<compile_context>
chip_gen: v6e
topology: v6e:2x2x1
jax: 0.10.0
libtpu: 0.0.40
codegen_flags: <defaults>
</compile_context>

<pallas_src>
import functools

import jax
import jax.numpy as jnp
from jax.experimental import pallas as pl
from jax.experimental.pallas import tpu as pltpu


# ------------------------------------------------------------------ chip-aware knobs

def _device_kind():
    try:
        return jax.devices()[0].device_kind.lower()
    except Exception:
        return ""


_KIND = _device_kind()
_IS_V7 = "v7" in _KIND
_IS_V56 = ("v5" in _KIND) or ("v6" in _KIND)

# v5e/v6e have 128 MiB VMEM -> larger scoped limit and tiles; v7x only 64 MiB physical.
_VMEM_LIMIT = (64 if _IS_V56 else 32) * 1024 * 1024
_TM_LINEAR = 256 if _IS_V7 else 1024
_TN_LINEAR = 512 if _IS_V7 else 2048
_TM_VSFD = 256 if _IS_V7 else 1024
# TODO(synk): switch the PVAM tanh / softmax exp to bf16 on v6e/v7x (bf16 VPU/EUP) once
# validated against the f32 reference; kept f32 here for portability (v5e has no bf16 EUP).


def _round_up(n, m):
    return ((n + m - 1) // m) * m


def _const_spec(shape):
    zeros = (0,) * len(shape)
    return pl.BlockSpec(shape, lambda *_, z=zeros: z)


def _pick_group(B, T, n_head, max_rows=512, max_unroll=64):
    """Largest divisor G of B so the fused layer works on G*T rows per grid step."""
    best = 1
    for g in range(1, B + 1):
        if B % g:
            continue
        rows = g * T
        if g > 1 and (rows > max_rows or g * n_head > max_unroll):
            continue
        if rows % 8 and g != B:       # keep the (8,128) block constraint satisfiable
            continue
        best = g
    return best


def _apply_act(x, act):
    if act == "relu":
        return jnp.maximum(x, 0.0)
    if act == "sigmoid":
        return jax.nn.sigmoid(x)
    if act == "tanh":
        return jnp.tanh(x)
    return x


# ------------------------------------------------------------------ generic linear kernels

def _linear_kernel(x_ref, w_ref, o_ref, *, act):
    acc = jnp.dot(x_ref[...].astype(jnp.bfloat16), w_ref[...],
                  preferred_element_type=jnp.float32)
    o_ref[...] = _apply_act(acc, act)


def _linear_bias_kernel(x_ref, w_ref, b_ref, o_ref, *, act):
    acc = jnp.dot(x_ref[...].astype(jnp.bfloat16), w_ref[...],
                  preferred_element_type=jnp.float32) + b_ref[...]
    o_ref[...] = _apply_act(acc, act)


def pallas_linear(x, wp, bp=None, n_out=None, act="none"):
    """x: (M, K) @ wp: (K, Np) pre-padded bf16 (+ optional bp (1, Np) f32) -> (M, n_out) f32.

    M tiled and Np tiled (both 'parallel'); bf16 MXU operands, f32 accumulation.
    """
    M, K = x.shape
    Np = wp.shape[1]
    tm = min(M, _TM_LINEAR)
    tn = min(Np, _TN_LINEAR)
    grid = (pl.cdiv(M, tm), pl.cdiv(Np, tn))

    if bp is None:
        kern = functools.partial(_linear_kernel, act=act)
        in_specs = [pl.BlockSpec((tm, K), lambda i, j: (i, 0)),
                    pl.BlockSpec((K, tn), lambda i, j: (0, j))]
        args = (x, wp)
    else:
        kern = functools.partial(_linear_bias_kernel, act=act)
        in_specs = [pl.BlockSpec((tm, K), lambda i, j: (i, 0)),
                    pl.BlockSpec((K, tn), lambda i, j: (0, j)),
                    pl.BlockSpec((1, tn), lambda i, j: (0, j))]
        args = (x, wp, bp)

    out = pl.pallas_call(
        kern,
        out_shape=jax.ShapeDtypeStruct((M, Np), jnp.float32),
        grid=grid,
        in_specs=in_specs,
        out_specs=pl.BlockSpec((tm, tn), lambda i, j: (i, j)),
        compiler_params=pltpu.CompilerParams(
            dimension_semantics=("parallel", "parallel"),
            vmem_limit_bytes=_VMEM_LIMIT),
    )(*args)
    if n_out is not None and n_out != Np:
        out = out[:, :n_out]
    return out


# ------------------------------------------------------------------ fused transformer layer

def _encoder_layer_kernel(x_ref, *refs, group, seq, n_head, d_key, scale, eps,
                          has_bias, final_ln):
    idx = 0
    bias_ref = None
    if has_bias:
        bias_ref = refs[idx]
        idx += 1
    (ln1g, ln1b, wqkv, wproj, ln2g, ln2b, fw1, fb1, fw2, fb2) = refs[idx:idx + 10]
    idx += 10
    if final_ln:
        lng, lnb = refs[idx:idx + 2]
        idx += 2
    o_ref = refs[idx]

    x = x_ref[...]                          # (group*seq, C) f32
    C = x.shape[-1]

    def _ln(v, g, b):
        mean = jnp.mean(v, axis=-1, keepdims=True)
        var = jnp.mean((v - mean) ** 2, axis=-1, keepdims=True)
        return (v - mean) * jax.lax.rsqrt(var + eps) * g[...] + b[...]

    # ---- pre-LN 1 + fused QKV projection (one big-M MXU matmul)
    y = _ln(x, ln1g, ln1b)
    qkv = jnp.dot(y.astype(jnp.bfloat16), wqkv[...],
                  preferred_element_type=jnp.float32)          # (rows, 3C)
    qkv_bf = qkv.astype(jnp.bfloat16)                          # single cast pass

    # ---- multi-head attention per batch element; one full-K output projection at the end
    ctx_rows = []
    for g in range(group):
        r0 = g * seq
        head_outs = []
        for h in range(n_head):
            lo = h * d_key
            q = qkv_bf[r0:r0 + seq, lo:lo + d_key]
            k = qkv_bf[r0:r0 + seq, C + lo:C + lo + d_key]
            v = qkv_bf[r0:r0 + seq, 2 * C + lo:2 * C + lo + d_key]
            s = jax.lax.dot_general(q, k, (((1,), (1,)), ((), ())),
                                    preferred_element_type=jnp.float32) * scale
            if has_bias:
                s = s + bias_ref[g, h]
            s = s - jnp.max(s, axis=-1, keepdims=True)
            e = jnp.exp(s)
            p = e / jnp.sum(e, axis=-1, keepdims=True)          # exact softmax (parity)
            head_outs.append(jnp.dot(p.astype(jnp.bfloat16), v,
                                     preferred_element_type=jnp.float32))   # (seq, dk)
        ctx_rows.append(jnp.concatenate(head_outs, axis=-1))    # (seq, C)
    ctx = ctx_rows[0] if group == 1 else jnp.concatenate(ctx_rows, axis=0)  # (rows, C)
    attn = jnp.dot(ctx.astype(jnp.bfloat16), wproj[...],
                   preferred_element_type=jnp.float32)          # ONE (rows,C)@(C,C)
    x = x + attn

    # ---- pre-LN 2 + FFN (relu) + residual
    y2 = _ln(x, ln2g, ln2b)
    h1 = jnp.dot(y2.astype(jnp.bfloat16), fw1[...],
                 preferred_element_type=jnp.float32) + fb1[...]
    h1 = jnp.maximum(h1, 0.0)
    f = jnp.dot(h1.astype(jnp.bfloat16), fw2[...],
                preferred_element_type=jnp.float32) + fb2[...]
    out = x + f

    if final_ln:                             # fused stack-final LayerNorm
        out = _ln(out, lng, lnb)
    o_ref[...] = out


def pallas_encoder_layer(x, bias, lp, final_ln, cfg):
    """One pre-LN transformer layer, fused, G batch elements per grid step."""
    B, T, C = x.shape
    H = cfg["num_heads"]
    dk = cfg["d_key"]
    has_bias = bias is not None
    G = _pick_group(B, T, H)
    M = B * T
    # pytorchocr self_attention.MultiHeadAttention scales scores by d_model**-0.5.
    scale = float(cfg["hidden_dims"]) ** -0.5

    kern = functools.partial(_encoder_layer_kernel, group=G, seq=T, n_head=H, d_key=dk,
                             scale=scale, eps=1e-5, has_bias=has_bias,
                             final_ln=final_ln is not None)

    in_specs = [pl.BlockSpec((G * T, C), lambda i: (i, 0))]
    args = [x.reshape(M, C)]
    if has_bias:
        in_specs.append(pl.BlockSpec((G, H, T, T), lambda i: (i, 0, 0, 0)))
        args.append(bias)

    weights = [lp["ln1_g"], lp["ln1_b"], lp["wqkv"], lp["wproj"],
               lp["ln2_g"], lp["ln2_b"], lp["ffn1_w"], lp["ffn1_b"],
               lp["ffn2_w"], lp["ffn2_b"]]
    if final_ln is not None:
        weights += [final_ln[0], final_ln[1]]
    for w in weights:
        in_specs.append(_const_spec(tuple(w.shape)))
        args.append(w)

    out = pl.pallas_call(
        kern,
        out_shape=jax.ShapeDtypeStruct((M, C), jnp.float32),
        grid=(B // G,),
        in_specs=in_specs,
        out_specs=pl.BlockSpec((G * T, C), lambda i: (i, 0)),
        compiler_params=pltpu.CompilerParams(
            dimension_semantics=("parallel",), vmem_limit_bytes=_VMEM_LIMIT),
    )(*args)
    return out.reshape(B, T, C)


def run_encoder(x, attn_bias, enc_p, cfg):
    """Pre-LN transformer stack ('n' preprocess / 'da' postprocess, dropout=0).

    The stack-final LayerNorm is fused into the last layer's kernel.
    """
    layers = enc_p["layers"]
    assert len(layers) >= 1
    bias = None if attn_bias is None else attn_bias.astype(jnp.float32)
    for idx, lp in enumerate(layers):
        fin = (enc_p["ln_g"], enc_p["ln_b"]) if idx == len(layers) - 1 else None
        x = pallas_encoder_layer(x, bias, lp, fin, cfg)
    return x


# ------------------------------------------------------------------ PVAM parallel attention
# Fuses fc0 (word-feature projection) + additive attention.  Tiles over L (static unroll):
# a bounded (t, C) tanh tile per step, with the C-reduction done on the MXU.

def _pvam_kernel(pos_ref, wfin_ref, fc0w_ref, fc0b_ref, w1_ref, o_ref, *, L):
    # fc0: word features (t, C) = enc_out @ W + b
    wf = jnp.dot(wfin_ref[0].astype(jnp.bfloat16), fc0w_ref[...],
                 preferred_element_type=jnp.float32) + fc0b_ref[...]        # (t, C) f32
    wf_bf = wf.astype(jnp.bfloat16)
    pos = pos_ref[0]                                                        # (L, C) f32
    w1 = w1_ref[...]                                                        # (8, C) bf16 (row 0)

    rows = []
    for l in range(L):
        y = jnp.tanh(pos[l:l + 1, :] + wf)                                  # (t, C) f32
        r = jax.lax.dot_general(w1, y.astype(jnp.bfloat16),
                                (((1,), (1,)), ((), ())),
                                preferred_element_type=jnp.float32)          # (8, t)
        rows.append(r[0:1, :])
    logits = rows[0] if L == 1 else jnp.concatenate(rows, axis=0)            # (L, t)
    logits = logits - jnp.max(logits, axis=-1, keepdims=True)
    e = jnp.exp(logits)
    p = e / jnp.sum(e, axis=-1, keepdims=True)                               # exact softmax
    o_ref[0] = jnp.dot(p.astype(jnp.bfloat16), wf_bf,
                       preferred_element_type=jnp.float32)                   # (L, C)


def pallas_pvam_attention(pos_feat, word_feat_enc, fc0_w, fc0_b, fc1_w8):
    """pos_feat: (B, L, C), word_feat_enc: (B, t, C) (pre-fc0) -> (B, L, C)."""
    B, L, C = pos_feat.shape
    t = word_feat_enc.shape[1]
    kern = functools.partial(_pvam_kernel, L=L)
    return pl.pallas_call(
        kern,
        out_shape=jax.ShapeDtypeStruct((B, L, C), jnp.float32),
        grid=(B,),
        in_specs=[pl.BlockSpec((1, L, C), lambda b: (b, 0, 0)),
                  pl.BlockSpec((1, t, C), lambda b: (b, 0, 0)),
                  pl.BlockSpec((C, C), lambda b: (0, 0)),
                  pl.BlockSpec((1, C), lambda b: (0, 0)),
                  pl.BlockSpec((8, C), lambda b: (0, 0))],
        out_specs=pl.BlockSpec((1, L, C), lambda b: (b, 0, 0)),
        compiler_params=pltpu.CompilerParams(
            dimension_semantics=("parallel",), vmem_limit_bytes=_VMEM_LIMIT),
    )(pos_feat, word_feat_enc, fc0_w, fc0_b, fc1_w8)


# ------------------------------------------------------------------ fused VSFD

def _vsfd_kernel(p_ref, g_ref, w0p_ref, w0g_ref, b0_ref, w1_ref, b1_ref, o_ref):
    pv = p_ref[...]
    gs = g_ref[...]
    z = (jnp.dot(pv.astype(jnp.bfloat16), w0p_ref[...], preferred_element_type=jnp.float32)
         + jnp.dot(gs.astype(jnp.bfloat16), w0g_ref[...], preferred_element_type=jnp.float32)
         + b0_ref[...])
    gate = jax.nn.sigmoid(z)
    comb = gate * pv + (1.0 - gate) * gs
    o_ref[...] = jnp.dot(comb.astype(jnp.bfloat16), w1_ref[...],
                         preferred_element_type=jnp.float32) + b1_ref[...]


def vsfd_forward(p, pvam_feature, gsrm_feature, cfg):
    B, T, C = pvam_feature.shape
    char_num = cfg["char_num"]
    M = B * T
    Np = p["w1p"].shape[1]
    pv = pvam_feature.reshape(M, C)
    gs = gsrm_feature.reshape(M, C)
    tm = min(M, _TM_VSFD)
    grid = (pl.cdiv(M, tm),)
    out = pl.pallas_call(
        _vsfd_kernel,
        out_shape=jax.ShapeDtypeStruct((M, Np), jnp.float32),
        grid=grid,
        in_specs=[pl.BlockSpec((tm, C), lambda i: (i, 0)),
                  pl.BlockSpec((tm, C), lambda i: (i, 0)),
                  pl.BlockSpec((C, C), lambda i: (0, 0)),
                  pl.BlockSpec((C, C), lambda i: (0, 0)),
                  pl.BlockSpec((1, C), lambda i: (0, 0)),
                  pl.BlockSpec((C, Np), lambda i: (0, 0)),
                  pl.BlockSpec((1, Np), lambda i: (0, 0))],
        out_specs=pl.BlockSpec((tm, Np), lambda i: (i, 0)),
        compiler_params=pltpu.CompilerParams(
            dimension_semantics=("parallel",), vmem_limit_bytes=_VMEM_LIMIT),
    )(pv, gs, p["w0p"], p["w0g"], p["b0"], p["w1p"], p["b1p"])
    return out[:, :char_num]


# ------------------------------------------------------------------ SRN sub-modules

def pvam_forward(p, inputs, encoder_word_pos, gsrm_word_pos, cfg):
    B, C, H, W = inputs.shape
    t = H * W
    d_model = cfg["hidden_dims"]
    conv_features = inputs.reshape(B, C, t).transpose(0, 2, 1)             # (B, t, C)

    # PrepareEncoder: features scaled by sqrt(d_model) + positional embedding.
    pos_enc = jnp.take(p["enc_pos_emb"], encoder_word_pos[..., 0], axis=0)
    enc_input = conv_features.astype(jnp.float32) * (float(d_model) ** 0.5) + pos_enc
    word_features = run_encoder(enc_input, None, p["encoder"], cfg)        # (B, t, C)

    word_pos_feature = jnp.take(p["emb_w"], gsrm_word_pos[..., 0], axis=0)  # (B, L, C)

    # fused: fc0 -> tanh(pos + wf) . fc1 -> softmax over t -> @ wf
    return pallas_pvam_attention(word_pos_feature, word_features,
                                 p["fc0_w"], p["fc0_b"], p["fc1_w8"])       # (B, L, C)


def wrap_encoder_forward(we_p, emb0, word, pos, attn_bias, cfg):
    """WrapEncoder: PrepareDecoder (shared emb0, scaled) + encoder stack."""
    d_model = cfg["hidden_dims"]
    w = word[..., 0]                                                        # (B, T) int
    word_emb = jnp.take(emb0, w, axis=0) * (float(d_model) ** 0.5)
    pos_emb = jnp.take(we_p["emb1"], pos[..., 0], axis=0)
    enc_input = word_emb + pos_emb
    return run_encoder(enc_input, attn_bias, we_p["encoder"], cfg)


def gsrm_forward(p, pvam_feature, gsrm_word_pos, bias1, bias2, cfg):
    B, T, C = pvam_feature.shape
    char_num = cfg["char_num"]
    d_model = cfg["hidden_dims"]

    # fc0 -> raw logits (reference returns word_out pre-softmax)
    word_out = pallas_linear(pvam_feature.reshape(-1, C), p["fc0_wp"], p["fc0_bp"],
                             n_out=char_num)
    # argmax(softmax(x)) == argmax(x)  (index selection is glue)
    word_ids = jnp.argmax(word_out, axis=-1).astype(jnp.int32).reshape(B, T, 1)

    pad_idx = char_num
    word1 = jnp.concatenate(
        [jnp.full((B, 1, 1), pad_idx, dtype=word_ids.dtype), word_ids], axis=1)[:, :-1, :]
    word2 = word_ids

    f1 = wrap_encoder_forward(p["we0"], p["emb0"], word1, gsrm_word_pos, bias1, cfg)
    f2 = wrap_encoder_forward(p["we1"], p["emb0"], word2, gsrm_word_pos, bias2, cfg)
    f2 = jnp.concatenate([f2[:, 1:, :], jnp.zeros((B, 1, d_model), jnp.float32)], axis=1)

    gsrm_features = f1 + f2                                                 # (B, T, d_model)
    gsrm_out = pallas_linear(gsrm_features.reshape(-1, d_model), p["emb0_tp"],
                             n_out=char_num + 1)
    return gsrm_features, word_out, gsrm_out


def srn_head_forward(params, inputs, others, *, cfg, training=False):
    encoder_word_pos = others[0].astype(jnp.int32)
    gsrm_word_pos = others[1].astype(jnp.int32)
    gsrm_slf_attn_bias1 = others[2]
    gsrm_slf_attn_bias2 = others[3]

    pvam_feature = pvam_forward(params["pvam"], inputs, encoder_word_pos,
                                gsrm_word_pos, cfg)
    gsrm_feature, word_out, gsrm_out = gsrm_forward(
        params["gsrm"], pvam_feature, gsrm_word_pos,
        gsrm_slf_attn_bias1, gsrm_slf_attn_bias2, cfg)
    final_out = vsfd_forward(params["vsfd"], pvam_feature, gsrm_feature, cfg)

    if not training:
        final_out = jax.nn.softmax(final_out, axis=1)
    decoded_out = jnp.argmax(final_out, axis=1).astype(jnp.int32).reshape(-1, 1)

    return {"predict": final_out,
            "pvam_feature": pvam_feature,
            "decoded_out": decoded_out,
            "word_out": word_out,
            "gsrm_out": gsrm_out}


# ------------------------------------------------------------------ deterministic init

def init_srn_params(key, in_channels, char_num, max_text_length, num_heads,
                    num_encoder_tus, num_decoder_tus, hidden_dims):
    assert in_channels == hidden_dims, "SRN assumes in_channels == hidden_dims (512 in paper)"
    d_model = hidden_dims
    d_key = hidden_dims // num_heads
    d_value = d_key
    d_inner = hidden_dims

    kit = iter(jax.random.split(key, 256))

    def nrm(shape, scale=0.02):
        return jax.random.normal(next(kit), shape, jnp.float32) * scale

    def enc_layer():
        return dict(
            ln1_g=jnp.ones((d_model,), jnp.float32), ln1_b=jnp.zeros((d_model,), jnp.float32),
            wq=nrm((d_model, num_heads * d_key)), wk=nrm((d_model, num_heads * d_key)),
            wv=nrm((d_model, num_heads * d_value)), wproj=nrm((num_heads * d_value, d_model)),
            ln2_g=jnp.ones((d_model,), jnp.float32), ln2_b=jnp.zeros((d_model,), jnp.float32),
            ffn1_w=nrm((d_model, d_inner)), ffn1_b=jnp.zeros((d_inner,), jnp.float32),
            ffn2_w=nrm((d_inner, d_model)), ffn2_b=jnp.zeros((d_model,), jnp.float32))

    def encoder(n_layer):
        return dict(layers=[enc_layer() for _ in range(n_layer)],
                    ln_g=jnp.ones((d_model,), jnp.float32),
                    ln_b=jnp.zeros((d_model,), jnp.float32))

    emb0 = nrm((char_num + 1, d_model)).at[0].set(0.0)   # padding_idx = 0 (bos_idx)

    params = dict(
        pvam=dict(
            enc_pos_emb=nrm((256, d_model)),             # PrepareEncoder: src_max_len = 256
            encoder=encoder(num_encoder_tus),
            fc0_w=nrm((in_channels, in_channels)), fc0_b=jnp.zeros((in_channels,), jnp.float32),
            emb_w=nrm((max_text_length, in_channels)),
            fc1_w=nrm((1, in_channels)),                 # torch Linear(C, 1, bias=False).weight
        ),
        gsrm=dict(
            fc0_w=nrm((in_channels, char_num)), fc0_b=jnp.zeros((char_num,), jnp.float32),
            emb0=emb0,                                   # shared by wrap_encoder0 / wrap_encoder1
            we0=dict(emb1=nrm((max_text_length, d_model)), encoder=encoder(num_decoder_tus)),
            we1=dict(emb1=nrm((max_text_length, d_model)), encoder=encoder(num_decoder_tus)),
        ),
        vsfd=dict(
            fc0_w=nrm((2 * in_channels, in_channels)), fc0_b=jnp.zeros((in_channels,), jnp.float32),
            fc1_w=nrm((in_channels, char_num)), fc1_b=jnp.zeros((char_num,), jnp.float32),
        ),
    )
    cfg = dict(in_channels=in_channels, char_num=char_num, max_text_length=max_text_length,
               num_heads=num_heads, hidden_dims=hidden_dims, d_key=d_key, d_value=d_value)
    return params, cfg


def prepare_params(params, cfg):
    """One-time weight prep (outside jit): fused QKV, bf16 MXU weights, lane-padded classifier
    weights, pre-transposed emb0, split VSFD fc0, (8,C) packed PVAM fc1 weight."""
    C = cfg["in_channels"]
    char_num = cfg["char_num"]

    def as_row(v):
        return v.astype(jnp.float32).reshape(1, -1)

    def prep_layer(lp):
        return dict(
            ln1_g=as_row(lp["ln1_g"]), ln1_b=as_row(lp["ln1_b"]),
            wqkv=jnp.concatenate([lp["wq"], lp["wk"], lp["wv"]], axis=1).astype(jnp.bfloat16),
            wproj=lp["wproj"].astype(jnp.bfloat16),
            ln2_g=as_row(lp["ln2_g"]), ln2_b=as_row(lp["ln2_b"]),
            ffn1_w=lp["ffn1_w"].astype(jnp.bfloat16), ffn1_b=as_row(lp["ffn1_b"]),
            ffn2_w=lp["ffn2_w"].astype(jnp.bfloat16), ffn2_b=as_row(lp["ffn2_b"]))

    def prep_encoder(e):
        return dict(layers=[prep_layer(l) for l in e["layers"]],
                    ln_g=as_row(e["ln_g"]), ln_b=as_row(e["ln_b"]))

    def pad_w(w):
        w = w.astype(jnp.bfloat16)
        n = w.shape[1]
        npad = _round_up(n, 128) - n
        return jnp.pad(w, ((0, 0), (0, npad))) if npad else w

    def pad_b(b, Np):
        b = b.astype(jnp.float32).reshape(1, -1)
        npad = Np - b.shape[1]
        return jnp.pad(b, ((0, 0), (0, npad))) if npad else b

    emb0 = params["gsrm"]["emb0"]
    g_fc0_wp = pad_w(params["gsrm"]["fc0_w"])
    g_fc0_bp = pad_b(params["gsrm"]["fc0_b"], g_fc0_wp.shape[1])
    emb0_tp = pad_w(emb0.T)

    # PVAM fc1 weight packed as an (8, C) bf16 MXU operand (row 0 = real weight).
    fc1_w8 = jnp.zeros((8, C), jnp.bfloat16).at[0, :].set(
        params["pvam"]["fc1_w"].reshape(-1).astype(jnp.bfloat16))

    Npv = _round_up(char_num, 128)
    w1p = jnp.pad(params["vsfd"]["fc1_w"].astype(jnp.bfloat16),
                  ((0, 0), (0, Npv - char_num)))
    b1p = pad_b(params["vsfd"]["fc1_b"], Npv)

    return dict(
        pvam=dict(enc_pos_emb=params["pvam"]["enc_pos_emb"],
                  encoder=prep_encoder(params["pvam"]["encoder"]),
                  fc0_w=params["pvam"]["fc0_w"].astype(jnp.bfloat16),
                  fc0_b=as_row(params["pvam"]["fc0_b"]),
                  emb_w=params["pvam"]["emb_w"],
                  fc1_w8=fc1_w8),
        gsrm=dict(fc0_wp=g_fc0_wp, fc0_bp=g_fc0_bp,
                  emb0=emb0, emb0_tp=emb0_tp,
                  we0=dict(emb1=params["gsrm"]["we0"]["emb1"],
                           encoder=prep_encoder(params["gsrm"]["we0"]["encoder"])),
                  we1=dict(emb1=params["gsrm"]["we1"]["emb1"],
                           encoder=prep_encoder(params["gsrm"]["we1"]["encoder"]))),
        vsfd=dict(w0p=params["vsfd"]["fc0_w"][:C, :].astype(jnp.bfloat16),
                  w0g=params["vsfd"]["fc0_w"][C:, :].astype(jnp.bfloat16),
                  b0=as_row(params["vsfd"]["fc0_b"]),
                  w1p=w1p, b1p=b1p),
    )


# ------------------------------------------------------------------ main

if __name__ == "__main__":
    B = 2
    in_channels = 64
    hidden_dims = 64
    char_num = 38            # out_channels
    max_text_length = 8
    num_heads = 4
    num_encoder_TUs = 1
    num_decoder_TUs = 1
    H, W = 4, 8              # t = H*W = 32 visual tokens

    key = jax.random.PRNGKey(0)
    kp, kx = jax.random.split(key)
    params, cfg = init_srn_params(kp, in_channels, char_num, max_text_length,
                                  num_heads, num_encoder_TUs, num_decoder_TUs, hidden_dims)
    prepped = prepare_params(params, cfg)

    inputs = jax.random.normal(kx, (B, in_channels, H, W), jnp.float32)   # NCHW like PyTorch

    t = H * W
    L = max_text_length
    encoder_word_pos = jnp.tile(jnp.arange(t, dtype=jnp.int32).reshape(1, t, 1), (B, 1, 1))
    gsrm_word_pos = jnp.tile(jnp.arange(L, dtype=jnp.int32).reshape(1, L, 1), (B, 1, 1))
    mask1 = jnp.triu(jnp.ones((L, L), jnp.float32), k=1) * (-1e9)   # forward (mask future)
    mask2 = jnp.tril(jnp.ones((L, L), jnp.float32), k=-1) * (-1e9)  # backward (mask past)
    gsrm_slf_attn_bias1 = jnp.broadcast_to(mask1, (B, num_heads, L, L)).astype(jnp.float32)
    gsrm_slf_attn_bias2 = jnp.broadcast_to(mask2, (B, num_heads, L, L)).astype(jnp.float32)

    others = (encoder_word_pos, gsrm_word_pos, gsrm_slf_attn_bias1, gsrm_slf_attn_bias2)

    fwd = jax.jit(functools.partial(srn_head_forward, cfg=cfg, training=False))
    outs = fwd(prepped, inputs, others)
    outs = jax.block_until_ready(outs)

    assert outs["predict"].shape == (B * L, char_num)
    assert outs["pvam_feature"].shape == (B, L, in_channels)
    assert outs["decoded_out"].shape == (B * L, 1)
    assert outs["word_out"].shape == (B * L, char_num)
    assert outs["gsrm_out"].shape == (B * L, char_num + 1)
    assert bool(jnp.all(jnp.isfinite(outs["predict"])))

    print("KERNEL_OK")
</pallas_src>

<mosaic_0001>
module attributes {stable_mosaic.version = 11 : i64} {
  func.func @_pvam_kernel(%arg0: i32, %arg1: memref<1x8x64xf32, #tpu.memory_space<vmem>>, %arg2: memref<1x32x64xf32, #tpu.memory_space<vmem>>, %arg3: memref<64x64xbf16, #tpu.memory_space<vmem>>, %arg4: memref<1x64xf32, #tpu.memory_space<vmem>>, %arg5: memref<8x64xbf16, #tpu.memory_space<vmem>>, %arg6: memref<1x8x64xf32, #tpu.memory_space<vmem>>) attributes {dimension_semantics = [#tpu.dimension_semantics<parallel>], iteration_bounds = array<i64: 2>, scalar_prefetch = 0 : i64, scratch_operands = 0 : i64, tpu.core_type = #tpu.core_type<tc>, window_params = [{transform_indices = @transform_0, window_bounds = array<i64: 1, 8, 64>}, {transform_indices = @transform_1, window_bounds = array<i64: 1, 32, 64>}, {pipeline_mode = #tpu.pipeline_mode<synchronous>, transform_indices = @transform_2, window_bounds = array<i64: 64, 64>}, {pipeline_mode = #tpu.pipeline_mode<synchronous>, transform_indices = @transform_3, window_bounds = array<i64: 1, 64>}, {pipeline_mode = #tpu.pipeline_mode<synchronous>, transform_indices = @transform_4, window_bounds = array<i64: 8, 64>}, {transform_indices = @transform_5, window_bounds = array<i64: 1, 8, 64>}]} {
    %c0 = arith.constant 0 : index
    %c0_0 = arith.constant 0 : index
    %c0_1 = arith.constant 0 : index
    %0 = vector.load %arg2[%c0, %c0_0, %c0_1] : memref<1x32x64xf32, #tpu.memory_space<vmem>>, vector<1x32x64xf32>
    %1 = vector.shape_cast %0 : vector<1x32x64xf32> to vector<32x64xf32>
    %2 = arith.truncf %1 : vector<32x64xf32> to vector<32x64xbf16>
    %c0_2 = arith.constant 0 : index
    %c0_3 = arith.constant 0 : index
    %3 = vector.load %arg3[%c0_2, %c0_3] : memref<64x64xbf16, #tpu.memory_space<vmem>>, vector<64x64xbf16>
    %cst = arith.constant dense<0.000000e+00> : vector<32x64xf32>
    %4 = tpu.matmul %2, %3, %cst {dimension_numbers = #tpu.dot_dimension_numbers<[1], [0], [0], [1], [0, 0, 1, 1], [], []>} : vector<32x64xbf16>, vector<64x64xbf16>, vector<32x64xf32> -> vector<32x64xf32>
    %c0_4 = arith.constant 0 : index
    %c0_5 = arith.constant 0 : index
    %5 = vector.load %arg4[%c0_4, %c0_5] : memref<1x64xf32, #tpu.memory_space<vmem>>, vector<1x64xf32>
    %6 = vector.broadcast %5 : vector<1x64xf32> to vector<32x64xf32>
    %7 = arith.addf %4, %6 : vector<32x64xf32>
    %8 = arith.truncf %7 : vector<32x64xf32> to vector<32x64xbf16>
    %c0_6 = arith.constant 0 : index
    %c0_7 = arith.constant 0 : index
    %c0_8 = arith.constant 0 : index
    %9 = vector.load %arg1[%c0_6, %c0_7, %c0_8] : memref<1x8x64xf32, #tpu.memory_space<vmem>>, vector<1x8x64xf32>
    %10 = vector.shape_cast %9 : vector<1x8x64xf32> to vector<8x64xf32>
    %c0_9 = arith.constant 0 : index
    %c0_10 = arith.constant 0 : index
    %11 = vector.load %arg5[%c0_9, %c0_10] : memref<8x64xbf16, #tpu.memory_space<vmem>>, vector<8x64xbf16>
    %12 = vector.extract_strided_slice %10 {offsets = [0, 0], sizes = [1, 64], strides = [1, 1]} : vector<8x64xf32> to vector<1x64xf32>
    %13 = vector.broadcast %12 : vector<1x64xf32> to vector<32x64xf32>
    %14 = arith.addf %13, %7 : vector<32x64xf32>
    %15 = math.tanh %14 : vector<32x64xf32>
    %16 = arith.truncf %15 : vector<32x64xf32> to vector<32x64xbf16>
    %cst_11 = arith.constant dense<0.000000e+00> : vector<8x32xf32>
    %17 = tpu.matmul %11, %16, %cst_11 {dimension_numbers = #tpu.dot_dimension_numbers<[1], [1], [0], [0], [0, 0, 1, 0], [], []>} : vector<8x64xbf16>, vector<32x64xbf16>, vector<8x32xf32> -> vector<8x32xf32>
    %18 = vector.extract_strided_slice %17 {offsets = [0, 0], sizes = [1, 32], strides = [1, 1]} : vector<8x32xf32> to vector<1x32xf32>
    %19 = vector.extract_strided_slice %10 {offsets = [1, 0], sizes = [1, 64], strides = [1, 1]} : vector<8x64xf32> to vector<1x64xf32>
    %20 = vector.broadcast %19 : vector<1x64xf32> to vector<32x64xf32>
    %21 = arith.addf %20, %7 : vector<32x64xf32>
    %22 = math.tanh %21 : vector<32x64xf32>
    %23 = arith.truncf %22 : vector<32x64xf32> to vector<32x64xbf16>
    %cst_12 = arith.constant dense<0.000000e+00> : vector<8x32xf32>
    %24 = tpu.matmul %11, %23, %cst_12 {dimension_numbers = #tpu.dot_dimension_numbers<[1], [1], [0], [0], [0, 0, 1, 0], [], []>} : vector<8x64xbf16>, vector<32x64xbf16>, vector<8x32xf32> -> vector<8x32xf32>
    %25 = vector.extract_strided_slice %24 {offsets = [0, 0], sizes = [1, 32], strides = [1, 1]} : vector<8x32xf32> to vector<1x32xf32>
    %26 = vector.extract_strided_slice %10 {offsets = [2, 0], sizes = [1, 64], strides = [1, 1]} : vector<8x64xf32> to vector<1x64xf32>
    %27 = vector.broadcast %26 : vector<1x64xf32> to vector<32x64xf32>
    %28 = arith.addf %27, %7 : vector<32x64xf32>
    %29 = math.tanh %28 : vector<32x64xf32>
    %30 = arith.truncf %29 : vector<32x64xf32> to vector<32x64xbf16>
    %cst_13 = arith.constant dense<0.000000e+00> : vector<8x32xf32>
    %31 = tpu.matmul %11, %30, %cst_13 {dimension_numbers = #tpu.dot_dimension_numbers<[1], [1], [0], [0], [0, 0, 1, 0], [], []>} : vector<8x64xbf16>, vector<32x64xbf16>, vector<8x32xf32> -> vector<8x32xf32>
    %32 = vector.extract_strided_slice %31 {offsets = [0, 0], sizes = [1, 32], strides = [1, 1]} : vector<8x32xf32> to vector<1x32xf32>
    %33 = vector.extract_strided_slice %10 {offsets = [3, 0], sizes = [1, 64], strides = [1, 1]} : vector<8x64xf32> to vector<1x64xf32>
    %34 = vector.broadcast %33 : vector<1x64xf32> to vector<32x64xf32>
    %35 = arith.addf %34, %7 : vector<32x64xf32>
    %36 = math.tanh %35 : vector<32x64xf32>
    %37 = arith.truncf %36 : vector<32x64xf32> to vector<32x64xbf16>
    %cst_14 = arith.constant dense<0.000000e+00> : vector<8x32xf32>
    %38 = tpu.matmul %11, %37, %cst_14 {dimension_numbers = #tpu.dot_dimension_numbers<[1], [1], [0], [0], [0, 0, 1, 0], [], []>} : vector<8x64xbf16>, vector<32x64xbf16>, vector<8x32xf32> -> vector<8x32xf32>
    %39 = vector.extract_strided_slice %38 {offsets = [0, 0], sizes = [1, 32], strides = [1, 1]} : vector<8x32xf32> to vector<1x32xf32>
    %40 = vector.extract_strided_slice %10 {offsets = [4, 0], sizes = [1, 64], strides = [1, 1]} : vector<8x64xf32> to vector<1x64xf32>
    %41 = vector.broadcast %40 : vector<1x64xf32> to vector<32x64xf32>
    %42 = arith.addf %41, %7 : vector<32x64xf32>
    %43 = math.tanh %42 : vector<32x64xf32>
    %44 = arith.truncf %43 : vector<32x64xf32> to vector<32x64xbf16>
    %cst_15 = arith.constant dense<0.000000e+00> : vector<8x32xf32>
    %45 = tpu.matmul %11, %44, %cst_15 {dimension_numbers = #tpu.dot_dimension_numbers<[1], [1], [0], [0], [0, 0, 1, 0], [], []>} : vector<8x64xbf16>, vector<32x64xbf16>, vector<8x32xf32> -> vector<8x32xf32>
    %46 = vector.extract_strided_slice %45 {offsets = [0, 0], sizes = [1, 32], strides = [1, 1]} : vector<8x32xf32> to vector<1x32xf32>
    %47 = vector.extract_strided_slice %10 {offsets = [5, 0], sizes = [1, 64], strides = [1, 1]} : vector<8x64xf32> to vector<1x64xf32>
    %48 = vector.broadcast %47 : vector<1x64xf32> to vector<32x64xf32>
    %49 = arith.addf %48, %7 : vector<32x64xf32>
    %50 = math.tanh %49 : vector<32x64xf32>
    %51 = arith.truncf %50 : vector<32x64xf32> to vector<32x64xbf16>
    %cst_16 = arith.constant dense<0.000000e+00> : vector<8x32xf32>
    %52 = tpu.matmul %11, %51, %cst_16 {dimension_numbers = #tpu.dot_dimension_numbers<[1], [1], [0], [0], [0, 0, 1, 0], [], []>} : vector<8x64xbf16>, vector<32x64xbf16>, vector<8x32xf32> -> vector<8x32xf32>
    %53 = vector.extract_strided_slice %52 {offsets = [0, 0], sizes = [1, 32], strides = [1, 1]} : vector<8x32xf32> to vector<1x32xf32>
    %54 = vector.extract_strided_slice %10 {offsets = [6, 0], sizes = [1, 64], strides = [1, 1]} : vector<8x64xf32> to vector<1x64xf32>
    %55 = vector.broadcast %54 : vector<1x64xf32> to vector<32x64xf32>
    %56 = arith.addf %55, %7 : vector<32x64xf32>
    %57 = math.tanh %56 : vector<32x64xf32>
    %58 = arith.truncf %57 : vector<32x64xf32> to vector<32x64xbf16>
    %cst_17 = arith.constant dense<0.000000e+00> : vector<8x32xf32>
    %59 = tpu.matmul %11, %58, %cst_17 {dimension_numbers = #tpu.dot_dimension_numbers<[1], [1], [0], [0], [0, 0, 1, 0], [], []>} : vector<8x64xbf16>, vector<32x64xbf16>, vector<8x32xf32> -> vector<8x32xf32>
    %60 = vector.extract_strided_slice %59 {offsets = [0, 0], sizes = [1, 32], strides = [1, 1]} : vector<8x32xf32> to vector<1x32xf32>
    %61 = vector.extract_strided_slice %10 {offsets = [7, 0], sizes = [1, 64], strides = [1, 1]} : vector<8x64xf32> to vector<1x64xf32>
    %62 = vector.broadcast %61 : vector<1x64xf32> to vector<32x64xf32>
    %63 = arith.addf %62, %7 : vector<32x64xf32>
    %64 = math.tanh %63 : vector<32x64xf32>
    %65 = arith.truncf %64 : vector<32x64xf32> to vector<32x64xbf16>
    %cst_18 = arith.constant dense<0.000000e+00> : vector<8x32xf32>
    %66 = tpu.matmul %11, %65, %cst_18 {dimension_numbers = #tpu.dot_dimension_numbers<[1], [1], [0], [0], [0, 0, 1, 0], [], []>} : vector<8x64xbf16>, vector<32x64xbf16>, vector<8x32xf32> -> vector<8x32xf32>
    %67 = vector.extract_strided_slice %66 {offsets = [0, 0], sizes = [1, 32], strides = [1, 1]} : vector<8x32xf32> to vector<1x32xf32>
    %68 = tpu.concatenate %18, %25, %32, %39, %46, %53, %60, %67 in 0 : vector<1x32xf32>, vector<1x32xf32>, vector<1x32xf32>, vector<1x32xf32>, vector<1x32xf32>, vector<1x32xf32>, vector<1x32xf32>, vector<1x32xf32> -> vector<8x32xf32>
    %cst_19 = arith.constant dense<0xFF800000> : vector<8xf32>
    %69 = vector.multi_reduction <maximumf>, %68, %cst_19 [1] : vector<8x32xf32> to vector<8xf32>
    %70 = vector.shape_cast %69 : vector<8xf32> to vector<8x1xf32>
    %71 = vector.broadcast %70 : vector<8x1xf32> to vector<8x32xf32>
    %72 = arith.subf %68, %71 : vector<8x32xf32>
    %73 = math.exp %72 : vector<8x32xf32>
    %cst_20 = arith.constant dense<0.000000e+00> : vector<8xf32>
    %74 = vector.multi_reduction <add>, %73, %cst_20 [1] : vector<8x32xf32> to vector<8xf32>
    %75 = vector.shape_cast %74 : vector<8xf32> to vector<8x1xf32>
    %76 = vector.broadcast %75 : vector<8x1xf32> to vector<8x32xf32>
    %77 = arith.divf %73, %76 : vector<8x32xf32>
    %78 = arith.truncf %77 : vector<8x32xf32> to vector<8x32xbf16>
    %cst_21 = arith.constant dense<0.000000e+00> : vector<8x64xf32>
    %79 = tpu.matmul %78, %8, %cst_21 {dimension_numbers = #tpu.dot_dimension_numbers<[1], [0], [0], [1], [0, 0, 1, 1], [], []>} : vector<8x32xbf16>, vector<32x64xbf16>, vector<8x64xf32> -> vector<8x64xf32>
    %c0_22 = arith.constant 0 : index
    %c0_23 = arith.constant 0 : index
    %c0_24 = arith.constant 0 : index
    %80 = vector.load %arg6[%c0_22, %c0_23, %c0_24] : memref<1x8x64xf32, #tpu.memory_space<vmem>>, vector<1x8x64xf32>
    %81 = vector.shape_cast %80 : vector<1x8x64xf32> to vector<8x64xf32>
    %82 = vector.shape_cast %79 : vector<8x64xf32> to vector<1x8x64xf32>
    tpu.vector_store %arg6[%c0_22, %c0_23, %c0_24], %82 {strides = array<i32>} : memref<1x8x64xf32, #tpu.memory_space<vmem>>, vector<1x8x64xf32>,
    return
  }
  func.func @transform_0(%arg0: i32) -> (i32, i32, i32) {
    %c0_i32 = arith.constant 0 : i32
    %c0_i32_0 = arith.constant 0 : i32
    %c0_i32_1 = arith.constant 0 : i32
    return %arg0, %c0_i32, %c0_i32_0 : i32, i32, i32
  }
  func.func @transform_1(%arg0: i32) -> (i32, i32, i32) {
    %c0_i32 = arith.constant 0 : i32
    %c0_i32_0 = arith.constant 0 : i32
    %c0_i32_1 = arith.constant 0 : i32
    return %arg0, %c0_i32, %c0_i32_0 : i32, i32, i32
  }
  func.func @transform_2(%arg0: i32) -> (i32, i32) {
    %c0_i32 = arith.constant 0 : i32
    %c0_i32_0 = arith.constant 0 : i32
    %c0_i32_1 = arith.constant 0 : i32
    return %c0_i32, %c0_i32_0 : i32, i32
  }
  func.func @transform_3(%arg0: i32) -> (i32, i32) {
    %c0_i32 = arith.constant 0 : i32
    %c0_i32_0 = arith.constant 0 : i32
    %c0_i32_1 = arith.constant 0 : i32
    return %c0_i32, %c0_i32_0 : i32, i32
  }
  func.func @transform_4(%arg0: i32) -> (i32, i32) {
    %c0_i32 = arith.constant 0 : i32
    %c0_i32_0 = arith.constant 0 : i32
    %c0_i32_1 = arith.constant 0 : i32
    return %c0_i32, %c0_i32_0 : i32, i32
  }
  func.func @transform_5(%arg0: i32) -> (i32, i32, i32) {
    %c0_i32 = arith.constant 0 : i32
    %c0_i32_0 = arith.constant 0 : i32
    %c0_i32_1 = arith.constant 0 : i32
    return %arg0, %c0_i32, %c0_i32_0 : i32, i32, i32
  }
}

module attributes {stable_mosaic.version = 11 : i64} {
  func.func @_encoder_layer_kernel(%arg0: i32, %arg1: memref<64x64xf32, #tpu.memory_space<vmem>>, %arg2: memref<1x64xf32, #tpu.memory_space<vmem>>, %arg3: memref<1x64xf32, #tpu.memory_space<vmem>>, %arg4: memref<64x192xbf16, #tpu.memory_space<vmem>>, %arg5: memref<64x64xbf16, #tpu.memory_space<vmem>>, %arg6: memref<1x64xf32, #tpu.memory_space<vmem>>, %arg7: memref<1x64xf32, #tpu.memory_space<vmem>>, %arg8: memref<64x64xbf16, #tpu.memory_space<vmem>>, %arg9: memref<1x64xf32, #tpu.memory_space<vmem>>, %arg10: memref<64x64xbf16, #tpu.memory_space<vmem>>, %arg11: memref<1x64xf32, #tpu.memory_space<vmem>>, %arg12: memref<1x64xf32, #tpu.memory_space<vmem>>, %arg13: memref<1x64xf32, #tpu.memory_space<vmem>>, %arg14: memref<64x64xf32, #tpu.memory_space<vmem>>) attributes {dimension_semantics = [#tpu.dimension_semantics<parallel>], iteration_bounds = array<i64: 1>, scalar_prefetch = 0 : i64, scratch_operands = 0 : i64, tpu.core_type = #tpu.core_type<tc>, window_params = [{transform_indices = @transform_0, window_bounds = array<i64: 64, 64>}, {pipeline_mode = #tpu.pipeline_mode<synchronous>, transform_indices = @transform_1, window_bounds = array<i64: 1, 64>}, {pipeline_mode = #tpu.pipeline_mode<synchronous>, transform_indices = @transform_2, window_bounds = array<i64: 1, 64>}, {pipeline_mode = #tpu.pipeline_mode<synchronous>, transform_indices = @transform_3, window_bounds = array<i64: 64, 192>}, {pipeline_mode = #tpu.pipeline_mode<synchronous>, transform_indices = @transform_4, window_bounds = array<i64: 64, 64>}, {pipeline_mode = #tpu.pipeline_mode<synchronous>, transform_indices = @transform_5, window_bounds = array<i64: 1, 64>}, {pipeline_mode = #tpu.pipeline_mode<synchronous>, transform_indices = @transform_6, window_bounds = array<i64: 1, 64>}, {pipeline_mode = #tpu.pipeline_mode<synchronous>, transform_indices = @transform_7, window_bounds = array<i64: 64, 64>}, {pipeline_mode = #tpu.pipeline_mode<synchronous>, transform_indices = @transform_8, window_bounds = array<i64: 1, 64>}, {pipeline_mode = #tpu.pipeline_mode<synchronous>, transform_indices = @transform_9, window_bounds = array<i64: 64, 64>}, {pipeline_mode = #tpu.pipeline_mode<synchronous>, transform_indices = @transform_10, window_bounds = array<i64: 1, 64>}, {pipeline_mode = #tpu.pipeline_mode<synchronous>, transform_indices = @transform_11, window_bounds = array<i64: 1, 64>}, {pipeline_mode = #tpu.pipeline_mode<synchronous>, transform_indices = @transform_12, window_bounds = array<i64: 1, 64>}, {transform_indices = @transform_13, window_bounds = array<i64: 64, 64>}]} {
    %c0 = arith.constant 0 : index
    %c0_0 = arith.constant 0 : index
    %0 = vector.load %arg1[%c0, %c0_0] : memref<64x64xf32, #tpu.memory_space<vmem>>, vector<64x64xf32>
    %cst = arith.constant dense<0.000000e+00> : vector<64xf32>
    %1 = vector.multi_reduction <add>, %0, %cst [1] : vector<64x64xf32> to vector<64xf32>
    %2 = vector.shape_cast %1 : vector<64xf32> to vector<64x1xf32>
    %cst_1 = arith.constant 6.400000e+01 : f32
    %3 = vector.broadcast %cst_1 : f32 to vector<64x1xf32>
    %4 = arith.divf %2, %3 : vector<64x1xf32>
    %5 = vector.broadcast %4 : vector<64x1xf32> to vector<64x64xf32>
    %6 = arith.subf %0, %5 : vector<64x64xf32>
    %7 = arith.mulf %6, %6 : vector<64x64xf32>
    %cst_2 = arith.constant dense<0.000000e+00> : vector<64xf32>
    %8 = vector.multi_reduction <add>, %7, %cst_2 [1] : vector<64x64xf32> to vector<64xf32>
    %9 = vector.shape_cast %8 : vector<64xf32> to vector<64x1xf32>
    %cst_3 = arith.constant 6.400000e+01 : f32
    %10 = vector.broadcast %cst_3 : f32 to vector<64x1xf32>
    %11 = arith.divf %9, %10 : vector<64x1xf32>
    %12 = vector.broadcast %4 : vector<64x1xf32> to vector<64x64xf32>
    %13 = arith.subf %0, %12 : vector<64x64xf32>
    %cst_4 = arith.constant 9.99999974E-6 : f32
    %14 = vector.broadcast %cst_4 : f32 to vector<64x1xf32>
    %15 = arith.addf %11, %14 : vector<64x1xf32>
    %16 = math.rsqrt %15 : vector<64x1xf32>
    %17 = vector.broadcast %16 : vector<64x1xf32> to vector<64x64xf32>
    %18 = arith.mulf %13, %17 : vector<64x64xf32>
    %c0_5 = arith.constant 0 : index
    %c0_6 = arith.constant 0 : index
    %19 = vector.load %arg2[%c0_5, %c0_6] : memref<1x64xf32, #tpu.memory_space<vmem>>, vector<1x64xf32>
    %20 = vector.broadcast %19 : vector<1x64xf32> to vector<64x64xf32>
    %21 = arith.mulf %18, %20 : vector<64x64xf32>
    %c0_7 = arith.constant 0 : index
    %c0_8 = arith.constant 0 : index
    %22 = vector.load %arg3[%c0_7, %c0_8] : memref<1x64xf32, #tpu.memory_space<vmem>>, vector<1x64xf32>
    %23 = vector.broadcast %22 : vector<1x64xf32> to vector<64x64xf32>
    %24 = arith.addf %21, %23 : vector<64x64xf32>
    %25 = arith.truncf %24 : vector<64x64xf32> to vector<64x64xbf16>
    %c0_9 = arith.constant 0 : index
    %c0_10 = arith.constant 0 : index
    %26 = vector.load %arg4[%c0_9, %c0_10] : memref<64x192xbf16, #tpu.memory_space<vmem>>, vector<64x192xbf16>
    %cst_11 = arith.constant dense<0.000000e+00> : vector<64x192xf32>
    %27 = tpu.matmul %25, %26, %cst_11 {dimension_numbers = #tpu.dot_dimension_numbers<[1], [0], [0], [1], [0, 0, 1, 1], [], []>} : vector<64x64xbf16>, vector<64x192xbf16>, vector<64x192xf32> -> vector<64x192xf32>
    %28 = arith.truncf %27 : vector<64x192xf32> to vector<64x192xbf16>
    %29 = vector.extract_strided_slice %28 {offsets = [0, 0], sizes = [32, 16], strides = [1, 1]} : vector<64x192xbf16> to vector<32x16xbf16>
    %30 = vector.extract_strided_slice %28 {offsets = [0, 64], sizes = [32, 16], strides = [1, 1]} : vector<64x192xbf16> to vector<32x16xbf16>
    %31 = vector.extract_strided_slice %28 {offsets = [0, 128], sizes = [32, 16], strides = [1, 1]} : vector<64x192xbf16> to vector<32x16xbf16>
    %cst_12 = arith.constant dense<0.000000e+00> : vector<32x32xf32>
    %32 = tpu.matmul %29, %30, %cst_12 {dimension_numbers = #tpu.dot_dimension_numbers<[1], [1], [0], [0], [0, 0, 1, 0], [], []>} : vector<32x16xbf16>, vector<32x16xbf16>, vector<32x32xf32> -> vector<32x32xf32>
    %cst_13 = arith.constant 1.250000e-01 : f32
    %33 = vector.broadcast %cst_13 : f32 to vector<32x32xf32>
    %34 = arith.mulf %32, %33 : vector<32x32xf32>
    %cst_14 = arith.constant dense<0xFF800000> : vector<32xf32>
    %35 = vector.multi_reduction <maximumf>, %34, %cst_14 [1] : vector<32x32xf32> to vector<32xf32>
    %36 = vector.shape_cast %35 : vector<32xf32> to vector<32x1xf32>
    %37 = vector.broadcast %36 : vector<32x1xf32> to vector<32x32xf32>
    %38 = arith.subf %34, %37 : vector<32x32xf32>
    %39 = math.exp %38 : vector<32x32xf32>
    %cst_15 = arith.constant dense<0.000000e+00> : vector<32xf32>
    %40 = vector.multi_reduction <add>, %39, %cst_15 [1] : vector<32x32xf32> to vector<32xf32>
    %41 = vector.shape_cast %40 : vector<32xf32> to vector<32x1xf32>
    %42 = vector.broadcast %41 : vector<32x1xf32> to vector<32x32xf32>
    %43 = arith.divf %39, %42 : vector<32x32xf32>
    %44 = arith.truncf %43 : vector<32x32xf32> to vector<32x32xbf16>
    %cst_16 = arith.constant dense<0.000000e+00> : vector<32x16xf32>
    %45 = tpu.matmul %44, %31, %cst_16 {dimension_numbers = #tpu.dot_dimension_numbers<[1], [0], [0], [1], [0, 0, 1, 1], [], []>} : vector<32x32xbf16>, vector<32x16xbf16>, vector<32x16xf32> -> vector<32x16xf32>
    %46 = vector.extract_strided_slice %28 {offsets = [0, 16], sizes = [32, 16], strides = [1, 1]} : vector<64x192xbf16> to vector<32x16xbf16>
    %47 = vector.extract_strided_slice %28 {offsets = [0, 80], sizes = [32, 16], strides = [1, 1]} : vector<64x192xbf16> to vector<32x16xbf16>
    %48 = vector.extract_strided_slice %28 {offsets = [0, 144], sizes = [32, 16], strides = [1, 1]} : vector<64x192xbf16> to vector<32x16xbf16>
    %cst_17 = arith.constant dense<0.000000e+00> : vector<32x32xf32>
    %49 = tpu.matmul %46, %47, %cst_17 {dimension_numbers = #tpu.dot_dimension_numbers<[1], [1], [0], [0], [0, 0, 1, 0], [], []>} : vector<32x16xbf16>, vector<32x16xbf16>, vector<32x32xf32> -> vector<32x32xf32>
    %cst_18 = arith.constant 1.250000e-01 : f32
    %50 = vector.broadcast %cst_18 : f32 to vector<32x32xf32>
    %51 = arith.mulf %49, %50 : vector<32x32xf32>
    %cst_19 = arith.constant dense<0xFF800000> : vector<32xf32>
    %52 = vector.multi_reduction <maximumf>, %51, %cst_19 [1] : vector<32x32xf32> to vector<32xf32>
    %53 = vector.shape_cast %52 : vector<32xf32> to vector<32x1xf32>
    %54 = vector.broadcast %53 : vector<32x1xf32> to vector<32x32xf32>
    %55 = arith.subf %51, %54 : vector<32x32xf32>
    %56 = math.exp %55 : vector<32x32xf32>
    %cst_20 = arith.constant dense<0.000000e+00> : vector<32xf32>
    %57 = vector.multi_reduction <add>, %56, %cst_20 [1] : vector<32x32xf32> to vector<32xf32>
    %58 = vector.shape_cast %57 : vector<32xf32> to vector<32x1xf32>
    %59 = vector.broadcast %58 : vector<32x1xf32> to vector<32x32xf32>
    %60 = arith.divf %56, %59 : vector<32x32xf32>
    %61 = arith.truncf %60 : vector<32x32xf32> to vector<32x32xbf16>
    %cst_21 = arith.constant dense<0.000000e+00> : vector<32x16xf32>
    %62 = tpu.matmul %61, %48, %cst_21 {dimension_numbers = #tpu.dot_dimension_numbers<[1], [0], [0], [1], [0, 0, 1, 1], [], []>} : vector<32x32xbf16>, vector<32x16xbf16>, vector<32x16xf32> -> vector<32x16xf32>
    %63 = vector.extract_strided_slice %28 {offsets = [0, 32], sizes = [32, 16], strides = [1, 1]} : vector<64x192xbf16> to vector<32x16xbf16>
    %64 = vector.extract_strided_slice %28 {offsets = [0, 96], sizes = [32, 16], strides = [1, 1]} : vector<64x192xbf16> to vector<32x16xbf16>
    %65 = vector.extract_strided_slice %28 {offsets = [0, 160], sizes = [32, 16], strides = [1, 1]} : vector<64x192xbf16> to vector<32x16xbf16>
    %cst_22 = arith.constant dense<0.000000e+00> : vector<32x32xf32>
    %66 = tpu.matmul %63, %64, %cst_22 {dimension_numbers = #tpu.dot_dimension_numbers<[1], [1], [0], [0], [0, 0, 1, 0], [], []>} : vector<32x16xbf16>, vector<32x16xbf16>, vector<32x32xf32> -> vector<32x32xf32>
    %cst_23 = arith.constant 1.250000e-01 : f32
    %67 = vector.broadcast %cst_23 : f32 to vector<32x32xf32>
    %68 = arith.mulf %66, %67 : vector<32x32xf32>
    %cst_24 = arith.constant dense<0xFF800000> : vector<32xf32>
    %69 = vector.multi_reduction <maximumf>, %68, %cst_24 [1] : vector<32x32xf32> to vector<32xf32>
    %70 = vector.shape_cast %69 : vector<32xf32> to vector<32x1xf32>
    %71 = vector.broadcast %70 : vector<32x1xf32> to vector<32x32xf32>
    %72 = arith.subf %68, %71 : vector<32x32xf32>
    %73 = math.exp %72 : vector<32x32xf32>
    %cst_25 = arith.constant dense<0.000000e+00> : vector<32xf32>
    %74 = vector.multi_reduction <add>, %73, %cst_25 [1] : vector<32x32xf32> to vector<32xf32>
    %75 = vector.shape_cast %74 : vector<32xf32> to vector<32x1xf32>
    %76 = vector.broadcast %75 : vector<32x1xf32> to vector<32x32xf32>
    %77 = arith.divf %73, %76 : vector<32x32xf32>
    %78 = arith.truncf %77 : vector<32x32xf32> to vector<32x32xbf16>
    %cst_26 = arith.constant dense<0.000000e+00> : vector<32x16xf32>
    %79 = tpu.matmul %78, %65, %cst_26 {dimension_numbers = #tpu.dot_dimension_numbers<[1], [0], [0], [1], [0, 0, 1, 1], [], []>} : vector<32x32xbf16>, vector<32x16xbf16>, vector<32x16xf32> -> vector<32x16xf32>
    %80 = vector.extract_strided_slice %28 {offsets = [0, 48], sizes = [32, 16], strides = [1, 1]} : vector<64x192xbf16> to vector<32x16xbf16>
    %81 = vector.extract_strided_slice %28 {offsets = [0, 112], sizes = [32, 16], strides = [1, 1]} : vector<64x192xbf16> to vector<32x16xbf16>
    %82 = vector.extract_strided_slice %28 {offsets = [0, 176], sizes = [32, 16], strides = [1, 1]} : vector<64x192xbf16> to vector<32x16xbf16>
    %cst_27 = arith.constant dense<0.000000e+00> : vector<32x32xf32>
    %83 = tpu.matmul %80, %81, %cst_27 {dimension_numbers = #tpu.dot_dimension_numbers<[1], [1], [0], [0], [0, 0, 1, 0], [], []>} : vector<32x16xbf16>, vector<32x16xbf16>, vector<32x32xf32> -> vector<32x32xf32>
    %cst_28 = arith.constant 1.250000e-01 : f32
    %84 = vector.broadcast %cst_28 : f32 to vector<32x32xf32>
    %85 = arith.mulf %83, %84 : vector<32x32xf32>
    %cst_29 = arith.constant dense<0xFF800000> : vector<32xf32>
    %86 = vector.multi_reduction <maximumf>, %85, %cst_29 [1] : vector<32x32xf32> to vector<32xf32>
    %87 = vector.shape_cast %86 : vector<32xf32> to vector<32x1xf32>
    %88 = vector.broadcast %87 : vector<32x1xf32> to vector<32x32xf32>
    %89 = arith.subf %85, %88 : vector<32x32xf32>
    %90 = math.exp %89 : vector<32x32xf32>
    %cst_30 = arith.constant dense<0.000000e+00> : vector<32xf32>
    %91 = vector.multi_reduction <add>, %90, %cst_30 [1] : vector<32x32xf32> to vector<32xf32>
    %92 = vector.shape_cast %91 : vector<32xf32> to vector<32x1xf32>
    %93 = vector.broadcast %92 : vector<32x1xf32> to vector<32x32xf32>
    %94 = arith.divf %90, %93 : vector<32x32xf32>
    %95 = arith.truncf %94 : vector<32x32xf32> to vector<32x32xbf16>
    %cst_31 = arith.constant dense<0.000000e+00> : vector<32x16xf32>
    %96 = tpu.matmul %95, %82, %cst_31 {dimension_numbers = #tpu.dot_dimension_numbers<[1], [0], [0], [1], [0, 0, 1, 1], [], []>} : vector<32x32xbf16>, vector<32x16xbf16>, vector<32x16xf32> -> vector<32x16xf32>
    %97 = tpu.concatenate %45, %62, %79, %96 in 1 : vector<32x16xf32>, vector<32x16xf32>, vector<32x16xf32>, vector<32x16xf32> -> vector<32x64xf32>
    %98 = vector.extract_strided_slice %28 {offsets = [32, 0], sizes = [32, 16], strides = [1, 1]} : vector<64x192xbf16> to vector<32x16xbf16>
    %99 = vector.extract_strided_slice %28 {offsets = [32, 64], sizes = [32, 16], strides = [1, 1]} : vector<64x192xbf16> to vector<32x16xbf16>
    %100 = vector.extract_strided_slice %28 {offsets = [32, 128], sizes = [32, 16], strides = [1, 1]} : vector<64x192xbf16> to vector<32x16xbf16>
    %cst_32 = arith.constant dense<0.000000e+00> : vector<32x32xf32>
    %101 = tpu.matmul %98, %99, %cst_32 {dimension_numbers = #tpu.dot_dimension_numbers<[1], [1], [0], [0], [0, 0, 1, 0], [], []>} : vector<32x16xbf16>, vector<32x16xbf16>, vector<32x32xf32> -> vector<32x32xf32>
    %cst_33 = arith.constant 1.250000e-01 : f32
    %102 = vector.broadcast %cst_33 : f32 to vector<32x32xf32>
    %103 = arith.mulf %101, %102 : vector<32x32xf32>
    %cst_34 = arith.constant dense<0xFF800000> : vector<32xf32>
    %104 = vector.multi_reduction <maximumf>, %103, %cst_34 [1] : vector<32x32xf32> to vector<32xf32>
    %105 = vector.shape_cast %104 : vector<32xf32> to vector<32x1xf32>
    %106 = vector.broadcast %105 : vector<32x1xf32> to vector<32x32xf32>
    %107 = arith.subf %103, %106 : vector<32x32xf32>
    %108 = math.exp %107 : vector<32x32xf32>
    %cst_35 = arith.constant dense<0.000000e+00> : vector<32xf32>
    %109 = vector.multi_reduction <add>, %108, %cst_35 [1] : vector<32x32xf32> to vector<32xf32>
    %110 = vector.shape_cast %109 : vector<32xf32> to vector<32x1xf32>
    %111 = vector.broadcast %110 : vector<32x1xf32> to vector<32x32xf32>
    %112 = arith.divf %108, %111 : vector<32x32xf32>
    %113 = arith.truncf %112 : vector<32x32xf32> to vector<32x32xbf16>
    %cst_36 = arith.constant dense<0.000000e+00> : vector<32x16xf32>
    %114 = tpu.matmul %113, %100, %cst_36 {dimension_numbers = #tpu.dot_dimension_numbers<[1], [0], [0], [1], [0, 0, 1, 1], [], []>} : vector<32x32xbf16>, vector<32x16xbf16>, vector<32x16xf32> -> vector<32x16xf32>
    %115 = vector.extract_strided_slice %28 {offsets = [32, 16], sizes = [32, 16], strides = [1, 1]} : vector<64x192xbf16> to vector<32x16xbf16>
    %116 = vector.extract_strided_slice %28 {offsets = [32, 80], sizes = [32, 16], strides = [1, 1]} : vector<64x192xbf16> to vector<32x16xbf16>
    %117 = vector.extract_strided_slice %28 {offsets = [32, 144], sizes = [32, 16], strides = [1, 1]} : vector<64x192xbf16> to vector<32x16xbf16>
    %cst_37 = arith.constant dense<0.000000e+00> : vector<32x32xf32>
    %118 = tpu.matmul %115, %116, %cst_37 {dimension_numbers = #tpu.dot_dimension_numbers<[1], [1], [0], [0], [0, 0, 1, 0], [], []>} : vector<32x16xbf16>, vector<32x16xbf16>, vector<32x32xf32> -> vector<32x32xf32>
    %cst_38 = arith.constant 1.250000e-01 : f32
    %119 = vector.broadcast %cst_38 : f32 to vector<32x32xf32>
    %120 = arith.mulf %118, %119 : vector<32x32xf32>
    %cst_39 = arith.constant dense<0xFF800000> : vector<32xf32>
    %121 = vector.multi_reduction <maximumf>, %120, %cst_39 [1] : vector<32x32xf32> to vector<32xf32>
    %122 = vector.shape_cast %121 : vector<32xf32> to vector<32x1xf32>
    %123 = vector.broadcast %122 : vector<32x1xf32> to vector<32x32xf32>
    %124 = arith.subf %120, %123 : vector<32x32xf32>
    %125 = math.exp %124 : vector<32x32xf32>
    %cst_40 = arith.constant dense<0.000000e+00> : vector<32xf32>
    %126 = vector.multi_reduction <add>, %125, %cst_40 [1] : vector<32x32xf32> to vector<32xf32>
    %127 = vector.shape_cast %126 : vector<32xf32> to vector<32x1xf32>
    %128 = vector.broadcast %127 : vector<32x1xf32> to vector<32x32xf32>
    %129 = arith.divf %125, %128 : vector<32x32xf32>
    %130 = arith.truncf %129 : vector<32x32xf32> to vector<32x32xbf16>
    %cst_41 = arith.constant dense<0.000000e+00> : vector<32x16xf32>
    %131 = tpu.matmul %130, %117, %cst_41 {dimension_numbers = #tpu.dot_dimension_numbers<[1], [0], [0], [1], [0, 0, 1, 1], [], []>} : vector<32x32xbf16>, vector<32x16xbf16>, vector<32x16xf32> -> vector<32x16xf32>
    %132 = vector.extract_strided_slice %28 {offsets = [32, 32], sizes = [32, 16], strides = [1, 1]} : vector<64x192xbf16> to vector<32x16xbf16>
    %133 = vector.extract_strided_slice %28 {offsets = [32, 96], sizes = [32, 16], strides = [1, 1]} : vector<64x192xbf16> to vector<32x16xbf16>
    %134 = vector.extract_strided_slice %28 {offsets = [32, 160], sizes = [32, 16], strides = [1, 1]} : vector<64x192xbf16> to vector<32x16xbf16>
    %cst_42 = arith.constant dense<0.000000e+00> : vector<32x32xf32>
    %135 = tpu.matmul %132, %133, %cst_42 {dimension_numbers = #tpu.dot_dimension_numbers<[1], [1], [0], [0], [0, 0, 1, 0], [], []>} : vector<32x16xbf16>, vector<32x16xbf16>, vector<32x32xf32> -> vector<32x32xf32>
    %cst_43 = arith.constant 1.250000e-01 : f32
    %136 = vector.broadcast %cst_43 : f32 to vector<32x32xf32>
    %137 = arith.mulf %135, %136 : vector<32x32xf32>
    %cst_44 = arith.constant dense<0xFF800000> : vector<32xf32>
    %138 = vector.multi_reduction <maximumf>, %137, %cst_44 [1] : vector<32x32xf32> to vector<32xf32>
    %139 = vector.shape_cast %138 : vector<32xf32> to vector<32x1xf32>
    %140 = vector.broadcast %139 : vector<32x1xf32> to vector<32x32xf32>
    %141 = arith.subf %137, %140 : vector<32x32xf32>
    %142 = math.exp %141 : vector<32x32xf32>
    %cst_45 = arith.constant dense<0.000000e+00> : vector<32xf32>
    %143 = vector.multi_reduction <add>, %142, %cst_45 [1] : vector<32x32xf32> to vector<32xf32>
    %144 = vector.shape_cast %143 : vector<32xf32> to vector<32x1xf32>
    %145 = vector.broadcast %144 : vector<32x1xf32> to vector<32x32xf32>
    %146 = arith.divf %142, %145 : vector<32x32xf32>
    %147 = arith.truncf %146 : vector<32x32xf32> to vector<32x32xbf16>
    %cst_46 = arith.constant dense<0.000000e+00> : vector<32x16xf32>
    %148 = tpu.matmul %147, %134, %cst_46 {dimension_numbers = #tpu.dot_dimension_numbers<[1], [0], [0], [1], [0, 0, 1, 1], [], []>} : vector<32x32xbf16>, vector<32x16xbf16>, vector<32x16xf32> -> vector<32x16xf32>
    %149 = vector.extract_strided_slice %28 {offsets = [32, 48], sizes = [32, 16], strides = [1, 1]} : vector<64x192xbf16> to vector<32x16xbf16>
    %150 = vector.extract_strided_slice %28 {offsets = [32, 112], sizes = [32, 16], strides = [1, 1]} : vector<64x192xbf16> to vector<32x16xbf16>
    %151 = vector.extract_strided_slice %28 {offsets = [32, 176], sizes = [32, 16], strides = [1, 1]} : vector<64x192xbf16> to vector<32x16xbf16>
    %cst_47 = arith.constant dense<0.000000e+00> : vector<32x32xf32>
    %152 = tpu.matmul %149, %150, %cst_47 {dimension_numbers = #tpu.dot_dimension_numbers<[1], [1], [0], [0], [0, 0, 1, 0], [], []>} : vector<32x16xbf16>, vector<32x16xbf16>, vector<32x32xf32> -> vector<32x32xf32>
    %cst_48 = arith.constant 1.250000e-01 : f32
    %153 = vector.broadcast %cst_48 : f32 to vector<32x32xf32>
    %154 = arith.mulf %152, %153 : vector<32x32xf32>
    %cst_49 = arith.constant dense<0xFF800000> : vector<32xf32>
    %155 = vector.multi_reduction <maximumf>, %154, %cst_49 [1] : vector<32x32xf32> to vector<32xf32>
    %156 = vector.shape_cast %155 : vector<32xf32> to vector<32x1xf32>
    %157 = vector.broadcast %156 : vector<32x1xf32> to vector<32x32xf32>
    %158 = arith.subf %154, %157 : vector<32x32xf32>
    %159 = math.exp %158 : vector<32x32xf32>
    %cst_50 = arith.constant dense<0.000000e+00> : vector<32xf32>
    %160 = vector.multi_reduction <add>, %159, %cst_50 [1] : vector<32x32xf32> to vector<32xf32>
    %161 = vector.shape_cast %160 : vector<32xf32> to vector<32x1xf32>
    %162 = vector.broadcast %161 : vector<32x1xf32> to vector<32x32xf32>
    %163 = arith.divf %159, %162 : vector<32x32xf32>
    %164 = arith.truncf %163 : vector<32x32xf32> to vector<32x32xbf16>
    %cst_51 = arith.constant dense<0.000000e+00> : vector<32x16xf32>
    %165 = tpu.matmul %164, %151, %cst_51 {dimension_numbers = #tpu.dot_dimension_numbers<[1], [0], [0], [1], [0, 0, 1, 1], [], []>} : vector<32x32xbf16>, vector<32x16xbf16>, vector<32x16xf32> -> vector<32x16xf32>
    %166 = tpu.concatenate %114, %131, %148, %165 in 1 : vector<32x16xf32>, vector<32x16xf32>, vector<32x16xf32>, vector<32x16xf32> -> vector<32x64xf32>
    %167 = tpu.concatenate %97, %166 in 0 : vector<32x64xf32>, vector<32x64xf32> -> vector<64x64xf32>
    %168 = arith.truncf %167 : vector<64x64xf32> to vector<64x64xbf16>
    %c0_52 = arith.constant 0 : index
    %c0_53 = arith.constant 0 : index
    %169 = vector.load %arg5[%c0_52, %c0_53] : memref<64x64xbf16, #tpu.memory_space<vmem>>, vector<64x64xbf16>
    %cst_54 = arith.constant dense<0.000000e+00> : vector<64x64xf32>
    %170 = tpu.matmul %168, %169, %cst_54 {dimension_numbers = #tpu.dot_dimension_numbers<[1], [0], [0], [1], [0, 0, 1, 1], [], []>} : vector<64x64xbf16>, vector<64x64xbf16>, vector<64x64xf32> -> vector<64x64xf32>
    %171 = arith.addf %0, %170 : vector<64x64xf32>
    %cst_55 = arith.constant dense<0.000000e+00> : vector<64xf32>
    %172 = vector.multi_reduction <add>, %171, %cst_55 [1] : vector<64x64xf32> to vector<64xf32>
    %173 = vector.shape_cast %172 : vector<64xf32> to vector<64x1xf32>
    %cst_56 = arith.constant 6.400000e+01 : f32
    %174 = vector.broadcast %cst_56 : f32 to vector<64x1xf32>
    %175 = arith.divf %173, %174 : vector<64x1xf32>
    %176 = vector.broadcast %175 : vector<64x1xf32> to vector<64x64xf32>
    %177 = arith.subf %171, %176 : vector<64x64xf32>
    %178 = arith.mulf %177, %177 : vector<64x64xf32>
    %cst_57 = arith.constant dense<0.000000e+00> : vector<64xf32>
    %179 = vector.multi_reduction <add>, %178, %cst_57 [1] : vector<64x64xf32> to vector<64xf32>
    %180 = vector.shape_cast %179 : vector<64xf32> to vector<64x1xf32>
    %cst_58 = arith.constant 6.400000e+01 : f32
    %181 = vector.broadcast %cst_58 : f32 to vector<64x1xf32>
    %182 = arith.divf %180, %181 : vector<64x1xf32>
    %183 = vector.broadcast %175 : vector<64x1xf32> to vector<64x64xf32>
    %184 = arith.subf %171, %183 : vector<64x64xf32>
    %cst_59 = arith.constant 9.99999974E-6 : f32
    %185 = vector.broadcast %cst_59 : f32 to vector<64x1xf32>
    %186 = arith.addf %182, %185 : vector<64x1xf32>
    %187 = math.rsqrt %186 : vector<64x1xf32>
    %188 = vector.broadcast %187 : vector<64x1xf32> to vector<64x64xf32>
    %189 = arith.mulf %184, %188 : vector<64x64xf32>
    %c0_60 = arith.constant 0 : index
    %c0_61 = arith.constant 0 : index
    %190 = vector.load %arg6[%c0_60, %c0_61] : memref<1x64xf32, #tpu.memory_space<vmem>>, vector<1x64xf32>
    %191 = vector.broadcast %190 : vector<1x64xf32> to vector<64x64xf32>
    %192 = arith.mulf %189, %191 : vector<64x64xf32>
    %c0_62 = arith.constant 0 : index
    %c0_63 = arith.constant 0 : index
    %193 = vector.load %arg7[%c0_62, %c0_63] : memref<1x64xf32, #tpu.memory_space<vmem>>, vector<1x64xf32>
    %194 = vector.broadcast %193 : vector<1x64xf32> to vector<64x64xf32>
    %195 = arith.addf %192, %194 : vector<64x64xf32>
    %196 = arith.truncf %195 : vector<64x64xf32> to vector<64x64xbf16>
    %c0_64 = arith.constant 0 : index
    %c0_65 = arith.constant 0 : index
    %197 = vector.load %arg8[%c0_64, %c0_65] : memref<64x64xbf16, #tpu.memory_space<vmem>>, vector<64x64xbf16>
    %cst_66 = arith.constant dense<0.000000e+00> : vector<64x64xf32>
    %198 = tpu.matmul %196, %197, %cst_66 {dimension_numbers = #tpu.dot_dimension_numbers<[1], [0], [0], [1], [0, 0, 1, 1], [], []>} : vector<64x64xbf16>, vector<64x64xbf16>, vector<64x64xf32> -> vector<64x64xf32>
    %c0_67 = arith.constant 0 : index
    %c0_68 = arith.constant 0 : index
    %199 = vector.load %arg9[%c0_67, %c0_68] : memref<1x64xf32, #tpu.memory_space<vmem>>, vector<1x64xf32>
    %200 = vector.broadcast %199 : vector<1x64xf32> to vector<64x64xf32>
    %201 = arith.addf %198, %200 : vector<64x64xf32>
    %cst_69 = arith.constant 0.000000e+00 : f32
    %202 = vector.broadcast %cst_69 : f32 to vector<64x64xf32>
    %203 = arith.maximumf %201, %202 : vector<64x64xf32>
    %204 = arith.truncf %203 : vector<64x64xf32> to vector<64x64xbf16>
    %c0_70 = arith.constant 0 : index
    %c0_71 = arith.constant 0 : index
    %205 = vector.load %arg10[%c0_70, %c0_71] : memref<64x64xbf16, #tpu.memory_space<vmem>>, vector<64x64xbf16>
    %cst_72 = arith.constant dense<0.000000e+00> : vector<64x64xf32>
    %206 = tpu.matmul %204, %205, %cst_72 {dimension_numbers = #tpu.dot_dimension_numbers<[1], [0], [0], [1], [0, 0, 1, 1], [], []>} : vector<64x64xbf16>, vector<64x64xbf16>, vector<64x64xf32> -> vector<64x64xf32>
    %c0_73 = arith.constant 0 : index
    %c0_74 = arith.constant 0 : index
    %207 = vector.load %arg11[%c0_73, %c0_74] : memref<1x64xf32, #tpu.memory_space<vmem>>, vector<1x64xf32>
    %208 = vector.broadcast %207 : vector<1x64xf32> to vector<64x64xf32>
    %209 = arith.addf %206, %208 : vector<64x64xf32>
    %210 = arith.addf %171, %209 : vector<64x64xf32>
    %cst_75 = arith.constant dense<0.000000e+00> : vector<64xf32>
    %211 = vector.multi_reduction <add>, %210, %cst_75 [1] : vector<64x64xf32> to vector<64xf32>
    %212 = vector.shape_cast %211 : vector<64xf32> to vector<64x1xf32>
    %cst_76 = arith.constant 6.400000e+01 : f32
    %213 = vector.broadcast %cst_76 : f32 to vector<64x1xf32>
    %214 = arith.divf %212, %213 : vector<64x1xf32>
    %215 = vector.broadcast %214 : vector<64x1xf32> to vector<64x64xf32>
    %216 = arith.subf %210, %215 : vector<64x64xf32>
    %217 = arith.mulf %216, %216 : vector<64x64xf32>
    %cst_77 = arith.constant dense<0.000000e+00> : vector<64xf32>
    %218 = vector.multi_reduction <add>, %217, %cst_77 [1] : vector<64x64xf32> to vector<64xf32>
    %219 = vector.shape_cast %218 : vector<64xf32> to vector<64x1xf32>
    %cst_78 = arith.constant 6.400000e+01 : f32
    %220 = vector.broadcast %cst_78 : f32 to vector<64x1xf32>
    %221 = arith.divf %219, %220 : vector<64x1xf32>
    %222 = vector.broadcast %214 : vector<64x1xf32> to vector<64x64xf32>
    %223 = arith.subf %210, %222 : vector<64x64xf32>
    %cst_79 = arith.constant 9.99999974E-6 : f32
    %224 = vector.broadcast %cst_79 : f32 to vector<64x1xf32>
    %225 = arith.addf %221, %224 : vector<64x1xf32>
    %226 = math.rsqrt %225 : vector<64x1xf32>
    %227 = vector.broadcast %226 : vector<64x1xf32> to vector<64x64xf32>
    %228 = arith.mulf %223, %227 : vector<64x64xf32>
    %c0_80 = arith.constant 0 : index
    %c0_81 = arith.constant 0 : index
    %229 = vector.load %arg12[%c0_80, %c0_81] : memref<1x64xf32, #tpu.memory_space<vmem>>, vector<1x64xf32>
    %230 = vector.broadcast %229 : vector<1x64xf32> to vector<64x64xf32>
    %231 = arith.mulf %228, %230 : vector<64x64xf32>
    %c0_82 = arith.constant 0 : index
    %c0_83 = arith.constant 0 : index
    %232 = vector.load %arg13[%c0_82, %c0_83] : memref<1x64xf32, #tpu.memory_space<vmem>>, vector<1x64xf32>
    %233 = vector.broadcast %232 : vector<1x64xf32> to vector<64x64xf32>
    %234 = arith.addf %231, %233 : vector<64x64xf32>
    %c0_84 = arith.constant 0 : index
    %c0_85 = arith.constant 0 : index
    %235 = vector.load %arg14[%c0_84, %c0_85] : memref<64x64xf32, #tpu.memory_space<vmem>>, vector<64x64xf32>
    tpu.vector_store %arg14[%c0_84, %c0_85], %234 {strides = array<i32>} : memref<64x64xf32, #tpu.memory_space<vmem>>, vector<64x64xf32>,
    return
  }
  func.func @transform_0(%arg0: i32) -> (i32, i32) {
    %c0_i32 = arith.constant 0 : i32
    %c0_i32_0 = arith.constant 0 : i32
    return %arg0, %c0_i32 : i32, i32
  }
  func.func @transform_1(%arg0: i32) -> (i32, i32) {
    %c0_i32 = arith.constant 0 : i32
    %c0_i32_0 = arith.constant 0 : i32
    %c0_i32_1 = arith.constant 0 : i32
    return %c0_i32, %c0_i32_0 : i32, i32
  }
  func.func @transform_2(%arg0: i32) -> (i32, i32) {
    %c0_i32 = arith.constant 0 : i32
    %c0_i32_0 = arith.constant 0 : i32
    %c0_i32_1 = arith.constant 0 : i32
    return %c0_i32, %c0_i32_0 : i32, i32
  }
  func.func @transform_3(%arg0: i32) -> (i32, i32) {
    %c0_i32 = arith.constant 0 : i32
    %c0_i32_0 = arith.constant 0 : i32
    %c0_i32_1 = arith.constant 0 : i32
    return %c0_i32, %c0_i32_0 : i32, i32
  }
  func.func @transform_4(%arg0: i32) -> (i32, i32) {
    %c0_i32 = arith.constant 0 : i32
    %c0_i32_0 = arith.constant 0 : i32
    %c0_i32_1 = arith.constant 0 : i32
    return %c0_i32, %c0_i32_0 : i32, i32
  }
  func.func @transform_5(%arg0: i32) -> (i32, i32) {
    %c0_i32 = arith.constant 0 : i32
    %c0_i32_0 = arith.constant 0 : i32
    %c0_i32_1 = arith.constant 0 : i32
    return %c0_i32, %c0_i32_0 : i32, i32
  }
  func.func @transform_6(%arg0: i32) -> (i32, i32) {
    %c0_i32 = arith.constant 0 : i32
    %c0_i32_0 = arith.constant 0 : i32
    %c0_i32_1 = arith.constant 0 : i32
    return %c0_i32, %c0_i32_0 : i32, i32
  }
  func.func @transform_7(%arg0: i32) -> (i32, i32) {
    %c0_i32 = arith.constant 0 : i32
    %c0_i32_0 = arith.constant 0 : i32
    %c0_i32_1 = arith.constant 0 : i32
    return %c0_i32, %c0_i32_0 : i32, i32
  }
  func.func @transform_8(%arg0: i32) -> (i32, i32) {
    %c0_i32 = arith.constant 0 : i32
    %c0_i32_0 = arith.constant 0 : i32
    %c0_i32_1 = arith.constant 0 : i32
    return %c0_i32, %c0_i32_0 : i32, i32
  }
  func.func @transform_9(%arg0: i32) -> (i32, i32) {
    %c0_i32 = arith.constant 0 : i32
    %c0_i32_0 = arith.constant 0 : i32
    %c0_i32_1 = arith.constant 0 : i32
    return %c0_i32, %c0_i32_0 : i32, i32
  }
  func.func @transform_10(%arg0: i32) -> (i32, i32) {
    %c0_i32 = arith.constant 0 : i32
    %c0_i32_0 = arith.constant 0 : i32
    %c0_i32_1 = arith.constant 0 : i32
    return %c0_i32, %c0_i32_0 : i32, i32
  }
  func.func @transform_11(%arg0: i32) -> (i32, i32) {
    %c0_i32 = arith.constant 0 : i32
    %c0_i32_0 = arith.constant 0 : i32
    %c0_i32_1 = arith.constant 0 : i32
    return %c0_i32, %c0_i32_0 : i32, i32
  }
  func.func @transform_12(%arg0: i32) -> (i32, i32) {
    %c0_i32 = arith.constant 0 : i32
    %c0_i32_0 = arith.constant 0 : i32
    %c0_i32_1 = arith.constant 0 : i32
    return %c0_i32, %c0_i32_0 : i32, i32
  }
  func.func @transform_13(%arg0: i32) -> (i32, i32) {
    %c0_i32 = arith.constant 0 : i32
    %c0_i32_0 = arith.constant 0 : i32
    return %arg0, %c0_i32 : i32, i32
  }
}

module attributes {stable_mosaic.version = 11 : i64} {
  func.func @_linear_bias_kernel(%arg0: i32, %arg1: i32, %arg2: memref<16x64xf32, #tpu.memory_space<vmem>>, %arg3: memref<64x128xbf16, #tpu.memory_space<vmem>>, %arg4: memref<1x128xf32, #tpu.memory_space<vmem>>, %arg5: memref<16x128xf32, #tpu.memory_space<vmem>>) attributes {dimension_semantics = [#tpu.dimension_semantics<parallel>, #tpu.dimension_semantics<parallel>], iteration_bounds = array<i64: 1, 1>, scalar_prefetch = 0 : i64, scratch_operands = 0 : i64, tpu.core_type = #tpu.core_type<tc>, window_params = [{transform_indices = @transform_0, window_bounds = array<i64: 16, 64>}, {transform_indices = @transform_1, window_bounds = array<i64: 64, 128>}, {transform_indices = @transform_2, window_bounds = array<i64: 1, 128>}, {transform_indices = @transform_3, window_bounds = array<i64: 16, 128>}]} {
    %c0 = arith.constant 0 : index
    %c0_0 = arith.constant 0 : index
    %0 = vector.load %arg2[%c0, %c0_0] : memref<16x64xf32, #tpu.memory_space<vmem>>, vector<16x64xf32>
    %1 = arith.truncf %0 : vector<16x64xf32> to vector<16x64xbf16>
    %c0_1 = arith.constant 0 : index
    %c0_2 = arith.constant 0 : index
    %2 = vector.load %arg3[%c0_1, %c0_2] : memref<64x128xbf16, #tpu.memory_space<vmem>>, vector<64x128xbf16>
    %cst = arith.constant dense<0.000000e+00> : vector<16x128xf32>
    %3 = tpu.matmul %1, %2, %cst {dimension_numbers = #tpu.dot_dimension_numbers<[1], [0], [0], [1], [0, 0, 1, 1], [], []>} : vector<16x64xbf16>, vector<64x128xbf16>, vector<16x128xf32> -> vector<16x128xf32>
    %c0_3 = arith.constant 0 : index
    %c0_4 = arith.constant 0 : index
    %4 = vector.load %arg4[%c0_3, %c0_4] : memref<1x128xf32, #tpu.memory_space<vmem>>, vector<1x128xf32>
    %5 = vector.broadcast %4 : vector<1x128xf32> to vector<16x128xf32>
    %6 = arith.addf %3, %5 : vector<16x128xf32>
    %c0_5 = arith.constant 0 : index
    %c0_6 = arith.constant 0 : index
    %7 = vector.load %arg5[%c0_5, %c0_6] : memref<16x128xf32, #tpu.memory_space<vmem>>, vector<16x128xf32>
    tpu.vector_store %arg5[%c0_5, %c0_6], %6 {strides = array<i32>} : memref<16x128xf32, #tpu.memory_space<vmem>>, vector<16x128xf32>,
    return
  }
  func.func @transform_0(%arg0: i32, %arg1: i32) -> (i32, i32) {
    %c0_i32 = arith.constant 0 : i32
    %c0_i32_0 = arith.constant 0 : i32
    return %arg0, %c0_i32 : i32, i32
  }
  func.func @transform_1(%arg0: i32, %arg1: i32) -> (i32, i32) {
    %c0_i32 = arith.constant 0 : i32
    %c0_i32_0 = arith.constant 0 : i32
    return %c0_i32, %arg1 : i32, i32
  }
  func.func @transform_2(%arg0: i32, %arg1: i32) -> (i32, i32) {
    %c0_i32 = arith.constant 0 : i32
    %c0_i32_0 = arith.constant 0 : i32
    return %c0_i32, %arg1 : i32, i32
  }
  func.func @transform_3(%arg0: i32, %arg1: i32) -> (i32, i32) {
    %c0_i32 = arith.constant 0 : i32
    return %arg0, %arg1 : i32, i32
  }
}

module attributes {stable_mosaic.version = 11 : i64} {
  func.func @_encoder_layer_kernel(%arg0: i32, %arg1: memref<16x64xf32, #tpu.memory_space<vmem>>, %arg2: memref<2x4x8x8xf32, #tpu.memory_space<vmem>>, %arg3: memref<1x64xf32, #tpu.memory_space<vmem>>, %arg4: memref<1x64xf32, #tpu.memory_space<vmem>>, %arg5: memref<64x192xbf16, #tpu.memory_space<vmem>>, %arg6: memref<64x64xbf16, #tpu.memory_space<vmem>>, %arg7: memref<1x64xf32, #tpu.memory_space<vmem>>, %arg8: memref<1x64xf32, #tpu.memory_space<vmem>>, %arg9: memref<64x64xbf16, #tpu.memory_space<vmem>>, %arg10: memref<1x64xf32, #tpu.memory_space<vmem>>, %arg11: memref<64x64xbf16, #tpu.memory_space<vmem>>, %arg12: memref<1x64xf32, #tpu.memory_space<vmem>>, %arg13: memref<1x64xf32, #tpu.memory_space<vmem>>, %arg14: memref<1x64xf32, #tpu.memory_space<vmem>>, %arg15: memref<16x64xf32, #tpu.memory_space<vmem>>) attributes {dimension_semantics = [#tpu.dimension_semantics<parallel>], iteration_bounds = array<i64: 1>, scalar_prefetch = 0 : i64, scratch_operands = 0 : i64, tpu.core_type = #tpu.core_type<tc>, window_params = [{transform_indices = @transform_0, window_bounds = array<i64: 16, 64>}, {transform_indices = @transform_1, window_bounds = array<i64: 2, 4, 8, 8>}, {pipeline_mode = #tpu.pipeline_mode<synchronous>, transform_indices = @transform_2, window_bounds = array<i64: 1, 64>}, {pipeline_mode = #tpu.pipeline_mode<synchronous>, transform_indices = @transform_3, window_bounds = array<i64: 1, 64>}, {pipeline_mode = #tpu.pipeline_mode<synchronous>, transform_indices = @transform_4, window_bounds = array<i64: 64, 192>}, {pipeline_mode = #tpu.pipeline_mode<synchronous>, transform_indices = @transform_5, window_bounds = array<i64: 64, 64>}, {pipeline_mode = #tpu.pipeline_mode<synchronous>, transform_indices = @transform_6, window_bounds = array<i64: 1, 64>}, {pipeline_mode = #tpu.pipeline_mode<synchronous>, transform_indices = @transform_7, window_bounds = array<i64: 1, 64>}, {pipeline_mode = #tpu.pipeline_mode<synchronous>, transform_indices = @transform_8, window_bounds = array<i64: 64, 64>}, {pipeline_mode = #tpu.pipeline_mode<synchronous>, transform_indices = @transform_9, window_bounds = array<i64: 1, 64>}, {pipeline_mode = #tpu.pipeline_mode<synchronous>, transform_indices = @transform_10, window_bounds = array<i64: 64, 64>}, {pipeline_mode = #tpu.pipeline_mode<synchronous>, transform_indices = @transform_11, window_bounds = array<i64: 1, 64>}, {pipeline_mode = #tpu.pipeline_mode<synchronous>, transform_indices = @transform_12, window_bounds = array<i64: 1, 64>}, {pipeline_mode = #tpu.pipeline_mode<synchronous>, transform_indices = @transform_13, window_bounds = array<i64: 1, 64>}, {transform_indices = @transform_14, window_bounds = array<i64: 16, 64>}]} {
    %c0 = arith.constant 0 : index
    %c0_0 = arith.constant 0 : index
    %0 = vector.load %arg1[%c0, %c0_0] : memref<16x64xf32, #tpu.memory_space<vmem>>, vector<16x64xf32>
    %cst = arith.constant dense<0.000000e+00> : vector<16xf32>
    %1 = vector.multi_reduction <add>, %0, %cst [1] : vector<16x64xf32> to vector<16xf32>
    %2 = vector.shape_cast %1 : vector<16xf32> to vector<16x1xf32>
    %cst_1 = arith.constant 6.400000e+01 : f32
    %3 = vector.broadcast %cst_1 : f32 to vector<16x1xf32>
    %4 = arith.divf %2, %3 : vector<16x1xf32>
    %5 = vector.broadcast %4 : vector<16x1xf32> to vector<16x64xf32>
    %6 = arith.subf %0, %5 : vector<16x64xf32>
    %7 = arith.mulf %6, %6 : vector<16x64xf32>
    %cst_2 = arith.constant dense<0.000000e+00> : vector<16xf32>
    %8 = vector.multi_reduction <add>, %7, %cst_2 [1] : vector<16x64xf32> to vector<16xf32>
    %9 = vector.shape_cast %8 : vector<16xf32> to vector<16x1xf32>
    %cst_3 = arith.constant 6.400000e+01 : f32
    %10 = vector.broadcast %cst_3 : f32 to vector<16x1xf32>
    %11 = arith.divf %9, %10 : vector<16x1xf32>
    %12 = vector.broadcast %4 : vector<16x1xf32> to vector<16x64xf32>
    %13 = arith.subf %0, %12 : vector<16x64xf32>
    %cst_4 = arith.constant 9.99999974E-6 : f32
    %14 = vector.broadcast %cst_4 : f32 to vector<16x1xf32>
    %15 = arith.addf %11, %14 : vector<16x1xf32>
    %16 = math.rsqrt %15 : vector<16x1xf32>
    %17 = vector.broadcast %16 : vector<16x1xf32> to vector<16x64xf32>
    %18 = arith.mulf %13, %17 : vector<16x64xf32>
    %c0_5 = arith.constant 0 : index
    %c0_6 = arith.constant 0 : index
    %19 = vector.load %arg3[%c0_5, %c0_6] : memref<1x64xf32, #tpu.memory_space<vmem>>, vector<1x64xf32>
    %20 = vector.broadcast %19 : vector<1x64xf32> to vector<16x64xf32>
    %21 = arith.mulf %18, %20 : vector<16x64xf32>
    %c0_7 = arith.constant 0 : index
    %c0_8 = arith.constant 0 : index
    %22 = vector.load %arg4[%c0_7, %c0_8] : memref<1x64xf32, #tpu.memory_space<vmem>>, vector<1x64xf32>
    %23 = vector.broadcast %22 : vector<1x64xf32> to vector<16x64xf32>
    %24 = arith.addf %21, %23 : vector<16x64xf32>
    %25 = arith.truncf %24 : vector<16x64xf32> to vector<16x64xbf16>
    %c0_9 = arith.constant 0 : index
    %c0_10 = arith.constant 0 : index
    %26 = vector.load %arg5[%c0_9, %c0_10] : memref<64x192xbf16, #tpu.memory_space<vmem>>, vector<64x192xbf16>
    %cst_11 = arith.constant dense<0.000000e+00> : vector<16x192xf32>
    %27 = tpu.matmul %25, %26, %cst_11 {dimension_numbers = #tpu.dot_dimension_numbers<[1], [0], [0], [1], [0, 0, 1, 1], [], []>} : vector<16x64xbf16>, vector<64x192xbf16>, vector<16x192xf32> -> vector<16x192xf32>
    %28 = arith.truncf %27 : vector<16x192xf32> to vector<16x192xbf16>
    %29 = vector.extract_strided_slice %28 {offsets = [0, 0], sizes = [8, 16], strides = [1, 1]} : vector<16x192xbf16> to vector<8x16xbf16>
    %30 = vector.extract_strided_slice %28 {offsets = [0, 64], sizes = [8, 16], strides = [1, 1]} : vector<16x192xbf16> to vector<8x16xbf16>
    %31 = vector.extract_strided_slice %28 {offsets = [0, 128], sizes = [8, 16], strides = [1, 1]} : vector<16x192xbf16> to vector<8x16xbf16>
    %cst_12 = arith.constant dense<0.000000e+00> : vector<8x8xf32>
    %32 = tpu.matmul %29, %30, %cst_12 {dimension_numbers = #tpu.dot_dimension_numbers<[1], [1], [0], [0], [0, 0, 1, 0], [], []>} : vector<8x16xbf16>, vector<8x16xbf16>, vector<8x8xf32> -> vector<8x8xf32>
    %cst_13 = arith.constant 1.250000e-01 : f32
    %33 = vector.broadcast %cst_13 : f32 to vector<8x8xf32>
    %34 = arith.mulf %32, %33 : vector<8x8xf32>
    %c0_14 = arith.constant 0 : index
    %c0_15 = arith.constant 0 : index
    %c0_16 = arith.constant 0 : index
    %c0_17 = arith.constant 0 : index
    %35 = vector.load %arg2[%c0_14, %c0_15, %c0_16, %c0_17] : memref<2x4x8x8xf32, #tpu.memory_space<vmem>>, vector<1x1x8x8xf32>
    %36 = vector.shape_cast %35 : vector<1x1x8x8xf32> to vector<8x8xf32>
    %37 = arith.addf %34, %36 : vector<8x8xf32>
    %cst_18 = arith.constant dense<0xFF800000> : vector<8xf32>
    %38 = vector.multi_reduction <maximumf>, %37, %cst_18 [1] : vector<8x8xf32> to vector<8xf32>
    %39 = vector.shape_cast %38 : vector<8xf32> to vector<8x1xf32>
    %40 = vector.broadcast %39 : vector<8x1xf32> to vector<8x8xf32>
    %41 = arith.subf %37, %40 : vector<8x8xf32>
    %42 = math.exp %41 : vector<8x8xf32>
    %cst_19 = arith.constant dense<0.000000e+00> : vector<8xf32>
    %43 = vector.multi_reduction <add>, %42, %cst_19 [1] : vector<8x8xf32> to vector<8xf32>
    %44 = vector.shape_cast %43 : vector<8xf32> to vector<8x1xf32>
    %45 = vector.broadcast %44 : vector<8x1xf32> to vector<8x8xf32>
    %46 = arith.divf %42, %45 : vector<8x8xf32>
    %47 = arith.truncf %46 : vector<8x8xf32> to vector<8x8xbf16>
    %cst_20 = arith.constant dense<0.000000e+00> : vector<8x16xf32>
    %48 = tpu.matmul %47, %31, %cst_20 {dimension_numbers = #tpu.dot_dimension_numbers<[1], [0], [0], [1], [0, 0, 1, 1], [], []>} : vector<8x8xbf16>, vector<8x16xbf16>, vector<8x16xf32> -> vector<8x16xf32>
    %49 = vector.extract_strided_slice %28 {offsets = [0, 16], sizes = [8, 16], strides = [1, 1]} : vector<16x192xbf16> to vector<8x16xbf16>
    %50 = vector.extract_strided_slice %28 {offsets = [0, 80], sizes = [8, 16], strides = [1, 1]} : vector<16x192xbf16> to vector<8x16xbf16>
    %51 = vector.extract_strided_slice %28 {offsets = [0, 144], sizes = [8, 16], strides = [1, 1]} : vector<16x192xbf16> to vector<8x16xbf16>
    %cst_21 = arith.constant dense<0.000000e+00> : vector<8x8xf32>
    %52 = tpu.matmul %49, %50, %cst_21 {dimension_numbers = #tpu.dot_dimension_numbers<[1], [1], [0], [0], [0, 0, 1, 0], [], []>} : vector<8x16xbf16>, vector<8x16xbf16>, vector<8x8xf32> -> vector<8x8xf32>
    %cst_22 = arith.constant 1.250000e-01 : f32
    %53 = vector.broadcast %cst_22 : f32 to vector<8x8xf32>
    %54 = arith.mulf %52, %53 : vector<8x8xf32>
    %c0_23 = arith.constant 0 : index
    %c1 = arith.constant 1 : index
    %c0_24 = arith.constant 0 : index
    %c0_25 = arith.constant 0 : index
    %55 = vector.load %arg2[%c0_23, %c1, %c0_24, %c0_25] : memref<2x4x8x8xf32, #tpu.memory_space<vmem>>, vector<1x1x8x8xf32>
    %56 = vector.shape_cast %55 : vector<1x1x8x8xf32> to vector<8x8xf32>
    %57 = arith.addf %54, %56 : vector<8x8xf32>
    %cst_26 = arith.constant dense<0xFF800000> : vector<8xf32>
    %58 = vector.multi_reduction <maximumf>, %57, %cst_26 [1] : vector<8x8xf32> to vector<8xf32>
    %59 = vector.shape_cast %58 : vector<8xf32> to vector<8x1xf32>
    %60 = vector.broadcast %59 : vector<8x1xf32> to vector<8x8xf32>
    %61 = arith.subf %57, %60 : vector<8x8xf32>
    %62 = math.exp %61 : vector<8x8xf32>
    %cst_27 = arith.constant dense<0.000000e+00> : vector<8xf32>
    %63 = vector.multi_reduction <add>, %62, %cst_27 [1] : vector<8x8xf32> to vector<8xf32>
    %64 = vector.shape_cast %63 : vector<8xf32> to vector<8x1xf32>
    %65 = vector.broadcast %64 : vector<8x1xf32> to vector<8x8xf32>
    %66 = arith.divf %62, %65 : vector<8x8xf32>
    %67 = arith.truncf %66 : vector<8x8xf32> to vector<8x8xbf16>
    %cst_28 = arith.constant dense<0.000000e+00> : vector<8x16xf32>
    %68 = tpu.matmul %67, %51, %cst_28 {dimension_numbers = #tpu.dot_dimension_numbers<[1], [0], [0], [1], [0, 0, 1, 1], [], []>} : vector<8x8xbf16>, vector<8x16xbf16>, vector<8x16xf32> -> vector<8x16xf32>
    %69 = vector.extract_strided_slice %28 {offsets = [0, 32], sizes = [8, 16], strides = [1, 1]} : vector<16x192xbf16> to vector<8x16xbf16>
    %70 = vector.extract_strided_slice %28 {offsets = [0, 96], sizes = [8, 16], strides = [1, 1]} : vector<16x192xbf16> to vector<8x16xbf16>
    %71 = vector.extract_strided_slice %28 {offsets = [0, 160], sizes = [8, 16], strides = [1, 1]} : vector<16x192xbf16> to vector<8x16xbf16>
    %cst_29 = arith.constant dense<0.000000e+00> : vector<8x8xf32>
    %72 = tpu.matmul %69, %70, %cst_29 {dimension_numbers = #tpu.dot_dimension_numbers<[1], [1], [0], [0], [0, 0, 1, 0], [], []>} : vector<8x16xbf16>, vector<8x16xbf16>, vector<8x8xf32> -> vector<8x8xf32>
    %cst_30 = arith.constant 1.250000e-01 : f32
    %73 = vector.broadcast %cst_30 : f32 to vector<8x8xf32>
    %74 = arith.mulf %72, %73 : vector<8x8xf32>
    %c0_31 = arith.constant 0 : index
    %c2 = arith.constant 2 : index
    %c0_32 = arith.constant 0 : index
    %c0_33 = arith.constant 0 : index
    %75 = vector.load %arg2[%c0_31, %c2, %c0_32, %c0_33] : memref<2x4x8x8xf32, #tpu.memory_space<vmem>>, vector<1x1x8x8xf32>
    %76 = vector.shape_cast %75 : vector<1x1x8x8xf32> to vector<8x8xf32>
    %77 = arith.addf %74, %76 : vector<8x8xf32>
    %cst_34 = arith.constant dense<0xFF800000> : vector<8xf32>
    %78 = vector.multi_reduction <maximumf>, %77, %cst_34 [1] : vector<8x8xf32> to vector<8xf32>
    %79 = vector.shape_cast %78 : vector<8xf32> to vector<8x1xf32>
    %80 = vector.broadcast %79 : vector<8x1xf32> to vector<8x8xf32>
    %81 = arith.subf %77, %80 : vector<8x8xf32>
    %82 = math.exp %81 : vector<8x8xf32>
    %cst_35 = arith.constant dense<0.000000e+00> : vector<8xf32>
    %83 = vector.multi_reduction <add>, %82, %cst_35 [1] : vector<8x8xf32> to vector<8xf32>
    %84 = vector.shape_cast %83 : vector<8xf32> to vector<8x1xf32>
    %85 = vector.broadcast %84 : vector<8x1xf32> to vector<8x8xf32>
    %86 = arith.divf %82, %85 : vector<8x8xf32>
    %87 = arith.truncf %86 : vector<8x8xf32> to vector<8x8xbf16>
    %cst_36 = arith.constant dense<0.000000e+00> : vector<8x16xf32>
    %88 = tpu.matmul %87, %71, %cst_36 {dimension_numbers = #tpu.dot_dimension_numbers<[1], [0], [0], [1], [0, 0, 1, 1], [], []>} : vector<8x8xbf16>, vector<8x16xbf16>, vector<8x16xf32> -> vector<8x16xf32>
    %89 = vector.extract_strided_slice %28 {offsets = [0, 48], sizes = [8, 16], strides = [1, 1]} : vector<16x192xbf16> to vector<8x16xbf16>
    %90 = vector.extract_strided_slice %28 {offsets = [0, 112], sizes = [8, 16], strides = [1, 1]} : vector<16x192xbf16> to vector<8x16xbf16>
    %91 = vector.extract_strided_slice %28 {offsets = [0, 176], sizes = [8, 16], strides = [1, 1]} : vector<16x192xbf16> to vector<8x16xbf16>
    %cst_37 = arith.constant dense<0.000000e+00> : vector<8x8xf32>
    %92 = tpu.matmul %89, %90, %cst_37 {dimension_numbers = #tpu.dot_dimension_numbers<[1], [1], [0], [0], [0, 0, 1, 0], [], []>} : vector<8x16xbf16>, vector<8x16xbf16>, vector<8x8xf32> -> vector<8x8xf32>
    %cst_38 = arith.constant 1.250000e-01 : f32
    %93 = vector.broadcast %cst_38 : f32 to vector<8x8xf32>
    %94 = arith.mulf %92, %93 : vector<8x8xf32>
    %c0_39 = arith.constant 0 : index
    %c3 = arith.constant 3 : index
    %c0_40 = arith.constant 0 : index
    %c0_41 = arith.constant 0 : index
    %95 = vector.load %arg2[%c0_39, %c3, %c0_40, %c0_41] : memref<2x4x8x8xf32, #tpu.memory_space<vmem>>, vector<1x1x8x8xf32>
    %96 = vector.shape_cast %95 : vector<1x1x8x8xf32> to vector<8x8xf32>
    %97 = arith.addf %94, %96 : vector<8x8xf32>
    %cst_42 = arith.constant dense<0xFF800000> : vector<8xf32>
    %98 = vector.multi_reduction <maximumf>, %97, %cst_42 [1] : vector<8x8xf32> to vector<8xf32>
    %99 = vector.shape_cast %98 : vector<8xf32> to vector<8x1xf32>
    %100 = vector.broadcast %99 : vector<8x1xf32> to vector<8x8xf32>
    %101 = arith.subf %97, %100 : vector<8x8xf32>
    %102 = math.exp %101 : vector<8x8xf32>
    %cst_43 = arith.constant dense<0.000000e+00> : vector<8xf32>
    %103 = vector.multi_reduction <add>, %102, %cst_43 [1] : vector<8x8xf32> to vector<8xf32>
    %104 = vector.shape_cast %103 : vector<8xf32> to vector<8x1xf32>
    %105 = vector.broadcast %104 : vector<8x1xf32> to vector<8x8xf32>
    %106 = arith.divf %102, %105 : vector<8x8xf32>
    %107 = arith.truncf %106 : vector<8x8xf32> to vector<8x8xbf16>
    %cst_44 = arith.constant dense<0.000000e+00> : vector<8x16xf32>
    %108 = tpu.matmul %107, %91, %cst_44 {dimension_numbers = #tpu.dot_dimension_numbers<[1], [0], [0], [1], [0, 0, 1, 1], [], []>} : vector<8x8xbf16>, vector<8x16xbf16>, vector<8x16xf32> -> vector<8x16xf32>
    %109 = tpu.concatenate %48, %68, %88, %108 in 1 : vector<8x16xf32>, vector<8x16xf32>, vector<8x16xf32>, vector<8x16xf32> -> vector<8x64xf32>
    %110 = vector.extract_strided_slice %28 {offsets = [8, 0], sizes = [8, 16], strides = [1, 1]} : vector<16x192xbf16> to vector<8x16xbf16>
    %111 = vector.extract_strided_slice %28 {offsets = [8, 64], sizes = [8, 16], strides = [1, 1]} : vector<16x192xbf16> to vector<8x16xbf16>
    %112 = vector.extract_strided_slice %28 {offsets = [8, 128], sizes = [8, 16], strides = [1, 1]} : vector<16x192xbf16> to vector<8x16xbf16>
    %cst_45 = arith.constant dense<0.000000e+00> : vector<8x8xf32>
    %113 = tpu.matmul %110, %111, %cst_45 {dimension_numbers = #tpu.dot_dimension_numbers<[1], [1], [0], [0], [0, 0, 1, 0], [], []>} : vector<8x16xbf16>, vector<8x16xbf16>, vector<8x8xf32> -> vector<8x8xf32>
    %cst_46 = arith.constant 1.250000e-01 : f32
    %114 = vector.broadcast %cst_46 : f32 to vector<8x8xf32>
    %115 = arith.mulf %113, %114 : vector<8x8xf32>
    %c1_47 = arith.constant 1 : index
    %c0_48 = arith.constant 0 : index
    %c0_49 = arith.constant 0 : index
    %c0_50 = arith.constant 0 : index
    %116 = vector.load %arg2[%c1_47, %c0_48, %c0_49, %c0_50] : memref<2x4x8x8xf32, #tpu.memory_space<vmem>>, vector<1x1x8x8xf32>
    %117 = vector.shape_cast %116 : vector<1x1x8x8xf32> to vector<8x8xf32>
    %118 = arith.addf %115, %117 : vector<8x8xf32>
    %cst_51 = arith.constant dense<0xFF800000> : vector<8xf32>
    %119 = vector.multi_reduction <maximumf>, %118, %cst_51 [1] : vector<8x8xf32> to vector<8xf32>
    %120 = vector.shape_cast %119 : vector<8xf32> to vector<8x1xf32>
    %121 = vector.broadcast %120 : vector<8x1xf32> to vector<8x8xf32>
    %122 = arith.subf %118, %121 : vector<8x8xf32>
    %123 = math.exp %122 : vector<8x8xf32>
    %cst_52 = arith.constant dense<0.000000e+00> : vector<8xf32>
    %124 = vector.multi_reduction <add>, %123, %cst_52 [1] : vector<8x8xf32> to vector<8xf32>
    %125 = vector.shape_cast %124 : vector<8xf32> to vector<8x1xf32>
    %126 = vector.broadcast %125 : vector<8x1xf32> to vector<8x8xf32>
    %127 = arith.divf %123, %126 : vector<8x8xf32>
    %128 = arith.truncf %127 : vector<8x8xf32> to vector<8x8xbf16>
    %cst_53 = arith.constant dense<0.000000e+00> : vector<8x16xf32>
    %129 = tpu.matmul %128, %112, %cst_53 {dimension_numbers = #tpu.dot_dimension_numbers<[1], [0], [0], [1], [0, 0, 1, 1], [], []>} : vector<8x8xbf16>, vector<8x16xbf16>, vector<8x16xf32> -> vector<8x16xf32>
    %130 = vector.extract_strided_slice %28 {offsets = [8, 16], sizes = [8, 16], strides = [1, 1]} : vector<16x192xbf16> to vector<8x16xbf16>
    %131 = vector.extract_strided_slice %28 {offsets = [8, 80], sizes = [8, 16], strides = [1, 1]} : vector<16x192xbf16> to vector<8x16xbf16>
    %132 = vector.extract_strided_slice %28 {offsets = [8, 144], sizes = [8, 16], strides = [1, 1]} : vector<16x192xbf16> to vector<8x16xbf16>
    %cst_54 = arith.constant dense<0.000000e+00> : vector<8x8xf32>
    %133 = tpu.matmul %130, %131, %cst_54 {dimension_numbers = #tpu.dot_dimension_numbers<[1], [1], [0], [0], [0, 0, 1, 0], [], []>} : vector<8x16xbf16>, vector<8x16xbf16>, vector<8x8xf32> -> vector<8x8xf32>
    %cst_55 = arith.constant 1.250000e-01 : f32
    %134 = vector.broadcast %cst_55 : f32 to vector<8x8xf32>
    %135 = arith.mulf %133, %134 : vector<8x8xf32>
    %c1_56 = arith.constant 1 : index
    %c1_57 = arith.constant 1 : index
    %c0_58 = arith.constant 0 : index
    %c0_59 = arith.constant 0 : index
    %136 = vector.load %arg2[%c1_56, %c1_57, %c0_58, %c0_59] : memref<2x4x8x8xf32, #tpu.memory_space<vmem>>, vector<1x1x8x8xf32>
    %137 = vector.shape_cast %136 : vector<1x1x8x8xf32> to vector<8x8xf32>
    %138 = arith.addf %135, %137 : vector<8x8xf32>
    %cst_60 = arith.constant dense<0xFF800000> : vector<8xf32>
    %139 = vector.multi_reduction <maximumf>, %138, %cst_60 [1] : vector<8x8xf32> to vector<8xf32>
    %140 = vector.shape_cast %139 : vector<8xf32> to vector<8x1xf32>
    %141 = vector.broadcast %140 : vector<8x1xf32> to vector<8x8xf32>
    %142 = arith.subf %138, %141 : vector<8x8xf32>
    %143 = math.exp %142 : vector<8x8xf32>
    %cst_61 = arith.constant dense<0.000000e+00> : vector<8xf32>
    %144 = vector.multi_reduction <add>, %143, %cst_61 [1] : vector<8x8xf32> to vector<8xf32>
    %145 = vector.shape_cast %144 : vector<8xf32> to vector<8x1xf32>
    %146 = vector.broadcast %145 : vector<8x1xf32> to vector<8x8xf32>
    %147 = arith.divf %143, %146 : vector<8x8xf32>
    %148 = arith.truncf %147 : vector<8x8xf32> to vector<8x8xbf16>
    %cst_62 = arith.constant dense<0.000000e+00> : vector<8x16xf32>
    %149 = tpu.matmul %148, %132, %cst_62 {dimension_numbers = #tpu.dot_dimension_numbers<[1], [0], [0], [1], [0, 0, 1, 1], [], []>} : vector<8x8xbf16>, vector<8x16xbf16>, vector<8x16xf32> -> vector<8x16xf32>
    %150 = vector.extract_strided_slice %28 {offsets = [8, 32], sizes = [8, 16], strides = [1, 1]} : vector<16x192xbf16> to vector<8x16xbf16>
    %151 = vector.extract_strided_slice %28 {offsets = [8, 96], sizes = [8, 16], strides = [1, 1]} : vector<16x192xbf16> to vector<8x16xbf16>
    %152 = vector.extract_strided_slice %28 {offsets = [8, 160], sizes = [8, 16], strides = [1, 1]} : vector<16x192xbf16> to vector<8x16xbf16>
    %cst_63 = arith.constant dense<0.000000e+00> : vector<8x8xf32>
    %153 = tpu.matmul %150, %151, %cst_63 {dimension_numbers = #tpu.dot_dimension_numbers<[1], [1], [0], [0], [0, 0, 1, 0], [], []>} : vector<8x16xbf16>, vector<8x16xbf16>, vector<8x8xf32> -> vector<8x8xf32>
    %cst_64 = arith.constant 1.250000e-01 : f32
    %154 = vector.broadcast %cst_64 : f32 to vector<8x8xf32>
    %155 = arith.mulf %153, %154 : vector<8x8xf32>
    %c1_65 = arith.constant 1 : index
    %c2_66 = arith.constant 2 : index
    %c0_67 = arith.constant 0 : index
    %c0_68 = arith.constant 0 : index
    %156 = vector.load %arg2[%c1_65, %c2_66, %c0_67, %c0_68] : memref<2x4x8x8xf32, #tpu.memory_space<vmem>>, vector<1x1x8x8xf32>
    %157 = vector.shape_cast %156 : vector<1x1x8x8xf32> to vector<8x8xf32>
    %158 = arith.addf %155, %157 : vector<8x8xf32>
    %cst_69 = arith.constant dense<0xFF800000> : vector<8xf32>
    %159 = vector.multi_reduction <maximumf>, %158, %cst_69 [1] : vector<8x8xf32> to vector<8xf32>
    %160 = vector.shape_cast %159 : vector<8xf32> to vector<8x1xf32>
    %161 = vector.broadcast %160 : vector<8x1xf32> to vector<8x8xf32>
    %162 = arith.subf %158, %161 : vector<8x8xf32>
    %163 = math.exp %162 : vector<8x8xf32>
    %cst_70 = arith.constant dense<0.000000e+00> : vector<8xf32>
    %164 = vector.multi_reduction <add>, %163, %cst_70 [1] : vector<8x8xf32> to vector<8xf32>
    %165 = vector.shape_cast %164 : vector<8xf32> to vector<8x1xf32>
    %166 = vector.broadcast %165 : vector<8x1xf32> to vector<8x8xf32>
    %167 = arith.divf %163, %166 : vector<8x8xf32>
    %168 = arith.truncf %167 : vector<8x8xf32> to vector<8x8xbf16>
    %cst_71 = arith.constant dense<0.000000e+00> : vector<8x16xf32>
    %169 = tpu.matmul %168, %152, %cst_71 {dimension_numbers = #tpu.dot_dimension_numbers<[1], [0], [0], [1], [0, 0, 1, 1], [], []>} : vector<8x8xbf16>, vector<8x16xbf16>, vector<8x16xf32> -> vector<8x16xf32>
    %170 = vector.extract_strided_slice %28 {offsets = [8, 48], sizes = [8, 16], strides = [1, 1]} : vector<16x192xbf16> to vector<8x16xbf16>
    %171 = vector.extract_strided_slice %28 {offsets = [8, 112], sizes = [8, 16], strides = [1, 1]} : vector<16x192xbf16> to vector<8x16xbf16>
    %172 = vector.extract_strided_slice %28 {offsets = [8, 176], sizes = [8, 16], strides = [1, 1]} : vector<16x192xbf16> to vector<8x16xbf16>
    %cst_72 = arith.constant dense<0.000000e+00> : vector<8x8xf32>
    %173 = tpu.matmul %170, %171, %cst_72 {dimension_numbers = #tpu.dot_dimension_numbers<[1], [1], [0], [0], [0, 0, 1, 0], [], []>} : vector<8x16xbf16>, vector<8x16xbf16>, vector<8x8xf32> -> vector<8x8xf32>
    %cst_73 = arith.constant 1.250000e-01 : f32
    %174 = vector.broadcast %cst_73 : f32 to vector<8x8xf32>
    %175 = arith.mulf %173, %174 : vector<8x8xf32>
    %c1_74 = arith.constant 1 : index
    %c3_75 = arith.constant 3 : index
    %c0_76 = arith.constant 0 : index
    %c0_77 = arith.constant 0 : index
    %176 = vector.load %arg2[%c1_74, %c3_75, %c0_76, %c0_77] : memref<2x4x8x8xf32, #tpu.memory_space<vmem>>, vector<1x1x8x8xf32>
    %177 = vector.shape_cast %176 : vector<1x1x8x8xf32> to vector<8x8xf32>
    %178 = arith.addf %175, %177 : vector<8x8xf32>
    %cst_78 = arith.constant dense<0xFF800000> : vector<8xf32>
    %179 = vector.multi_reduction <maximumf>, %178, %cst_78 [1] : vector<8x8xf32> to vector<8xf32>
    %180 = vector.shape_cast %179 : vector<8xf32> to vector<8x1xf32>
    %181 = vector.broadcast %180 : vector<8x1xf32> to vector<8x8xf32>
    %182 = arith.subf %178, %181 : vector<8x8xf32>
    %183 = math.exp %182 : vector<8x8xf32>
    %cst_79 = arith.constant dense<0.000000e+00> : vector<8xf32>
    %184 = vector.multi_reduction <add>, %183, %cst_79 [1] : vector<8x8xf32> to vector<8xf32>
    %185 = vector.shape_cast %184 : vector<8xf32> to vector<8x1xf32>
    %186 = vector.broadcast %185 : vector<8x1xf32> to vector<8x8xf32>
    %187 = arith.divf %183, %186 : vector<8x8xf32>
    %188 = arith.truncf %187 : vector<8x8xf32> to vector<8x8xbf16>
    %cst_80 = arith.constant dense<0.000000e+00> : vector<8x16xf32>
    %189 = tpu.matmul %188, %172, %cst_80 {dimension_numbers = #tpu.dot_dimension_numbers<[1], [0], [0], [1], [0, 0, 1, 1], [], []>} : vector<8x8xbf16>, vector<8x16xbf16>, vector<8x16xf32> -> vector<8x16xf32>
    %190 = tpu.concatenate %129, %149, %169, %189 in 1 : vector<8x16xf32>, vector<8x16xf32>, vector<8x16xf32>, vector<8x16xf32> -> vector<8x64xf32>
    %191 = tpu.concatenate %109, %190 in 0 : vector<8x64xf32>, vector<8x64xf32> -> vector<16x64xf32>
    %192 = arith.truncf %191 : vector<16x64xf32> to vector<16x64xbf16>
    %c0_81 = arith.constant 0 : index
    %c0_82 = arith.constant 0 : index
    %193 = vector.load %arg6[%c0_81, %c0_82] : memref<64x64xbf16, #tpu.memory_space<vmem>>, vector<64x64xbf16>
    %cst_83 = arith.constant dense<0.000000e+00> : vector<16x64xf32>
    %194 = tpu.matmul %192, %193, %cst_83 {dimension_numbers = #tpu.dot_dimension_numbers<[1], [0], [0], [1], [0, 0, 1, 1], [], []>} : vector<16x64xbf16>, vector<64x64xbf16>, vector<16x64xf32> -> vector<16x64xf32>
    %195 = arith.addf %0, %194 : vector<16x64xf32>
    %cst_84 = arith.constant dense<0.000000e+00> : vector<16xf32>
    %196 = vector.multi_reduction <add>, %195, %cst_84 [1] : vector<16x64xf32> to vector<16xf32>
    %197 = vector.shape_cast %196 : vector<16xf32> to vector<16x1xf32>
    %cst_85 = arith.constant 6.400000e+01 : f32
    %198 = vector.broadcast %cst_85 : f32 to vector<16x1xf32>
    %199 = arith.divf %197, %198 : vector<16x1xf32>
    %200 = vector.broadcast %199 : vector<16x1xf32> to vector<16x64xf32>
    %201 = arith.subf %195, %200 : vector<16x64xf32>
    %202 = arith.mulf %201, %201 : vector<16x64xf32>
    %cst_86 = arith.constant dense<0.000000e+00> : vector<16xf32>
    %203 = vector.multi_reduction <add>, %202, %cst_86 [1] : vector<16x64xf32> to vector<16xf32>
    %204 = vector.shape_cast %203 : vector<16xf32> to vector<16x1xf32>
    %cst_87 = arith.constant 6.400000e+01 : f32
    %205 = vector.broadcast %cst_87 : f32 to vector<16x1xf32>
    %206 = arith.divf %204, %205 : vector<16x1xf32>
    %207 = vector.broadcast %199 : vector<16x1xf32> to vector<16x64xf32>
    %208 = arith.subf %195, %207 : vector<16x64xf32>
    %cst_88 = arith.constant 9.99999974E-6 : f32
    %209 = vector.broadcast %cst_88 : f32 to vector<16x1xf32>
    %210 = arith.addf %206, %209 : vector<16x1xf32>
    %211 = math.rsqrt %210 : vector<16x1xf32>
    %212 = vector.broadcast %211 : vector<16x1xf32> to vector<16x64xf32>
    %213 = arith.mulf %208, %212 : vector<16x64xf32>
    %c0_89 = arith.constant 0 : index
    %c0_90 = arith.constant 0 : index
    %214 = vector.load %arg7[%c0_89, %c0_90] : memref<1x64xf32, #tpu.memory_space<vmem>>, vector<1x64xf32>
    %215 = vector.broadcast %214 : vector<1x64xf32> to vector<16x64xf32>
    %216 = arith.mulf %213, %215 : vector<16x64xf32>
    %c0_91 = arith.constant 0 : index
    %c0_92 = arith.constant 0 : index
    %217 = vector.load %arg8[%c0_91, %c0_92] : memref<1x64xf32, #tpu.memory_space<vmem>>, vector<1x64xf32>
    %218 = vector.broadcast %217 : vector<1x64xf32> to vector<16x64xf32>
    %219 = arith.addf %216, %218 : vector<16x64xf32>
    %220 = arith.truncf %219 : vector<16x64xf32> to vector<16x64xbf16>
    %c0_93 = arith.constant 0 : index
    %c0_94 = arith.constant 0 : index
    %221 = vector.load %arg9[%c0_93, %c0_94] : memref<64x64xbf16, #tpu.memory_space<vmem>>, vector<64x64xbf16>
    %cst_95 = arith.constant dense<0.000000e+00> : vector<16x64xf32>
    %222 = tpu.matmul %220, %221, %cst_95 {dimension_numbers = #tpu.dot_dimension_numbers<[1], [0], [0], [1], [0, 0, 1, 1], [], []>} : vector<16x64xbf16>, vector<64x64xbf16>, vector<16x64xf32> -> vector<16x64xf32>
    %c0_96 = arith.constant 0 : index
    %c0_97 = arith.constant 0 : index
    %223 = vector.load %arg10[%c0_96, %c0_97] : memref<1x64xf32, #tpu.memory_space<vmem>>, vector<1x64xf32>
    %224 = vector.broadcast %223 : vector<1x64xf32> to vector<16x64xf32>
    %225 = arith.addf %222, %224 : vector<16x64xf32>
    %cst_98 = arith.constant 0.000000e+00 : f32
    %226 = vector.broadcast %cst_98 : f32 to vector<16x64xf32>
    %227 = arith.maximumf %225, %226 : vector<16x64xf32>
    %228 = arith.truncf %227 : vector<16x64xf32> to vector<16x64xbf16>
    %c0_99 = arith.constant 0 : index
    %c0_100 = arith.constant 0 : index
    %229 = vector.load %arg11[%c0_99, %c0_100] : memref<64x64xbf16, #tpu.memory_space<vmem>>, vector<64x64xbf16>
    %cst_101 = arith.constant dense<0.000000e+00> : vector<16x64xf32>
    %230 = tpu.matmul %228, %229, %cst_101 {dimension_numbers = #tpu.dot_dimension_numbers<[1], [0], [0], [1], [0, 0, 1, 1], [], []>} : vector<16x64xbf16>, vector<64x64xbf16>, vector<16x64xf32> -> vector<16x64xf32>
    %c0_102 = arith.constant 0 : index
    %c0_103 = arith.constant 0 : index
    %231 = vector.load %arg12[%c0_102, %c0_103] : memref<1x64xf32, #tpu.memory_space<vmem>>, vector<1x64xf32>
    %232 = vector.broadcast %231 : vector<1x64xf32> to vector<16x64xf32>
    %233 = arith.addf %230, %232 : vector<16x64xf32>
    %234 = arith.addf %195, %233 : vector<16x64xf32>
    %cst_104 = arith.constant dense<0.000000e+00> : vector<16xf32>
    %235 = vector.multi_reduction <add>, %234, %cst_104 [1] : vector<16x64xf32> to vector<16xf32>
    %236 = vector.shape_cast %235 : vector<16xf32> to vector<16x1xf32>
    %cst_105 = arith.constant 6.400000e+01 : f32
    %237 = vector.broadcast %cst_105 : f32 to vector<16x1xf32>
    %238 = arith.divf %236, %237 : vector<16x1xf32>
    %239 = vector.broadcast %238 : vector<16x1xf32> to vector<16x64xf32>
    %240 = arith.subf %234, %239 : vector<16x64xf32>
    %241 = arith.mulf %240, %240 : vector<16x64xf32>
    %cst_106 = arith.constant dense<0.000000e+00> : vector<16xf32>
    %242 = vector.multi_reduction <add>, %241, %cst_106 [1] : vector<16x64xf32> to vector<16xf32>
    %243 = vector.shape_cast %242 : vector<16xf32> to vector<16x1xf32>
    %cst_107 = arith.constant 6.400000e+01 : f32
    %244 = vector.broadcast %cst_107 : f32 to vector<16x1xf32>
    %245 = arith.divf %243, %244 : vector<16x1xf32>
    %246 = vector.broadcast %238 : vector<16x1xf32> to vector<16x64xf32>
    %247 = arith.subf %234, %246 : vector<16x64xf32>
    %cst_108 = arith.constant 9.99999974E-6 : f32
    %248 = vector.broadcast %cst_108 : f32 to vector<16x1xf32>
    %249 = arith.addf %245, %248 : vector<16x1xf32>
    %250 = math.rsqrt %249 : vector<16x1xf32>
    %251 = vector.broadcast %250 : vector<16x1xf32> to vector<16x64xf32>
    %252 = arith.mulf %247, %251 : vector<16x64xf32>
    %c0_109 = arith.constant 0 : index
    %c0_110 = arith.constant 0 : index
    %253 = vector.load %arg13[%c0_109, %c0_110] : memref<1x64xf32, #tpu.memory_space<vmem>>, vector<1x64xf32>
    %254 = vector.broadcast %253 : vector<1x64xf32> to vector<16x64xf32>
    %255 = arith.mulf %252, %254 : vector<16x64xf32>
    %c0_111 = arith.constant 0 : index
    %c0_112 = arith.constant 0 : index
    %256 = vector.load %arg14[%c0_111, %c0_112] : memref<1x64xf32, #tpu.memory_space<vmem>>, vector<1x64xf32>
    %257 = vector.broadcast %256 : vector<1x64xf32> to vector<16x64xf32>
    %258 = arith.addf %255, %257 : vector<16x64xf32>
    %c0_113 = arith.constant 0 : index
    %c0_114 = arith.constant 0 : index
    %259 = vector.load %arg15[%c0_113, %c0_114] : memref<16x64xf32, #tpu.memory_space<vmem>>, vector<16x64xf32>
    tpu.vector_store %arg15[%c0_113, %c0_114], %258 {strides = array<i32>} : memref<16x64xf32, #tpu.memory_space<vmem>>, vector<16x64xf32>,
    return
  }
  func.func @transform_0(%arg0: i32) -> (i32, i32) {
    %c0_i32 = arith.constant 0 : i32
    %c0_i32_0 = arith.constant 0 : i32
    return %arg0, %c0_i32 : i32, i32
  }
  func.func @transform_1(%arg0: i32) -> (i32, i32, i32, i32) {
    %c0_i32 = arith.constant 0 : i32
    %c0_i32_0 = arith.constant 0 : i32
    %c0_i32_1 = arith.constant 0 : i32
    %c0_i32_2 = arith.constant 0 : i32
    return %arg0, %c0_i32, %c0_i32_0, %c0_i32_1 : i32, i32, i32, i32
  }
  func.func @transform_2(%arg0: i32) -> (i32, i32) {
    %c0_i32 = arith.constant 0 : i32
    %c0_i32_0 = arith.constant 0 : i32
    %c0_i32_1 = arith.constant 0 : i32
    return %c0_i32, %c0_i32_0 : i32, i32
  }
  func.func @transform_3(%arg0: i32) -> (i32, i32) {
    %c0_i32 = arith.constant 0 : i32
    %c0_i32_0 = arith.constant 0 : i32
    %c0_i32_1 = arith.constant 0 : i32
    return %c0_i32, %c0_i32_0 : i32, i32
  }
  func.func @transform_4(%arg0: i32) -> (i32, i32) {
    %c0_i32 = arith.constant 0 : i32
    %c0_i32_0 = arith.constant 0 : i32
    %c0_i32_1 = arith.constant 0 : i32
    return %c0_i32, %c0_i32_0 : i32, i32
  }
  func.func @transform_5(%arg0: i32) -> (i32, i32) {
    %c0_i32 = arith.constant 0 : i32
    %c0_i32_0 = arith.constant 0 : i32
    %c0_i32_1 = arith.constant 0 : i32
    return %c0_i32, %c0_i32_0 : i32, i32
  }
  func.func @transform_6(%arg0: i32) -> (i32, i32) {
    %c0_i32 = arith.constant 0 : i32
    %c0_i32_0 = arith.constant 0 : i32
    %c0_i32_1 = arith.constant 0 : i32
    return %c0_i32, %c0_i32_0 : i32, i32
  }
  func.func @transform_7(%arg0: i32) -> (i32, i32) {
    %c0_i32 = arith.constant 0 : i32
    %c0_i32_0 = arith.constant 0 : i32
    %c0_i32_1 = arith.constant 0 : i32
    return %c0_i32, %c0_i32_0 : i32, i32
  }
  func.func @transform_8(%arg0: i32) -> (i32, i32) {
    %c0_i32 = arith.constant 0 : i32
    %c0_i32_0 = arith.constant 0 : i32
    %c0_i32_1 = arith.constant 0 : i32
    return %c0_i32, %c0_i32_0 : i32, i32
  }
  func.func @transform_9(%arg0: i32) -> (i32, i32) {
    %c0_i32 = arith.constant 0 : i32
    %c0_i32_0 = arith.constant 0 : i32
    %c0_i32_1 = arith.constant 0 : i32
    return %c0_i32, %c0_i32_0 : i32, i32
  }
  func.func @transform_10(%arg0: i32) -> (i32, i32) {
    %c0_i32 = arith.constant 0 : i32
    %c0_i32_0 = arith.constant 0 : i32
    %c0_i32_1 = arith.constant 0 : i32
    return %c0_i32, %c0_i32_0 : i32, i32
  }
  func.func @transform_11(%arg0: i32) -> (i32, i32) {
    %c0_i32 = arith.constant 0 : i32
    %c0_i32_0 = arith.constant 0 : i32
    %c0_i32_1 = arith.constant 0 : i32
    return %c0_i32, %c0_i32_0 : i32, i32
  }
  func.func @transform_12(%arg0: i32) -> (i32, i32) {
    %c0_i32 = arith.constant 0 : i32
    %c0_i32_0 = arith.constant 0 : i32
    %c0_i32_1 = arith.constant 0 : i32
    return %c0_i32, %c0_i32_0 : i32, i32
  }
  func.func @transform_13(%arg0: i32) -> (i32, i32) {
    %c0_i32 = arith.constant 0 : i32
    %c0_i32_0 = arith.constant 0 : i32
    %c0_i32_1 = arith.constant 0 : i32
    return %c0_i32, %c0_i32_0 : i32, i32
  }
  func.func @transform_14(%arg0: i32) -> (i32, i32) {
    %c0_i32 = arith.constant 0 : i32
    %c0_i32_0 = arith.constant 0 : i32
    return %arg0, %c0_i32 : i32, i32
  }
}

module attributes {stable_mosaic.version = 11 : i64} {
  func.func @_vsfd_kernel(%arg0: i32, %arg1: memref<16x64xf32, #tpu.memory_space<vmem>>, %arg2: memref<16x64xf32, #tpu.memory_space<vmem>>, %arg3: memref<64x64xbf16, #tpu.memory_space<vmem>>, %arg4: memref<64x64xbf16, #tpu.memory_space<vmem>>, %arg5: memref<1x64xf32, #tpu.memory_space<vmem>>, %arg6: memref<64x128xbf16, #tpu.memory_space<vmem>>, %arg7: memref<1x128xf32, #tpu.memory_space<vmem>>, %arg8: memref<16x128xf32, #tpu.memory_space<vmem>>) attributes {dimension_semantics = [#tpu.dimension_semantics<parallel>], iteration_bounds = array<i64: 1>, scalar_prefetch = 0 : i64, scratch_operands = 0 : i64, tpu.core_type = #tpu.core_type<tc>, window_params = [{transform_indices = @transform_0, window_bounds = array<i64: 16, 64>}, {transform_indices = @transform_1, window_bounds = array<i64: 16, 64>}, {pipeline_mode = #tpu.pipeline_mode<synchronous>, transform_indices = @transform_2, window_bounds = array<i64: 64, 64>}, {pipeline_mode = #tpu.pipeline_mode<synchronous>, transform_indices = @transform_3, window_bounds = array<i64: 64, 64>}, {pipeline_mode = #tpu.pipeline_mode<synchronous>, transform_indices = @transform_4, window_bounds = array<i64: 1, 64>}, {pipeline_mode = #tpu.pipeline_mode<synchronous>, transform_indices = @transform_5, window_bounds = array<i64: 64, 128>}, {pipeline_mode = #tpu.pipeline_mode<synchronous>, transform_indices = @transform_6, window_bounds = array<i64: 1, 128>}, {transform_indices = @transform_7, window_bounds = array<i64: 16, 128>}]} {
    %c0 = arith.constant 0 : index
    %c0_0 = arith.constant 0 : index
    %0 = vector.load %arg1[%c0, %c0_0] : memref<16x64xf32, #tpu.memory_space<vmem>>, vector<16x64xf32>
    %c0_1 = arith.constant 0 : index
    %c0_2 = arith.constant 0 : index
    %1 = vector.load %arg2[%c0_1, %c0_2] : memref<16x64xf32, #tpu.memory_space<vmem>>, vector<16x64xf32>
    %2 = arith.truncf %0 : vector<16x64xf32> to vector<16x64xbf16>
    %c0_3 = arith.constant 0 : index
    %c0_4 = arith.constant 0 : index
    %3 = vector.load %arg3[%c0_3, %c0_4] : memref<64x64xbf16, #tpu.memory_space<vmem>>, vector<64x64xbf16>
    %cst = arith.constant dense<0.000000e+00> : vector<16x64xf32>
    %4 = tpu.matmul %2, %3, %cst {dimension_numbers = #tpu.dot_dimension_numbers<[1], [0], [0], [1], [0, 0, 1, 1], [], []>} : vector<16x64xbf16>, vector<64x64xbf16>, vector<16x64xf32> -> vector<16x64xf32>
    %5 = arith.truncf %1 : vector<16x64xf32> to vector<16x64xbf16>
    %c0_5 = arith.constant 0 : index
    %c0_6 = arith.constant 0 : index
    %6 = vector.load %arg4[%c0_5, %c0_6] : memref<64x64xbf16, #tpu.memory_space<vmem>>, vector<64x64xbf16>
    %cst_7 = arith.constant dense<0.000000e+00> : vector<16x64xf32>
    %7 = tpu.matmul %5, %6, %cst_7 {dimension_numbers = #tpu.dot_dimension_numbers<[1], [0], [0], [1], [0, 0, 1, 1], [], []>} : vector<16x64xbf16>, vector<64x64xbf16>, vector<16x64xf32> -> vector<16x64xf32>
    %8 = arith.addf %4, %7 : vector<16x64xf32>
    %c0_8 = arith.constant 0 : index
    %c0_9 = arith.constant 0 : index
    %9 = vector.load %arg5[%c0_8, %c0_9] : memref<1x64xf32, #tpu.memory_space<vmem>>, vector<1x64xf32>
    %10 = vector.broadcast %9 : vector<1x64xf32> to vector<16x64xf32>
    %11 = arith.addf %8, %10 : vector<16x64xf32>
    %12 = arith.negf %11 : vector<16x64xf32>
    %13 = math.exp %12 : vector<16x64xf32>
    %cst_10 = arith.constant 1.000000e+00 : f32
    %14 = vector.broadcast %cst_10 : f32 to vector<16x64xf32>
    %15 = arith.addf %14, %13 : vector<16x64xf32>
    %16 = arith.divf %14, %15 : vector<16x64xf32>
    %17 = arith.mulf %16, %0 : vector<16x64xf32>
    %cst_11 = arith.constant 1.000000e+00 : f32
    %18 = vector.broadcast %cst_11 : f32 to vector<16x64xf32>
    %19 = arith.subf %18, %16 : vector<16x64xf32>
    %20 = arith.mulf %19, %1 : vector<16x64xf32>
    %21 = arith.addf %17, %20 : vector<16x64xf32>
    %22 = arith.truncf %21 : vector<16x64xf32> to vector<16x64xbf16>
    %c0_12 = arith.constant 0 : index
    %c0_13 = arith.constant 0 : index
    %23 = vector.load %arg6[%c0_12, %c0_13] : memref<64x128xbf16, #tpu.memory_space<vmem>>, vector<64x128xbf16>
    %cst_14 = arith.constant dense<0.000000e+00> : vector<16x128xf32>
    %24 = tpu.matmul %22, %23, %cst_14 {dimension_numbers = #tpu.dot_dimension_numbers<[1], [0], [0], [1], [0, 0, 1, 1], [], []>} : vector<16x64xbf16>, vector<64x128xbf16>, vector<16x128xf32> -> vector<16x128xf32>
    %c0_15 = arith.constant 0 : index
    %c0_16 = arith.constant 0 : index
    %25 = vector.load %arg7[%c0_15, %c0_16] : memref<1x128xf32, #tpu.memory_space<vmem>>, vector<1x128xf32>
    %26 = vector.broadcast %25 : vector<1x128xf32> to vector<16x128xf32>
    %27 = arith.addf %24, %26 : vector<16x128xf32>
    %c0_17 = arith.constant 0 : index
    %c0_18 = arith.constant 0 : index
    %28 = vector.load %arg8[%c0_17, %c0_18] : memref<16x128xf32, #tpu.memory_space<vmem>>, vector<16x128xf32>
    tpu.vector_store %arg8[%c0_17, %c0_18], %27 {strides = array<i32>} : memref<16x128xf32, #tpu.memory_space<vmem>>, vector<16x128xf32>,
    return
  }
  func.func @transform_0(%arg0: i32) -> (i32, i32) {
    %c0_i32 = arith.constant 0 : i32
    %c0_i32_0 = arith.constant 0 : i32
    return %arg0, %c0_i32 : i32, i32
  }
  func.func @transform_1(%arg0: i32) -> (i32, i32) {
    %c0_i32 = arith.constant 0 : i32
    %c0_i32_0 = arith.constant 0 : i32
    return %arg0, %c0_i32 : i32, i32
  }
  func.func @transform_2(%arg0: i32) -> (i32, i32) {
    %c0_i32 = arith.constant 0 : i32
    %c0_i32_0 = arith.constant 0 : i32
    %c0_i32_1 = arith.constant 0 : i32
    return %c0_i32, %c0_i32_0 : i32, i32
  }
  func.func @transform_3(%arg0: i32) -> (i32, i32) {
    %c0_i32 = arith.constant 0 : i32
    %c0_i32_0 = arith.constant 0 : i32
    %c0_i32_1 = arith.constant 0 : i32
    return %c0_i32, %c0_i32_0 : i32, i32
  }
  func.func @transform_4(%arg0: i32) -> (i32, i32) {
    %c0_i32 = arith.constant 0 : i32
    %c0_i32_0 = arith.constant 0 : i32
    %c0_i32_1 = arith.constant 0 : i32
    return %c0_i32, %c0_i32_0 : i32, i32
  }
  func.func @transform_5(%arg0: i32) -> (i32, i32) {
    %c0_i32 = arith.constant 0 : i32
    %c0_i32_0 = arith.constant 0 : i32
    %c0_i32_1 = arith.constant 0 : i32
    return %c0_i32, %c0_i32_0 : i32, i32
  }
  func.func @transform_6(%arg0: i32) -> (i32, i32) {
    %c0_i32 = arith.constant 0 : i32
    %c0_i32_0 = arith.constant 0 : i32
    %c0_i32_1 = arith.constant 0 : i32
    return %c0_i32, %c0_i32_0 : i32, i32
  }
  func.func @transform_7(%arg0: i32) -> (i32, i32) {
    %c0_i32 = arith.constant 0 : i32
    %c0_i32_0 = arith.constant 0 : i32
    return %arg0, %c0_i32 : i32, i32
  }
}

module attributes {stable_mosaic.version = 11 : i64} {
  func.func @_linear_kernel(%arg0: i32, %arg1: i32, %arg2: memref<16x64xf32, #tpu.memory_space<vmem>>, %arg3: memref<64x128xbf16, #tpu.memory_space<vmem>>, %arg4: memref<16x128xf32, #tpu.memory_space<vmem>>) attributes {dimension_semantics = [#tpu.dimension_semantics<parallel>, #tpu.dimension_semantics<parallel>], iteration_bounds = array<i64: 1, 1>, scalar_prefetch = 0 : i64, scratch_operands = 0 : i64, tpu.core_type = #tpu.core_type<tc>, window_params = [{transform_indices = @transform_0, window_bounds = array<i64: 16, 64>}, {transform_indices = @transform_1, window_bounds = array<i64: 64, 128>}, {transform_indices = @transform_2, window_bounds = array<i64: 16, 128>}]} {
    %c0 = arith.constant 0 : index
    %c0_0 = arith.constant 0 : index
    %0 = vector.load %arg2[%c0, %c0_0] : memref<16x64xf32, #tpu.memory_space<vmem>>, vector<16x64xf32>
    %1 = arith.truncf %0 : vector<16x64xf32> to vector<16x64xbf16>
    %c0_1 = arith.constant 0 : index
    %c0_2 = arith.constant 0 : index
    %2 = vector.load %arg3[%c0_1, %c0_2] : memref<64x128xbf16, #tpu.memory_space<vmem>>, vector<64x128xbf16>
    %cst = arith.constant dense<0.000000e+00> : vector<16x128xf32>
    %3 = tpu.matmul %1, %2, %cst {dimension_numbers = #tpu.dot_dimension_numbers<[1], [0], [0], [1], [0, 0, 1, 1], [], []>} : vector<16x64xbf16>, vector<64x128xbf16>, vector<16x128xf32> -> vector<16x128xf32>
    %c0_3 = arith.constant 0 : index
    %c0_4 = arith.constant 0 : index
    %4 = vector.load %arg4[%c0_3, %c0_4] : memref<16x128xf32, #tpu.memory_space<vmem>>, vector<16x128xf32>
    tpu.vector_store %arg4[%c0_3, %c0_4], %3 {strides = array<i32>} : memref<16x128xf32, #tpu.memory_space<vmem>>, vector<16x128xf32>,
    return
  }
  func.func @transform_0(%arg0: i32, %arg1: i32) -> (i32, i32) {
    %c0_i32 = arith.constant 0 : i32
    %c0_i32_0 = arith.constant 0 : i32
    return %arg0, %c0_i32 : i32, i32
  }
  func.func @transform_1(%arg0: i32, %arg1: i32) -> (i32, i32) {
    %c0_i32 = arith.constant 0 : i32
    %c0_i32_0 = arith.constant 0 : i32
    return %c0_i32, %arg1 : i32, i32
  }
  func.func @transform_2(%arg0: i32, %arg1: i32) -> (i32, i32) {
    %c0_i32 = arith.constant 0 : i32
    return %arg0, %arg1 : i32, i32
  }
}

</mosaic_0001>

<llo_original>
// kernel: srn_head_forward.9
$region0: #{srn_head_forward.9}
  #allocation0 [shape = 'u32[]', space=smem, size = 0x4, offset = 0x4, fixed_abs, tag = 'smem constant byte address 0x4 - core index']
  #allocation1 [shape = 'u32[144,128]{1,0:T(1,128)}', space=vmem, size = 0x12000, scoped, tag = 'internal scratch']
  %s0 = inlined_call_operand.vmem [shape: f32[16,64], index: 0, kind: input, shape index: {}]
  %s1 = inlined_call_operand.vmem [shape: bf16[64,128], index: 1, kind: input, shape index: {}]
  %s2 = inlined_call_operand.vmem [shape: f32[1,128], index: 2, kind: input, shape index: {}]
  %s3 = inlined_call_operand.vmem [shape: f32[16,128], index: 3, kind: output, shape index: {}]
  %s4 = sld [smem:[#allocation0]]
  $region22: #{srn_head_forward.9} parent=0
    _
  %s6 = ssub.s32 1, %s4
  %s7 = scalar_select 0, %s6, %s4
  // Predicated region
  $region2: #{srn_head_forward.9} parent=0 // pred_check
    _
  $region3: #{srn_head_forward.9} parent=0 // pred_check_branch
    %9 = sbr.rel (0) target = $region5
  $region4: #{srn_head_forward.9} parent=0 // pred_region
    _
  $region5: #{srn_head_forward.9} parent=0 // pred_fallthru
    _
  // Predicated region
  $region6: #{srn_head_forward.9} parent=0 // pred_check
    _
  $region7: #{srn_head_forward.9} parent=0 // pred_check_branch
    %11 = sbr.rel (0) target = $region9
  $region8: #{srn_head_forward.9} parent=0 // pred_region
    _
  $region9: #{srn_head_forward.9} parent=0 // pred_fallthru
    _
  // Predicated region
  $region10: #{srn_head_forward.9} parent=0 // pred_check
    _
  $region11: #{srn_head_forward.9} parent=0 // pred_check_branch
    %13 = sbr.rel (0) target = $region13
  $region12: #{srn_head_forward.9} parent=0 // pred_region
    _
  $region13: #{srn_head_forward.9} parent=0 // pred_fallthru
    _
  %v15 = vld [vmem:[%s0] sm:$0xff]
  %v16 = vld [vmem:[%s0 + $0x8] sm:$0xff]
  %v17 = vpack.c.bf16 %v16, %v15
  %v18 = vld [vmem:[%s1] sm:$0xf]
  %v19 = vld [vmem:[%s1 + $0x4] sm:$0xf]
  %v20 = vld [vmem:[%s1 + $0x8] sm:$0xf]
  %v21 = vld [vmem:[%s1 + $0xc] sm:$0xf]
  %v22 = vld [vmem:[%s1 + $0x10] sm:$0xf]
  %v23 = vld [vmem:[%s1 + $0x14] sm:$0xf]
  %v24 = vld [vmem:[%s1 + $0x18] sm:$0xf]
  %v25 = vld [vmem:[%s1 + $0x1c] sm:$0xf]
  %v26 = vld [vmem:[%s2] sm:$0x1]
  %v28 = vlaneseq
  %v29 = vshrl.u32 %v28, 7
  %v30 = vsub.s32 0, %v29
  %v31 = vrot.slane %v26, %v30
  %v41 = vunpack.c.l.b16 %v18
  %v42 = vunpack.c.l.b16 %v19
  %v43 = vunpack.c.l.b16 %v20
  %v44 = vunpack.c.l.b16 %v21
  %v45 = vunpack.c.l.b16 %v22
  %v46 = vunpack.c.l.b16 %v23
  %v47 = vunpack.c.l.b16 %v24
  %v48 = vunpack.c.l.b16 %v25
  %v49 = vpack.c.b16 %v42, %v41
  %v50 = vpack.c.b16 %v44, %v43
  %v51 = vpack.c.b16 %v46, %v45
  %v52 = vpack.c.b16 %v48, %v47
  %vm57 = vcmask 523264
  %v59 = vsel %vm57, %v17, 0
  %61 = vmatprep.subr.bf16.mxu0 0
  %62 = vmatpush1.bf16.msra.mxu0 0
  %63 = vmatprep.subr.bf16.mxu0 0
  %64 = vmatpush1.bf16.msra.mxu0 0
  %65 = vmatprep.subr.bf16.mxu0 0
  %66 = vmatpush1.bf16.msra.mxu0 0
  %67 = vmatprep.subr.bf16.mxu0 0
  %68 = vmatpush1.bf16.msra.mxu0 0
  %69 = vmatprep.subr.bf16.mxu0 0
  %70 = vmatpush1.bf16.msra.mxu0 %v52
  %71 = vmatprep.subr.bf16.mxu0 0
  %72 = vmatpush1.bf16.msra.mxu0 %v51
  %73 = vmatprep.subr.bf16.mxu0 0
  %74 = vmatpush1.bf16.msra.mxu0 %v50
  %75 = vmatprep.subr.bf16.mxu0 0
  %76 = vmatpush1.bf16.msra.mxu0 %v49
  %77 = vmatprep.subr.bf16.mxu0 0
  %78 = vmatpush2.bf16.msra.mxu0 0
  %79 = vmatprep.subr.bf16.mxu0 0
  %80 = vmatpush2.bf16.msra.mxu0 0
  %81 = vmatprep.subr.bf16.mxu0 0
  %82 = vmatpush2.bf16.msra.mxu0 0
  %83 = vmatprep.subr.bf16.mxu0 0
  %84 = vmatpush2.bf16.msra.mxu0 0
  %85 = vmatprep.subr.bf16.mxu0 0
  %86 = vmatpush2.bf16.msra.mxu0 0
  %87 = vmatprep.subr.bf16.mxu0 0
  %88 = vmatpush2.bf16.msra.mxu0 0
  %89 = vmatprep.subr.bf16.mxu0 0
  %90 = vmatpush2.bf16.msra.mxu0 0
  %91 = vmatprep.subr.bf16.mxu0 0
  %92 = vmatpush2.bf16.msra.mxu0 0
  %93 = vmatprep.mubr.bf16.mxu0 0
  %94 = vmatmul.mubr.bf16.gmra.mxu0 %v59
  %v95 = vpop.f32.mrf.mxu0
  %v96 = vadd.f32 %v31, %v95
  %v97 = vpop.f32.mrf.mxu0
  %v98 = vpop.f32.mrf.mxu0
  %v99 = vadd.f32 %v31, %v98
  %v100 = vpop.f32.mrf.mxu0
  %101 = vdwg.mxu0
  %102 = vst [vmem:[%s3] sm:$0xff] %v96
  %103 = vst [vmem:[%s3 + $0x8] sm:$0xff] %v99
  // Predicated region
  $region14: #{srn_head_forward.9} parent=0 // pred_check
    _
  $region15: #{srn_head_forward.9} parent=0 // pred_check_branch
    %105 = sbr.rel (0) target = $region17
  $region16: #{srn_head_forward.9} parent=0 // pred_region
    _
  $region17: #{srn_head_forward.9} parent=0 // pred_fallthru
    _
  // Predicated region
  $region18: #{srn_head_forward.9} parent=0 // pred_check
    _
  $region19: #{srn_head_forward.9} parent=0 // pred_check_branch
    %107 = sbr.rel (0) target = $region21
  $region20: #{srn_head_forward.9} parent=0 // pred_region
    _
  $region21: #{srn_head_forward.9} parent=0 // pred_fallthru
    _

// kernel: srn_head_forward.8
$region0: #{srn_head_forward.8}
  #allocation0 [shape = 'u32[]', space=smem, size = 0x4, offset = 0x4, fixed_abs, tag = 'smem constant byte address 0x4 - core index']
  #allocation1 [shape = 'u32[144,128]{1,0:T(1,128)}', space=vmem, size = 0x12000, scoped, tag = 'internal scratch']
  %s0 = inlined_call_operand.vmem [shape: f32[2,8,64], index: 0, kind: input, shape index: {}]
  %s1 = inlined_call_operand.vmem [shape: f32[2,32,64], index: 1, kind: input, shape index: {}]
  %s2 = inlined_call_operand.vmem [shape: bf16[64,64], index: 2, kind: input, shape index: {}]
  %s3 = inlined_call_operand.vmem [shape: f32[1,64], index: 3, kind: input, shape index: {}]
  %s4 = inlined_call_operand.vmem [shape: bf16[8,64], index: 4, kind: input, shape index: {}]
  %s5 = inlined_call_operand.vmem [shape: f32[2,8,64], index: 5, kind: output, shape index: {}]
  %s6 = sld [smem:[#allocation0]]
  $region53: #{srn_head_forward.8} parent=0
    _
  %s8 = ssub.s32 1, %s6
  %s9 = scalar_select 0, %s8, %s6
  loop: start=0, step=1, limit=4
  $region2: #{srn_head_forward.8} parent=0 // loop_pre_header
    _
  $region3: #{srn_head_forward.8} parent=0 // loop_header
    %s11 = sphi 0, %s15
    %p12 = scmp.ge.s32.totalorder %s11, 4
    %s21 = sphi 0, %s23
    %s24 = sphi 0, %s21
    %s25 = sphi 0, %s24
    %s41 = sphi 0, %s25
    %s47 = sphi 0, %s49
    %s50 = sphi 0, %s47
    %s51 = sphi 0, %s50
    %s67 = sphi 0, %s51
    %s71 = sphi 0, %s71
    %s73 = sphi 0, %s71
    %s74 = sphi 0, %s73
    %s88 = sphi 0, %s74
    %s92 = sphi 0, %s92
    %s94 = sphi 0, %s92
    %s95 = sphi 0, %s94
    %s109 = sphi 0, %s95
    %s113 = sphi 0, %s113
    %s115 = sphi 0, %s113
    %s116 = sphi 0, %s115
    %s130 = sphi 0, %s116
    %s136 = sphi 0, %s138
    %s139 = sphi 0, %s136
    %s140 = sphi 0, %s139
    %s156 = sphi 0, %s140
  $region4: #{srn_head_forward.8} parent=0 // loop_header_branch
    %14 = sbr.rel (%p12) target = $region8
  $region5: #{srn_head_forward.8} parent=0 // loop_body
    %s16 = ssub.s32 %s11, 1
    %s17 = ssub.s32 %s11, 2
    %s18 = sadd.s32 %s11, 1
    %s19 = ssub.s32 %s11, %s18
    %p20 = scmp.eq.s32.totalorder %s19, 0
    %s22 = sadd.s32 %s21, 1
    %s23 = scalar_select %p20, %s21, %s22
    %p26 = pneg %p20
    %p27 = scmp.eq.s32.totalorder %s11, 1
    %p28 = por %p26, %p27
    %p29 = scmp.ne.s32.totalorder %s21, %s24
    %p30 = scmp.eq.s32.totalorder %s11, 0
    %p31 = por %p29, %p30
    %p32 = scmp.ne.s32.totalorder %s21, %s24
    %p33 = scmp.eq.s32.totalorder %s16, 1
    %p34 = por %p32, %p33
    %p35 = scmp.ne.s32.totalorder %s24, %s25
    %p36 = scmp.eq.s32.totalorder %s16, 0
    %p37 = por %p35, %p36
    %p38 = scmp.ne.s32.totalorder %s24, %s25
    %p39 = scmp.eq.s32.totalorder %s17, 1
    %p40 = por %p38, %p39
    %p42 = scmp.ne.s32.totalorder %s25, %s41
    %p43 = scmp.eq.s32.totalorder %s17, 0
    %p44 = por %p42, %p43
    %s45 = ssub.s32 %s11, %s18
    %p46 = scmp.eq.s32.totalorder %s45, 0
    %s48 = sadd.s32 %s47, 1
    %s49 = scalar_select %p46, %s47, %s48
    %p52 = pneg %p46
    %p53 = scmp.eq.s32.totalorder %s11, 1
    %p54 = por %p52, %p53
    %p55 = scmp.ne.s32.totalorder %s47, %s50
    %p56 = scmp.eq.s32.totalorder %s11, 0
    %p57 = por %p55, %p56
    %p58 = scmp.ne.s32.totalorder %s47, %s50
    %p59 = scmp.eq.s32.totalorder %s16, 1
    %p60 = por %p58, %p59
    %p61 = scmp.ne.s32.totalorder %s50, %s51
    %p62 = scmp.eq.s32.totalorder %s16, 0
    %p63 = por %p61, %p62
    %p64 = scmp.ne.s32.totalorder %s50, %s51
    %p65 = scmp.eq.s32.totalorder %s17, 1
    %p66 = por %p64, %p65
    %p68 = scmp.ne.s32.totalorder %s51, %s67
    %p69 = scmp.eq.s32.totalorder %s17, 0
    %p70 = por %p68, %p69
    %s72 = sadd.s32 %s71, 1
    %p75 = scmp.eq.s32.totalorder %s11, 1
    %p76 = scmp.ne.s32.totalorder %s71, %s73
    %p77 = scmp.eq.s32.totalorder %s11, 0
    %p78 = por %p76, %p77
    %p79 = scmp.ne.s32.totalorder %s71, %s73
    %p80 = scmp.eq.s32.totalorder %s16, 1
    %p81 = por %p79, %p80
    %p82 = scmp.ne.s32.totalorder %s73, %s74
    %p83 = scmp.eq.s32.totalorder %s16, 0
    %p84 = por %p82, %p83
    %p85 = scmp.ne.s32.totalorder %s73, %s74
    %p86 = scmp.eq.s32.totalorder %s17, 1
    %p87 = por %p85, %p86
    %p89 = scmp.ne.s32.totalorder %s74, %s88
    %p90 = scmp.eq.s32.totalorder %s17, 0
    %p91 = por %p89, %p90
    %s93 = sadd.s32 %s92, 1
    %p96 = scmp.eq.s32.totalorder %s11, 1
    %p97 = scmp.ne.s32.totalorder %s92, %s94
    %p98 = scmp.eq.s32.totalorder %s11, 0
    %p99 = por %p97, %p98
    %p100 = scmp.ne.s32.totalorder %s92, %s94
    %p101 = scmp.eq.s32.totalorder %s16, 1
    %p102 = por %p100, %p101
    %p103 = scmp.ne.s32.totalorder %s94, %s95
    %p104 = scmp.eq.s32.totalorder %s16, 0
    %p105 = por %p103, %p104
    %p106 = scmp.ne.s32.totalorder %s94, %s95
    %p107 = scmp.eq.s32.totalorder %s17, 1
    %p108 = por %p106, %p107
    %p110 = scmp.ne.s32.totalorder %s95, %s109
    %p111 = scmp.eq.s32.totalorder %s17, 0
    %p112 = por %p110, %p111
    %s114 = sadd.s32 %s113, 1
    %p117 = scmp.eq.s32.totalorder %s11, 1
    %p118 = scmp.ne.s32.totalorder %s113, %s115
    %p119 = scmp.eq.s32.totalorder %s11, 0
    %p120 = por %p118, %p119
    %p121 = scmp.ne.s32.totalorder %s113, %s115
    %p122 = scmp.eq.s32.totalorder %s16, 1
    %p123 = por %p121, %p122
    %p124 = scmp.ne.s32.totalorder %s115, %s116
    %p125 = scmp.eq.s32.totalorder %s16, 0
    %p126 = por %p124, %p125
    %p127 = scmp.ne.s32.totalorder %s115, %s116
    %p128 = scmp.eq.s32.totalorder %s17, 1
    %p129 = por %p127, %p128
    %p131 = scmp.ne.s32.totalorder %s116, %s130
    %p132 = scmp.eq.s32.totalorder %s17, 0
    %p133 = por %p131, %p132
    %s134 = ssub.s32 %s11, %s18
    %p135 = scmp.eq.s32.totalorder %s134, 0
    %s137 = sadd.s32 %s136, 1
    %s138 = scalar_select %p135, %s136, %s137
    %p141 = pneg %p135
    %p142 = scmp.eq.s32.totalorder %s11, 1
    %p143 = por %p141, %p142
    %p144 = scmp.ne.s32.totalorder %s136, %s139
    %p145 = scmp.eq.s32.totalorder %s11, 0
    %p146 = por %p144, %p145
    %p147 = scmp.ne.s32.totalorder %s136, %s139
    %p148 = scmp.eq.s32.totalorder %s16, 1
    %p149 = por %p147, %p148
    %p150 = scmp.ne.s32.totalorder %s139, %s140
    %p151 = scmp.eq.s32.totalorder %s16, 0
    %p152 = por %p150, %p151
    %p153 = scmp.ne.s32.totalorder %s139, %s140
    %p154 = scmp.eq.s32.totalorder %s17, 1
    %p155 = por %p153, %p154
    %p157 = scmp.ne.s32.totalorder %s140, %s156
    %p158 = scmp.eq.s32.totalorder %s17, 0
    %p159 = por %p157, %p158
    %p160 = scmp.le.s32.totalorder 1, %s11
    %p161 = scmp.lt.s32.totalorder %s11, 3
    %p162 = pnand %p160, %p161
    %p163 = pneg %p162
    // Predicated region
    $region9: #{srn_head_forward.8} parent=5 // pred_check
      _
    $region10: #{srn_head_forward.8} parent=5 // pred_check_branch
      %165 = sbr.rel (%p162) target = $region12
    $region11: #{srn_head_forward.8} parent=5 // pred_region
      %s166 = ssub.s32 %s11, 1
      // Predicated region
      $region13: #{srn_head_forward.8} parent=11 // pred_check
        %p167 = pneg %p84
      $region14: #{srn_head_forward.8} parent=11 // pred_check_branch
        %169 = sbr.rel (%p167) target = $region16
      $region15: #{srn_head_forward.8} parent=11 // pred_region
        _
      $region16: #{srn_head_forward.8} parent=11 // pred_fallthru
        _
      // Predicated region
      $region17: #{srn_head_forward.8} parent=11 // pred_check
        %p170 = pneg %p105
      $region18: #{srn_head_forward.8} parent=11 // pred_check_branch
        %172 = sbr.rel (%p170) target = $region20
      $region19: #{srn_head_forward.8} parent=11 // pred_region
        _
      $region20: #{srn_head_forward.8} parent=11 // pred_fallthru
        _
      // Predicated region
      $region21: #{srn_head_forward.8} parent=11 // pred_check
        %p173 = pneg %p126
      $region22: #{srn_head_forward.8} parent=11 // pred_check_branch
        %175 = sbr.rel (%p173) target = $region24
      $region23: #{srn_head_forward.8} parent=11 // pred_region
        _
      $region24: #{srn_head_forward.8} parent=11 // pred_fallthru
        _
    $region12: #{srn_head_forward.8} parent=5 // pred_fallthru
      _
    %p176 = scmp.lt.s32.totalorder %s11, 2
    // Predicated region
    $region25: #{srn_head_forward.8} parent=5 // pred_check
      %p177 = pneg %p176
    $region26: #{srn_head_forward.8} parent=5 // pred_check_branch
      %179 = sbr.rel (%p177) target = $region28
    $region27: #{srn_head_forward.8} parent=5 // pred_region
      // Predicated region
      $region29: #{srn_head_forward.8} parent=27 // pred_check
        %p180 = pneg %p31
      $region30: #{srn_head_forward.8} parent=27 // pred_check_branch
        %182 = sbr.rel (%p180) target = $region32
      $region31: #{srn_head_forward.8} parent=27 // pred_region
        %p183 = scmp.lt.s32.totalorder %s11, 1
        %s184 = scalar_select %p183, %s11, 1
        %s185 = smul.addr %s184, 8
        %s186 = scalar_lea.vmem %s0, %s185
      $region32: #{srn_head_forward.8} parent=27 // pred_fallthru
        _
      // Predicated region
      $region33: #{srn_head_forward.8} parent=27 // pred_check
        %p187 = pneg %p57
      $region34: #{srn_head_forward.8} parent=27 // pred_check_branch
        %189 = sbr.rel (%p187) target = $region36
      $region35: #{srn_head_forward.8} parent=27 // pred_region
        %p190 = scmp.lt.s32.totalorder %s11, 1
        %s191 = scalar_select %p190, %s11, 1
        %s192 = smul.addr %s191, 4
        %s193 = smul.addr %s192, 8
        %s194 = scalar_lea.vmem %s1, %s193
      $region36: #{srn_head_forward.8} parent=27 // pred_fallthru
        _
    $region28: #{srn_head_forward.8} parent=5 // pred_fallthru
      _
    %p195 = scmp.le.s32.totalorder 1, %s11
    %p196 = scmp.lt.s32.totalorder %s11, 3
    %p197 = pnand %p195, %p196
    %p198 = pneg %p197
    // Predicated region
    $region37: #{srn_head_forward.8} parent=5 // pred_check
      _
    $region38: #{srn_head_forward.8} parent=5 // pred_check_branch
      %200 = sbr.rel (%p197) target = $region40
    $region39: #{srn_head_forward.8} parent=5 // pred_region
      %s201 = ssub.s32 %s11, 1
      %p202 = scmp.lt.s32.totalorder %s16, 1
      %s203 = scalar_select %p202, %s16, 1
      %s204 = smul.addr %s203, 8
      %s205 = scalar_lea.vmem %s0, %s204
      %p206 = pneg %p37
      %p207 = pneg %p34
      %p208 = scmp.lt.s32.totalorder %s16, 1
      %s209 = scalar_select %p208, %s16, 1
      %s210 = smul.addr %s209, 4
      %s211 = smul.addr %s210, 8
      %s212 = scalar_lea.vmem %s1, %s211
      %p213 = pneg %p63
      %p214 = pneg %p60
      %p215 = pneg %p84
      %p216 = pneg %p81
      %p217 = pneg %p105
      %p218 = pneg %p102
      %p219 = pneg %p126
      %p220 = pneg %p123
      %p221 = pneg %p152
      %p222 = pneg %p149
      %p223 = scmp.lt.s32.totalorder %s16, 1
      %s224 = scalar_select %p223, %s16, 1
      %s225 = smul.addr %s224, 8
      %s226 = scalar_lea.vmem %s5, %s225
      %p227 = scmp.lt.s32.totalorder %s16, 1
      %s228 = scalar_select %p227, %s16, 1
      %s229 = smul.addr %s228, 8
      %s230 = scalar_lea.vmem %s0, %s229
      %p231 = scmp.lt.s32.totalorder %s16, 1
      %s232 = scalar_select %p231, %s16, 1
      %s233 = smul.addr %s232, 4
      %s234 = smul.addr %s233, 8
      %s235 = scalar_lea.vmem %s1, %s234
      %p236 = scmp.lt.s32.totalorder %s16, 1
      %s237 = scalar_select %p236, %s16, 1
      %s238 = smul.addr %s237, 8
      %s239 = scalar_lea.vmem %s5, %s238
      %v241 = vld [vmem:[%s235] sm:$0xff]
      %v242 = vld [vmem:[%s235 + $0x8] sm:$0xff]
      %v243 = vld [vmem:[%s235 + $0x10] sm:$0xff]
      %v244 = vld [vmem:[%s235 + $0x18] sm:$0xff]
      %v245 = vpack.c.bf16 %v242, %v241
      %v246 = vpack.c.bf16 %v244, %v243
      %v247 = vld [vmem:[%s2] sm:$0xf]
      %v248 = vld [vmem:[%s2 + $0x4] sm:$0xf]
      %v249 = vld [vmem:[%s2 + $0x8] sm:$0xf]
      %v250 = vld [vmem:[%s2 + $0xc] sm:$0xf]
      %v251 = vld [vmem:[%s2 + $0x10] sm:$0xf]
      %v252 = vld [vmem:[%s2 + $0x14] sm:$0xf]
      %v253 = vld [vmem:[%s2 + $0x18] sm:$0xf]
      %v254 = vld [vmem:[%s2 + $0x1c] sm:$0xf]
      %v255 = vld [vmem:[%s3] sm:$0x1]
      %v257 = vlaneseq
      %v258 = vshrl.u32 %v257, 7
      %v259 = vsub.s32 0, %v258
      %v260 = vrot.slane %v255, %v259
      %v270 = vunpack.c.l.b16 %v247
      %v271 = vunpack.c.l.b16 %v248
      %v272 = vunpack.c.l.b16 %v249
      %v273 = vunpack.c.l.b16 %v250
      %v274 = vunpack.c.l.b16 %v251
      %v275 = vunpack.c.l.b16 %v252
      %v276 = vunpack.c.l.b16 %v253
      %v277 = vunpack.c.l.b16 %v254
      %v278 = vpack.c.b16 %v271, %v270
      %v279 = vpack.c.b16 %v273, %v272
      %v280 = vpack.c.b16 %v275, %v274
      %v281 = vpack.c.b16 %v277, %v276
      %vm286 = vcmask 523264
      %v288 = vsel %vm286, %v245, 0
      %v291 = vsel %vm286, %v246, 0
      %293 = vmatprep.subr.bf16.mxu0 0
      %294 = vmatpush1.bf16.msra.mxu0 0
      %295 = vmatprep.subr.bf16.mxu0 0
      %296 = vmatpush1.bf16.msra.mxu0 0
      %297 = vmatprep.subr.bf16.mxu0 0
      %298 = vmatpush1.bf16.msra.mxu0 0
      %299 = vmatprep.subr.bf16.mxu0 0
      %300 = vmatpush1.bf16.msra.mxu0 0
      %301 = vmatprep.subr.bf16.mxu0 0
      %302 = vmatpush1.bf16.msra.mxu0 %v281
      %303 = vmatprep.subr.bf16.mxu0 0
      %304 = vmatpush1.bf16.msra.mxu0 %v280
      %305 = vmatprep.subr.bf16.mxu0 0
      %306 = vmatpush1.bf16.msra.mxu0 %v279
      %307 = vmatprep.subr.bf16.mxu0 0
      %308 = vmatpush1.bf16.msra.mxu0 %v278
      %309 = vmatprep.subr.bf16.mxu0 0
      %310 = vmatpush2.bf16.msra.mxu0 0
      %311 = vmatprep.subr.bf16.mxu0 0
      %312 = vmatpush2.bf16.msra.mxu0 0
      %313 = vmatprep.subr.bf16.mxu0 0
      %314 = vmatpush2.bf16.msra.mxu0 0
      %315 = vmatprep.subr.bf16.mxu0 0
      %316 = vmatpush2.bf16.msra.mxu0 0
      %317 = vmatprep.subr.bf16.mxu0 0
      %318 = vmatpush2.bf16.msra.mxu0 0
      %319 = vmatprep.subr.bf16.mxu0 0
      %320 = vmatpush2.bf16.msra.mxu0 0
      %321 = vmatprep.subr.bf16.mxu0 0
      %322 = vmatpush2.bf16.msra.mxu0 0
      %323 = vmatprep.subr.bf16.mxu0 0
      %324 = vmatpush2.bf16.msra.mxu0 0
      %325 = vmatprep.mubr.bf16.mxu0 0
      %326 = vmatmul.mubr.bf16.gmra.mxu0 %v288
      %v327 = vpop.f32.mrf.mxu0
      %v328 = vadd.f32 %v260, %v327
      %v329 = vpop.f32.mrf.mxu0
      %v330 = vpop.f32.mrf.mxu0
      %v331 = vadd.f32 %v260, %v330
      %v332 = vpop.f32.mrf.mxu0
      %333 = vmatprep.mubr.bf16.mxu0 0
      %334 = vmatmul.mubr.bf16.gmra.mxu0 %v291
      %v335 = vpop.f32.mrf.mxu0
      %v336 = vadd.f32 %v260, %v335
      %v337 = vpop.f32.mrf.mxu0
      %v338 = vpop.f32.mrf.mxu0
      %v339 = vadd.f32 %v260, %v338
      %v340 = vpop.f32.mrf.mxu0
      %341 = vdwg.mxu0
      %v342 = vpack.c.bf16 %v331, %v328
      %v343 = vpack.c.bf16 %v339, %v336
      %v344 = vld [vmem:[%s230] sm:$0xff]
      %v345 = vld [vmem:[%s4] sm:$0xf]
      %v346 = vlaneseq
      %v347 = vshrl.u32 %v346, 7
      %v348 = vsub.s32 0, %v347
      %v349 = vrot.slane %v344, %v348
      %v350 = vadd.f32 %v349, %v328
      %v351 = vadd.f32 %v349, %v331
      %v352 = vadd.f32 %v349, %v336
      %v353 = vadd.f32 %v349, %v339
      %v354 = vtanh.pop %v350
      %v355 = vtanh.pop %v351
      %v356 = vtanh.pop %v352
      %v357 = vtanh.pop %v353
      %v358 = vpack.c.bf16 %v355, %v354
      %v359 = vpack.c.bf16 %v357, %v356
      %v361 = vsel %vm286, %v345, 0
      %v364 = vsel %vm286, %v358, 0
      %v367 = vsel %vm286, %v359, 0
      %369 = vmatprep.subr.bf16.mxu0 0
      %370 = vmatpush1.bf16.xpose.msra.mxu0 0
      %371 = vmatprep.subr.bf16.mxu0 0
      %372 = vmatpush1.bf16.xpose.msra.mxu0 0
      %373 = vmatprep.subr.bf16.mxu0 0
      %374 = vmatpush1.bf16.xpose.msra.mxu0 0
      %375 = vmatprep.subr.bf16.mxu0 0
      %376 = vmatpush1.bf16.xpose.msra.mxu0 0
      %377 = vmatprep.subr.bf16.mxu0 0
      %378 = vmatpush1.bf16.xpose.msra.mxu0 0
      %379 = vmatprep.subr.bf16.mxu0 0
      %380 = vmatpush1.bf16.xpose.msra.mxu0 0
      %381 = vmatprep.subr.bf16.mxu0 0
      %382 = vmatpush1.bf16.xpose.msra.mxu0 %v367
      %383 = vmatprep.subr.bf16.mxu0 0
      %384 = vmatpush1.bf16.xpose.msra.mxu0 %v364
      %385 = vmatprep.subr.bf16.mxu0 0
      %386 = vmatpush2.bf16.xpose.msra.mxu0 0
      %387 = vmatprep.subr.bf16.mxu0 0
      %388 = vmatpush2.bf16.xpose.msra.mxu0 0
      %389 = vmatprep.subr.bf16.mxu0 0
      %390 = vmatpush2.bf16.xpose.msra.mxu0 0
      %391 = vmatprep.subr.bf16.mxu0 0
      %392 = vmatpush2.bf16.xpose.msra.mxu0 0
      %393 = vmatprep.subr.bf16.mxu0 0
      %394 = vmatpush2.bf16.xpose.msra.mxu0 0
      %395 = vmatprep.subr.bf16.mxu0 0
      %396 = vmatpush2.bf16.xpose.msra.mxu0 0
      %397 = vmatprep.subr.bf16.mxu0 0
      %398 = vmatpush2.bf16.xpose.msra.mxu0 0
      %399 = vmatprep.subr.bf16.mxu0 0
      %400 = vmatpush2.bf16.xpose.msra.mxu0 0
      %401 = vmatprep.mubr.bf16.mxu0 0
      %402 = vmatmul.mubr.bf16.gmra.mxu0 %v361
      %v403 = vpop.f32.mrf.mxu0
      %v404 = vadd.f32 0.0, %v403
      %v405 = vpop.f32.mrf.mxu0
      %v406 = vpop.f32.mrf.mxu0
      %v407 = vpop.f32.mrf.mxu0
      %408 = vdwg.mxu0
      %v409 = vlaneseq
      %v410 = vshrl.u32 %v409, 7
      %v411 = vsub.s32 1, %v410
      %v412 = vrot.slane %v344, %v411
      %v413 = vadd.f32 %v412, %v328
      %v414 = vadd.f32 %v412, %v331
      %v415 = vadd.f32 %v412, %v336
      %v416 = vadd.f32 %v412, %v339
      %v417 = vtanh.pop %v413
      %v418 = vtanh.pop %v414
      %v419 = vtanh.pop %v415
      %v420 = vtanh.pop %v416
      %v421 = vpack.c.bf16 %v418, %v417
      %v422 = vpack.c.bf16 %v420, %v419
      %v424 = vsel %vm286, %v421, 0
      %v427 = vsel %vm286, %v422, 0
      %429 = vmatprep.subr.bf16.mxu0 0
      %430 = vmatpush1.bf16.xpose.msra.mxu0 0
      %431 = vmatprep.subr.bf16.mxu0 0
      %432 = vmatpush1.bf16.xpose.msra.mxu0 0
      %433 = vmatprep.subr.bf16.mxu0 0
      %434 = vmatpush1.bf16.xpose.msra.mxu0 0
      %435 = vmatprep.subr.bf16.mxu0 0
      %436 = vmatpush1.bf16.xpose.msra.mxu0 0
      %437 = vmatprep.subr.bf16.mxu0 0
      %438 = vmatpush1.bf16.xpose.msra.mxu0 0
      %439 = vmatprep.subr.bf16.mxu0 0
      %440 = vmatpush1.bf16.xpose.msra.mxu0 0
      %441 = vmatprep.subr.bf16.mxu0 0
      %442 = vmatpush1.bf16.xpose.msra.mxu0 %v427
      %443 = vmatprep.subr.bf16.mxu0 0
      %444 = vmatpush1.bf16.xpose.msra.mxu0 %v424
      %445 = vmatprep.subr.bf16.mxu0 0
      %446 = vmatpush2.bf16.xpose.msra.mxu0 0
      %447 = vmatprep.subr.bf16.mxu0 0
      %448 = vmatpush2.bf16.xpose.msra.mxu0 0
      %449 = vmatprep.subr.bf16.mxu0 0
      %450 = vmatpush2.bf16.xpose.msra.mxu0 0
      %451 = vmatprep.subr.bf16.mxu0 0
      %452 = vmatpush2.bf16.xpose.msra.mxu0 0
      %453 = vmatprep.subr.bf16.mxu0 0
      %454 = vmatpush2.bf16.xpose.msra.mxu0 0
      %455 = vmatprep.subr.bf16.mxu0 0
      %456 = vmatpush2.bf16.xpose.msra.mxu0 0
      %457 = vmatprep.subr.bf16.mxu0 0
      %458 = vmatpush2.bf16.xpose.msra.mxu0 0
      %459 = vmatprep.subr.bf16.mxu0 0
      %460 = vmatpush2.bf16.xpose.msra.mxu0 0
      %461 = vmatprep.mubr.bf16.mxu0 0
      %462 = vmatmul.mubr.bf16.gmra.mxu0 %v361
      %v463 = vpop.f32.mrf.mxu0
      %v464 = vadd.f32 0.0, %v463
      %v465 = vpop.f32.mrf.mxu0
      %v466 = vpop.f32.mrf.mxu0
      %v467 = vpop.f32.mrf.mxu0
      %468 = vdwg.mxu0
      %v469 = vlaneseq
      %v470 = vshrl.u32 %v469, 7
      %v471 = vsub.s32 2, %v470
      %v472 = vrot.slane %v344, %v471
      %v473 = vadd.f32 %v472, %v328
      %v474 = vadd.f32 %v472, %v331
      %v475 = vadd.f32 %v472, %v336
      %v476 = vadd.f32 %v472, %v339
      %v477 = vtanh.pop %v473
      %v478 = vtanh.pop %v474
      %v479 = vtanh.pop %v475
      %v480 = vtanh.pop %v476
      %v481 = vpack.c.bf16 %v478, %v477
      %v482 = vpack.c.bf16 %v480, %v479
      %v484 = vsel %vm286, %v481, 0
      %v487 = vsel %vm286, %v482, 0
      %489 = vmatprep.subr.bf16.mxu0 0
      %490 = vmatpush1.bf16.xpose.msra.mxu0 0
      %491 = vmatprep.subr.bf16.mxu0 0
      %492 = vmatpush1.bf16.xpose.msra.mxu0 0
      %493 = vmatprep.subr.bf16.mxu0 0
      %494 = vmatpush1.bf16.xpose.msra.mxu0 0
      %495 = vmatprep.subr.bf16.mxu0 0
      %496 = vmatpush1.bf16.xpose.msra.mxu0 0
      %497 = vmatprep.subr.bf16.mxu0 0
      %498 = vmatpush1.bf16.xpose.msra.mxu0 0
      %499 = vmatprep.subr.bf16.mxu0 0
      %500 = vmatpush1.bf16.xpose.msra.mxu0 0
      %501 = vmatprep.subr.bf16.mxu0 0
      %502 = vmatpush1.bf16.xpose.msra.mxu0 %v487
      %503 = vmatprep.subr.bf16.mxu0 0
      %504 = vmatpush1.bf16.xpose.msra.mxu0 %v484
      %505 = vmatprep.subr.bf16.mxu0 0
      %506 = vmatpush2.bf16.xpose.msra.mxu0 0
      %507 = vmatprep.subr.bf16.mxu0 0
      %508 = vmatpush2.bf16.xpose.msra.mxu0 0
      %509 = vmatprep.subr.bf16.mxu0 0
      %510 = vmatpush2.bf16.xpose.msra.mxu0 0
      %511 = vmatprep.subr.bf16.mxu0 0
      %512 = vmatpush2.bf16.xpose.msra.mxu0 0
      %513 = vmatprep.subr.bf16.mxu0 0
      %514 = vmatpush2.bf16.xpose.msra.mxu0 0
      %515 = vmatprep.subr.bf16.mxu0 0
      %516 = vmatpush2.bf16.xpose.msra.mxu0 0
      %517 = vmatprep.subr.bf16.mxu0 0
      %518 = vmatpush2.bf16.xpose.msra.mxu0 0
      %519 = vmatprep.subr.bf16.mxu0 0
      %520 = vmatpush2.bf16.xpose.msra.mxu0 0
      %521 = vmatprep.mubr.bf16.mxu0 0
      %522 = vmatmul.mubr.bf16.gmra.mxu0 %v361
      %v523 = vpop.f32.mrf.mxu0
      %v524 = vadd.f32 0.0, %v523
      %v525 = vpop.f32.mrf.mxu0
      %v526 = vpop.f32.mrf.mxu0
      %v527 = vpop.f32.mrf.mxu0
      %528 = vdwg.mxu0
      %v529 = vlaneseq
      %v530 = vshrl.u32 %v529, 7
      %v531 = vsub.s32 3, %v530
      %v532 = vrot.slane %v344, %v531
      %v533 = vadd.f32 %v532, %v328
      %v534 = vadd.f32 %v532, %v331
      %v535 = vadd.f32 %v532, %v336
      %v536 = vadd.f32 %v532, %v339
      %v537 = vtanh.pop %v533
      %v538 = vtanh.pop %v534
      %v539 = vtanh.pop %v535
      %v540 = vtanh.pop %v536
      %v541 = vpack.c.bf16 %v538, %v537
      %v542 = vpack.c.bf16 %v540, %v539
      %v544 = vsel %vm286, %v541, 0
      %v547 = vsel %vm286, %v542, 0
      %549 = vmatprep.subr.bf16.mxu0 0
      %550 = vmatpush1.bf16.xpose.msra.mxu0 0
      %551 = vmatprep.subr.bf16.mxu0 0
      %552 = vmatpush1.bf16.xpose.msra.mxu0 0
      %553 = vmatprep.subr.bf16.mxu0 0
      %554 = vmatpush1.bf16.xpose.msra.mxu0 0
      %555 = vmatprep.subr.bf16.mxu0 0
      %556 = vmatpush1.bf16.xpose.msra.mxu0 0
      %557 = vmatprep.subr.bf16.mxu0 0
      %558 = vmatpush1.bf16.xpose.msra.mxu0 0
      %559 = vmatprep.subr.bf16.mxu0 0
      %560 = vmatpush1.bf16.xpose.msra.mxu0 0
      %561 = vmatprep.subr.bf16.mxu0 0
      %562 = vmatpush1.bf16.xpose.msra.mxu0 %v547
      %563 = vmatprep.subr.bf16.mxu0 0
      %564 = vmatpush1.bf16.xpose.msra.mxu0 %v544
      %565 = vmatprep.subr.bf16.mxu0 0
      %566 = vmatpush2.bf16.xpose.msra.mxu0 0
      %567 = vmatprep.subr.bf16.mxu0 0
      %568 = vmatpush2.bf16.xpose.msra.mxu0 0
      %569 = vmatprep.subr.bf16.mxu0 0
      %570 = vmatpush2.bf16.xpose.msra.mxu0 0
      %571 = vmatprep.subr.bf16.mxu0 0
      %572 = vmatpush2.bf16.xpose.msra.mxu0 0
      %573 = vmatprep.subr.bf16.mxu0 0
      %574 = vmatpush2.bf16.xpose.msra.mxu0 0
      %575 = vmatprep.subr.bf16.mxu0 0
      %576 = vmatpush2.bf16.xpose.msra.mxu0 0
      %577 = vmatprep.subr.bf16.mxu0 0
      %578 = vmatpush2.bf16.xpose.msra.mxu0 0
      %579 = vmatprep.subr.bf16.mxu0 0
      %580 = vmatpush2.bf16.xpose.msra.mxu0 0
      %581 = vmatprep.mubr.bf16.mxu0 0
      %582 = vmatmul.mubr.bf16.gmra.mxu0 %v361
      %v583 = vpop.f32.mrf.mxu0
      %v584 = vadd.f32 0.0, %v583
      %v585 = vpop.f32.mrf.mxu0
      %v586 = vpop.f32.mrf.mxu0
      %v587 = vpop.f32.mrf.mxu0
      %588 = vdwg.mxu0
      %v589 = vlaneseq
      %v590 = vshrl.u32 %v589, 7
      %v591 = vsub.s32 4, %v590
      %v592 = vrot.slane %v344, %v591
      %v593 = vadd.f32 %v592, %v328
      %v594 = vadd.f32 %v592, %v331
      %v595 = vadd.f32 %v592, %v336
      %v596 = vadd.f32 %v592, %v339
      %v597 = vtanh.pop %v593
      %v598 = vtanh.pop %v594
      %v599 = vtanh.pop %v595
      %v600 = vtanh.pop %v596
      %v601 = vpack.c.bf16 %v598, %v597
      %v602 = vpack.c.bf16 %v600, %v599
      %v604 = vsel %vm286, %v601, 0
      %v607 = vsel %vm286, %v602, 0
      %609 = vmatprep.subr.bf16.mxu0 0
      %610 = vmatpush1.bf16.xpose.msra.mxu0 0
      %611 = vmatprep.subr.bf16.mxu0 0
      %612 = vmatpush1.bf16.xpose.msra.mxu0 0
      %613 = vmatprep.subr.bf16.mxu0 0
      %614 = vmatpush1.bf16.xpose.msra.mxu0 0
      %615 = vmatprep.subr.bf16.mxu0 0
      %616 = vmatpush1.bf16.xpose.msra.mxu0 0
      %617 = vmatprep.subr.bf16.mxu0 0
      %618 = vmatpush1.bf16.xpose.msra.mxu0 0
      %619 = vmatprep.subr.bf16.mxu0 0
      %620 = vmatpush1.bf16.xpose.msra.mxu0 0
      %621 = vmatprep.subr.bf16.mxu0 0
      %622 = vmatpush1.bf16.xpose.msra.mxu0 %v607
      %623 = vmatprep.subr.bf16.mxu0 0
      %624 = vmatpush1.bf16.xpose.msra.mxu0 %v604
      %625 = vmatprep.subr.bf16.mxu0 0
      %626 = vmatpush2.bf16.xpose.msra.mxu0 0
      %627 = vmatprep.subr.bf16.mxu0 0
      %628 = vmatpush2.bf16.xpose.msra.mxu0 0
      %629 = vmatprep.subr.bf16.mxu0 0
      %630 = vmatpush2.bf16.xpose.msra.mxu0 0
      %631 = vmatprep.subr.bf16.mxu0 0
      %632 = vmatpush2.bf16.xpose.msra.mxu0 0
      %633 = vmatprep.subr.bf16.mxu0 0
      %634 = vmatpush2.bf16.xpose.msra.mxu0 0
      %635 = vmatprep.subr.bf16.mxu0 0
      %636 = vmatpush2.bf16.xpose.msra.mxu0 0
      %637 = vmatprep.subr.bf16.mxu0 0
      %638 = vmatpush2.bf16.xpose.msra.mxu0 0
      %639 = vmatprep.subr.bf16.mxu0 0
      %640 = vmatpush2.bf16.xpose.msra.mxu0 0
      %641 = vmatprep.mubr.bf16.mxu0 0
      %642 = vmatmul.mubr.bf16.gmra.mxu0 %v361
      %v643 = vpop.f32.mrf.mxu0
      %v644 = vadd.f32 0.0, %v643
      %v645 = vpop.f32.mrf.mxu0
      %v646 = vpop.f32.mrf.mxu0
      %v647 = vpop.f32.mrf.mxu0
      %648 = vdwg.mxu0
      %v649 = vlaneseq
      %v650 = vshrl.u32 %v649, 7
      %v651 = vsub.s32 5, %v650
      %v652 = vrot.slane %v344, %v651
      %v653 = vadd.f32 %v652, %v328
      %v654 = vadd.f32 %v652, %v331
      %v655 = vadd.f32 %v652, %v336
      %v656 = vadd.f32 %v652, %v339
      %v657 = vtanh.pop %v653
      %v658 = vtanh.pop %v654
      %v659 = vtanh.pop %v655
      %v660 = vtanh.pop %v656
      %v661 = vpack.c.bf16 %v658, %v657
      %v662 = vpack.c.bf16 %v660, %v659
      %v664 = vsel %vm286, %v661, 0
      %v667 = vsel %vm286, %v662, 0
      %669 = vmatprep.subr.bf16.mxu0 0
      %670 = vmatpush1.bf16.xpose.msra.mxu0 0
      %671 = vmatprep.subr.bf16.mxu0 0
      %672 = vmatpush1.bf16.xpose.msra.mxu0 0
      %673 = vmatprep.subr.bf16.mxu0 0
      %674 = vmatpush1.bf16.xpose.msra.mxu0 0
      %675 = vmatprep.subr.bf16.mxu0 0
      %676 = vmatpush1.bf16.xpose.msra.mxu0 0
      %677 = vmatprep.subr.bf16.mxu0 0
      %678 = vmatpush1.bf16.xpose.msra.mxu0 0
      %679 = vmatprep.subr.bf16.mxu0 0
      %680 = vmatpush1.bf16.xpose.msra.mxu0 0
      %681 = vmatprep.subr.bf16.mxu0 0
      %682 = vmatpush1.bf16.xpose.msra.mxu0 %v667
      %683 = vmatprep.subr.bf16.mxu0 0
      %684 = vmatpush1.bf16.xpose.msra.mxu0 %v664
      %685 = vmatprep.subr.bf16.mxu0 0
      %686 = vmatpush2.bf16.xpose.msra.mxu0 0
      %687 = vmatprep.subr.bf16.mxu0 0
      %688 = vmatpush2.bf16.xpose.msra.mxu0 0
      %689 = vmatprep.subr.bf16.mxu0 0
      %690 = vmatpush2.bf16.xpose.msra.mxu0 0
      %691 = vmatprep.subr.bf16.mxu0 0
      %692 = vmatpush2.bf16.xpose.msra.mxu0 0
      %693 = vmatprep.subr.bf16.mxu0 0
      %694 = vmatpush2.bf16.xpose.msra.mxu0 0
      %695 = vmatprep.subr.bf16.mxu0 0
      %696 = vmatpush2.bf16.xpose.msra.mxu0 0
      %697 = vmatprep.subr.bf16.mxu0 0
      %698 = vmatpush2.bf16.xpose.msra.mxu0 0
      %699 = vmatprep.subr.bf16.mxu0 0
      %700 = vmatpush2.bf16.xpose.msra.mxu0 0
      %701 = vmatprep.mubr.bf16.mxu0 0
      %702 = vmatmul.mubr.bf16.gmra.mxu0 %v361
      %v703 = vpop.f32.mrf.mxu0
      %v704 = vadd.f32 0.0, %v703
      %v705 = vpop.f32.mrf.mxu0
      %v706 = vpop.f32.mrf.mxu0
      %v707 = vpop.f32.mrf.mxu0
      %708 = vdwg.mxu0
      %v709 = vlaneseq
      %v710 = vshrl.u32 %v709, 7
      %v711 = vsub.s32 6, %v710
      %v712 = vrot.slane %v344, %v711
      %v713 = vadd.f32 %v712, %v328
      %v714 = vadd.f32 %v712, %v331
      %v715 = vadd.f32 %v712, %v336
      %v716 = vadd.f32 %v712, %v339
      %v717 = vtanh.pop %v713
      %v718 = vtanh.pop %v714
      %v719 = vtanh.pop %v715
      %v720 = vtanh.pop %v716
      %v721 = vpack.c.bf16 %v718, %v717
      %v722 = vpack.c.bf16 %v720, %v719
      %v724 = vsel %vm286, %v721, 0
      %v727 = vsel %vm286, %v722, 0
      %729 = vmatprep.subr.bf16.mxu0 0
      %730 = vmatpush1.bf16.xpose.msra.mxu0 0
      %731 = vmatprep.subr.bf16.mxu0 0
      %732 = vmatpush1.bf16.xpose.msra.mxu0 0
      %733 = vmatprep.subr.bf16.mxu0 0
      %734 = vmatpush1.bf16.xpose.msra.mxu0 0
      %735 = vmatprep.subr.bf16.mxu0 0
      %736 = vmatpush1.bf16.xpose.msra.mxu0 0
      %737 = vmatprep.subr.bf16.mxu0 0
      %738 = vmatpush1.bf16.xpose.msra.mxu0 0
      %739 = vmatprep.subr.bf16.mxu0 0
      %740 = vmatpush1.bf16.xpose.msra.mxu0 0
      %741 = vmatprep.subr.bf16.mxu0 0
      %742 = vmatpush1.bf16.xpose.msra.mxu0 %v727
      %743 = vmatprep.subr.bf16.mxu0 0
      %744 = vmatpush1.bf16.xpose.msra.mxu0 %v724
      %745 = vmatprep.subr.bf16.mxu0 0
      %746 = vmatpush2.bf16.xpose.msra.mxu0 0
      %747 = vmatprep.subr.bf16.mxu0 0
      %748 = vmatpush2.bf16.xpose.msra.mxu0 0
      %749 = vmatprep.subr.bf16.mxu0 0
      %750 = vmatpush2.bf16.xpose.msra.mxu0 0
      %751 = vmatprep.subr.bf16.mxu0 0
      %752 = vmatpush2.bf16.xpose.msra.mxu0 0
      %753 = vmatprep.subr.bf16.mxu0 0
      %754 = vmatpush2.bf16.xpose.msra.mxu0 0
      %755 = vmatprep.subr.bf16.mxu0 0
      %756 = vmatpush2.bf16.xpose.msra.mxu0 0
      %757 = vmatprep.subr.bf16.mxu0 0
      %758 = vmatpush2.bf16.xpose.msra.mxu0 0
      %759 = vmatprep.subr.bf16.mxu0 0
      %760 = vmatpush2.bf16.xpose.msra.mxu0 0
      %761 = vmatprep.mubr.bf16.mxu0 0
      %762 = vmatmul.mubr.bf16.gmra.mxu0 %v361
      %v763 = vpop.f32.mrf.mxu0
      %v764 = vadd.f32 0.0, %v763
      %v765 = vpop.f32.mrf.mxu0
      %v766 = vpop.f32.mrf.mxu0
      %v767 = vpop.f32.mrf.mxu0
      %768 = vdwg.mxu0
      %v769 = vlaneseq
      %v770 = vshrl.u32 %v769, 7
      %v771 = vsub.s32 7, %v770
      %v772 = vrot.slane %v344, %v771
      %v773 = vadd.f32 %v772, %v328
      %v774 = vadd.f32 %v772, %v331
      %v775 = vadd.f32 %v772, %v336
      %v776 = vadd.f32 %v772, %v339
      %v777 = vtanh.pop %v773
      %v778 = vtanh.pop %v774
      %v779 = vtanh.pop %v775
      %v780 = vtanh.pop %v776
      %v781 = vpack.c.bf16 %v778, %v777
      %v782 = vpack.c.bf16 %v780, %v779
      %v784 = vsel %vm286, %v781, 0
      %v787 = vsel %vm286, %v782, 0
      %789 = vmatprep.subr.bf16.mxu0 0
      %790 = vmatpush1.bf16.xpose.msra.mxu0 0
      %791 = vmatprep.subr.bf16.mxu0 0
      %792 = vmatpush1.bf16.xpose.msra.mxu0 0
      %793 = vmatprep.subr.bf16.mxu0 0
      %794 = vmatpush1.bf16.xpose.msra.mxu0 0
      %795 = vmatprep.subr.bf16.mxu0 0
      %796 = vmatpush1.bf16.xpose.msra.mxu0 0
      %797 = vmatprep.subr.bf16.mxu0 0
      %798 = vmatpush1.bf16.xpose.msra.mxu0 0
      %799 = vmatprep.subr.bf16.mxu0 0
      %800 = vmatpush1.bf16.xpose.msra.mxu0 0
      %801 = vmatprep.subr.bf16.mxu0 0
      %802 = vmatpush1.bf16.xpose.msra.mxu0 %v787
      %803 = vmatprep.subr.bf16.mxu0 0
      %804 = vmatpush1.bf16.xpose.msra.mxu0 %v784
      %805 = vmatprep.subr.bf16.mxu0 0
      %806 = vmatpush2.bf16.xpose.msra.mxu0 0
      %807 = vmatprep.subr.bf16.mxu0 0
      %808 = vmatpush2.bf16.xpose.msra.mxu0 0
      %809 = vmatprep.subr.bf16.mxu0 0
      %810 = vmatpush2.bf16.xpose.msra.mxu0 0
      %811 = vmatprep.subr.bf16.mxu0 0
      %812 = vmatpush2.bf16.xpose.msra.mxu0 0
      %813 = vmatprep.subr.bf16.mxu0 0
      %814 = vmatpush2.bf16.xpose.msra.mxu0 0
      %815 = vmatprep.subr.bf16.mxu0 0
      %816 = vmatpush2.bf16.xpose.msra.mxu0 0
      %817 = vmatprep.subr.bf16.mxu0 0
      %818 = vmatpush2.bf16.xpose.msra.mxu0 0
      %819 = vmatprep.subr.bf16.mxu0 0
      %820 = vmatpush2.bf16.xpose.msra.mxu0 0
      %821 = vmatprep.mubr.bf16.mxu0 0
      %822 = vmatmul.mubr.bf16.gmra.mxu0 %v361
      %v823 = vpop.f32.mrf.mxu0
      %v824 = vadd.f32 0.0, %v823
      %v825 = vpop.f32.mrf.mxu0
      %v826 = vpop.f32.mrf.mxu0
      %v827 = vpop.f32.mrf.mxu0
      %828 = vdwg.mxu0
      %v830 = vrot.slane %v464, 7
      %v833 = vrot.slane %v524, 6
      %v836 = vrot.slane %v584, 5
      %v839 = vrot.slane %v644, 4
      %v842 = vrot.slane %v704, 3
      %v845 = vrot.slane %v764, 2
      %v848 = vrot.slane %v824, 1
      %vm850 = vcmask 1040384
      %v851 = vsel %vm850, %v404, %v830
      %vm852 = vcmask 1041408
      %v853 = vsel %vm852, %v851, %v833
      %vm854 = vcmask 1042432
      %v855 = vsel %vm854, %v853, %v836
      %vm856 = vcmask 1043456
      %v857 = vsel %vm856, %v855, %v839
      %vm858 = vcmask 1044480
      %v859 = vsel %vm858, %v857, %v842
      %vm860 = vcmask 1045504
      %v861 = vsel %vm860, %v859, %v845
      %vm862 = vcmask 1046528
      %v863 = vsel %vm862, %v861, %v848
      %vm864 = vcmask 261120
      %v865 = vsel %vm864, %v863, -inf
      %866 = vmax.xlane.f32.xlu0 %v865
      %v867 = vpop.xlane.xlu0 %866
      %v868 = vsub.f32 %v863, %v867
      %v869 = vmul.f32 %v868, 1.442695
      %v870 = vpow.pop %v869
      %v871 = vsel %vm864, %v870, 0.0
      %872 = vadd.xlane.f32.xlu0 %v871
      %v873 = vpop.xlane.xlu0 %872
      %v874 = vrcp.pop %v873
      %v875 = vmul.f32 %v870, %v874
      %v876 = vpack.c.bf16 %v875, %v875
      %v878 = vsel %vm864, %v876, 0
      %880 = vmatprep.subr.bf16.mxu0 0
      %881 = vmatpush1.bf16.msra.mxu0 0
      %882 = vmatprep.subr.bf16.mxu0 0
      %883 = vmatpush1.bf16.msra.mxu0 0
      %884 = vmatprep.subr.bf16.mxu0 0
      %885 = vmatpush1.bf16.msra.mxu0 0
      %886 = vmatprep.subr.bf16.mxu0 0
      %887 = vmatpush1.bf16.msra.mxu0 0
      %888 = vmatprep.subr.bf16.mxu0 0
      %889 = vmatpush1.bf16.msra.mxu0 0
      %890 = vmatprep.subr.bf16.mxu0 0
      %891 = vmatpush1.bf16.msra.mxu0 0
      %892 = vmatprep.subr.bf16.mxu0 0
      %893 = vmatpush1.bf16.msra.mxu0 %v343
      %894 = vmatprep.subr.bf16.mxu0 0
      %895 = vmatpush1.bf16.msra.mxu0 %v342
      %896 = vmatprep.subr.bf16.mxu0 0
      %897 = vmatpush2.bf16.msra.mxu0 0
      %898 = vmatprep.subr.bf16.mxu0 0
      %899 = vmatpush2.bf16.msra.mxu0 0
      %900 = vmatprep.subr.bf16.mxu0 0
      %901 = vmatpush2.bf16.msra.mxu0 0
      %902 = vmatprep.subr.bf16.mxu0 0
      %903 = vmatpush2.bf16.msra.mxu0 0
      %904 = vmatprep.subr.bf16.mxu0 0
      %905 = vmatpush2.bf16.msra.mxu0 0
      %906 = vmatprep.subr.bf16.mxu0 0
      %907 = vmatpush2.bf16.msra.mxu0 0
      %908 = vmatprep.subr.bf16.mxu0 0
      %909 = vmatpush2.bf16.msra.mxu0 0
      %910 = vmatprep.subr.bf16.mxu0 0
      %911 = vmatpush2.bf16.msra.mxu0 0
      %912 = vmatprep.mubr.bf16.mxu0 0
      %913 = vmatmul.mubr.bf16.gmra.mxu0 %v878
      %v914 = vpop.f32.mrf.mxu0
      %v915 = vadd.f32 0.0, %v914
      %v916 = vpop.f32.mrf.mxu0
      %v917 = vpop.f32.mrf.mxu0
      %v918 = vpop.f32.mrf.mxu0
      %919 = vdwg.mxu0
      %920 = vst.msk [vmem:[%s239] sm:$0xff] %vm286, %v915
      %p921 = scmp.lt.s32.totalorder %s16, 1
      %s922 = scalar_select %p921, %s16, 1
      %s923 = smul.addr %s922, 8
      %s924 = scalar_lea.vmem %s5, %s923
      // Predicated region
      $region41: #{srn_head_forward.8} parent=39 // pred_check
        %p925 = pneg %p149
      $region42: #{srn_head_forward.8} parent=39 // pred_check_branch
        %927 = sbr.rel (%p925) target = $region44
      $region43: #{srn_head_forward.8} parent=39 // pred_region
        _
      $region44: #{srn_head_forward.8} parent=39 // pred_fallthru
        _
    $region40: #{srn_head_forward.8} parent=5 // pred_fallthru
      _
    %p928 = scmp.le.s32.totalorder 2, %s11
    // Predicated region
    $region45: #{srn_head_forward.8} parent=5 // pred_check
      %p929 = pneg %p928
    $region46: #{srn_head_forward.8} parent=5 // pred_check_branch
      %931 = sbr.rel (%p929) target = $region48
    $region47: #{srn_head_forward.8} parent=5 // pred_region
      %s932 = ssub.s32 %s11, 2
      // Predicated region
      $region49: #{srn_head_forward.8} parent=47 // pred_check
        %p933 = pneg %p155
      $region50: #{srn_head_forward.8} parent=47 // pred_check_branch
        %935 = sbr.rel (%p933) target = $region52
      $region51: #{srn_head_forward.8} parent=47 // pred_region
        %p936 = scmp.lt.s32.totalorder %s17, 1
        %s937 = scalar_select %p936, %s17, 1
        %s938 = smul.addr %s937, 8
        %s939 = scalar_lea.vmem %s5, %s938
      $region52: #{srn_head_forward.8} parent=47 // pred_fallthru
        _
    $region48: #{srn_head_forward.8} parent=5 // pred_fallthru
      _
  $region6: #{srn_head_forward.8} parent=0 // loop_footer
    %s15 = sadd.s32 1, %s11
  $region7: #{srn_head_forward.8} parent=0 // loop_footer_branch
    %10 = sbr.rel target = $region3
  $region8: #{srn_head_forward.8} parent=0 // loop_exit
    _

// kernel: srn_head_forward.7
$region0: #{srn_head_forward.7}
  #allocation0 [shape = 'u32[]', space=smem, size = 0x4, offset = 0x4, fixed_abs, tag = 'smem constant byte address 0x4 - core index']
  #allocation1 [shape = 'u32[144,128]{1,0:T(1,128)}', space=vmem, size = 0x12000, scoped, tag = 'internal scratch']
  %s0 = inlined_call_operand.vmem [shape: f32[64,64], index: 0, kind: input, shape index: {}]
  %s1 = inlined_call_operand.vmem [shape: f32[1,64], index: 1, kind: input, shape index: {}]
  %s2 = inlined_call_operand.vmem [shape: f32[1,64], index: 2, kind: input, shape index: {}]
  %s3 = inlined_call_operand.vmem [shape: bf16[64,192], index: 3, kind: input, shape index: {}]
  %s4 = inlined_call_operand.vmem [shape: bf16[64,64], index: 4, kind: input, shape index: {}]
  %s5 = inlined_call_operand.vmem [shape: f32[1,64], index: 5, kind: input, shape index: {}]
  %s6 = inlined_call_operand.vmem [shape: f32[1,64], index: 6, kind: input, shape index: {}]
  %s7 = inlined_call_operand.vmem [shape: bf16[64,64], index: 7, kind: input, shape index: {}]
  %s8 = inlined_call_operand.vmem [shape: f32[1,64], index: 8, kind: input, shape index: {}]
  %s9 = inlined_call_operand.vmem [shape: bf16[64,64], index: 9, kind: input, shape index: {}]
  %s10 = inlined_call_operand.vmem [shape: f32[1,64], index: 10, kind: input, shape index: {}]
  %s11 = inlined_call_operand.vmem [shape: f32[1,64], index: 11, kind: input, shape index: {}]
  %s12 = inlined_call_operand.vmem [shape: f32[1,64], index: 12, kind: input, shape index: {}]
  %s13 = inlined_call_operand.vmem [shape: f32[64,64], index: 13, kind: output, shape index: {}]
  %s14 = sld [smem:[#allocation0]]
  $region62: #{srn_head_forward.7} parent=0
    _
  %s16 = ssub.s32 1, %s14
  %s17 = scalar_select 0, %s16, %s14
  // Predicated region
  $region2: #{srn_head_forward.7} parent=0 // pred_check
    _
  $region3: #{srn_head_forward.7} parent=0 // pred_check_branch
    %19 = sbr.rel (0) target = $region5
  $region4: #{srn_head_forward.7} parent=0 // pred_region
    _
  $region5: #{srn_head_forward.7} parent=0 // pred_fallthru
    _
  // Predicated region
  $region6: #{srn_head_forward.7} parent=0 // pred_check
    _
  $region7: #{srn_head_forward.7} parent=0 // pred_check_branch
    %21 = sbr.rel (0) target = $region9
  $region8: #{srn_head_forward.7} parent=0 // pred_region
    _
  $region9: #{srn_head_forward.7} parent=0 // pred_fallthru
    _
  // Predicated region
  $region10: #{srn_head_forward.7} parent=0 // pred_check
    _
  $region11: #{srn_head_forward.7} parent=0 // pred_check_branch
    %23 = sbr.rel (0) target = $region13
  $region12: #{srn_head_forward.7} parent=0 // pred_region
    _
  $region13: #{srn_head_forward.7} parent=0 // pred_fallthru
    _
  // Predicated region
  $region14: #{srn_head_forward.7} parent=0 // pred_check
    _
  $region15: #{srn_head_forward.7} parent=0 // pred_check_branch
    %25 = sbr.rel (0) target = $region17
  $region16: #{srn_head_forward.7} parent=0 // pred_region
    _
  $region17: #{srn_head_forward.7} parent=0 // pred_fallthru
    _
  // Predicated region
  $region18: #{srn_head_forward.7} parent=0 // pred_check
    _
  $region19: #{srn_head_forward.7} parent=0 // pred_check_branch
    %27 = sbr.rel (0) target = $region21
  $region20: #{srn_head_forward.7} parent=0 // pred_region
    _
  $region21: #{srn_head_forward.7} parent=0 // pred_fallthru
    _
  // Predicated region
  $region22: #{srn_head_forward.7} parent=0 // pred_check
    _
  $region23: #{srn_head_forward.7} parent=0 // pred_check_branch
    %29 = sbr.rel (0) target = $region25
  $region24: #{srn_head_forward.7} parent=0 // pred_region
    _
  $region25: #{srn_head_forward.7} parent=0 // pred_fallthru
    _
  // Predicated region
  $region26: #{srn_head_forward.7} parent=0 // pred_check
    _
  $region27: #{srn_head_forward.7} parent=0 // pred_check_branch
    %31 = sbr.rel (0) target = $region29
  $region28: #{srn_head_forward.7} parent=0 // pred_region
    _
  $region29: #{srn_head_forward.7} parent=0 // pred_fallthru
    _
  // Predicated region
  $region30: #{srn_head_forward.7} parent=0 // pred_check
    _
  $region31: #{srn_head_forward.7} parent=0 // pred_check_branch
    %33 = sbr.rel (0) target = $region33
  $region32: #{srn_head_forward.7} parent=0 // pred_region
    _
  $region33: #{srn_head_forward.7} parent=0 // pred_fallthru
    _
  // Predicated region
  $region34: #{srn_head_forward.7} parent=0 // pred_check
    _
  $region35: #{srn_head_forward.7} parent=0 // pred_check_branch
    %35 = sbr.rel (0) target = $region37
  $region36: #{srn_head_forward.7} parent=0 // pred_region
    _
  $region37: #{srn_head_forward.7} parent=0 // pred_fallthru
    _
  // Predicated region
  $region38: #{srn_head_forward.7} parent=0 // pred_check
    _
  $region39: #{srn_head_forward.7} parent=0 // pred_check_branch
    %37 = sbr.rel (0) target = $region41
  $region40: #{srn_head_forward.7} parent=0 // pred_region
    _
  $region41: #{srn_head_forward.7} parent=0 // pred_fallthru
    _
  // Predicated region
  $region42: #{srn_head_forward.7} parent=0 // pred_check
    _
  $region43: #{srn_head_forward.7} parent=0 // pred_check_branch
    %39 = sbr.rel (0) target = $region45
  $region44: #{srn_head_forward.7} parent=0 // pred_region
    _
  $region45: #{srn_head_forward.7} parent=0 // pred_fallthru
    _
  // Predicated region
  $region46: #{srn_head_forward.7} parent=0 // pred_check
    _
  $region47: #{srn_head_forward.7} parent=0 // pred_check_branch
    %41 = sbr.rel (0) target = $region49
  $region48: #{srn_head_forward.7} parent=0 // pred_region
    _
  $region49: #{srn_head_forward.7} parent=0 // pred_fallthru
    _
  // Predicated region
  $region50: #{srn_head_forward.7} parent=0 // pred_check
    _
  $region51: #{srn_head_forward.7} parent=0 // pred_check_branch
    %43 = sbr.rel (0) target = $region53
  $region52: #{srn_head_forward.7} parent=0 // pred_region
    _
  $region53: #{srn_head_forward.7} parent=0 // pred_fallthru
    _
  %v45 = vld [vmem:[%s0] sm:$0xff]
  %v46 = vld [vmem:[%s0 + $0x8] sm:$0xff]
  %v47 = vld [vmem:[%s0 + $0x10] sm:$0xff]
  %v48 = vld [vmem:[%s0 + $0x18] sm:$0xff]
  %v49 = vld [vmem:[%s0 + $0x20] sm:$0xff]
  %v50 = vld [vmem:[%s0 + $0x28] sm:$0xff]
  %v51 = vld [vmem:[%s0 + $0x30] sm:$0xff]
  %v52 = vld [vmem:[%s0 + $0x38] sm:$0xff]
  %vm53 = vcmask 523264
  %v54 = vsel %vm53, %v45, 0.0
  %55 = vadd.xlane.f32.xlu0 %v54
  %v56 = vpop.xlane.xlu0 %55
  %v57 = vsel %vm53, %v46, 0.0
  %58 = vadd.xlane.f32.xlu0 %v57
  %v59 = vpop.xlane.xlu0 %58
  %v60 = vsel %vm53, %v47, 0.0
  %61 = vadd.xlane.f32.xlu0 %v60
  %v62 = vpop.xlane.xlu0 %61
  %v63 = vsel %vm53, %v48, 0.0
  %64 = vadd.xlane.f32.xlu0 %v63
  %v65 = vpop.xlane.xlu0 %64
  %v66 = vsel %vm53, %v49, 0.0
  %67 = vadd.xlane.f32.xlu0 %v66
  %v68 = vpop.xlane.xlu0 %67
  %v69 = vsel %vm53, %v50, 0.0
  %70 = vadd.xlane.f32.xlu0 %v69
  %v71 = vpop.xlane.xlu0 %70
  %v72 = vsel %vm53, %v51, 0.0
  %73 = vadd.xlane.f32.xlu0 %v72
  %v74 = vpop.xlane.xlu0 %73
  %v75 = vsel %vm53, %v52, 0.0
  %76 = vadd.xlane.f32.xlu0 %v75
  %v77 = vpop.xlane.xlu0 %76
  %v78 = vrcp.pop 64.0
  %v79 = vmul.f32 %v56, %v78
  %v80 = vmul.f32 %v59, %v78
  %v81 = vmul.f32 %v62, %v78
  %v82 = vmul.f32 %v65, %v78
  %v83 = vmul.f32 %v68, %v78
  %v84 = vmul.f32 %v71, %v78
  %v85 = vmul.f32 %v74, %v78
  %v86 = vmul.f32 %v77, %v78
  %v87 = vsub.f32 %v45, %v79
  %v88 = vsub.f32 %v46, %v80
  %v89 = vsub.f32 %v47, %v81
  %v90 = vsub.f32 %v48, %v82
  %v91 = vsub.f32 %v49, %v83
  %v92 = vsub.f32 %v50, %v84
  %v93 = vsub.f32 %v51, %v85
  %v94 = vsub.f32 %v52, %v86
  %v95 = vmul.f32 %v87, %v87
  %v96 = vmul.f32 %v88, %v88
  %v97 = vmul.f32 %v89, %v89
  %v98 = vmul.f32 %v90, %v90
  %v99 = vmul.f32 %v91, %v91
  %v100 = vmul.f32 %v92, %v92
  %v101 = vmul.f32 %v93, %v93
  %v102 = vmul.f32 %v94, %v94
  %v103 = vsel %vm53, %v95, 0.0
  %104 = vadd.xlane.f32.xlu0 %v103
  %v105 = vpop.xlane.xlu0 %104
  %v106 = vsel %vm53, %v96, 0.0
  %107 = vadd.xlane.f32.xlu0 %v106
  %v108 = vpop.xlane.xlu0 %107
  %v109 = vsel %vm53, %v97, 0.0
  %110 = vadd.xlane.f32.xlu0 %v109
  %v111 = vpop.xlane.xlu0 %110
  %v112 = vsel %vm53, %v98, 0.0
  %113 = vadd.xlane.f32.xlu0 %v112
  %v114 = vpop.xlane.xlu0 %113
  %v115 = vsel %vm53, %v99, 0.0
  %116 = vadd.xlane.f32.xlu0 %v115
  %v117 = vpop.xlane.xlu0 %116
  %v118 = vsel %vm53, %v100, 0.0
  %119 = vadd.xlane.f32.xlu0 %v118
  %v120 = vpop.xlane.xlu0 %119
  %v121 = vsel %vm53, %v101, 0.0
  %122 = vadd.xlane.f32.xlu0 %v121
  %v123 = vpop.xlane.xlu0 %122
  %v124 = vsel %vm53, %v102, 0.0
  %125 = vadd.xlane.f32.xlu0 %v124
  %v126 = vpop.xlane.xlu0 %125
  %v127 = vmul.f32 %v105, %v78
  %v128 = vmul.f32 %v108, %v78
  %v129 = vmul.f32 %v111, %v78
  %v130 = vmul.f32 %v114, %v78
  %v131 = vmul.f32 %v117, %v78
  %v132 = vmul.f32 %v120, %v78
  %v133 = vmul.f32 %v123, %v78
  %v134 = vmul.f32 %v126, %v78
  %v135 = vadd.f32 %v127, 1e-05
  %v136 = vadd.f32 %v128, 1e-05
  %v137 = vadd.f32 %v129, 1e-05
  %v138 = vadd.f32 %v130, 1e-05
  %v139 = vadd.f32 %v131, 1e-05
  %v140 = vadd.f32 %v132, 1e-05
  %v141 = vadd.f32 %v133, 1e-05
  %v142 = vadd.f32 %v134, 1e-05
  %v143 = vrsqrt.pop %v135
  %v144 = vrsqrt.pop %v136
  %v145 = vrsqrt.pop %v137
  %v146 = vrsqrt.pop %v138
  %v147 = vrsqrt.pop %v139
  %v148 = vrsqrt.pop %v140
  %v149 = vrsqrt.pop %v141
  %v150 = vrsqrt.pop %v142
  %v151 = vmul.f32 %v87, %v143
  %v152 = vmul.f32 %v88, %v144
  %v153 = vmul.f32 %v89, %v145
  %v154 = vmul.f32 %v90, %v146
  %v155 = vmul.f32 %v91, %v147
  %v156 = vmul.f32 %v92, %v148
  %v157 = vmul.f32 %v93, %v149
  %v158 = vmul.f32 %v94, %v150
  %v159 = vld [vmem:[%s1] sm:$0x1]
  %v161 = vlaneseq
  %v162 = vshrl.u32 %v161, 7
  %v163 = vsub.s32 0, %v162
  %v164 = vrot.slane %v159, %v163
  %v166 = vmul.f32 %v151, %v164
  %v167 = vmul.f32 %v152, %v164
  %v168 = vmul.f32 %v153, %v164
  %v169 = vmul.f32 %v154, %v164
  %v170 = vmul.f32 %v155, %v164
  %v171 = vmul.f32 %v156, %v164
  %v172 = vmul.f32 %v157, %v164
  %v173 = vmul.f32 %v158, %v164
  %v174 = vld [vmem:[%s2] sm:$0x1]
  %v176 = vlaneseq
  %v177 = vshrl.u32 %v176, 7
  %v178 = vsub.s32 0, %v177
  %v179 = vrot.slane %v174, %v178
  %v181 = vadd.f32 %v166, %v179
  %v182 = vadd.f32 %v167, %v179
  %v183 = vadd.f32 %v168, %v179
  %v184 = vadd.f32 %v169, %v179
  %v185 = vadd.f32 %v170, %v179
  %v186 = vadd.f32 %v171, %v179
  %v187 = vadd.f32 %v172, %v179
  %v188 = vadd.f32 %v173, %v179
  %v189 = vpack.c.bf16 %v182, %v181
  %v190 = vpack.c.bf16 %v184, %v183
  %v191 = vpack.c.bf16 %v186, %v185
  %v192 = vpack.c.bf16 %v188, %v187
  %v193 = vld [vmem:[%s3] sm:$0xff]
  %v194 = vld [vmem:[%s3 + $0x8] sm:$0xff]
  %v195 = vld [vmem:[%s3 + $0x10] sm:$0xff]
  %v196 = vld [vmem:[%s3 + $0x18] sm:$0xff]
  %v197 = vld [vmem:[%s3 + $0x20] sm:$0xff]
  %v198 = vld [vmem:[%s3 + $0x28] sm:$0xff]
  %v199 = vld [vmem:[%s3 + $0x30] sm:$0xff]
  %v200 = vld [vmem:[%s3 + $0x38] sm:$0xff]
  %v209 = vunpack.c.l.b16 %v193
  %v210 = vunpack.c.h.b16 %v193
  %v211 = vunpack.c.l.b16 %v194
  %v212 = vunpack.c.h.b16 %v194
  %v213 = vunpack.c.l.b16 %v195
  %v214 = vunpack.c.h.b16 %v195
  %v215 = vunpack.c.l.b16 %v196
  %v216 = vunpack.c.h.b16 %v196
  %v217 = vunpack.c.l.b16 %v197
  %v218 = vunpack.c.h.b16 %v197
  %v219 = vunpack.c.l.b16 %v198
  %v220 = vunpack.c.h.b16 %v198
  %v221 = vunpack.c.l.b16 %v199
  %v222 = vunpack.c.h.b16 %v199
  %v223 = vunpack.c.l.b16 %v200
  %v224 = vunpack.c.h.b16 %v200
  %v225 = vpack.c.b16 %v211, %v209
  %v226 = vpack.c.b16 %v212, %v210
  %v227 = vpack.c.b16 %v215, %v213
  %v228 = vpack.c.b16 %v216, %v214
  %v229 = vpack.c.b16 %v219, %v217
  %v230 = vpack.c.b16 %v220, %v218
  %v231 = vpack.c.b16 %v223, %v221
  %v232 = vpack.c.b16 %v224, %v222
  %v242 = vsel %vm53, %v189, 0
  %v245 = vsel %vm53, %v190, 0
  %v248 = vsel %vm53, %v191, 0
  %v251 = vsel %vm53, %v192, 0
  %253 = vmatprep.subr.bf16.mxu0 0
  %254 = vmatpush1.bf16.msra.mxu0 0
  %255 = vmatprep.subr.bf16.mxu0 0
  %256 = vmatpush1.bf16.msra.mxu0 0
  %257 = vmatprep.subr.bf16.mxu0 0
  %258 = vmatpush1.bf16.msra.mxu0 0
  %259 = vmatprep.subr.bf16.mxu0 0
  %260 = vmatpush1.bf16.msra.mxu0 0
  %261 = vmatprep.subr.bf16.mxu0 %v232
  %262 = vmatpush1.bf16.msra.mxu0 %v231
  %263 = vmatprep.subr.bf16.mxu0 %v230
  %264 = vmatpush1.bf16.msra.mxu0 %v229
  %265 = vmatprep.subr.bf16.mxu0 %v228
  %266 = vmatpush1.bf16.msra.mxu0 %v227
  %267 = vmatprep.subr.bf16.mxu0 %v226
  %268 = vmatpush1.bf16.msra.mxu0 %v225
  %269 = vmatprep.subr.bf16.mxu0 0
  %270 = vmatpush2.bf16.msra.mxu0 0
  %271 = vmatprep.subr.bf16.mxu0 0
  %272 = vmatpush2.bf16.msra.mxu0 0
  %273 = vmatprep.subr.bf16.mxu0 0
  %274 = vmatpush2.bf16.msra.mxu0 0
  %275 = vmatprep.subr.bf16.mxu0 0
  %276 = vmatpush2.bf16.msra.mxu0 0
  %277 = vmatprep.subr.bf16.mxu0 0
  %278 = vmatpush2.bf16.msra.mxu0 0
  %279 = vmatprep.subr.bf16.mxu0 0
  %280 = vmatpush2.bf16.msra.mxu0 0
  %281 = vmatprep.subr.bf16.mxu0 0
  %282 = vmatpush2.bf16.msra.mxu0 0
  %283 = vmatprep.subr.bf16.mxu0 0
  %284 = vmatpush2.bf16.msra.mxu0 0
  %285 = vmatprep.mubr.bf16.mxu0 0
  %286 = vmatmul.mubr.bf16.gmra.mxu0 %v242
  %v287 = vpop.f32.mrf.mxu0
  %v288 = vadd.f32 0.0, %v287
  %v289 = vpop.f32.mrf.mxu0
  %v290 = vadd.f32 0.0, %v289
  %v291 = vpop.f32.mrf.mxu0
  %v292 = vadd.f32 0.0, %v291
  %v293 = vpop.f32.mrf.mxu0
  %v294 = vadd.f32 0.0, %v293
  %295 = vmatprep.mubr.bf16.mxu0 0
  %296 = vmatmul.mubr.bf16.gmra.mxu0 %v245
  %v297 = vpop.f32.mrf.mxu0
  %v298 = vadd.f32 0.0, %v297
  %v299 = vpop.f32.mrf.mxu0
  %v300 = vadd.f32 0.0, %v299
  %v301 = vpop.f32.mrf.mxu0
  %v302 = vadd.f32 0.0, %v301
  %v303 = vpop.f32.mrf.mxu0
  %v304 = vadd.f32 0.0, %v303
  %305 = vmatprep.mubr.bf16.mxu0 0
  %306 = vmatmul.mubr.bf16.gmra.mxu0 %v248
  %v307 = vpop.f32.mrf.mxu0
  %v308 = vadd.f32 0.0, %v307
  %v309 = vpop.f32.mrf.mxu0
  %v310 = vadd.f32 0.0, %v309
  %v311 = vpop.f32.mrf.mxu0
  %v312 = vadd.f32 0.0, %v311
  %v313 = vpop.f32.mrf.mxu0
  %v314 = vadd.f32 0.0, %v313
  %315 = vmatprep.mubr.bf16.mxu0 0
  %316 = vmatmul.mubr.bf16.gmra.mxu0 %v251
  %v317 = vpop.f32.mrf.mxu0
  %v318 = vadd.f32 0.0, %v317
  %v319 = vpop.f32.mrf.mxu0
  %v320 = vadd.f32 0.0, %v319
  %v321 = vpop.f32.mrf.mxu0
  %v322 = vadd.f32 0.0, %v321
  %v323 = vpop.f32.mrf.mxu0
  %v324 = vadd.f32 0.0, %v323
  %325 = vdwg.mxu0
  %v326 = vpack.c.bf16 %v292, %v288
  %v327 = vpack.c.bf16 %v294, %v290
  %v328 = vpack.c.bf16 %v302, %v298
  %v329 = vpack.c.bf16 %v304, %v300
  %v330 = vpack.c.bf16 %v312, %v308
  %v331 = vpack.c.bf16 %v314, %v310
  %v332 = vpack.c.bf16 %v322, %v318
  %v333 = vpack.c.bf16 %v324, %v320
  %336 = vrot.lane.b32.xlu0 %v326, 64
  %v337 = vpop.permute.xlu0 %336
  %338 = vrot.lane.b32.xlu0 %v328, 64
  %v339 = vpop.permute.xlu0 %338
  %vm340 = vcmask 130048
  %v342 = vsel %vm340, %v326, 0
  %v345 = vsel %vm340, %v328, 0
  %v348 = vsel %vm340, %v337, 0
  %v351 = vsel %vm340, %v339, 0
  %353 = vmatprep.subr.bf16.mxu0 0
  %354 = vmatpush1.bf16.xpose.msra.mxu0 0
  %355 = vmatprep.subr.bf16.mxu0 0
  %356 = vmatpush1.bf16.xpose.msra.mxu0 0
  %357 = vmatprep.subr.bf16.mxu0 0
  %358 = vmatpush1.bf16.xpose.msra.mxu0 0
  %359 = vmatprep.subr.bf16.mxu0 0
  %360 = vmatpush1.bf16.xpose.msra.mxu0 0
  %361 = vmatprep.subr.bf16.mxu0 0
  %362 = vmatpush1.bf16.xpose.msra.mxu0 0
  %363 = vmatprep.subr.bf16.mxu0 0
  %364 = vmatpush1.bf16.xpose.msra.mxu0 0
  %365 = vmatprep.subr.bf16.mxu0 0
  %366 = vmatpush1.bf16.xpose.msra.mxu0 %v351
  %367 = vmatprep.subr.bf16.mxu0 0
  %368 = vmatpush1.bf16.xpose.msra.mxu0 %v348
  %369 = vmatprep.subr.bf16.mxu0 0
  %370 = vmatpush2.bf16.xpose.msra.mxu0 0
  %371 = vmatprep.subr.bf16.mxu0 0
  %372 = vmatpush2.bf16.xpose.msra.mxu0 0
  %373 = vmatprep.subr.bf16.mxu0 0
  %374 = vmatpush2.bf16.xpose.msra.mxu0 0
  %375 = vmatprep.subr.bf16.mxu0 0
  %376 = vmatpush2.bf16.xpose.msra.mxu0 0
  %377 = vmatprep.subr.bf16.mxu0 0
  %378 = vmatpush2.bf16.xpose.msra.mxu0 0
  %379 = vmatprep.subr.bf16.mxu0 0
  %380 = vmatpush2.bf16.xpose.msra.mxu0 0
  %381 = vmatprep.subr.bf16.mxu0 0
  %382 = vmatpush2.bf16.xpose.msra.mxu0 0
  %383 = vmatprep.subr.bf16.mxu0 0
  %384 = vmatpush2.bf16.xpose.msra.mxu0 0
  %385 = vmatprep.mubr.bf16.mxu0 0
  %386 = vmatmul.mubr.bf16.gmra.mxu0 %v342
  %v387 = vpop.f32.mrf.mxu0
  %v388 = vadd.f32 0.0, %v387
  %v389 = vpop.f32.mrf.mxu0
  %v390 = vpop.f32.mrf.mxu0
  %v391 = vadd.f32 0.0, %v390
  %v392 = vpop.f32.mrf.mxu0
  %393 = vmatprep.mubr.bf16.mxu0 0
  %394 = vmatmul.mubr.bf16.gmra.mxu0 %v345
  %v395 = vpop.f32.mrf.mxu0
  %v396 = vadd.f32 0.0, %v395
  %v397 = vpop.f32.mrf.mxu0
  %v398 = vpop.f32.mrf.mxu0
  %v399 = vadd.f32 0.0, %v398
  %v400 = vpop.f32.mrf.mxu0
  %401 = vdwg.mxu0
  %v402 = vmul.f32 %v388, 0.125
  %v403 = vmul.f32 %v391, 0.125
  %v404 = vmul.f32 %v396, 0.125
  %v405 = vmul.f32 %v399, 0.125
  %vm406 = vcmask 261120
  %v407 = vsel %vm406, %v402, -inf
  %408 = vmax.xlane.f32.xlu0 %v407
  %v409 = vpop.xlane.xlu0 %408
  %v410 = vsel %vm406, %v403, -inf
  %411 = vmax.xlane.f32.xlu0 %v410
  %v412 = vpop.xlane.xlu0 %411
  %v413 = vsel %vm406, %v404, -inf
  %414 = vmax.xlane.f32.xlu0 %v413
  %v415 = vpop.xlane.xlu0 %414
  %v416 = vsel %vm406, %v405, -inf
  %417 = vmax.xlane.f32.xlu0 %v416
  %v418 = vpop.xlane.xlu0 %417
  %v419 = vsub.f32 %v402, %v409
  %v420 = vsub.f32 %v403, %v412
  %v421 = vsub.f32 %v404, %v415
  %v422 = vsub.f32 %v405, %v418
  %v423 = vmul.f32 %v419, 1.442695
  %v424 = vpow.pop %v423
  %v425 = vmul.f32 %v420, 1.442695
  %v426 = vpow.pop %v425
  %v427 = vmul.f32 %v421, 1.442695
  %v428 = vpow.pop %v427
  %v429 = vmul.f32 %v422, 1.442695
  %v430 = vpow.pop %v429
  %v431 = vsel %vm406, %v424, 0.0
  %432 = vadd.xlane.f32.xlu0 %v431
  %v433 = vpop.xlane.xlu0 %432
  %v434 = vsel %vm406, %v426, 0.0
  %435 = vadd.xlane.f32.xlu0 %v434
  %v436 = vpop.xlane.xlu0 %435
  %v437 = vsel %vm406, %v428, 0.0
  %438 = vadd.xlane.f32.xlu0 %v437
  %v439 = vpop.xlane.xlu0 %438
  %v440 = vsel %vm406, %v430, 0.0
  %441 = vadd.xlane.f32.xlu0 %v440
  %v442 = vpop.xlane.xlu0 %441
  %v443 = vrcp.pop %v433
  %v444 = vmul.f32 %v424, %v443
  %v445 = vrcp.pop %v436
  %v446 = vmul.f32 %v426, %v445
  %v447 = vrcp.pop %v439
  %v448 = vmul.f32 %v428, %v447
  %v449 = vrcp.pop %v442
  %v450 = vmul.f32 %v430, %v449
  %v451 = vpack.c.bf16 %v446, %v444
  %v452 = vpack.c.bf16 %v450, %v448
  %v454 = vsel %vm406, %v451, 0
  %v457 = vsel %vm406, %v452, 0
  %459 = vmatprep.subr.bf16.mxu0 0
  %460 = vmatpush1.bf16.msra.mxu0 0
  %461 = vmatprep.subr.bf16.mxu0 0
  %462 = vmatpush1.bf16.msra.mxu0 0
  %463 = vmatprep.subr.bf16.mxu0 0
  %464 = vmatpush1.bf16.msra.mxu0 0
  %465 = vmatprep.subr.bf16.mxu0 0
  %466 = vmatpush1.bf16.msra.mxu0 0
  %467 = vmatprep.subr.bf16.mxu0 0
  %468 = vmatpush1.bf16.msra.mxu0 0
  %469 = vmatprep.subr.bf16.mxu0 0
  %470 = vmatpush1.bf16.msra.mxu0 0
  %471 = vmatprep.subr.bf16.mxu0 0
  %472 = vmatpush1.bf16.msra.mxu0 %v329
  %473 = vmatprep.subr.bf16.mxu0 0
  %474 = vmatpush1.bf16.msra.mxu0 %v327
  %475 = vmatprep.subr.bf16.mxu0 0
  %476 = vmatpush2.bf16.msra.mxu0 0
  %477 = vmatprep.subr.bf16.mxu0 0
  %478 = vmatpush2.bf16.msra.mxu0 0
  %479 = vmatprep.subr.bf16.mxu0 0
  %480 = vmatpush2.bf16.msra.mxu0 0
  %481 = vmatprep.subr.bf16.mxu0 0
  %482 = vmatpush2.bf16.msra.mxu0 0
  %483 = vmatprep.subr.bf16.mxu0 0
  %484 = vmatpush2.bf16.msra.mxu0 0
  %485 = vmatprep.subr.bf16.mxu0 0
  %486 = vmatpush2.bf16.msra.mxu0 0
  %487 = vmatprep.subr.bf16.mxu0 0
  %488 = vmatpush2.bf16.msra.mxu0 0
  %489 = vmatprep.subr.bf16.mxu0 0
  %490 = vmatpush2.bf16.msra.mxu0 0
  %491 = vmatprep.mubr.bf16.mxu0 0
  %492 = vmatmul.mubr.bf16.gmra.mxu0 %v454
  %v493 = vpop.f32.mrf.mxu0
  %v494 = vadd.f32 0.0, %v493
  %v495 = vpop.f32.mrf.mxu0
  %v496 = vpop.f32.mrf.mxu0
  %v497 = vadd.f32 0.0, %v496
  %v498 = vpop.f32.mrf.mxu0
  %499 = vmatprep.mubr.bf16.mxu0 0
  %500 = vmatmul.mubr.bf16.gmra.mxu0 %v457
  %v501 = vpop.f32.mrf.mxu0
  %v502 = vadd.f32 0.0, %v501
  %v503 = vpop.f32.mrf.mxu0
  %v504 = vpop.f32.mrf.mxu0
  %v505 = vadd.f32 0.0, %v504
  %v506 = vpop.f32.mrf.mxu0
  %507 = vdwg.mxu0
  %508 = vrot.lane.b32.xlu0 %v326, 112
  %v509 = vpop.permute.xlu0 %508
  %510 = vrot.lane.b32.xlu0 %v328, 112
  %v511 = vpop.permute.xlu0 %510
  %512 = vrot.lane.b32.xlu0 %v326, 48
  %v513 = vpop.permute.xlu0 %512
  %514 = vrot.lane.b32.xlu0 %v328, 48
  %v515 = vpop.permute.xlu0 %514
  %v517 = vsel %vm340, %v509, 0
  %v520 = vsel %vm340, %v511, 0
  %v523 = vsel %vm340, %v513, 0
  %v526 = vsel %vm340, %v515, 0
  %528 = vmatprep.subr.bf16.mxu0 0
  %529 = vmatpush1.bf16.xpose.msra.mxu0 0
  %530 = vmatprep.subr.bf16.mxu0 0
  %531 = vmatpush1.bf16.xpose.msra.mxu0 0
  %532 = vmatprep.subr.bf16.mxu0 0
  %533 = vmatpush1.bf16.xpose.msra.mxu0 0
  %534 = vmatprep.subr.bf16.mxu0 0
  %535 = vmatpush1.bf16.xpose.msra.mxu0 0
  %536 = vmatprep.subr.bf16.mxu0 0
  %537 = vmatpush1.bf16.xpose.msra.mxu0 0
  %538 = vmatprep.subr.bf16.mxu0 0
  %539 = vmatpush1.bf16.xpose.msra.mxu0 0
  %540 = vmatprep.subr.bf16.mxu0 0
  %541 = vmatpush1.bf16.xpose.msra.mxu0 %v526
  %542 = vmatprep.subr.bf16.mxu0 0
  %543 = vmatpush1.bf16.xpose.msra.mxu0 %v523
  %544 = vmatprep.subr.bf16.mxu0 0
  %545 = vmatpush2.bf16.xpose.msra.mxu0 0
  %546 = vmatprep.subr.bf16.mxu0 0
  %547 = vmatpush2.bf16.xpose.msra.mxu0 0
  %548 = vmatprep.subr.bf16.mxu0 0
  %549 = vmatpush2.bf16.xpose.msra.mxu0 0
  %550 = vmatprep.subr.bf16.mxu0 0
  %551 = vmatpush2.bf16.xpose.msra.mxu0 0
  %552 = vmatprep.subr.bf16.mxu0 0
  %553 = vmatpush2.bf16.xpose.msra.mxu0 0
  %554 = vmatprep.subr.bf16.mxu0 0
  %555 = vmatpush2.bf16.xpose.msra.mxu0 0
  %556 = vmatprep.subr.bf16.mxu0 0
  %557 = vmatpush2.bf16.xpose.msra.mxu0 0
  %558 = vmatprep.subr.bf16.mxu0 0
  %559 = vmatpush2.bf16.xpose.msra.mxu0 0
  %560 = vmatprep.mubr.bf16.mxu0 0
  %561 = vmatmul.mubr.bf16.gmra.mxu0 %v517
  %v562 = vpop.f32.mrf.mxu0
  %v563 = vadd.f32 0.0, %v562
  %v564 = vpop.f32.mrf.mxu0
  %v565 = vpop.f32.mrf.mxu0
  %v566 = vadd.f32 0.0, %v565
  %v567 = vpop.f32.mrf.mxu0
  %568 = vmatprep.mubr.bf16.mxu0 0
  %569 = vmatmul.mubr.bf16.gmra.mxu0 %v520
  %v570 = vpop.f32.mrf.mxu0
  %v571 = vadd.f32 0.0, %v570
  %v572 = vpop.f32.mrf.mxu0
  %v573 = vpop.f32.mrf.mxu0
  %v574 = vadd.f32 0.0, %v573
  %v575 = vpop.f32.mrf.mxu0
  %576 = vdwg.mxu0
  %v577 = vmul.f32 %v563, 0.125
  %v578 = vmul.f32 %v566, 0.125
  %v579 = vmul.f32 %v571, 0.125
  %v580 = vmul.f32 %v574, 0.125
  %v581 = vsel %vm406, %v577, -inf
  %582 = vmax.xlane.f32.xlu0 %v581
  %v583 = vpop.xlane.xlu0 %582
  %v584 = vsel %vm406, %v578, -inf
  %585 = vmax.xlane.f32.xlu0 %v584
  %v586 = vpop.xlane.xlu0 %585
  %v587 = vsel %vm406, %v579, -inf
  %588 = vmax.xlane.f32.xlu0 %v587
  %v589 = vpop.xlane.xlu0 %588
  %v590 = vsel %vm406, %v580, -inf
  %591 = vmax.xlane.f32.xlu0 %v590
  %v592 = vpop.xlane.xlu0 %591
  %v593 = vsub.f32 %v577, %v583
  %v594 = vsub.f32 %v578, %v586
  %v595 = vsub.f32 %v579, %v589
  %v596 = vsub.f32 %v580, %v592
  %v597 = vmul.f32 %v593, 1.442695
  %v598 = vpow.pop %v597
  %v599 = vmul.f32 %v594, 1.442695
  %v600 = vpow.pop %v599
  %v601 = vmul.f32 %v595, 1.442695
  %v602 = vpow.pop %v601
  %v603 = vmul.f32 %v596, 1.442695
  %v604 = vpow.pop %v603
  %v605 = vsel %vm406, %v598, 0.0
  %606 = vadd.xlane.f32.xlu0 %v605
  %v607 = vpop.xlane.xlu0 %606
  %v608 = vsel %vm406, %v600, 0.0
  %609 = vadd.xlane.f32.xlu0 %v608
  %v610 = vpop.xlane.xlu0 %609
  %v611 = vsel %vm406, %v602, 0.0
  %612 = vadd.xlane.f32.xlu0 %v611
  %v613 = vpop.xlane.xlu0 %612
  %v614 = vsel %vm406, %v604, 0.0
  %615 = vadd.xlane.f32.xlu0 %v614
  %v616 = vpop.xlane.xlu0 %615
  %v617 = vrcp.pop %v607
  %v618 = vmul.f32 %v598, %v617
  %v619 = vrcp.pop %v610
  %v620 = vmul.f32 %v600, %v619
  %v621 = vrcp.pop %v613
  %v622 = vmul.f32 %v602, %v621
  %v623 = vrcp.pop %v616
  %v624 = vmul.f32 %v604, %v623
  %v625 = vpack.c.bf16 %v620, %v618
  %v626 = vpack.c.bf16 %v624, %v622
  %629 = vrot.lane.b32.xlu0 %v327, 112
  %v630 = vpop.permute.xlu0 %629
  %631 = vrot.lane.b32.xlu0 %v329, 112
  %v632 = vpop.permute.xlu0 %631
  %v636 = vsel %vm406, %v625, 0
  %v639 = vsel %vm406, %v626, 0
  %641 = vmatprep.subr.bf16.mxu0 0
  %642 = vmatpush1.bf16.msra.mxu0 0
  %643 = vmatprep.subr.bf16.mxu0 0
  %644 = vmatpush1.bf16.msra.mxu0 0
  %645 = vmatprep.subr.bf16.mxu0 0
  %646 = vmatpush1.bf16.msra.mxu0 0
  %647 = vmatprep.subr.bf16.mxu0 0
  %648 = vmatpush1.bf16.msra.mxu0 0
  %649 = vmatprep.subr.bf16.mxu0 0
  %650 = vmatpush1.bf16.msra.mxu0 0
  %651 = vmatprep.subr.bf16.mxu0 0
  %652 = vmatpush1.bf16.msra.mxu0 0
  %653 = vmatprep.subr.bf16.mxu0 0
  %654 = vmatpush1.bf16.msra.mxu0 %v632
  %655 = vmatprep.subr.bf16.mxu0 0
  %656 = vmatpush1.bf16.msra.mxu0 %v630
  %657 = vmatprep.subr.bf16.mxu0 0
  %658 = vmatpush2.bf16.msra.mxu0 0
  %659 = vmatprep.subr.bf16.mxu0 0
  %660 = vmatpush2.bf16.msra.mxu0 0
  %661 = vmatprep.subr.bf16.mxu0 0
  %662 = vmatpush2.bf16.msra.mxu0 0
  %663 = vmatprep.subr.bf16.mxu0 0
  %664 = vmatpush2.bf16.msra.mxu0 0
  %665 = vmatprep.subr.bf16.mxu0 0
  %666 = vmatpush2.bf16.msra.mxu0 0
  %667 = vmatprep.subr.bf16.mxu0 0
  %668 = vmatpush2.bf16.msra.mxu0 0
  %669 = vmatprep.subr.bf16.mxu0 0
  %670 = vmatpush2.bf16.msra.mxu0 0
  %671 = vmatprep.subr.bf16.mxu0 0
  %672 = vmatpush2.bf16.msra.mxu0 0
  %673 = vmatprep.mubr.bf16.mxu0 0
  %674 = vmatmul.mubr.bf16.gmra.mxu0 %v636
  %v675 = vpop.f32.mrf.mxu0
  %v676 = vadd.f32 0.0, %v675
  %v677 = vpop.f32.mrf.mxu0
  %v678 = vpop.f32.mrf.mxu0
  %v679 = vadd.f32 0.0, %v678
  %v680 = vpop.f32.mrf.mxu0
  %681 = vmatprep.mubr.bf16.mxu0 0
  %682 = vmatmul.mubr.bf16.gmra.mxu0 %v639
  %v683 = vpop.f32.mrf.mxu0
  %v684 = vadd.f32 0.0, %v683
  %v685 = vpop.f32.mrf.mxu0
  %v686 = vpop.f32.mrf.mxu0
  %v687 = vadd.f32 0.0, %v686
  %v688 = vpop.f32.mrf.mxu0
  %689 = vdwg.mxu0
  %690 = vrot.lane.b32.xlu0 %v326, 96
  %v691 = vpop.permute.xlu0 %690
  %692 = vrot.lane.b32.xlu0 %v328, 96
  %v693 = vpop.permute.xlu0 %692
  %694 = vrot.lane.b32.xlu0 %v326, 32
  %v695 = vpop.permute.xlu0 %694
  %696 = vrot.lane.b32.xlu0 %v328, 32
  %v697 = vpop.permute.xlu0 %696
  %v699 = vsel %vm340, %v691, 0
  %v702 = vsel %vm340, %v693, 0
  %v705 = vsel %vm340, %v695, 0
  %v708 = vsel %vm340, %v697, 0
  %710 = vmatprep.subr.bf16.mxu0 0
  %711 = vmatpush1.bf16.xpose.msra.mxu0 0
  %712 = vmatprep.subr.bf16.mxu0 0
  %713 = vmatpush1.bf16.xpose.msra.mxu0 0
  %714 = vmatprep.subr.bf16.mxu0 0
  %715 = vmatpush1.bf16.xpose.msra.mxu0 0
  %716 = vmatprep.subr.bf16.mxu0 0
  %717 = vmatpush1.bf16.xpose.msra.mxu0 0
  %718 = vmatprep.subr.bf16.mxu0 0
  %719 = vmatpush1.bf16.xpose.msra.mxu0 0
  %720 = vmatprep.subr.bf16.mxu0 0
  %721 = vmatpush1.bf16.xpose.msra.mxu0 0
  %722 = vmatprep.subr.bf16.mxu0 0
  %723 = vmatpush1.bf16.xpose.msra.mxu0 %v708
  %724 = vmatprep.subr.bf16.mxu0 0
  %725 = vmatpush1.bf16.xpose.msra.mxu0 %v705
  %726 = vmatprep.subr.bf16.mxu0 0
  %727 = vmatpush2.bf16.xpose.msra.mxu0 0
  %728 = vmatprep.subr.bf16.mxu0 0
  %729 = vmatpush2.bf16.xpose.msra.mxu0 0
  %730 = vmatprep.subr.bf16.mxu0 0
  %731 = vmatpush2.bf16.xpose.msra.mxu0 0
  %732 = vmatprep.subr.bf16.mxu0 0
  %733 = vmatpush2.bf16.xpose.msra.mxu0 0
  %734 = vmatprep.subr.bf16.mxu0 0
  %735 = vmatpush2.bf16.xpose.msra.mxu0 0
  %736 = vmatprep.subr.bf16.mxu0 0
  %737 = vmatpush2.bf16.xpose.msra.mxu0 0
  %738 = vmatprep.subr.bf16.mxu0 0
  %739 = vmatpush2.bf16.xpose.msra.mxu0 0
  %740 = vmatprep.subr.bf16.mxu0 0
  %741 = vmatpush2.bf16.xpose.msra.mxu0 0
  %742 = vmatprep.mubr.bf16.mxu0 0
  %743 = vmatmul.mubr.bf16.gmra.mxu0 %v699
  %v744 = vpop.f32.mrf.mxu0
  %v745 = vadd.f32 0.0, %v744
  %v746 = vpop.f32.mrf.mxu0
  %v747 = vpop.f32.mrf.mxu0
  %v748 = vadd.f32 0.0, %v747
  %v749 = vpop.f32.mrf.mxu0
  %750 = vmatprep.mubr.bf16.mxu0 0
  %751 = vmatmul.mubr.bf16.gmra.mxu0 %v702
  %v752 = vpop.f32.mrf.mxu0
  %v753 = vadd.f32 0.0, %v752
  %v754 = vpop.f32.mrf.mxu0
  %v755 = vpop.f32.mrf.mxu0
  %v756 = vadd.f32 0.0, %v755
  %v757 = vpop.f32.mrf.mxu0
  %758 = vdwg.mxu0
  %v759 = vmul.f32 %v745, 0.125
  %v760 = vmul.f32 %v748, 0.125
  %v761 = vmul.f32 %v753, 0.125
  %v762 = vmul.f32 %v756, 0.125
  %v763 = vsel %vm406, %v759, -inf
  %764 = vmax.xlane.f32.xlu0 %v763
  %v765 = vpop.xlane.xlu0 %764
  %v766 = vsel %vm406, %v760, -inf
  %767 = vmax.xlane.f32.xlu0 %v766
  %v768 = vpop.xlane.xlu0 %767
  %v769 = vsel %vm406, %v761, -inf
  %770 = vmax.xlane.f32.xlu0 %v769
  %v771 = vpop.xlane.xlu0 %770
  %v772 = vsel %vm406, %v762, -inf
  %773 = vmax.xlane.f32.xlu0 %v772
  %v774 = vpop.xlane.xlu0 %773
  %v775 = vsub.f32 %v759, %v765
  %v776 = vsub.f32 %v760, %v768
  %v777 = vsub.f32 %v761, %v771
  %v778 = vsub.f32 %v762, %v774
  %v779 = vmul.f32 %v775, 1.442695
  %v780 = vpow.pop %v779
  %v781 = vmul.f32 %v776, 1.442695
  %v782 = vpow.pop %v781
  %v783 = vmul.f32 %v777, 1.442695
  %v784 = vpow.pop %v783
  %v785 = vmul.f32 %v778, 1.442695
  %v786 = vpow.pop %v785
  %v787 = vsel %vm406, %v780, 0.0
  %788 = vadd.xlane.f32.xlu0 %v787
  %v789 = vpop.xlane.xlu0 %788
  %v790 = vsel %vm406, %v782, 0.0
  %791 = vadd.xlane.f32.xlu0 %v790
  %v792 = vpop.xlane.xlu0 %791
  %v793 = vsel %vm406, %v784, 0.0
  %794 = vadd.xlane.f32.xlu0 %v793
  %v795 = vpop.xlane.xlu0 %794
  %v796 = vsel %vm406, %v786, 0.0
  %797 = vadd.xlane.f32.xlu0 %v796
  %v798 = vpop.xlane.xlu0 %797
  %v799 = vrcp.pop %v789
  %v800 = vmul.f32 %v780, %v799
  %v801 = vrcp.pop %v792
  %v802 = vmul.f32 %v782, %v801
  %v803 = vrcp.pop %v795
  %v804 = vmul.f32 %v784, %v803
  %v805 = vrcp.pop %v798
  %v806 = vmul.f32 %v786, %v805
  %v807 = vpack.c.bf16 %v802, %v800
  %v808 = vpack.c.bf16 %v806, %v804
  %809 = vrot.lane.b32.xlu0 %v327, 96
  %v810 = vpop.permute.xlu0 %809
  %811 = vrot.lane.b32.xlu0 %v329, 96
  %v812 = vpop.permute.xlu0 %811
  %v816 = vsel %vm406, %v807, 0
  %v819 = vsel %vm406, %v808, 0
  %821 = vmatprep.subr.bf16.mxu0 0
  %822 = vmatpush1.bf16.msra.mxu0 0
  %823 = vmatprep.subr.bf16.mxu0 0
  %824 = vmatpush1.bf16.msra.mxu0 0
  %825 = vmatprep.subr.bf16.mxu0 0
  %826 = vmatpush1.bf16.msra.mxu0 0
  %827 = vmatprep.subr.bf16.mxu0 0
  %828 = vmatpush1.bf16.msra.mxu0 0
  %829 = vmatprep.subr.bf16.mxu0 0
  %830 = vmatpush1.bf16.msra.mxu0 0
  %831 = vmatprep.subr.bf16.mxu0 0
  %832 = vmatpush1.bf16.msra.mxu0 0
  %833 = vmatprep.subr.bf16.mxu0 0
  %834 = vmatpush1.bf16.msra.mxu0 %v812
  %835 = vmatprep.subr.bf16.mxu0 0
  %836 = vmatpush1.bf16.msra.mxu0 %v810
  %837 = vmatprep.subr.bf16.mxu0 0
  %838 = vmatpush2.bf16.msra.mxu0 0
  %839 = vmatprep.subr.bf16.mxu0 0
  %840 = vmatpush2.bf16.msra.mxu0 0
  %841 = vmatprep.subr.bf16.mxu0 0
  %842 = vmatpush2.bf16.msra.mxu0 0
  %843 = vmatprep.subr.bf16.mxu0 0
  %844 = vmatpush2.bf16.msra.mxu0 0
  %845 = vmatprep.subr.bf16.mxu0 0
  %846 = vmatpush2.bf16.msra.mxu0 0
  %847 = vmatprep.subr.bf16.mxu0 0
  %848 = vmatpush2.bf16.msra.mxu0 0
  %849 = vmatprep.subr.bf16.mxu0 0
  %850 = vmatpush2.bf16.msra.mxu0 0
  %851 = vmatprep.subr.bf16.mxu0 0
  %852 = vmatpush2.bf16.msra.mxu0 0
  %853 = vmatprep.mubr.bf16.mxu0 0
  %854 = vmatmul.mubr.bf16.gmra.mxu0 %v816
  %v855 = vpop.f32.mrf.mxu0
  %v856 = vadd.f32 0.0, %v855
  %v857 = vpop.f32.mrf.mxu0
  %v858 = vpop.f32.mrf.mxu0
  %v859 = vadd.f32 0.0, %v858
  %v860 = vpop.f32.mrf.mxu0
  %861 = vmatprep.mubr.bf16.mxu0 0
  %862 = vmatmul.mubr.bf16.gmra.mxu0 %v819
  %v863 = vpop.f32.mrf.mxu0
  %v864 = vadd.f32 0.0, %v863
  %v865 = vpop.f32.mrf.mxu0
  %v866 = vpop.f32.mrf.mxu0
  %v867 = vadd.f32 0.0, %v866
  %v868 = vpop.f32.mrf.mxu0
  %869 = vdwg.mxu0
  %870 = vrot.lane.b32.xlu0 %v326, 80
  %v871 = vpop.permute.xlu0 %870
  %872 = vrot.lane.b32.xlu0 %v328, 80
  %v873 = vpop.permute.xlu0 %872
  %874 = vrot.lane.b32.xlu0 %v326, 16
  %v875 = vpop.permute.xlu0 %874
  %876 = vrot.lane.b32.xlu0 %v328, 16
  %v877 = vpop.permute.xlu0 %876
  %v879 = vsel %vm340, %v871, 0
  %v882 = vsel %vm340, %v873, 0
  %v885 = vsel %vm340, %v875, 0
  %v888 = vsel %vm340, %v877, 0
  %890 = vmatprep.subr.bf16.mxu0 0
  %891 = vmatpush1.bf16.xpose.msra.mxu0 0
  %892 = vmatprep.subr.bf16.mxu0 0
  %893 = vmatpush1.bf16.xpose.msra.mxu0 0
  %894 = vmatprep.subr.bf16.mxu0 0
  %895 = vmatpush1.bf16.xpose.msra.mxu0 0
  %896 = vmatprep.subr.bf16.mxu0 0
  %897 = vmatpush1.bf16.xpose.msra.mxu0 0
  %898 = vmatprep.subr.bf16.mxu0 0
  %899 = vmatpush1.bf16.xpose.msra.mxu0 0
  %900 = vmatprep.subr.bf16.mxu0 0
  %901 = vmatpush1.bf16.xpose.msra.mxu0 0
  %902 = vmatprep.subr.bf16.mxu0 0
  %903 = vmatpush1.bf16.xpose.msra.mxu0 %v888
  %904 = vmatprep.subr.bf16.mxu0 0
  %905 = vmatpush1.bf16.xpose.msra.mxu0 %v885
  %906 = vmatprep.subr.bf16.mxu0 0
  %907 = vmatpush2.bf16.xpose.msra.mxu0 0
  %908 = vmatprep.subr.bf16.mxu0 0
  %909 = vmatpush2.bf16.xpose.msra.mxu0 0
  %910 = vmatprep.subr.bf16.mxu0 0
  %911 = vmatpush2.bf16.xpose.msra.mxu0 0
  %912 = vmatprep.subr.bf16.mxu0 0
  %913 = vmatpush2.bf16.xpose.msra.mxu0 0
  %914 = vmatprep.subr.bf16.mxu0 0
  %915 = vmatpush2.bf16.xpose.msra.mxu0 0
  %916 = vmatprep.subr.bf16.mxu0 0
  %917 = vmatpush2.bf16.xpose.msra.mxu0 0
  %918 = vmatprep.subr.bf16.mxu0 0
  %919 = vmatpush2.bf16.xpose.msra.mxu0 0
  %920 = vmatprep.subr.bf16.mxu0 0
  %921 = vmatpush2.bf16.xpose.msra.mxu0 0
  %922 = vmatprep.mubr.bf16.mxu0 0
  %923 = vmatmul.mubr.bf16.gmra.mxu0 %v879
  %v924 = vpop.f32.mrf.mxu0
  %v925 = vadd.f32 0.0, %v924
  %v926 = vpop.f32.mrf.mxu0
  %v927 = vpop.f32.mrf.mxu0
  %v928 = vadd.f32 0.0, %v927
  %v929 = vpop.f32.mrf.mxu0
  %930 = vmatprep.mubr.bf16.mxu0 0
  %931 = vmatmul.mubr.bf16.gmra.mxu0 %v882
  %v932 = vpop.f32.mrf.mxu0
  %v933 = vadd.f32 0.0, %v932
  %v934 = vpop.f32.mrf.mxu0
  %v935 = vpop.f32.mrf.mxu0
  %v936 = vadd.f32 0.0, %v935
  %v937 = vpop.f32.mrf.mxu0
  %938 = vdwg.mxu0
  %v939 = vmul.f32 %v925, 0.125
  %v940 = vmul.f32 %v928, 0.125
  %v941 = vmul.f32 %v933, 0.125
  %v942 = vmul.f32 %v936, 0.125
  %v943 = vsel %vm406, %v939, -inf
  %944 = vmax.xlane.f32.xlu0 %v943
  %v945 = vpop.xlane.xlu0 %944
  %v946 = vsel %vm406, %v940, -inf
  %947 = vmax.xlane.f32.xlu0 %v946
  %v948 = vpop.xlane.xlu0 %947
  %v949 = vsel %vm406, %v941, -inf
  %950 = vmax.xlane.f32.xlu0 %v949
  %v951 = vpop.xlane.xlu0 %950
  %v952 = vsel %vm406, %v942, -inf
  %953 = vmax.xlane.f32.xlu0 %v952
  %v954 = vpop.xlane.xlu0 %953
  %v955 = vsub.f32 %v939, %v945
  %v956 = vsub.f32 %v940, %v948
  %v957 = vsub.f32 %v941, %v951
  %v958 = vsub.f32 %v942, %v954
  %v959 = vmul.f32 %v955, 1.442695
  %v960 = vpow.pop %v959
  %v961 = vmul.f32 %v956, 1.442695
  %v962 = vpow.pop %v961
  %v963 = vmul.f32 %v957, 1.442695
  %v964 = vpow.pop %v963
  %v965 = vmul.f32 %v958, 1.442695
  %v966 = vpow.pop %v965
  %v967 = vsel %vm406, %v960, 0.0
  %968 = vadd.xlane.f32.xlu0 %v967
  %v969 = vpop.xlane.xlu0 %968
  %v970 = vsel %vm406, %v962, 0.0
  %971 = vadd.xlane.f32.xlu0 %v970
  %v972 = vpop.xlane.xlu0 %971
  %v973 = vsel %vm406, %v964, 0.0
  %974 = vadd.xlane.f32.xlu0 %v973
  %v975 = vpop.xlane.xlu0 %974
  %v976 = vsel %vm406, %v966, 0.0
  %977 = vadd.xlane.f32.xlu0 %v976
  %v978 = vpop.xlane.xlu0 %977
  %v979 = vrcp.pop %v969
  %v980 = vmul.f32 %v960, %v979
  %v981 = vrcp.pop %v972
  %v982 = vmul.f32 %v962, %v981
  %v983 = vrcp.pop %v975
  %v984 = vmul.f32 %v964, %v983
  %v985 = vrcp.pop %v978
  %v986 = vmul.f32 %v966, %v985
  %v987 = vpack.c.bf16 %v982, %v980
  %v988 = vpack.c.bf16 %v986, %v984
  %989 = vrot.lane.b32.xlu0 %v327, 80
  %v990 = vpop.permute.xlu0 %989
  %991 = vrot.lane.b32.xlu0 %v329, 80
  %v992 = vpop.permute.xlu0 %991
  %v996 = vsel %vm406, %v987, 0
  %v999 = vsel %vm406, %v988, 0
  %1001 = vmatprep.subr.bf16.mxu0 0
  %1002 = vmatpush1.bf16.msra.mxu0 0
  %1003 = vmatprep.subr.bf16.mxu0 0
  %1004 = vmatpush1.bf16.msra.mxu0 0
  %1005 = vmatprep.subr.bf16.mxu0 0
  %1006 = vmatpush1.bf16.msra.mxu0 0
  %1007 = vmatprep.subr.bf16.mxu0 0
  %1008 = vmatpush1.bf16.msra.mxu0 0
  %1009 = vmatprep.subr.bf16.mxu0 0
  %1010 = vmatpush1.bf16.msra.mxu0 0
  %1011 = vmatprep.subr.bf16.mxu0 0
  %1012 = vmatpush1.bf16.msra.mxu0 0
  %1013 = vmatprep.subr.bf16.mxu0 0
  %1014 = vmatpush1.bf16.msra.mxu0 %v992
  %1015 = vmatprep.subr.bf16.mxu0 0
  %1016 = vmatpush1.bf16.msra.mxu0 %v990
  %1017 = vmatprep.subr.bf16.mxu0 0
  %1018 = vmatpush2.bf16.msra.mxu0 0
  %1019 = vmatprep.subr.bf16.mxu0 0
  %1020 = vmatpush2.bf16.msra.mxu0 0
  %1021 = vmatprep.subr.bf16.mxu0 0
  %1022 = vmatpush2.bf16.msra.mxu0 0
  %1023 = vmatprep.subr.bf16.mxu0 0
  %1024 = vmatpush2.bf16.msra.mxu0 0
  %1025 = vmatprep.subr.bf16.mxu0 0
  %1026 = vmatpush2.bf16.msra.mxu0 0
  %1027 = vmatprep.subr.bf16.mxu0 0
  %1028 = vmatpush2.bf16.msra.mxu0 0
  %1029 = vmatprep.subr.bf16.mxu0 0
  %1030 = vmatpush2.bf16.msra.mxu0 0
  %1031 = vmatprep.subr.bf16.mxu0 0
  %1032 = vmatpush2.bf16.msra.mxu0 0
  %1033 = vmatprep.mubr.bf16.mxu0 0
  %1034 = vmatmul.mubr.bf16.gmra.mxu0 %v996
  %v1035 = vpop.f32.mrf.mxu0
  %v1036 = vadd.f32 0.0, %v1035
  %v1037 = vpop.f32.mrf.mxu0
  %v1038 = vpop.f32.mrf.mxu0
  %v1039 = vadd.f32 0.0, %v1038
  %v1040 = vpop.f32.mrf.mxu0
  %1041 = vmatprep.mubr.bf16.mxu0 0
  %1042 = vmatmul.mubr.bf16.gmra.mxu0 %v999
  %v1043 = vpop.f32.mrf.mxu0
  %v1044 = vadd.f32 0.0, %v1043
  %v1045 = vpop.f32.mrf.mxu0
  %v1046 = vpop.f32.mrf.mxu0
  %v1047 = vadd.f32 0.0, %v1046
  %v1048 = vpop.f32.mrf.mxu0
  %1049 = vdwg.mxu0
  %1054 = vrot.lane.b32.xlu0 %v676, 16
  %v1055 = vpop.permute.xlu0 %1054
  %1056 = vrot.lane.b32.xlu0 %v679, 16
  %v1057 = vpop.permute.xlu0 %1056
  %1058 = vrot.lane.b32.xlu0 %v684, 16
  %v1059 = vpop.permute.xlu0 %1058
  %1060 = vrot.lane.b32.xlu0 %v687, 16
  %v1061 = vpop.permute.xlu0 %1060
  %1070 = vrot.lane.b32.xlu0 %v856, 32
  %v1071 = vpop.permute.xlu0 %1070
  %1072 = vrot.lane.b32.xlu0 %v859, 32
  %v1073 = vpop.permute.xlu0 %1072
  %1074 = vrot.lane.b32.xlu0 %v864, 32
  %v1075 = vpop.permute.xlu0 %1074
  %1076 = vrot.lane.b32.xlu0 %v867, 32
  %v1077 = vpop.permute.xlu0 %1076
  %1086 = vrot.lane.b32.xlu0 %v1036, 48
  %v1087 = vpop.permute.xlu0 %1086
  %1088 = vrot.lane.b32.xlu0 %v1039, 48
  %v1089 = vpop.permute.xlu0 %1088
  %1090 = vrot.lane.b32.xlu0 %v1044, 48
  %v1091 = vpop.permute.xlu0 %1090
  %1092 = vrot.lane.b32.xlu0 %v1047, 48
  %v1093 = vpop.permute.xlu0 %1092
  %v1098 = vsel %vm340, %v494, %v1055
  %v1099 = vsel %vm340, %v497, %v1057
  %v1100 = vsel %vm340, %v502, %v1059
  %v1101 = vsel %vm340, %v505, %v1061
  %v1102 = vsel %vm406, %v1098, %v1071
  %v1103 = vsel %vm406, %v1099, %v1073
  %v1104 = vsel %vm406, %v1100, %v1075
  %v1105 = vsel %vm406, %v1101, %v1077
  %vm1106 = vcmask 392192
  %v1107 = vsel %vm1106, %v1102, %v1087
  %v1108 = vsel %vm1106, %v1103, %v1089
  %v1109 = vsel %vm1106, %v1104, %v1091
  %v1110 = vsel %vm1106, %v1105, %v1093
  %1113 = vrot.lane.b32.xlu0 %v330, 64
  %v1114 = vpop.permute.xlu0 %1113
  %1115 = vrot.lane.b32.xlu0 %v332, 64
  %v1116 = vpop.permute.xlu0 %1115
  %v1118 = vsel %vm340, %v330, 0
  %v1121 = vsel %vm340, %v332, 0
  %v1124 = vsel %vm340, %v1114, 0
  %v1127 = vsel %vm340, %v1116, 0
  %1129 = vmatprep.subr.bf16.mxu0 0
  %1130 = vmatpush1.bf16.xpose.msra.mxu0 0
  %1131 = vmatprep.subr.bf16.mxu0 0
  %1132 = vmatpush1.bf16.xpose.msra.mxu0 0
  %1133 = vmatprep.subr.bf16.mxu0 0
  %1134 = vmatpush1.bf16.xpose.msra.mxu0 0
  %1135 = vmatprep.subr.bf16.mxu0 0
  %1136 = vmatpush1.bf16.xpose.msra.mxu0 0
  %1137 = vmatprep.subr.bf16.mxu0 0
  %1138 = vmatpush1.bf16.xpose.msra.mxu0 0
  %1139 = vmatprep.subr.bf16.mxu0 0
  %1140 = vmatpush1.bf16.xpose.msra.mxu0 0
  %1141 = vmatprep.subr.bf16.mxu0 0
  %1142 = vmatpush1.bf16.xpose.msra.mxu0 %v1127
  %1143 = vmatprep.subr.bf16.mxu0 0
  %1144 = vmatpush1.bf16.xpose.msra.mxu0 %v1124
  %1145 = vmatprep.subr.bf16.mxu0 0
  %1146 = vmatpush2.bf16.xpose.msra.mxu0 0
  %1147 = vmatprep.subr.bf16.mxu0 0
  %1148 = vmatpush2.bf16.xpose.msra.mxu0 0
  %1149 = vmatprep.subr.bf16.mxu0 0
  %1150 = vmatpush2.bf16.xpose.msra.mxu0 0
  %1151 = vmatprep.subr.bf16.mxu0 0
  %1152 = vmatpush2.bf16.xpose.msra.mxu0 0
  %1153 = vmatprep.subr.bf16.mxu0 0
  %1154 = vmatpush2.bf16.xpose.msra.mxu0 0
  %1155 = vmatprep.subr.bf16.mxu0 0
  %1156 = vmatpush2.bf16.xpose.msra.mxu0 0
  %1157 = vmatprep.subr.bf16.mxu0 0
  %1158 = vmatpush2.bf16.xpose.msra.mxu0 0
  %1159 = vmatprep.subr.bf16.mxu0 0
  %1160 = vmatpush2.bf16.xpose.msra.mxu0 0
  %1161 = vmatprep.mubr.bf16.mxu0 0
  %1162 = vmatmul.mubr.bf16.gmra.mxu0 %v1118
  %v1163 = vpop.f32.mrf.mxu0
  %v1164 = vadd.f32 0.0, %v1163
  %v1165 = vpop.f32.mrf.mxu0
  %v1166 = vpop.f32.mrf.mxu0
  %v1167 = vadd.f32 0.0, %v1166
  %v1168 = vpop.f32.mrf.mxu0
  %1169 = vmatprep.mubr.bf16.mxu0 0
  %1170 = vmatmul.mubr.bf16.gmra.mxu0 %v1121
  %v1171 = vpop.f32.mrf.mxu0
  %v1172 = vadd.f32 0.0, %v1171
  %v1173 = vpop.f32.mrf.mxu0
  %v1174 = vpop.f32.mrf.mxu0
  %v1175 = vadd.f32 0.0, %v1174
  %v1176 = vpop.f32.mrf.mxu0
  %1177 = vdwg.mxu0
  %v1178 = vmul.f32 %v1164, 0.125
  %v1179 = vmul.f32 %v1167, 0.125
  %v1180 = vmul.f32 %v1172, 0.125
  %v1181 = vmul.f32 %v1175, 0.125
  %v1182 = vsel %vm406, %v1178, -inf
  %1183 = vmax.xlane.f32.xlu0 %v1182
  %v1184 = vpop.xlane.xlu0 %1183
  %v1185 = vsel %vm406, %v1179, -inf
  %1186 = vmax.xlane.f32.xlu0 %v1185
  %v1187 = vpop.xlane.xlu0 %1186
  %v1188 = vsel %vm406, %v1180, -inf
  %1189 = vmax.xlane.f32.xlu0 %v1188
  %v1190 = vpop.xlane.xlu0 %1189
  %v1191 = vsel %vm406, %v1181, -inf
  %1192 = vmax.xlane.f32.xlu0 %v1191
  %v1193 = vpop.xlane.xlu0 %1192
  %v1194 = vsub.f32 %v1178, %v1184
  %v1195 = vsub.f32 %v1179, %v1187
  %v1196 = vsub.f32 %v1180, %v1190
  %v1197 = vsub.f32 %v1181, %v1193
  %v1198 = vmul.f32 %v1194, 1.442695
  %v1199 = vpow.pop %v1198
  %v1200 = vmul.f32 %v1195, 1.442695
  %v1201 = vpow.pop %v1200
  %v1202 = vmul.f32 %v1196, 1.442695
  %v1203 = vpow.pop %v1202
  %v1204 = vmul.f32 %v1197, 1.442695
  %v1205 = vpow.pop %v1204
  %v1206 = vsel %vm406, %v1199, 0.0
  %1207 = vadd.xlane.f32.xlu0 %v1206
  %v1208 = vpop.xlane.xlu0 %1207
  %v1209 = vsel %vm406, %v1201, 0.0
  %1210 = vadd.xlane.f32.xlu0 %v1209
  %v1211 = vpop.xlane.xlu0 %1210
  %v1212 = vsel %vm406, %v1203, 0.0
  %1213 = vadd.xlane.f32.xlu0 %v1212
  %v1214 = vpop.xlane.xlu0 %1213
  %v1215 = vsel %vm406, %v1205, 0.0
  %1216 = vadd.xlane.f32.xlu0 %v1215
  %v1217 = vpop.xlane.xlu0 %1216
  %v1218 = vrcp.pop %v1208
  %v1219 = vmul.f32 %v1199, %v1218
  %v1220 = vrcp.pop %v1211
  %v1221 = vmul.f32 %v1201, %v1220
  %v1222 = vrcp.pop %v1214
  %v1223 = vmul.f32 %v1203, %v1222
  %v1224 = vrcp.pop %v1217
  %v1225 = vmul.f32 %v1205, %v1224
  %v1226 = vpack.c.bf16 %v1221, %v1219
  %v1227 = vpack.c.bf16 %v1225, %v1223
  %v1229 = vsel %vm406, %v1226, 0
  %v1232 = vsel %vm406, %v1227, 0
  %1234 = vmatprep.subr.bf16.mxu0 0
  %1235 = vmatpush1.bf16.msra.mxu0 0
  %1236 = vmatprep.subr.bf16.mxu0 0
  %1237 = vmatpush1.bf16.msra.mxu0 0
  %1238 = vmatprep.subr.bf16.mxu0 0
  %1239 = vmatpush1.bf16.msra.mxu0 0
  %1240 = vmatprep.subr.bf16.mxu0 0
  %1241 = vmatpush1.bf16.msra.mxu0 0
  %1242 = vmatprep.subr.bf16.mxu0 0
  %1243 = vmatpush1.bf16.msra.mxu0 0
  %1244 = vmatprep.subr.bf16.mxu0 0
  %1245 = vmatpush1.bf16.msra.mxu0 0
  %1246 = vmatprep.subr.bf16.mxu0 0
  %1247 = vmatpush1.bf16.msra.mxu0 %v333
  %1248 = vmatprep.subr.bf16.mxu0 0
  %1249 = vmatpush1.bf16.msra.mxu0 %v331
  %1250 = vmatprep.subr.bf16.mxu0 0
  %1251 = vmatpush2.bf16.msra.mxu0 0
  %1252 = vmatprep.subr.bf16.mxu0 0
  %1253 = vmatpush2.bf16.msra.mxu0 0
  %1254 = vmatprep.subr.bf16.mxu0 0
  %1255 = vmatpush2.bf16.msra.mxu0 0
  %1256 = vmatprep.subr.bf16.mxu0 0
  %1257 = vmatpush2.bf16.msra.mxu0 0
  %1258 = vmatprep.subr.bf16.mxu0 0
  %1259 = vmatpush2.bf16.msra.mxu0 0
  %1260 = vmatprep.subr.bf16.mxu0 0
  %1261 = vmatpush2.bf16.msra.mxu0 0
  %1262 = vmatprep.subr.bf16.mxu0 0
  %1263 = vmatpush2.bf16.msra.mxu0 0
  %1264 = vmatprep.subr.bf16.mxu0 0
  %1265 = vmatpush2.bf16.msra.mxu0 0
  %1266 = vmatprep.mubr.bf16.mxu0 0
  %1267 = vmatmul.mubr.bf16.gmra.mxu0 %v1229
  %v1268 = vpop.f32.mrf.mxu0
  %v1269 = vadd.f32 0.0, %v1268
  %v1270 = vpop.f32.mrf.mxu0
  %v1271 = vpop.f32.mrf.mxu0
  %v1272 = vadd.f32 0.0, %v1271
  %v1273 = vpop.f32.mrf.mxu0
  %1274 = vmatprep.mubr.bf16.mxu0 0
  %1275 = vmatmul.mubr.bf16.gmra.mxu0 %v1232
  %v1276 = vpop.f32.mrf.mxu0
  %v1277 = vadd.f32 0.0, %v1276
  %v1278 = vpop.f32.mrf.mxu0
  %v1279 = vpop.f32.mrf.mxu0
  %v1280 = vadd.f32 0.0, %v1279
  %v1281 = vpop.f32.mrf.mxu0
  %1282 = vdwg.mxu0
  %1283 = vrot.lane.b32.xlu0 %v330, 112
  %v1284 = vpop.permute.xlu0 %1283
  %1285 = vrot.lane.b32.xlu0 %v332, 112
  %v1286 = vpop.permute.xlu0 %1285
  %1287 = vrot.lane.b32.xlu0 %v330, 48
  %v1288 = vpop.permute.xlu0 %1287
  %1289 = vrot.lane.b32.xlu0 %v332, 48
  %v1290 = vpop.permute.xlu0 %1289
  %v1292 = vsel %vm340, %v1284, 0
  %v1295 = vsel %vm340, %v1286, 0
  %v1298 = vsel %vm340, %v1288, 0
  %v1301 = vsel %vm340, %v1290, 0
  %1303 = vmatprep.subr.bf16.mxu0 0
  %1304 = vmatpush1.bf16.xpose.msra.mxu0 0
  %1305 = vmatprep.subr.bf16.mxu0 0
  %1306 = vmatpush1.bf16.xpose.msra.mxu0 0
  %1307 = vmatprep.subr.bf16.mxu0 0
  %1308 = vmatpush1.bf16.xpose.msra.mxu0 0
  %1309 = vmatprep.subr.bf16.mxu0 0
  %1310 = vmatpush1.bf16.xpose.msra.mxu0 0
  %1311 = vmatprep.subr.bf16.mxu0 0
  %1312 = vmatpush1.bf16.xpose.msra.mxu0 0
  %1313 = vmatprep.subr.bf16.mxu0 0
  %1314 = vmatpush1.bf16.xpose.msra.mxu0 0
  %1315 = vmatprep.subr.bf16.mxu0 0
  %1316 = vmatpush1.bf16.xpose.msra.mxu0 %v1301
  %1317 = vmatprep.subr.bf16.mxu0 0
  %1318 = vmatpush1.bf16.xpose.msra.mxu0 %v1298
  %1319 = vmatprep.subr.bf16.mxu0 0
  %1320 = vmatpush2.bf16.xpose.msra.mxu0 0
  %1321 = vmatprep.subr.bf16.mxu0 0
  %1322 = vmatpush2.bf16.xpose.msra.mxu0 0
  %1323 = vmatprep.subr.bf16.mxu0 0
  %1324 = vmatpush2.bf16.xpose.msra.mxu0 0
  %1325 = vmatprep.subr.bf16.mxu0 0
  %1326 = vmatpush2.bf16.xpose.msra.mxu0 0
  %1327 = vmatprep.subr.bf16.mxu0 0
  %1328 = vmatpush2.bf16.xpose.msra.mxu0 0
  %1329 = vmatprep.subr.bf16.mxu0 0
  %1330 = vmatpush2.bf16.xpose.msra.mxu0 0
  %1331 = vmatprep.subr.bf16.mxu0 0
  %1332 = vmatpush2.bf16.xpose.msra.mxu0 0
  %1333 = vmatprep.subr.bf16.mxu0 0
  %1334 = vmatpush2.bf16.xpose.msra.mxu0 0
  %1335 = vmatprep.mubr.bf16.mxu0 0
  %1336 = vmatmul.mubr.bf16.gmra.mxu0 %v1292
  %v1337 = vpop.f32.mrf.mxu0
  %v1338 = vadd.f32 0.0, %v1337
  %v1339 = vpop.f32.mrf.mxu0
  %v1340 = vpop.f32.mrf.mxu0
  %v1341 = vadd.f32 0.0, %v1340
  %v1342 = vpop.f32.mrf.mxu0
  %1343 = vmatprep.mubr.bf16.mxu0 0
  %1344 = vmatmul.mubr.bf16.gmra.mxu0 %v1295
  %v1345 = vpop.f32.mrf.mxu0
  %v1346 = vadd.f32 0.0, %v1345
  %v1347 = vpop.f32.mrf.mxu0
  %v1348 = vpop.f32.mrf.mxu0
  %v1349 = vadd.f32 0.0, %v1348
  %v1350 = vpop.f32.mrf.mxu0
  %1351 = vdwg.mxu0
  %v1352 = vmul.f32 %v1338, 0.125
  %v1353 = vmul.f32 %v1341, 0.125
  %v1354 = vmul.f32 %v1346, 0.125
  %v1355 = vmul.f32 %v1349, 0.125
  %v1356 = vsel %vm406, %v1352, -inf
  %1357 = vmax.xlane.f32.xlu0 %v1356
  %v1358 = vpop.xlane.xlu0 %1357
  %v1359 = vsel %vm406, %v1353, -inf
  %1360 = vmax.xlane.f32.xlu0 %v1359
  %v1361 = vpop.xlane.xlu0 %1360
  %v1362 = vsel %vm406, %v1354, -inf
  %1363 = vmax.xlane.f32.xlu0 %v1362
  %v1364 = vpop.xlane.xlu0 %1363
  %v1365 = vsel %vm406, %v1355, -inf
  %1366 = vmax.xlane.f32.xlu0 %v1365
  %v1367 = vpop.xlane.xlu0 %1366
  %v1368 = vsub.f32 %v1352, %v1358
  %v1369 = vsub.f32 %v1353, %v1361
  %v1370 = vsub.f32 %v1354, %v1364
  %v1371 = vsub.f32 %v1355, %v1367
  %v1372 = vmul.f32 %v1368, 1.442695
  %v1373 = vpow.pop %v1372
  %v1374 = vmul.f32 %v1369, 1.442695
  %v1375 = vpow.pop %v1374
  %v1376 = vmul.f32 %v1370, 1.442695
  %v1377 = vpow.pop %v1376
  %v1378 = vmul.f32 %v1371, 1.442695
  %v1379 = vpow.pop %v1378
  %v1380 = vsel %vm406, %v1373, 0.0
  %1381 = vadd.xlane.f32.xlu0 %v1380
  %v1382 = vpop.xlane.xlu0 %1381
  %v1383 = vsel %vm406, %v1375, 0.0
  %1384 = vadd.xlane.f32.xlu0 %v1383
  %v1385 = vpop.xlane.xlu0 %1384
  %v1386 = vsel %vm406, %v1377, 0.0
  %1387 = vadd.xlane.f32.xlu0 %v1386
  %v1388 = vpop.xlane.xlu0 %1387
  %v1389 = vsel %vm406, %v1379, 0.0
  %1390 = vadd.xlane.f32.xlu0 %v1389
  %v1391 = vpop.xlane.xlu0 %1390
  %v1392 = vrcp.pop %v1382
  %v1393 = vmul.f32 %v1373, %v1392
  %v1394 = vrcp.pop %v1385
  %v1395 = vmul.f32 %v1375, %v1394
  %v1396 = vrcp.pop %v1388
  %v1397 = vmul.f32 %v1377, %v1396
  %v1398 = vrcp.pop %v1391
  %v1399 = vmul.f32 %v1379, %v1398
  %v1400 = vpack.c.bf16 %v1395, %v1393
  %v1401 = vpack.c.bf16 %v1399, %v1397
  %1404 = vrot.lane.b32.xlu0 %v331, 112
  %v1405 = vpop.permute.xlu0 %1404
  %1406 = vrot.lane.b32.xlu0 %v333, 112
  %v1407 = vpop.permute.xlu0 %1406
  %v1411 = vsel %vm406, %v1400, 0
  %v1414 = vsel %vm406, %v1401, 0
  %1416 = vmatprep.subr.bf16.mxu0 0
  %1417 = vmatpush1.bf16.msra.mxu0 0
  %1418 = vmatprep.subr.bf16.mxu0 0
  %1419 = vmatpush1.bf16.msra.mxu0 0
  %1420 = vmatprep.subr.bf16.mxu0 0
  %1421 = vmatpush1.bf16.msra.mxu0 0
  %1422 = vmatprep.subr.bf16.mxu0 0
  %1423 = vmatpush1.bf16.msra.mxu0 0
  %1424 = vmatprep.subr.bf16.mxu0 0
  %1425 = vmatpush1.bf16.msra.mxu0 0
  %1426 = vmatprep.subr.bf16.mxu0 0
  %1427 = vmatpush1.bf16.msra.mxu0 0
  %1428 = vmatprep.subr.bf16.mxu0 0
  %1429 = vmatpush1.bf16.msra.mxu0 %v1407
  %1430 = vmatprep.subr.bf16.mxu0 0
  %1431 = vmatpush1.bf16.msra.mxu0 %v1405
  %1432 = vmatprep.subr.bf16.mxu0 0
  %1433 = vmatpush2.bf16.msra.mxu0 0
  %1434 = vmatprep.subr.bf16.mxu0 0
  %1435 = vmatpush2.bf16.msra.mxu0 0
  %1436 = vmatprep.subr.bf16.mxu0 0
  %1437 = vmatpush2.bf16.msra.mxu0 0
  %1438 = vmatprep.subr.bf16.mxu0 0
  %1439 = vmatpush2.bf16.msra.mxu0 0
  %1440 = vmatprep.subr.bf16.mxu0 0
  %1441 = vmatpush2.bf16.msra.mxu0 0
  %1442 = vmatprep.subr.bf16.mxu0 0
  %1443 = vmatpush2.bf16.msra.mxu0 0
  %1444 = vmatprep.subr.bf16.mxu0 0
  %1445 = vmatpush2.bf16.msra.mxu0 0
  %1446 = vmatprep.subr.bf16.mxu0 0
  %1447 = vmatpush2.bf16.msra.mxu0 0
  %1448 = vmatprep.mubr.bf16.mxu0 0
  %1449 = vmatmul.mubr.bf16.gmra.mxu0 %v1411
  %v1450 = vpop.f32.mrf.mxu0
  %v1451 = vadd.f32 0.0, %v1450
  %v1452 = vpop.f32.mrf.mxu0
  %v1453 = vpop.f32.mrf.mxu0
  %v1454 = vadd.f32 0.0, %v1453
  %v1455 = vpop.f32.mrf.mxu0
  %1456 = vmatprep.mubr.bf16.mxu0 0
  %1457 = vmatmul.mubr.bf16.gmra.mxu0 %v1414
  %v1458 = vpop.f32.mrf.mxu0
  %v1459 = vadd.f32 0.0, %v1458
  %v1460 = vpop.f32.mrf.mxu0
  %v1461 = vpop.f32.mrf.mxu0
  %v1462 = vadd.f32 0.0, %v1461
  %v1463 = vpop.f32.mrf.mxu0
  %1464 = vdwg.mxu0
  %1465 = vrot.lane.b32.xlu0 %v330, 96
  %v1466 = vpop.permute.xlu0 %1465
  %1467 = vrot.lane.b32.xlu0 %v332, 96
  %v1468 = vpop.permute.xlu0 %1467
  %1469 = vrot.lane.b32.xlu0 %v330, 32
  %v1470 = vpop.permute.xlu0 %1469
  %1471 = vrot.lane.b32.xlu0 %v332, 32
  %v1472 = vpop.permute.xlu0 %1471
  %v1474 = vsel %vm340, %v1466, 0
  %v1477 = vsel %vm340, %v1468, 0
  %v1480 = vsel %vm340, %v1470, 0
  %v1483 = vsel %vm340, %v1472, 0
  %1485 = vmatprep.subr.bf16.mxu0 0
  %1486 = vmatpush1.bf16.xpose.msra.mxu0 0
  %1487 = vmatprep.subr.bf16.mxu0 0
  %1488 = vmatpush1.bf16.xpose.msra.mxu0 0
  %1489 = vmatprep.subr.bf16.mxu0 0
  %1490 = vmatpush1.bf16.xpose.msra.mxu0 0
  %1491 = vmatprep.subr.bf16.mxu0 0
  %1492 = vmatpush1.bf16.xpose.msra.mxu0 0
  %1493 = vmatprep.subr.bf16.mxu0 0
  %1494 = vmatpush1.bf16.xpose.msra.mxu0 0
  %1495 = vmatprep.subr.bf16.mxu0 0
  %1496 = vmatpush1.bf16.xpose.msra.mxu0 0
  %1497 = vmatprep.subr.bf16.mxu0 0
  %1498 = vmatpush1.bf16.xpose.msra.mxu0 %v1483
  %1499 = vmatprep.subr.bf16.mxu0 0
  %1500 = vmatpush1.bf16.xpose.msra.mxu0 %v1480
  %1501 = vmatprep.subr.bf16.mxu0 0
  %1502 = vmatpush2.bf16.xpose.msra.mxu0 0
  %1503 = vmatprep.subr.bf16.mxu0 0
  %1504 = vmatpush2.bf16.xpose.msra.mxu0 0
  %1505 = vmatprep.subr.bf16.mxu0 0
  %1506 = vmatpush2.bf16.xpose.msra.mxu0 0
  %1507 = vmatprep.subr.bf16.mxu0 0
  %1508 = vmatpush2.bf16.xpose.msra.mxu0 0
  %1509 = vmatprep.subr.bf16.mxu0 0
  %1510 = vmatpush2.bf16.xpose.msra.mxu0 0
  %1511 = vmatprep.subr.bf16.mxu0 0
  %1512 = vmatpush2.bf16.xpose.msra.mxu0 0
  %1513 = vmatprep.subr.bf16.mxu0 0
  %1514 = vmatpush2.bf16.xpose.msra.mxu0 0
  %1515 = vmatprep.subr.bf16.mxu0 0
  %1516 = vmatpush2.bf16.xpose.msra.mxu0 0
  %1517 = vmatprep.mubr.bf16.mxu0 0
  %1518 = vmatmul.mubr.bf16.gmra.mxu0 %v1474
  %v1519 = vpop.f32.mrf.mxu0
  %v1520 = vadd.f32 0.0, %v1519
  %v1521 = vpop.f32.mrf.mxu0
  %v1522 = vpop.f32.mrf.mxu0
  %v1523 = vadd.f32 0.0, %v1522
  %v1524 = vpop.f32.mrf.mxu0
  %1525 = vmatprep.mubr.bf16.mxu0 0
  %1526 = vmatmul.mubr.bf16.gmra.mxu0 %v1477
  %v1527 = vpop.f32.mrf.mxu0
  %v1528 = vadd.f32 0.0, %v1527
  %v1529 = vpop.f32.mrf.mxu0
  %v1530 = vpop.f32.mrf.mxu0
  %v1531 = vadd.f32 0.0, %v1530
  %v1532 = vpop.f32.mrf.mxu0
  %1533 = vdwg.mxu0
  %v1534 = vmul.f32 %v1520, 0.125
  %v1535 = vmul.f32 %v1523, 0.125
  %v1536 = vmul.f32 %v1528, 0.125
  %v1537 = vmul.f32 %v1531, 0.125
  %v1538 = vsel %vm406, %v1534, -inf
  %1539 = vmax.xlane.f32.xlu0 %v1538
  %v1540 = vpop.xlane.xlu0 %1539
  %v1541 = vsel %vm406, %v1535, -inf
  %1542 = vmax.xlane.f32.xlu0 %v1541
  %v1543 = vpop.xlane.xlu0 %1542
  %v1544 = vsel %vm406, %v1536, -inf
  %1545 = vmax.xlane.f32.xlu0 %v1544
  %v1546 = vpop.xlane.xlu0 %1545
  %v1547 = vsel %vm406, %v1537, -inf
  %1548 = vmax.xlane.f32.xlu0 %v1547
  %v1549 = vpop.xlane.xlu0 %1548
  %v1550 = vsub.f32 %v1534, %v1540
  %v1551 = vsub.f32 %v1535, %v1543
  %v1552 = vsub.f32 %v1536, %v1546
  %v1553 = vsub.f32 %v1537, %v1549
  %v1554 = vmul.f32 %v1550, 1.442695
  %v1555 = vpow.pop %v1554
  %v1556 = vmul.f32 %v1551, 1.442695
  %v1557 = vpow.pop %v1556
  %v1558 = vmul.f32 %v1552, 1.442695
  %v1559 = vpow.pop %v1558
  %v1560 = vmul.f32 %v1553, 1.442695
  %v1561 = vpow.pop %v1560
  %v1562 = vsel %vm406, %v1555, 0.0
  %1563 = vadd.xlane.f32.xlu0 %v1562
  %v1564 = vpop.xlane.xlu0 %1563
  %v1565 = vsel %vm406, %v1557, 0.0
  %1566 = vadd.xlane.f32.xlu0 %v1565
  %v1567 = vpop.xlane.xlu0 %1566
  %v1568 = vsel %vm406, %v1559, 0.0
  %1569 = vadd.xlane.f32.xlu0 %v1568
  %v1570 = vpop.xlane.xlu0 %1569
  %v1571 = vsel %vm406, %v1561, 0.0
  %1572 = vadd.xlane.f32.xlu0 %v1571
  %v1573 = vpop.xlane.xlu0 %1572
  %v1574 = vrcp.pop %v1564
  %v1575 = vmul.f32 %v1555, %v1574
  %v1576 = vrcp.pop %v1567
  %v1577 = vmul.f32 %v1557, %v1576
  %v1578 = vrcp.pop %v1570
  %v1579 = vmul.f32 %v1559, %v1578
  %v1580 = vrcp.pop %v1573
  %v1581 = vmul.f32 %v1561, %v1580
  %v1582 = vpack.c.bf16 %v1577, %v1575
  %v1583 = vpack.c.bf16 %v1581, %v1579
  %1584 = vrot.lane.b32.xlu0 %v331, 96
  %v1585 = vpop.permute.xlu0 %1584
  %1586 = vrot.lane.b32.xlu0 %v333, 96
  %v1587 = vpop.permute.xlu0 %1586
  %v1591 = vsel %vm406, %v1582, 0
  %v1594 = vsel %vm406, %v1583, 0
  %1596 = vmatprep.subr.bf16.mxu0 0
  %1597 = vmatpush1.bf16.msra.mxu0 0
  %1598 = vmatprep.subr.bf16.mxu0 0
  %1599 = vmatpush1.bf16.msra.mxu0 0
  %1600 = vmatprep.subr.bf16.mxu0 0
  %1601 = vmatpush1.bf16.msra.mxu0 0
  %1602 = vmatprep.subr.bf16.mxu0 0
  %1603 = vmatpush1.bf16.msra.mxu0 0
  %1604 = vmatprep.subr.bf16.mxu0 0
  %1605 = vmatpush1.bf16.msra.mxu0 0
  %1606 = vmatprep.subr.bf16.mxu0 0
  %1607 = vmatpush1.bf16.msra.mxu0 0
  %1608 = vmatprep.subr.bf16.mxu0 0
  %1609 = vmatpush1.bf16.msra.mxu0 %v1587
  %1610 = vmatprep.subr.bf16.mxu0 0
  %1611 = vmatpush1.bf16.msra.mxu0 %v1585
  %1612 = vmatprep.subr.bf16.mxu0 0
  %1613 = vmatpush2.bf16.msra.mxu0 0
  %1614 = vmatprep.subr.bf16.mxu0 0
  %1615 = vmatpush2.bf16.msra.mxu0 0
  %1616 = vmatprep.subr.bf16.mxu0 0
  %1617 = vmatpush2.bf16.msra.mxu0 0
  %1618 = vmatprep.subr.bf16.mxu0 0
  %1619 = vmatpush2.bf16.msra.mxu0 0
  %1620 = vmatprep.subr.bf16.mxu0 0
  %1621 = vmatpush2.bf16.msra.mxu0 0
  %1622 = vmatprep.subr.bf16.mxu0 0
  %1623 = vmatpush2.bf16.msra.mxu0 0
  %1624 = vmatprep.subr.bf16.mxu0 0
  %1625 = vmatpush2.bf16.msra.mxu0 0
  %1626 = vmatprep.subr.bf16.mxu0 0
  %1627 = vmatpush2.bf16.msra.mxu0 0
  %1628 = vmatprep.mubr.bf16.mxu0 0
  %1629 = vmatmul.mubr.bf16.gmra.mxu0 %v1591
  %v1630 = vpop.f32.mrf.mxu0
  %v1631 = vadd.f32 0.0, %v1630
  %v1632 = vpop.f32.mrf.mxu0
  %v1633 = vpop.f32.mrf.mxu0
  %v1634 = vadd.f32 0.0, %v1633
  %v1635 = vpop.f32.mrf.mxu0
  %1636 = vmatprep.mubr.bf16.mxu0 0
  %1637 = vmatmul.mubr.bf16.gmra.mxu0 %v1594
  %v1638 = vpop.f32.mrf.mxu0
  %v1639 = vadd.f32 0.0, %v1638
  %v1640 = vpop.f32.mrf.mxu0
  %v1641 = vpop.f32.mrf.mxu0
  %v1642 = vadd.f32 0.0, %v1641
  %v1643 = vpop.f32.mrf.mxu0
  %1644 = vdwg.mxu0
  %1645 = vrot.lane.b32.xlu0 %v330, 80
  %v1646 = vpop.permute.xlu0 %1645
  %1647 = vrot.lane.b32.xlu0 %v332, 80
  %v1648 = vpop.permute.xlu0 %1647
  %1649 = vrot.lane.b32.xlu0 %v330, 16
  %v1650 = vpop.permute.xlu0 %1649
  %1651 = vrot.lane.b32.xlu0 %v332, 16
  %v1652 = vpop.permute.xlu0 %1651
  %v1654 = vsel %vm340, %v1646, 0
  %v1657 = vsel %vm340, %v1648, 0
  %v1660 = vsel %vm340, %v1650, 0
  %v1663 = vsel %vm340, %v1652, 0
  %1665 = vmatprep.subr.bf16.mxu0 0
  %1666 = vmatpush1.bf16.xpose.msra.mxu0 0
  %1667 = vmatprep.subr.bf16.mxu0 0
  %1668 = vmatpush1.bf16.xpose.msra.mxu0 0
  %1669 = vmatprep.subr.bf16.mxu0 0
  %1670 = vmatpush1.bf16.xpose.msra.mxu0 0
  %1671 = vmatprep.subr.bf16.mxu0 0
  %1672 = vmatpush1.bf16.xpose.msra.mxu0 0
  %1673 = vmatprep.subr.bf16.mxu0 0
  %1674 = vmatpush1.bf16.xpose.msra.mxu0 0
  %1675 = vmatprep.subr.bf16.mxu0 0
  %1676 = vmatpush1.bf16.xpose.msra.mxu0 0
  %1677 = vmatprep.subr.bf16.mxu0 0
  %1678 = vmatpush1.bf16.xpose.msra.mxu0 %v1663
  %1679 = vmatprep.subr.bf16.mxu0 0
  %1680 = vmatpush1.bf16.xpose.msra.mxu0 %v1660
  %1681 = vmatprep.subr.bf16.mxu0 0
  %1682 = vmatpush2.bf16.xpose.msra.mxu0 0
  %1683 = vmatprep.subr.bf16.mxu0 0
  %1684 = vmatpush2.bf16.xpose.msra.mxu0 0
  %1685 = vmatprep.subr.bf16.mxu0 0
  %1686 = vmatpush2.bf16.xpose.msra.mxu0 0
  %1687 = vmatprep.subr.bf16.mxu0 0
  %1688 = vmatpush2.bf16.xpose.msra.mxu0 0
  %1689 = vmatprep.subr.bf16.mxu0 0
  %1690 = vmatpush2.bf16.xpose.msra.mxu0 0
  %1691 = vmatprep.subr.bf16.mxu0 0
  %1692 = vmatpush2.bf16.xpose.msra.mxu0 0
  %1693 = vmatprep.subr.bf16.mxu0 0
  %1694 = vmatpush2.bf16.xpose.msra.mxu0 0
  %1695 = vmatprep.subr.bf16.mxu0 0
  %1696 = vmatpush2.bf16.xpose.msra.mxu0 0
  %1697 = vmatprep.mubr.bf16.mxu0 0
  %1698 = vmatmul.mubr.bf16.gmra.mxu0 %v1654
  %v1699 = vpop.f32.mrf.mxu0
  %v1700 = vadd.f32 0.0, %v1699
  %v1701 = vpop.f32.mrf.mxu0
  %v1702 = vpop.f32.mrf.mxu0
  %v1703 = vadd.f32 0.0, %v1702
  %v1704 = vpop.f32.mrf.mxu0
  %1705 = vmatprep.mubr.bf16.mxu0 0
  %1706 = vmatmul.mubr.bf16.gmra.mxu0 %v1657
  %v1707 = vpop.f32.mrf.mxu0
  %v1708 = vadd.f32 0.0, %v1707
  %v1709 = vpop.f32.mrf.mxu0
  %v1710 = vpop.f32.mrf.mxu0
  %v1711 = vadd.f32 0.0, %v1710
  %v1712 = vpop.f32.mrf.mxu0
  %1713 = vdwg.mxu0
  %v1714 = vmul.f32 %v1700, 0.125
  %v1715 = vmul.f32 %v1703, 0.125
  %v1716 = vmul.f32 %v1708, 0.125
  %v1717 = vmul.f32 %v1711, 0.125
  %v1718 = vsel %vm406, %v1714, -inf
  %1719 = vmax.xlane.f32.xlu0 %v1718
  %v1720 = vpop.xlane.xlu0 %1719
  %v1721 = vsel %vm406, %v1715, -inf
  %1722 = vmax.xlane.f32.xlu0 %v1721
  %v1723 = vpop.xlane.xlu0 %1722
  %v1724 = vsel %vm406, %v1716, -inf
  %1725 = vmax.xlane.f32.xlu0 %v1724
  %v1726 = vpop.xlane.xlu0 %1725
  %v1727 = vsel %vm406, %v1717, -inf
  %1728 = vmax.xlane.f32.xlu0 %v1727
  %v1729 = vpop.xlane.xlu0 %1728
  %v1730 = vsub.f32 %v1714, %v1720
  %v1731 = vsub.f32 %v1715, %v1723
  %v1732 = vsub.f32 %v1716, %v1726
  %v1733 = vsub.f32 %v1717, %v1729
  %v1734 = vmul.f32 %v1730, 1.442695
  %v1735 = vpow.pop %v1734
  %v1736 = vmul.f32 %v1731, 1.442695
  %v1737 = vpow.pop %v1736
  %v1738 = vmul.f32 %v1732, 1.442695
  %v1739 = vpow.pop %v1738
  %v1740 = vmul.f32 %v1733, 1.442695
  %v1741 = vpow.pop %v1740
  %v1742 = vsel %vm406, %v1735, 0.0
  %1743 = vadd.xlane.f32.xlu0 %v1742
  %v1744 = vpop.xlane.xlu0 %1743
  %v1745 = vsel %vm406, %v1737, 0.0
  %1746 = vadd.xlane.f32.xlu0 %v1745
  %v1747 = vpop.xlane.xlu0 %1746
  %v1748 = vsel %vm406, %v1739, 0.0
  %1749 = vadd.xlane.f32.xlu0 %v1748
  %v1750 = vpop.xlane.xlu0 %1749
  %v1751 = vsel %vm406, %v1741, 0.0
  %1752 = vadd.xlane.f32.xlu0 %v1751
  %v1753 = vpop.xlane.xlu0 %1752
  %v1754 = vrcp.pop %v1744
  %v1755 = vmul.f32 %v1735, %v1754
  %v1756 = vrcp.pop %v1747
  %v1757 = vmul.f32 %v1737, %v1756
  %v1758 = vrcp.pop %v1750
  %v1759 = vmul.f32 %v1739, %v1758
  %v1760 = vrcp.pop %v1753
  %v1761 = vmul.f32 %v1741, %v1760
  %v1762 = vpack.c.bf16 %v1757, %v1755
  %v1763 = vpack.c.bf16 %v1761, %v1759
  %1764 = vrot.lane.b32.xlu0 %v331, 80
  %v1765 = vpop.permute.xlu0 %1764
  %1766 = vrot.lane.b32.xlu0 %v333, 80
  %v1767 = vpop.permute.xlu0 %1766
  %v1771 = vsel %vm406, %v1762, 0
  %v1774 = vsel %vm406, %v1763, 0
  %1776 = vmatprep.subr.bf16.mxu0 0
  %1777 = vmatpush1.bf16.msra.mxu0 0
  %1778 = vmatprep.subr.bf16.mxu0 0
  %1779 = vmatpush1.bf16.msra.mxu0 0
  %1780 = vmatprep.subr.bf16.mxu0 0
  %1781 = vmatpush1.bf16.msra.mxu0 0
  %1782 = vmatprep.subr.bf16.mxu0 0
  %1783 = vmatpush1.bf16.msra.mxu0 0
  %1784 = vmatprep.subr.bf16.mxu0 0
  %1785 = vmatpush1.bf16.msra.mxu0 0
  %1786 = vmatprep.subr.bf16.mxu0 0
  %1787 = vmatpush1.bf16.msra.mxu0 0
  %1788 = vmatprep.subr.bf16.mxu0 0
  %1789 = vmatpush1.bf16.msra.mxu0 %v1767
  %1790 = vmatprep.subr.bf16.mxu0 0
  %1791 = vmatpush1.bf16.msra.mxu0 %v1765
  %1792 = vmatprep.subr.bf16.mxu0 0
  %1793 = vmatpush2.bf16.msra.mxu0 0
  %1794 = vmatprep.subr.bf16.mxu0 0
  %1795 = vmatpush2.bf16.msra.mxu0 0
  %1796 = vmatprep.subr.bf16.mxu0 0
  %1797 = vmatpush2.bf16.msra.mxu0 0
  %1798 = vmatprep.subr.bf16.mxu0 0
  %1799 = vmatpush2.bf16.msra.mxu0 0
  %1800 = vmatprep.subr.bf16.mxu0 0
  %1801 = vmatpush2.bf16.msra.mxu0 0
  %1802 = vmatprep.subr.bf16.mxu0 0
  %1803 = vmatpush2.bf16.msra.mxu0 0
  %1804 = vmatprep.subr.bf16.mxu0 0
  %1805 = vmatpush2.bf16.msra.mxu0 0
  %1806 = vmatprep.subr.bf16.mxu0 0
  %1807 = vmatpush2.bf16.msra.mxu0 0
  %1808 = vmatprep.mubr.bf16.mxu0 0
  %1809 = vmatmul.mubr.bf16.gmra.mxu0 %v1771
  %v1810 = vpop.f32.mrf.mxu0
  %v1811 = vadd.f32 0.0, %v1810
  %v1812 = vpop.f32.mrf.mxu0
  %v1813 = vpop.f32.mrf.mxu0
  %v1814 = vadd.f32 0.0, %v1813
  %v1815 = vpop.f32.mrf.mxu0
  %1816 = vmatprep.mubr.bf16.mxu0 0
  %1817 = vmatmul.mubr.bf16.gmra.mxu0 %v1774
  %v1818 = vpop.f32.mrf.mxu0
  %v1819 = vadd.f32 0.0, %v1818
  %v1820 = vpop.f32.mrf.mxu0
  %v1821 = vpop.f32.mrf.mxu0
  %v1822 = vadd.f32 0.0, %v1821
  %v1823 = vpop.f32.mrf.mxu0
  %1824 = vdwg.mxu0
  %1829 = vrot.lane.b32.xlu0 %v1451, 16
  %v1830 = vpop.permute.xlu0 %1829
  %1831 = vrot.lane.b32.xlu0 %v1454, 16
  %v1832 = vpop.permute.xlu0 %1831
  %1833 = vrot.lane.b32.xlu0 %v1459, 16
  %v1834 = vpop.permute.xlu0 %1833
  %1835 = vrot.lane.b32.xlu0 %v1462, 16
  %v1836 = vpop.permute.xlu0 %1835
  %1845 = vrot.lane.b32.xlu0 %v1631, 32
  %v1846 = vpop.permute.xlu0 %1845
  %1847 = vrot.lane.b32.xlu0 %v1634, 32
  %v1848 = vpop.permute.xlu0 %1847
  %1849 = vrot.lane.b32.xlu0 %v1639, 32
  %v1850 = vpop.permute.xlu0 %1849
  %1851 = vrot.lane.b32.xlu0 %v1642, 32
  %v1852 = vpop.permute.xlu0 %1851
  %1861 = vrot.lane.b32.xlu0 %v1811, 48
  %v1862 = vpop.permute.xlu0 %1861
  %1863 = vrot.lane.b32.xlu0 %v1814, 48
  %v1864 = vpop.permute.xlu0 %1863
  %1865 = vrot.lane.b32.xlu0 %v1819, 48
  %v1866 = vpop.permute.xlu0 %1865
  %1867 = vrot.lane.b32.xlu0 %v1822, 48
  %v1868 = vpop.permute.xlu0 %1867
  %v1873 = vsel %vm340, %v1269, %v1830
  %v1874 = vsel %vm340, %v1272, %v1832
  %v1875 = vsel %vm340, %v1277, %v1834
  %v1876 = vsel %vm340, %v1280, %v1836
  %v1877 = vsel %vm406, %v1873, %v1846
  %v1878 = vsel %vm406, %v1874, %v1848
  %v1879 = vsel %vm406, %v1875, %v1850
  %v1880 = vsel %vm406, %v1876, %v1852
  %v1881 = vsel %vm1106, %v1877, %v1862
  %v1882 = vsel %vm1106, %v1878, %v1864
  %v1883 = vsel %vm1106, %v1879, %v1866
  %v1884 = vsel %vm1106, %v1880, %v1868
  %v1885 = vpack.c.bf16 %v1108, %v1107
  %v1886 = vpack.c.bf16 %v1110, %v1109
  %v1887 = vpack.c.bf16 %v1882, %v1881
  %v1888 = vpack.c.bf16 %v1884, %v1883
  %v1889 = vld [vmem:[%s4] sm:$0xf]
  %v1890 = vld [vmem:[%s4 + $0x4] sm:$0xf]
  %v1891 = vld [vmem:[%s4 + $0x8] sm:$0xf]
  %v1892 = vld [vmem:[%s4 + $0xc] sm:$0xf]
  %v1893 = vld [vmem:[%s4 + $0x10] sm:$0xf]
  %v1894 = vld [vmem:[%s4 + $0x14] sm:$0xf]
  %v1895 = vld [vmem:[%s4 + $0x18] sm:$0xf]
  %v1896 = vld [vmem:[%s4 + $0x1c] sm:$0xf]
  %v1905 = vunpack.c.l.b16 %v1889
  %v1906 = vunpack.c.l.b16 %v1890
  %v1907 = vunpack.c.l.b16 %v1891
  %v1908 = vunpack.c.l.b16 %v1892
  %v1909 = vunpack.c.l.b16 %v1893
  %v1910 = vunpack.c.l.b16 %v1894
  %v1911 = vunpack.c.l.b16 %v1895
  %v1912 = vunpack.c.l.b16 %v1896
  %v1913 = vpack.c.b16 %v1906, %v1905
  %v1914 = vpack.c.b16 %v1908, %v1907
  %v1915 = vpack.c.b16 %v1910, %v1909
  %v1916 = vpack.c.b16 %v1912, %v1911
  %v1922 = vsel %vm53, %v1885, 0
  %v1925 = vsel %vm53, %v1886, 0
  %v1928 = vsel %vm53, %v1887, 0
  %v1931 = vsel %vm53, %v1888, 0
  %1933 = vmatprep.subr.bf16.mxu0 0
  %1934 = vmatpush1.bf16.msra.mxu0 0
  %1935 = vmatprep.subr.bf16.mxu0 0
  %1936 = vmatpush1.bf16.msra.mxu0 0
  %1937 = vmatprep.subr.bf16.mxu0 0
  %1938 = vmatpush1.bf16.msra.mxu0 0
  %1939 = vmatprep.subr.bf16.mxu0 0
  %1940 = vmatpush1.bf16.msra.mxu0 0
  %1941 = vmatprep.subr.bf16.mxu0 0
  %1942 = vmatpush1.bf16.msra.mxu0 %v1916
  %1943 = vmatprep.subr.bf16.mxu0 0
  %1944 = vmatpush1.bf16.msra.mxu0 %v1915
  %1945 = vmatprep.subr.bf16.mxu0 0
  %1946 = vmatpush1.bf16.msra.mxu0 %v1914
  %1947 = vmatprep.subr.bf16.mxu0 0
  %1948 = vmatpush1.bf16.msra.mxu0 %v1913
  %1949 = vmatprep.subr.bf16.mxu0 0
  %1950 = vmatpush2.bf16.msra.mxu0 0
  %1951 = vmatprep.subr.bf16.mxu0 0
  %1952 = vmatpush2.bf16.msra.mxu0 0
  %1953 = vmatprep.subr.bf16.mxu0 0
  %1954 = vmatpush2.bf16.msra.mxu0 0
  %1955 = vmatprep.subr.bf16.mxu0 0
  %1956 = vmatpush2.bf16.msra.mxu0 0
  %1957 = vmatprep.subr.bf16.mxu0 0
  %1958 = vmatpush2.bf16.msra.mxu0 0
  %1959 = vmatprep.subr.bf16.mxu0 0
  %1960 = vmatpush2.bf16.msra.mxu0 0
  %1961 = vmatprep.subr.bf16.mxu0 0
  %1962 = vmatpush2.bf16.msra.mxu0 0
  %1963 = vmatprep.subr.bf16.mxu0 0
  %1964 = vmatpush2.bf16.msra.mxu0 0
  %1965 = vmatprep.mubr.bf16.mxu0 0
  %1966 = vmatmul.mubr.bf16.gmra.mxu0 %v1922
  %v1967 = vpop.f32.mrf.mxu0
  %v1968 = vadd.f32 0.0, %v1967
  %v1969 = vpop.f32.mrf.mxu0
  %v1970 = vpop.f32.mrf.mxu0
  %v1971 = vadd.f32 0.0, %v1970
  %v1972 = vpop.f32.mrf.mxu0
  %1973 = vmatprep.mubr.bf16.mxu0 0
  %1974 = vmatmul.mubr.bf16.gmra.mxu0 %v1925
  %v1975 = vpop.f32.mrf.mxu0
  %v1976 = vadd.f32 0.0, %v1975
  %v1977 = vpop.f32.mrf.mxu0
  %v1978 = vpop.f32.mrf.mxu0
  %v1979 = vadd.f32 0.0, %v1978
  %v1980 = vpop.f32.mrf.mxu0
  %1981 = vmatprep.mubr.bf16.mxu0 0
  %1982 = vmatmul.mubr.bf16.gmra.mxu0 %v1928
  %v1983 = vpop.f32.mrf.mxu0
  %v1984 = vadd.f32 0.0, %v1983
  %v1985 = vpop.f32.mrf.mxu0
  %v1986 = vpop.f32.mrf.mxu0
  %v1987 = vadd.f32 0.0, %v1986
  %v1988 = vpop.f32.mrf.mxu0
  %1989 = vmatprep.mubr.bf16.mxu0 0
  %1990 = vmatmul.mubr.bf16.gmra.mxu0 %v1931
  %v1991 = vpop.f32.mrf.mxu0
  %v1992 = vadd.f32 0.0, %v1991
  %v1993 = vpop.f32.mrf.mxu0
  %v1994 = vpop.f32.mrf.mxu0
  %v1995 = vadd.f32 0.0, %v1994
  %v1996 = vpop.f32.mrf.mxu0
  %1997 = vdwg.mxu0
  %v1998 = vadd.f32 %v45, %v1968
  %v1999 = vadd.f32 %v46, %v1971
  %v2000 = vadd.f32 %v47, %v1976
  %v2001 = vadd.f32 %v48, %v1979
  %v2002 = vadd.f32 %v49, %v1984
  %v2003 = vadd.f32 %v50, %v1987
  %v2004 = vadd.f32 %v51, %v1992
  %v2005 = vadd.f32 %v52, %v1995
  %v2006 = vsel %vm53, %v1998, 0.0
  %2007 = vadd.xlane.f32.xlu0 %v2006
  %v2008 = vpop.xlane.xlu0 %2007
  %v2009 = vsel %vm53, %v1999, 0.0
  %2010 = vadd.xlane.f32.xlu0 %v2009
  %v2011 = vpop.xlane.xlu0 %2010
  %v2012 = vsel %vm53, %v2000, 0.0
  %2013 = vadd.xlane.f32.xlu0 %v2012
  %v2014 = vpop.xlane.xlu0 %2013
  %v2015 = vsel %vm53, %v2001, 0.0
  %2016 = vadd.xlane.f32.xlu0 %v2015
  %v2017 = vpop.xlane.xlu0 %2016
  %v2018 = vsel %vm53, %v2002, 0.0
  %2019 = vadd.xlane.f32.xlu0 %v2018
  %v2020 = vpop.xlane.xlu0 %2019
  %v2021 = vsel %vm53, %v2003, 0.0
  %2022 = vadd.xlane.f32.xlu0 %v2021
  %v2023 = vpop.xlane.xlu0 %2022
  %v2024 = vsel %vm53, %v2004, 0.0
  %2025 = vadd.xlane.f32.xlu0 %v2024
  %v2026 = vpop.xlane.xlu0 %2025
  %v2027 = vsel %vm53, %v2005, 0.0
  %2028 = vadd.xlane.f32.xlu0 %v2027
  %v2029 = vpop.xlane.xlu0 %2028
  %v2030 = vmul.f32 %v2008, %v78
  %v2031 = vmul.f32 %v2011, %v78
  %v2032 = vmul.f32 %v2014, %v78
  %v2033 = vmul.f32 %v2017, %v78
  %v2034 = vmul.f32 %v2020, %v78
  %v2035 = vmul.f32 %v2023, %v78
  %v2036 = vmul.f32 %v2026, %v78
  %v2037 = vmul.f32 %v2029, %v78
  %v2038 = vsub.f32 %v1998, %v2030
  %v2039 = vsub.f32 %v1999, %v2031
  %v2040 = vsub.f32 %v2000, %v2032
  %v2041 = vsub.f32 %v2001, %v2033
  %v2042 = vsub.f32 %v2002, %v2034
  %v2043 = vsub.f32 %v2003, %v2035
  %v2044 = vsub.f32 %v2004, %v2036
  %v2045 = vsub.f32 %v2005, %v2037
  %v2046 = vmul.f32 %v2038, %v2038
  %v2047 = vmul.f32 %v2039, %v2039
  %v2048 = vmul.f32 %v2040, %v2040
  %v2049 = vmul.f32 %v2041, %v2041
  %v2050 = vmul.f32 %v2042, %v2042
  %v2051 = vmul.f32 %v2043, %v2043
  %v2052 = vmul.f32 %v2044, %v2044
  %v2053 = vmul.f32 %v2045, %v2045
  %v2054 = vsel %vm53, %v2046, 0.0
  %2055 = vadd.xlane.f32.xlu0 %v2054
  %v2056 = vpop.xlane.xlu0 %2055
  %v2057 = vsel %vm53, %v2047, 0.0
  %2058 = vadd.xlane.f32.xlu0 %v2057
  %v2059 = vpop.xlane.xlu0 %2058
  %v2060 = vsel %vm53, %v2048, 0.0
  %2061 = vadd.xlane.f32.xlu0 %v2060
  %v2062 = vpop.xlane.xlu0 %2061
  %v2063 = vsel %vm53, %v2049, 0.0
  %2064 = vadd.xlane.f32.xlu0 %v2063
  %v2065 = vpop.xlane.xlu0 %2064
  %v2066 = vsel %vm53, %v2050, 0.0
  %2067 = vadd.xlane.f32.xlu0 %v2066
  %v2068 = vpop.xlane.xlu0 %2067
  %v2069 = vsel %vm53, %v2051, 0.0
  %2070 = vadd.xlane.f32.xlu0 %v2069
  %v2071 = vpop.xlane.xlu0 %2070
  %v2072 = vsel %vm53, %v2052, 0.0
  %2073 = vadd.xlane.f32.xlu0 %v2072
  %v2074 = vpop.xlane.xlu0 %2073
  %v2075 = vsel %vm53, %v2053, 0.0
  %2076 = vadd.xlane.f32.xlu0 %v2075
  %v2077 = vpop.xlane.xlu0 %2076
  %v2078 = vmul.f32 %v2056, %v78
  %v2079 = vmul.f32 %v2059, %v78
  %v2080 = vmul.f32 %v2062, %v78
  %v2081 = vmul.f32 %v2065, %v78
  %v2082 = vmul.f32 %v2068, %v78
  %v2083 = vmul.f32 %v2071, %v78
  %v2084 = vmul.f32 %v2074, %v78
  %v2085 = vmul.f32 %v2077, %v78
  %v2086 = vadd.f32 %v2078, 1e-05
  %v2087 = vadd.f32 %v2079, 1e-05
  %v2088 = vadd.f32 %v2080, 1e-05
  %v2089 = vadd.f32 %v2081, 1e-05
  %v2090 = vadd.f32 %v2082, 1e-05
  %v2091 = vadd.f32 %v2083, 1e-05
  %v2092 = vadd.f32 %v2084, 1e-05
  %v2093 = vadd.f32 %v2085, 1e-05
  %v2094 = vrsqrt.pop %v2086
  %v2095 = vrsqrt.pop %v2087
  %v2096 = vrsqrt.pop %v2088
  %v2097 = vrsqrt.pop %v2089
  %v2098 = vrsqrt.pop %v2090
  %v2099 = vrsqrt.pop %v2091
  %v2100 = vrsqrt.pop %v2092
  %v2101 = vrsqrt.pop %v2093
  %v2102 = vmul.f32 %v2038, %v2094
  %v2103 = vmul.f32 %v2039, %v2095
  %v2104 = vmul.f32 %v2040, %v2096
  %v2105 = vmul.f32 %v2041, %v2097
  %v2106 = vmul.f32 %v2042, %v2098
  %v2107 = vmul.f32 %v2043, %v2099
  %v2108 = vmul.f32 %v2044, %v2100
  %v2109 = vmul.f32 %v2045, %v2101
  %v2110 = vld [vmem:[%s5] sm:$0x1]
  %v2112 = vlaneseq
  %v2113 = vshrl.u32 %v2112, 7
  %v2114 = vsub.s32 0, %v2113
  %v2115 = vrot.slane %v2110, %v2114
  %v2117 = vmul.f32 %v2102, %v2115
  %v2118 = vmul.f32 %v2103, %v2115
  %v2119 = vmul.f32 %v2104, %v2115
  %v2120 = vmul.f32 %v2105, %v2115
  %v2121 = vmul.f32 %v2106, %v2115
  %v2122 = vmul.f32 %v2107, %v2115
  %v2123 = vmul.f32 %v2108, %v2115
  %v2124 = vmul.f32 %v2109, %v2115
  %v2125 = vld [vmem:[%s6] sm:$0x1]
  %v2127 = vlaneseq
  %v2128 = vshrl.u32 %v2127, 7
  %v2129 = vsub.s32 0, %v2128
  %v2130 = vrot.slane %v2125, %v2129
  %v2132 = vadd.f32 %v2117, %v2130
  %v2133 = vadd.f32 %v2118, %v2130
  %v2134 = vadd.f32 %v2119, %v2130
  %v2135 = vadd.f32 %v2120, %v2130
  %v2136 = vadd.f32 %v2121, %v2130
  %v2137 = vadd.f32 %v2122, %v2130
  %v2138 = vadd.f32 %v2123, %v2130
  %v2139 = vadd.f32 %v2124, %v2130
  %v2140 = vpack.c.bf16 %v2133, %v2132
  %v2141 = vpack.c.bf16 %v2135, %v2134
  %v2142 = vpack.c.bf16 %v2137, %v2136
  %v2143 = vpack.c.bf16 %v2139, %v2138
  %v2144 = vld [vmem:[%s7] sm:$0xf]
  %v2145 = vld [vmem:[%s7 + $0x4] sm:$0xf]
  %v2146 = vld [vmem:[%s7 + $0x8] sm:$0xf]
  %v2147 = vld [vmem:[%s7 + $0xc] sm:$0xf]
  %v2148 = vld [vmem:[%s7 + $0x10] sm:$0xf]
  %v2149 = vld [vmem:[%s7 + $0x14] sm:$0xf]
  %v2150 = vld [vmem:[%s7 + $0x18] sm:$0xf]
  %v2151 = vld [vmem:[%s7 + $0x1c] sm:$0xf]
  %v2152 = vld [vmem:[%s8] sm:$0x1]
  %v2154 = vlaneseq
  %v2155 = vshrl.u32 %v2154, 7
  %v2156 = vsub.s32 0, %v2155
  %v2157 = vrot.slane %v2152, %v2156
  %v2167 = vunpack.c.l.b16 %v2144
  %v2168 = vunpack.c.l.b16 %v2145
  %v2169 = vunpack.c.l.b16 %v2146
  %v2170 = vunpack.c.l.b16 %v2147
  %v2171 = vunpack.c.l.b16 %v2148
  %v2172 = vunpack.c.l.b16 %v2149
  %v2173 = vunpack.c.l.b16 %v2150
  %v2174 = vunpack.c.l.b16 %v2151
  %v2175 = vpack.c.b16 %v2168, %v2167
  %v2176 = vpack.c.b16 %v2170, %v2169
  %v2177 = vpack.c.b16 %v2172, %v2171
  %v2178 = vpack.c.b16 %v2174, %v2173
  %v2184 = vsel %vm53, %v2140, 0
  %v2187 = vsel %vm53, %v2141, 0
  %v2190 = vsel %vm53, %v2142, 0
  %v2193 = vsel %vm53, %v2143, 0
  %2195 = vmatprep.subr.bf16.mxu0 0
  %2196 = vmatpush1.bf16.msra.mxu0 0
  %2197 = vmatprep.subr.bf16.mxu0 0
  %2198 = vmatpush1.bf16.msra.mxu0 0
  %2199 = vmatprep.subr.bf16.mxu0 0
  %2200 = vmatpush1.bf16.msra.mxu0 0
  %2201 = vmatprep.subr.bf16.mxu0 0
  %2202 = vmatpush1.bf16.msra.mxu0 0
  %2203 = vmatprep.subr.bf16.mxu0 0
  %2204 = vmatpush1.bf16.msra.mxu0 %v2178
  %2205 = vmatprep.subr.bf16.mxu0 0
  %2206 = vmatpush1.bf16.msra.mxu0 %v2177
  %2207 = vmatprep.subr.bf16.mxu0 0
  %2208 = vmatpush1.bf16.msra.mxu0 %v2176
  %2209 = vmatprep.subr.bf16.mxu0 0
  %2210 = vmatpush1.bf16.msra.mxu0 %v2175
  %2211 = vmatprep.subr.bf16.mxu0 0
  %2212 = vmatpush2.bf16.msra.mxu0 0
  %2213 = vmatprep.subr.bf16.mxu0 0
  %2214 = vmatpush2.bf16.msra.mxu0 0
  %2215 = vmatprep.subr.bf16.mxu0 0
  %2216 = vmatpush2.bf16.msra.mxu0 0
  %2217 = vmatprep.subr.bf16.mxu0 0
  %2218 = vmatpush2.bf16.msra.mxu0 0
  %2219 = vmatprep.subr.bf16.mxu0 0
  %2220 = vmatpush2.bf16.msra.mxu0 0
  %2221 = vmatprep.subr.bf16.mxu0 0
  %2222 = vmatpush2.bf16.msra.mxu0 0
  %2223 = vmatprep.subr.bf16.mxu0 0
  %2224 = vmatpush2.bf16.msra.mxu0 0
  %2225 = vmatprep.subr.bf16.mxu0 0
  %2226 = vmatpush2.bf16.msra.mxu0 0
  %2227 = vmatprep.mubr.bf16.mxu0 0
  %2228 = vmatmul.mubr.bf16.gmra.mxu0 %v2184
  %v2229 = vpop.f32.mrf.mxu0
  %v2230 = vadd.f32 %v2157, %v2229
  %v2231 = vpop.f32.mrf.mxu0
  %v2232 = vpop.f32.mrf.mxu0
  %v2233 = vadd.f32 %v2157, %v2232
  %v2234 = vpop.f32.mrf.mxu0
  %2235 = vmatprep.mubr.bf16.mxu0 0
  %2236 = vmatmul.mubr.bf16.gmra.mxu0 %v2187
  %v2237 = vpop.f32.mrf.mxu0
  %v2238 = vadd.f32 %v2157, %v2237
  %v2239 = vpop.f32.mrf.mxu0
  %v2240 = vpop.f32.mrf.mxu0
  %v2241 = vadd.f32 %v2157, %v2240
  %v2242 = vpop.f32.mrf.mxu0
  %2243 = vmatprep.mubr.bf16.mxu0 0
  %2244 = vmatmul.mubr.bf16.gmra.mxu0 %v2190
  %v2245 = vpop.f32.mrf.mxu0
  %v2246 = vadd.f32 %v2157, %v2245
  %v2247 = vpop.f32.mrf.mxu0
  %v2248 = vpop.f32.mrf.mxu0
  %v2249 = vadd.f32 %v2157, %v2248
  %v2250 = vpop.f32.mrf.mxu0
  %2251 = vmatprep.mubr.bf16.mxu0 0
  %2252 = vmatmul.mubr.bf16.gmra.mxu0 %v2193
  %v2253 = vpop.f32.mrf.mxu0
  %v2254 = vadd.f32 %v2157, %v2253
  %v2255 = vpop.f32.mrf.mxu0
  %v2256 = vpop.f32.mrf.mxu0
  %v2257 = vadd.f32 %v2157, %v2256
  %v2258 = vpop.f32.mrf.mxu0
  %2259 = vdwg.mxu0
  %v2260 = vmax.f32 %v2230, 0.0
  %v2261 = vmax.f32 %v2233, 0.0
  %v2262 = vmax.f32 %v2238, 0.0
  %v2263 = vmax.f32 %v2241, 0.0
  %v2264 = vmax.f32 %v2246, 0.0
  %v2265 = vmax.f32 %v2249, 0.0
  %v2266 = vmax.f32 %v2254, 0.0
  %v2267 = vmax.f32 %v2257, 0.0
  %v2268 = vpack.c.bf16 %v2261, %v2260
  %v2269 = vpack.c.bf16 %v2263, %v2262
  %v2270 = vpack.c.bf16 %v2265, %v2264
  %v2271 = vpack.c.bf16 %v2267, %v2266
  %v2272 = vld [vmem:[%s9] sm:$0xf]
  %v2273 = vld [vmem:[%s9 + $0x4] sm:$0xf]
  %v2274 = vld [vmem:[%s9 + $0x8] sm:$0xf]
  %v2275 = vld [vmem:[%s9 + $0xc] sm:$0xf]
  %v2276 = vld [vmem:[%s9 + $0x10] sm:$0xf]
  %v2277 = vld [vmem:[%s9 + $0x14] sm:$0xf]
  %v2278 = vld [vmem:[%s9 + $0x18] sm:$0xf]
  %v2279 = vld [vmem:[%s9 + $0x1c] sm:$0xf]
  %v2280 = vld [vmem:[%s10] sm:$0x1]
  %v2282 = vlaneseq
  %v2283 = vshrl.u32 %v2282, 7
  %v2284 = vsub.s32 0, %v2283
  %v2285 = vrot.slane %v2280, %v2284
  %v2295 = vunpack.c.l.b16 %v2272
  %v2296 = vunpack.c.l.b16 %v2273
  %v2297 = vunpack.c.l.b16 %v2274
  %v2298 = vunpack.c.l.b16 %v2275
  %v2299 = vunpack.c.l.b16 %v2276
  %v2300 = vunpack.c.l.b16 %v2277
  %v2301 = vunpack.c.l.b16 %v2278
  %v2302 = vunpack.c.l.b16 %v2279
  %v2303 = vpack.c.b16 %v2296, %v2295
  %v2304 = vpack.c.b16 %v2298, %v2297
  %v2305 = vpack.c.b16 %v2300, %v2299
  %v2306 = vpack.c.b16 %v2302, %v2301
  %v2312 = vsel %vm53, %v2268, 0
  %v2315 = vsel %vm53, %v2269, 0
  %v2318 = vsel %vm53, %v2270, 0
  %v2321 = vsel %vm53, %v2271, 0
  %2323 = vmatprep.subr.bf16.mxu0 0
  %2324 = vmatpush1.bf16.msra.mxu0 0
  %2325 = vmatprep.subr.bf16.mxu0 0
  %2326 = vmatpush1.bf16.msra.mxu0 0
  %2327 = vmatprep.subr.bf16.mxu0 0
  %2328 = vmatpush1.bf16.msra.mxu0 0
  %2329 = vmatprep.subr.bf16.mxu0 0
  %2330 = vmatpush1.bf16.msra.mxu0 0
  %2331 = vmatprep.subr.bf16.mxu0 0
  %2332 = vmatpush1.bf16.msra.mxu0 %v2306
  %2333 = vmatprep.subr.bf16.mxu0 0
  %2334 = vmatpush1.bf16.msra.mxu0 %v2305
  %2335 = vmatprep.subr.bf16.mxu0 0
  %2336 = vmatpush1.bf16.msra.mxu0 %v2304
  %2337 = vmatprep.subr.bf16.mxu0 0
  %2338 = vmatpush1.bf16.msra.mxu0 %v2303
  %2339 = vmatprep.subr.bf16.mxu0 0
  %2340 = vmatpush2.bf16.msra.mxu0 0
  %2341 = vmatprep.subr.bf16.mxu0 0
  %2342 = vmatpush2.bf16.msra.mxu0 0
  %2343 = vmatprep.subr.bf16.mxu0 0
  %2344 = vmatpush2.bf16.msra.mxu0 0
  %2345 = vmatprep.subr.bf16.mxu0 0
  %2346 = vmatpush2.bf16.msra.mxu0 0
  %2347 = vmatprep.subr.bf16.mxu0 0
  %2348 = vmatpush2.bf16.msra.mxu0 0
  %2349 = vmatprep.subr.bf16.mxu0 0
  %2350 = vmatpush2.bf16.msra.mxu0 0
  %2351 = vmatprep.subr.bf16.mxu0 0
  %2352 = vmatpush2.bf16.msra.mxu0 0
  %2353 = vmatprep.subr.bf16.mxu0 0
  %2354 = vmatpush2.bf16.msra.mxu0 0
  %2355 = vmatprep.mubr.bf16.mxu0 0
  %2356 = vmatmul.mubr.bf16.gmra.mxu0 %v2312
  %v2357 = vpop.f32.mrf.mxu0
  %v2358 = vadd.f32 %v2285, %v2357
  %v2359 = vpop.f32.mrf.mxu0
  %v2360 = vpop.f32.mrf.mxu0
  %v2361 = vadd.f32 %v2285, %v2360
  %v2362 = vpop.f32.mrf.mxu0
  %2363 = vmatprep.mubr.bf16.mxu0 0
  %2364 = vmatmul.mubr.bf16.gmra.mxu0 %v2315
  %v2365 = vpop.f32.mrf.mxu0
  %v2366 = vadd.f32 %v2285, %v2365
  %v2367 = vpop.f32.mrf.mxu0
  %v2368 = vpop.f32.mrf.mxu0
  %v2369 = vadd.f32 %v2285, %v2368
  %v2370 = vpop.f32.mrf.mxu0
  %2371 = vmatprep.mubr.bf16.mxu0 0
  %2372 = vmatmul.mubr.bf16.gmra.mxu0 %v2318
  %v2373 = vpop.f32.mrf.mxu0
  %v2374 = vadd.f32 %v2285, %v2373
  %v2375 = vpop.f32.mrf.mxu0
  %v2376 = vpop.f32.mrf.mxu0
  %v2377 = vadd.f32 %v2285, %v2376
  %v2378 = vpop.f32.mrf.mxu0
  %2379 = vmatprep.mubr.bf16.mxu0 0
  %2380 = vmatmul.mubr.bf16.gmra.mxu0 %v2321
  %v2381 = vpop.f32.mrf.mxu0
  %v2382 = vadd.f32 %v2285, %v2381
  %v2383 = vpop.f32.mrf.mxu0
  %v2384 = vpop.f32.mrf.mxu0
  %v2385 = vadd.f32 %v2285, %v2384
  %v2386 = vpop.f32.mrf.mxu0
  %2387 = vdwg.mxu0
  %v2388 = vadd.f32 %v1998, %v2358
  %v2389 = vadd.f32 %v1999, %v2361
  %v2390 = vadd.f32 %v2000, %v2366
  %v2391 = vadd.f32 %v2001, %v2369
  %v2392 = vadd.f32 %v2002, %v2374
  %v2393 = vadd.f32 %v2003, %v2377
  %v2394 = vadd.f32 %v2004, %v2382
  %v2395 = vadd.f32 %v2005, %v2385
  %v2396 = vsel %vm53, %v2388, 0.0
  %2397 = vadd.xlane.f32.xlu0 %v2396
  %v2398 = vpop.xlane.xlu0 %2397
  %v2399 = vsel %vm53, %v2389, 0.0
  %2400 = vadd.xlane.f32.xlu0 %v2399
  %v2401 = vpop.xlane.xlu0 %2400
  %v2402 = vsel %vm53, %v2390, 0.0
  %2403 = vadd.xlane.f32.xlu0 %v2402
  %v2404 = vpop.xlane.xlu0 %2403
  %v2405 = vsel %vm53, %v2391, 0.0
  %2406 = vadd.xlane.f32.xlu0 %v2405
  %v2407 = vpop.xlane.xlu0 %2406
  %v2408 = vsel %vm53, %v2392, 0.0
  %2409 = vadd.xlane.f32.xlu0 %v2408
  %v2410 = vpop.xlane.xlu0 %2409
  %v2411 = vsel %vm53, %v2393, 0.0
  %2412 = vadd.xlane.f32.xlu0 %v2411
  %v2413 = vpop.xlane.xlu0 %2412
  %v2414 = vsel %vm53, %v2394, 0.0
  %2415 = vadd.xlane.f32.xlu0 %v2414
  %v2416 = vpop.xlane.xlu0 %2415
  %v2417 = vsel %vm53, %v2395, 0.0
  %2418 = vadd.xlane.f32.xlu0 %v2417
  %v2419 = vpop.xlane.xlu0 %2418
  %v2420 = vmul.f32 %v2398, %v78
  %v2421 = vmul.f32 %v2401, %v78
  %v2422 = vmul.f32 %v2404, %v78
  %v2423 = vmul.f32 %v2407, %v78
  %v2424 = vmul.f32 %v2410, %v78
  %v2425 = vmul.f32 %v2413, %v78
  %v2426 = vmul.f32 %v2416, %v78
  %v2427 = vmul.f32 %v2419, %v78
  %v2428 = vsub.f32 %v2388, %v2420
  %v2429 = vsub.f32 %v2389, %v2421
  %v2430 = vsub.f32 %v2390, %v2422
  %v2431 = vsub.f32 %v2391, %v2423
  %v2432 = vsub.f32 %v2392, %v2424
  %v2433 = vsub.f32 %v2393, %v2425
  %v2434 = vsub.f32 %v2394, %v2426
  %v2435 = vsub.f32 %v2395, %v2427
  %v2436 = vmul.f32 %v2428, %v2428
  %v2437 = vmul.f32 %v2429, %v2429
  %v2438 = vmul.f32 %v2430, %v2430
  %v2439 = vmul.f32 %v2431, %v2431
  %v2440 = vmul.f32 %v2432, %v2432
  %v2441 = vmul.f32 %v2433, %v2433
  %v2442 = vmul.f32 %v2434, %v2434
  %v2443 = vmul.f32 %v2435, %v2435
  %v2444 = vsel %vm53, %v2436, 0.0
  %2445 = vadd.xlane.f32.xlu0 %v2444
  %v2446 = vpop.xlane.xlu0 %2445
  %v2447 = vsel %vm53, %v2437, 0.0
  %2448 = vadd.xlane.f32.xlu0 %v2447
  %v2449 = vpop.xlane.xlu0 %2448
  %v2450 = vsel %vm53, %v2438, 0.0
  %2451 = vadd.xlane.f32.xlu0 %v2450
  %v2452 = vpop.xlane.xlu0 %2451
  %v2453 = vsel %vm53, %v2439, 0.0
  %2454 = vadd.xlane.f32.xlu0 %v2453
  %v2455 = vpop.xlane.xlu0 %2454
  %v2456 = vsel %vm53, %v2440, 0.0
  %2457 = vadd.xlane.f32.xlu0 %v2456
  %v2458 = vpop.xlane.xlu0 %2457
  %v2459 = vsel %vm53, %v2441, 0.0
  %2460 = vadd.xlane.f32.xlu0 %v2459
  %v2461 = vpop.xlane.xlu0 %2460
  %v2462 = vsel %vm53, %v2442, 0.0
  %2463 = vadd.xlane.f32.xlu0 %v2462
  %v2464 = vpop.xlane.xlu0 %2463
  %v2465 = vsel %vm53, %v2443, 0.0
  %2466 = vadd.xlane.f32.xlu0 %v2465
  %v2467 = vpop.xlane.xlu0 %2466
  %v2468 = vmul.f32 %v2446, %v78
  %v2469 = vmul.f32 %v2449, %v78
  %v2470 = vmul.f32 %v2452, %v78
  %v2471 = vmul.f32 %v2455, %v78
  %v2472 = vmul.f32 %v2458, %v78
  %v2473 = vmul.f32 %v2461, %v78
  %v2474 = vmul.f32 %v2464, %v78
  %v2475 = vmul.f32 %v2467, %v78
  %v2476 = vadd.f32 %v2468, 1e-05
  %v2477 = vadd.f32 %v2469, 1e-05
  %v2478 = vadd.f32 %v2470, 1e-05
  %v2479 = vadd.f32 %v2471, 1e-05
  %v2480 = vadd.f32 %v2472, 1e-05
  %v2481 = vadd.f32 %v2473, 1e-05
  %v2482 = vadd.f32 %v2474, 1e-05
  %v2483 = vadd.f32 %v2475, 1e-05
  %v2484 = vrsqrt.pop %v2476
  %v2485 = vrsqrt.pop %v2477
  %v2486 = vrsqrt.pop %v2478
  %v2487 = vrsqrt.pop %v2479
  %v2488 = vrsqrt.pop %v2480
  %v2489 = vrsqrt.pop %v2481
  %v2490 = vrsqrt.pop %v2482
  %v2491 = vrsqrt.pop %v2483
  %v2492 = vmul.f32 %v2428, %v2484
  %v2493 = vmul.f32 %v2429, %v2485
  %v2494 = vmul.f32 %v2430, %v2486
  %v2495 = vmul.f32 %v2431, %v2487
  %v2496 = vmul.f32 %v2432, %v2488
  %v2497 = vmul.f32 %v2433, %v2489
  %v2498 = vmul.f32 %v2434, %v2490
  %v2499 = vmul.f32 %v2435, %v2491
  %v2500 = vld [vmem:[%s11] sm:$0x1]
  %v2502 = vlaneseq
  %v2503 = vshrl.u32 %v2502, 7
  %v2504 = vsub.s32 0, %v2503
  %v2505 = vrot.slane %v2500, %v2504
  %v2507 = vmul.f32 %v2492, %v2505
  %v2508 = vmul.f32 %v2493, %v2505
  %v2509 = vmul.f32 %v2494, %v2505
  %v2510 = vmul.f32 %v2495, %v2505
  %v2511 = vmul.f32 %v2496, %v2505
  %v2512 = vmul.f32 %v2497, %v2505
  %v2513 = vmul.f32 %v2498, %v2505
  %v2514 = vmul.f32 %v2499, %v2505
  %v2515 = vld [vmem:[%s12] sm:$0x1]
  %v2517 = vlaneseq
  %v2518 = vshrl.u32 %v2517, 7
  %v2519 = vsub.s32 0, %v2518
  %v2520 = vrot.slane %v2515, %v2519
  %v2522 = vadd.f32 %v2507, %v2520
  %v2523 = vadd.f32 %v2508, %v2520
  %v2524 = vadd.f32 %v2509, %v2520
  %v2525 = vadd.f32 %v2510, %v2520
  %v2526 = vadd.f32 %v2511, %v2520
  %v2527 = vadd.f32 %v2512, %v2520
  %v2528 = vadd.f32 %v2513, %v2520
  %v2529 = vadd.f32 %v2514, %v2520
  %2530 = vst.msk [vmem:[%s13] sm:$0xff] %vm53, %v2522
  %2531 = vst.msk [vmem:[%s13 + $0x8] sm:$0xff] %vm53, %v2523
  %2532 = vst.msk [vmem:[%s13 + $0x10] sm:$0xff] %vm53, %v2524
  %2533 = vst.msk [vmem:[%s13 + $0x18] sm:$0xff] %vm53, %v2525
  %2534 = vst.msk [vmem:[%s13 + $0x20] sm:$0xff] %vm53, %v2526
  %2535 = vst.msk [vmem:[%s13 + $0x28] sm:$0xff] %vm53, %v2527
  %2536 = vst.msk [vmem:[%s13 + $0x30] sm:$0xff] %vm53, %v2528
  %2537 = vst.msk [vmem:[%s13 + $0x38] sm:$0xff] %vm53, %v2529
  // Predicated region
  $region54: #{srn_head_forward.7} parent=0 // pred_check
    _
  $region55: #{srn_head_forward.7} parent=0 // pred_check_branch
    %2539 = sbr.rel (0) target = $region57
  $region56: #{srn_head_forward.7} parent=0 // pred_region
    _
  $region57: #{srn_head_forward.7} parent=0 // pred_fallthru
    _
  // Predicated region
  $region58: #{srn_head_forward.7} parent=0 // pred_check
    _
  $region59: #{srn_head_forward.7} parent=0 // pred_check_branch
    %2541 = sbr.rel (0) target = $region61
  $region60: #{srn_head_forward.7} parent=0 // pred_region
    _
  $region61: #{srn_head_forward.7} parent=0 // pred_fallthru
    _

// kernel: srn_head_forward.13
$region0: #{srn_head_forward.13}
  #allocation0 [shape = 'u32[]', space=smem, size = 0x4, offset = 0x4, fixed_abs, tag = 'smem constant byte address 0x4 - core index']
  #allocation1 [shape = 'u32[144,128]{1,0:T(1,128)}', space=vmem, size = 0x12000, scoped, tag = 'internal scratch']
  %s0 = inlined_call_operand.vmem [shape: f32[16,64], index: 0, kind: input, shape index: {}]
  %s1 = inlined_call_operand.vmem [shape: f32[16,64], index: 1, kind: input, shape index: {}]
  %s2 = inlined_call_operand.vmem [shape: bf16[64,64], index: 2, kind: input, shape index: {}]
  %s3 = inlined_call_operand.vmem [shape: bf16[64,64], index: 3, kind: input, shape index: {}]
  %s4 = inlined_call_operand.vmem [shape: f32[1,64], index: 4, kind: input, shape index: {}]
  %s5 = inlined_call_operand.vmem [shape: bf16[64,128], index: 5, kind: input, shape index: {}]
  %s6 = inlined_call_operand.vmem [shape: f32[1,128], index: 6, kind: input, shape index: {}]
  %s7 = inlined_call_operand.vmem [shape: f32[16,128], index: 7, kind: output, shape index: {}]
  %s8 = sld [smem:[#allocation0]]
  $region38: #{srn_head_forward.13} parent=0
    _
  %s10 = ssub.s32 1, %s8
  %s11 = scalar_select 0, %s10, %s8
  // Predicated region
  $region2: #{srn_head_forward.13} parent=0 // pred_check
    _
  $region3: #{srn_head_forward.13} parent=0 // pred_check_branch
    %13 = sbr.rel (0) target = $region5
  $region4: #{srn_head_forward.13} parent=0 // pred_region
    _
  $region5: #{srn_head_forward.13} parent=0 // pred_fallthru
    _
  // Predicated region
  $region6: #{srn_head_forward.13} parent=0 // pred_check
    _
  $region7: #{srn_head_forward.13} parent=0 // pred_check_branch
    %15 = sbr.rel (0) target = $region9
  $region8: #{srn_head_forward.13} parent=0 // pred_region
    _
  $region9: #{srn_head_forward.13} parent=0 // pred_fallthru
    _
  // Predicated region
  $region10: #{srn_head_forward.13} parent=0 // pred_check
    _
  $region11: #{srn_head_forward.13} parent=0 // pred_check_branch
    %17 = sbr.rel (0) target = $region13
  $region12: #{srn_head_forward.13} parent=0 // pred_region
    _
  $region13: #{srn_head_forward.13} parent=0 // pred_fallthru
    _
  // Predicated region
  $region14: #{srn_head_forward.13} parent=0 // pred_check
    _
  $region15: #{srn_head_forward.13} parent=0 // pred_check_branch
    %19 = sbr.rel (0) target = $region17
  $region16: #{srn_head_forward.13} parent=0 // pred_region
    _
  $region17: #{srn_head_forward.13} parent=0 // pred_fallthru
    _
  // Predicated region
  $region18: #{srn_head_forward.13} parent=0 // pred_check
    _
  $region19: #{srn_head_forward.13} parent=0 // pred_check_branch
    %21 = sbr.rel (0) target = $region21
  $region20: #{srn_head_forward.13} parent=0 // pred_region
    _
  $region21: #{srn_head_forward.13} parent=0 // pred_fallthru
    _
  // Predicated region
  $region22: #{srn_head_forward.13} parent=0 // pred_check
    _
  $region23: #{srn_head_forward.13} parent=0 // pred_check_branch
    %23 = sbr.rel (0) target = $region25
  $region24: #{srn_head_forward.13} parent=0 // pred_region
    _
  $region25: #{srn_head_forward.13} parent=0 // pred_fallthru
    _
  // Predicated region
  $region26: #{srn_head_forward.13} parent=0 // pred_check
    _
  $region27: #{srn_head_forward.13} parent=0 // pred_check_branch
    %25 = sbr.rel (0) target = $region29
  $region28: #{srn_head_forward.13} parent=0 // pred_region
    _
  $region29: #{srn_head_forward.13} parent=0 // pred_fallthru
    _
  %v27 = vld [vmem:[%s0] sm:$0xff]
  %v28 = vld [vmem:[%s0 + $0x8] sm:$0xff]
  %v29 = vld [vmem:[%s1] sm:$0xff]
  %v30 = vld [vmem:[%s1 + $0x8] sm:$0xff]
  %v31 = vpack.c.bf16 %v28, %v27
  %v32 = vld [vmem:[%s2] sm:$0xf]
  %v33 = vld [vmem:[%s2 + $0x4] sm:$0xf]
  %v34 = vld [vmem:[%s2 + $0x8] sm:$0xf]
  %v35 = vld [vmem:[%s2 + $0xc] sm:$0xf]
  %v36 = vld [vmem:[%s2 + $0x10] sm:$0xf]
  %v37 = vld [vmem:[%s2 + $0x14] sm:$0xf]
  %v38 = vld [vmem:[%s2 + $0x18] sm:$0xf]
  %v39 = vld [vmem:[%s2 + $0x1c] sm:$0xf]
  %v40 = vpack.c.bf16 %v30, %v29
  %v41 = vld [vmem:[%s3] sm:$0xf]
  %v42 = vld [vmem:[%s3 + $0x4] sm:$0xf]
  %v43 = vld [vmem:[%s3 + $0x8] sm:$0xf]
  %v44 = vld [vmem:[%s3 + $0xc] sm:$0xf]
  %v45 = vld [vmem:[%s3 + $0x10] sm:$0xf]
  %v46 = vld [vmem:[%s3 + $0x14] sm:$0xf]
  %v47 = vld [vmem:[%s3 + $0x18] sm:$0xf]
  %v48 = vld [vmem:[%s3 + $0x1c] sm:$0xf]
  %v57 = vunpack.c.l.b16 %v41
  %v58 = vunpack.c.l.b16 %v42
  %v59 = vunpack.c.l.b16 %v43
  %v60 = vunpack.c.l.b16 %v44
  %v61 = vunpack.c.l.b16 %v45
  %v62 = vunpack.c.l.b16 %v46
  %v63 = vunpack.c.l.b16 %v47
  %v64 = vunpack.c.l.b16 %v48
  %v65 = vpack.c.b16 %v58, %v57
  %v66 = vpack.c.b16 %v60, %v59
  %v67 = vpack.c.b16 %v62, %v61
  %v68 = vpack.c.b16 %v64, %v63
  %vm73 = vcmask 523264
  %v75 = vsel %vm73, %v40, 0
  %77 = vmatprep.subr.bf16.mxu0 0
  %78 = vmatpush1.bf16.msra.mxu0 0
  %79 = vmatprep.subr.bf16.mxu0 0
  %80 = vmatpush1.bf16.msra.mxu0 0
  %81 = vmatprep.subr.bf16.mxu0 0
  %82 = vmatpush1.bf16.msra.mxu0 0
  %83 = vmatprep.subr.bf16.mxu0 0
  %84 = vmatpush1.bf16.msra.mxu0 0
  %85 = vmatprep.subr.bf16.mxu0 0
  %86 = vmatpush1.bf16.msra.mxu0 %v68
  %87 = vmatprep.subr.bf16.mxu0 0
  %88 = vmatpush1.bf16.msra.mxu0 %v67
  %89 = vmatprep.subr.bf16.mxu0 0
  %90 = vmatpush1.bf16.msra.mxu0 %v66
  %91 = vmatprep.subr.bf16.mxu0 0
  %92 = vmatpush1.bf16.msra.mxu0 %v65
  %93 = vmatprep.subr.bf16.mxu0 0
  %94 = vmatpush2.bf16.msra.mxu0 0
  %95 = vmatprep.subr.bf16.mxu0 0
  %96 = vmatpush2.bf16.msra.mxu0 0
  %97 = vmatprep.subr.bf16.mxu0 0
  %98 = vmatpush2.bf16.msra.mxu0 0
  %99 = vmatprep.subr.bf16.mxu0 0
  %100 = vmatpush2.bf16.msra.mxu0 0
  %101 = vmatprep.subr.bf16.mxu0 0
  %102 = vmatpush2.bf16.msra.mxu0 0
  %103 = vmatprep.subr.bf16.mxu0 0
  %104 = vmatpush2.bf16.msra.mxu0 0
  %105 = vmatprep.subr.bf16.mxu0 0
  %106 = vmatpush2.bf16.msra.mxu0 0
  %107 = vmatprep.subr.bf16.mxu0 0
  %108 = vmatpush2.bf16.msra.mxu0 0
  %109 = vmatprep.mubr.bf16.mxu0 0
  %110 = vmatmul.mubr.bf16.gmra.mxu0 %v75
  %v111 = vpop.f32.mrf.mxu0
  %v112 = vadd.f32 0.0, %v111
  %v113 = vpop.f32.mrf.mxu0
  %v114 = vpop.f32.mrf.mxu0
  %v115 = vadd.f32 0.0, %v114
  %v116 = vpop.f32.mrf.mxu0
  %117 = vdwg.mxu0
  %v126 = vunpack.c.l.b16 %v32
  %v127 = vunpack.c.l.b16 %v33
  %v128 = vunpack.c.l.b16 %v34
  %v129 = vunpack.c.l.b16 %v35
  %v130 = vunpack.c.l.b16 %v36
  %v131 = vunpack.c.l.b16 %v37
  %v132 = vunpack.c.l.b16 %v38
  %v133 = vunpack.c.l.b16 %v39
  %v134 = vpack.c.b16 %v127, %v126
  %v135 = vpack.c.b16 %v129, %v128
  %v136 = vpack.c.b16 %v131, %v130
  %v137 = vpack.c.b16 %v133, %v132
  %v143 = vsel %vm73, %v31, 0
  %145 = vmatprep.subr.bf16.mxu0 0
  %146 = vmatpush1.bf16.msra.mxu0 0
  %147 = vmatprep.subr.bf16.mxu0 0
  %148 = vmatpush1.bf16.msra.mxu0 0
  %149 = vmatprep.subr.bf16.mxu0 0
  %150 = vmatpush1.bf16.msra.mxu0 0
  %151 = vmatprep.subr.bf16.mxu0 0
  %152 = vmatpush1.bf16.msra.mxu0 0
  %153 = vmatprep.subr.bf16.mxu0 0
  %154 = vmatpush1.bf16.msra.mxu0 %v137
  %155 = vmatprep.subr.bf16.mxu0 0
  %156 = vmatpush1.bf16.msra.mxu0 %v136
  %157 = vmatprep.subr.bf16.mxu0 0
  %158 = vmatpush1.bf16.msra.mxu0 %v135
  %159 = vmatprep.subr.bf16.mxu0 0
  %160 = vmatpush1.bf16.msra.mxu0 %v134
  %161 = vmatprep.subr.bf16.mxu0 0
  %162 = vmatpush2.bf16.msra.mxu0 0
  %163 = vmatprep.subr.bf16.mxu0 0
  %164 = vmatpush2.bf16.msra.mxu0 0
  %165 = vmatprep.subr.bf16.mxu0 0
  %166 = vmatpush2.bf16.msra.mxu0 0
  %167 = vmatprep.subr.bf16.mxu0 0
  %168 = vmatpush2.bf16.msra.mxu0 0
  %169 = vmatprep.subr.bf16.mxu0 0
  %170 = vmatpush2.bf16.msra.mxu0 0
  %171 = vmatprep.subr.bf16.mxu0 0
  %172 = vmatpush2.bf16.msra.mxu0 0
  %173 = vmatprep.subr.bf16.mxu0 0
  %174 = vmatpush2.bf16.msra.mxu0 0
  %175 = vmatprep.subr.bf16.mxu0 0
  %176 = vmatpush2.bf16.msra.mxu0 0
  %177 = vmatprep.mubr.bf16.mxu0 0
  %178 = vmatmul.mubr.bf16.gmra.mxu0 %v143
  %v179 = vpop.f32.mrf.mxu0
  %v180 = vadd.f32 %v112, %v179
  %v181 = vpop.f32.mrf.mxu0
  %v182 = vpop.f32.mrf.mxu0
  %v183 = vadd.f32 %v115, %v182
  %v184 = vpop.f32.mrf.mxu0
  %185 = vdwg.mxu0
  %v186 = vld [vmem:[%s4] sm:$0x1]
  %v188 = vlaneseq
  %v189 = vshrl.u32 %v188, 7
  %v190 = vsub.s32 0, %v189
  %v191 = vrot.slane %v186, %v190
  %v193 = vadd.f32 %v180, %v191
  %v194 = vadd.f32 %v183, %v191
  %v195 = vxor.u32 %v193, 2147483648
  %v196 = vxor.u32 %v194, 2147483648
  %v197 = vmul.f32 %v195, 1.442695
  %v198 = vpow.pop %v197
  %v199 = vmul.f32 %v196, 1.442695
  %v200 = vpow.pop %v199
  %v201 = vadd.f32 %v198, 1.0
  %v202 = vadd.f32 %v200, 1.0
  %v203 = vrcp.pop %v201
  %v204 = vmul.f32 1.0, %v203
  %v205 = vrcp.pop %v202
  %v206 = vmul.f32 1.0, %v205
  %v207 = vmul.f32 %v204, %v27
  %v208 = vmul.f32 %v206, %v28
  %v209 = vsub.f32 1.0, %v204
  %v210 = vsub.f32 1.0, %v206
  %v211 = vmul.f32 %v209, %v29
  %v212 = vmul.f32 %v210, %v30
  %v213 = vadd.f32 %v207, %v211
  %v214 = vadd.f32 %v208, %v212
  %v215 = vpack.c.bf16 %v214, %v213
  %v216 = vld [vmem:[%s5] sm:$0xf]
  %v217 = vld [vmem:[%s5 + $0x4] sm:$0xf]
  %v218 = vld [vmem:[%s5 + $0x8] sm:$0xf]
  %v219 = vld [vmem:[%s5 + $0xc] sm:$0xf]
  %v220 = vld [vmem:[%s5 + $0x10] sm:$0xf]
  %v221 = vld [vmem:[%s5 + $0x14] sm:$0xf]
  %v222 = vld [vmem:[%s5 + $0x18] sm:$0xf]
  %v223 = vld [vmem:[%s5 + $0x1c] sm:$0xf]
  %v224 = vld [vmem:[%s6] sm:$0x1]
  %v226 = vlaneseq
  %v227 = vshrl.u32 %v226, 7
  %v228 = vsub.s32 0, %v227
  %v229 = vrot.slane %v224, %v228
  %v239 = vunpack.c.l.b16 %v216
  %v240 = vunpack.c.l.b16 %v217
  %v241 = vunpack.c.l.b16 %v218
  %v242 = vunpack.c.l.b16 %v219
  %v243 = vunpack.c.l.b16 %v220
  %v244 = vunpack.c.l.b16 %v221
  %v245 = vunpack.c.l.b16 %v222
  %v246 = vunpack.c.l.b16 %v223
  %v247 = vpack.c.b16 %v240, %v239
  %v248 = vpack.c.b16 %v242, %v241
  %v249 = vpack.c.b16 %v244, %v243
  %v250 = vpack.c.b16 %v246, %v245
  %v256 = vsel %vm73, %v215, 0
  %258 = vmatprep.subr.bf16.mxu0 0
  %259 = vmatpush1.bf16.msra.mxu0 0
  %260 = vmatprep.subr.bf16.mxu0 0
  %261 = vmatpush1.bf16.msra.mxu0 0
  %262 = vmatprep.subr.bf16.mxu0 0
  %263 = vmatpush1.bf16.msra.mxu0 0
  %264 = vmatprep.subr.bf16.mxu0 0
  %265 = vmatpush1.bf16.msra.mxu0 0
  %266 = vmatprep.subr.bf16.mxu0 0
  %267 = vmatpush1.bf16.msra.mxu0 %v250
  %268 = vmatprep.subr.bf16.mxu0 0
  %269 = vmatpush1.bf16.msra.mxu0 %v249
  %270 = vmatprep.subr.bf16.mxu0 0
  %271 = vmatpush1.bf16.msra.mxu0 %v248
  %272 = vmatprep.subr.bf16.mxu0 0
  %273 = vmatpush1.bf16.msra.mxu0 %v247
  %274 = vmatprep.subr.bf16.mxu0 0
  %275 = vmatpush2.bf16.msra.mxu0 0
  %276 = vmatprep.subr.bf16.mxu0 0
  %277 = vmatpush2.bf16.msra.mxu0 0
  %278 = vmatprep.subr.bf16.mxu0 0
  %279 = vmatpush2.bf16.msra.mxu0 0
  %280 = vmatprep.subr.bf16.mxu0 0
  %281 = vmatpush2.bf16.msra.mxu0 0
  %282 = vmatprep.subr.bf16.mxu0 0
  %283 = vmatpush2.bf16.msra.mxu0 0
  %284 = vmatprep.subr.bf16.mxu0 0
  %285 = vmatpush2.bf16.msra.mxu0 0
  %286 = vmatprep.subr.bf16.mxu0 0
  %287 = vmatpush2.bf16.msra.mxu0 0
  %288 = vmatprep.subr.bf16.mxu0 0
  %289 = vmatpush2.bf16.msra.mxu0 0
  %290 = vmatprep.mubr.bf16.mxu0 0
  %291 = vmatmul.mubr.bf16.gmra.mxu0 %v256
  %v292 = vpop.f32.mrf.mxu0
  %v293 = vadd.f32 %v229, %v292
  %v294 = vpop.f32.mrf.mxu0
  %v295 = vpop.f32.mrf.mxu0
  %v296 = vadd.f32 %v229, %v295
  %v297 = vpop.f32.mrf.mxu0
  %298 = vdwg.mxu0
  %299 = vst [vmem:[%s7] sm:$0xff] %v293
  %300 = vst [vmem:[%s7 + $0x8] sm:$0xff] %v296
  // Predicated region
  $region30: #{srn_head_forward.13} parent=0 // pred_check
    _
  $region31: #{srn_head_forward.13} parent=0 // pred_check_branch
    %302 = sbr.rel (0) target = $region33
  $region32: #{srn_head_forward.13} parent=0 // pred_region
    _
  $region33: #{srn_head_forward.13} parent=0 // pred_fallthru
    _
  // Predicated region
  $region34: #{srn_head_forward.13} parent=0 // pred_check
    _
  $region35: #{srn_head_forward.13} parent=0 // pred_check_branch
    %304 = sbr.rel (0) target = $region37
  $region36: #{srn_head_forward.13} parent=0 // pred_region
    _
  $region37: #{srn_head_forward.13} parent=0 // pred_fallthru
    _

// kernel: srn_head_forward.11
$region0: #{srn_head_forward.11}
  #allocation0 [shape = 'u32[]', space=smem, size = 0x4, offset = 0x4, fixed_abs, tag = 'smem constant byte address 0x4 - core index']
  #allocation1 [shape = 'u32[144,128]{1,0:T(1,128)}', space=vmem, size = 0x12000, scoped, tag = 'internal scratch']
  %s0 = inlined_call_operand.vmem [shape: f32[16,64], index: 0, kind: input, shape index: {}]
  %s1 = inlined_call_operand.vmem [shape: f32[2,4,8,8], index: 1, kind: input, shape index: {}]
  %s2 = inlined_call_operand.vmem [shape: f32[1,64], index: 2, kind: input, shape index: {}]
  %s3 = inlined_call_operand.vmem [shape: f32[1,64], index: 3, kind: input, shape index: {}]
  %s4 = inlined_call_operand.vmem [shape: bf16[64,192], index: 4, kind: input, shape index: {}]
  %s5 = inlined_call_operand.vmem [shape: bf16[64,64], index: 5, kind: input, shape index: {}]
  %s6 = inlined_call_operand.vmem [shape: f32[1,64], index: 6, kind: input, shape index: {}]
  %s7 = inlined_call_operand.vmem [shape: f32[1,64], index: 7, kind: input, shape index: {}]
  %s8 = inlined_call_operand.vmem [shape: bf16[64,64], index: 8, kind: input, shape index: {}]
  %s9 = inlined_call_operand.vmem [shape: f32[1,64], index: 9, kind: input, shape index: {}]
  %s10 = inlined_call_operand.vmem [shape: bf16[64,64], index: 10, kind: input, shape index: {}]
  %s11 = inlined_call_operand.vmem [shape: f32[1,64], index: 11, kind: input, shape index: {}]
  %s12 = inlined_call_operand.vmem [shape: f32[1,64], index: 12, kind: input, shape index: {}]
  %s13 = inlined_call_operand.vmem [shape: f32[1,64], index: 13, kind: input, shape index: {}]
  %s14 = inlined_call_operand.vmem [shape: f32[16,64], index: 14, kind: output, shape index: {}]
  %s15 = sld [smem:[#allocation0]]
  $region66: #{srn_head_forward.11} parent=0
    _
  %s17 = ssub.s32 1, %s15
  %s18 = scalar_select 0, %s17, %s15
  // Predicated region
  $region2: #{srn_head_forward.11} parent=0 // pred_check
    _
  $region3: #{srn_head_forward.11} parent=0 // pred_check_branch
    %20 = sbr.rel (0) target = $region5
  $region4: #{srn_head_forward.11} parent=0 // pred_region
    _
  $region5: #{srn_head_forward.11} parent=0 // pred_fallthru
    _
  // Predicated region
  $region6: #{srn_head_forward.11} parent=0 // pred_check
    _
  $region7: #{srn_head_forward.11} parent=0 // pred_check_branch
    %22 = sbr.rel (0) target = $region9
  $region8: #{srn_head_forward.11} parent=0 // pred_region
    _
  $region9: #{srn_head_forward.11} parent=0 // pred_fallthru
    _
  // Predicated region
  $region10: #{srn_head_forward.11} parent=0 // pred_check
    _
  $region11: #{srn_head_forward.11} parent=0 // pred_check_branch
    %24 = sbr.rel (0) target = $region13
  $region12: #{srn_head_forward.11} parent=0 // pred_region
    _
  $region13: #{srn_head_forward.11} parent=0 // pred_fallthru
    _
  // Predicated region
  $region14: #{srn_head_forward.11} parent=0 // pred_check
    _
  $region15: #{srn_head_forward.11} parent=0 // pred_check_branch
    %26 = sbr.rel (0) target = $region17
  $region16: #{srn_head_forward.11} parent=0 // pred_region
    _
  $region17: #{srn_head_forward.11} parent=0 // pred_fallthru
    _
  // Predicated region
  $region18: #{srn_head_forward.11} parent=0 // pred_check
    _
  $region19: #{srn_head_forward.11} parent=0 // pred_check_branch
    %28 = sbr.rel (0) target = $region21
  $region20: #{srn_head_forward.11} parent=0 // pred_region
    _
  $region21: #{srn_head_forward.11} parent=0 // pred_fallthru
    _
  // Predicated region
  $region22: #{srn_head_forward.11} parent=0 // pred_check
    _
  $region23: #{srn_head_forward.11} parent=0 // pred_check_branch
    %30 = sbr.rel (0) target = $region25
  $region24: #{srn_head_forward.11} parent=0 // pred_region
    _
  $region25: #{srn_head_forward.11} parent=0 // pred_fallthru
    _
  // Predicated region
  $region26: #{srn_head_forward.11} parent=0 // pred_check
    _
  $region27: #{srn_head_forward.11} parent=0 // pred_check_branch
    %32 = sbr.rel (0) target = $region29
  $region28: #{srn_head_forward.11} parent=0 // pred_region
    _
  $region29: #{srn_head_forward.11} parent=0 // pred_fallthru
    _
  // Predicated region
  $region30: #{srn_head_forward.11} parent=0 // pred_check
    _
  $region31: #{srn_head_forward.11} parent=0 // pred_check_branch
    %34 = sbr.rel (0) target = $region33
  $region32: #{srn_head_forward.11} parent=0 // pred_region
    _
  $region33: #{srn_head_forward.11} parent=0 // pred_fallthru
    _
  // Predicated region
  $region34: #{srn_head_forward.11} parent=0 // pred_check
    _
  $region35: #{srn_head_forward.11} parent=0 // pred_check_branch
    %36 = sbr.rel (0) target = $region37
  $region36: #{srn_head_forward.11} parent=0 // pred_region
    _
  $region37: #{srn_head_forward.11} parent=0 // pred_fallthru
    _
  // Predicated region
  $region38: #{srn_head_forward.11} parent=0 // pred_check
    _
  $region39: #{srn_head_forward.11} parent=0 // pred_check_branch
    %38 = sbr.rel (0) target = $region41
  $region40: #{srn_head_forward.11} parent=0 // pred_region
    _
  $region41: #{srn_head_forward.11} parent=0 // pred_fallthru
    _
  // Predicated region
  $region42: #{srn_head_forward.11} parent=0 // pred_check
    _
  $region43: #{srn_head_forward.11} parent=0 // pred_check_branch
    %40 = sbr.rel (0) target = $region45
  $region44: #{srn_head_forward.11} parent=0 // pred_region
    _
  $region45: #{srn_head_forward.11} parent=0 // pred_fallthru
    _
  // Predicated region
  $region46: #{srn_head_forward.11} parent=0 // pred_check
    _
  $region47: #{srn_head_forward.11} parent=0 // pred_check_branch
    %42 = sbr.rel (0) target = $region49
  $region48: #{srn_head_forward.11} parent=0 // pred_region
    _
  $region49: #{srn_head_forward.11} parent=0 // pred_fallthru
    _
  // Predicated region
  $region50: #{srn_head_forward.11} parent=0 // pred_check
    _
  $region51: #{srn_head_forward.11} parent=0 // pred_check_branch
    %44 = sbr.rel (0) target = $region53
  $region52: #{srn_head_forward.11} parent=0 // pred_region
    _
  $region53: #{srn_head_forward.11} parent=0 // pred_fallthru
    _
  // Predicated region
  $region54: #{srn_head_forward.11} parent=0 // pred_check
    _
  $region55: #{srn_head_forward.11} parent=0 // pred_check_branch
    %46 = sbr.rel (0) target = $region57
  $region56: #{srn_head_forward.11} parent=0 // pred_region
    _
  $region57: #{srn_head_forward.11} parent=0 // pred_fallthru
    _
  %v48 = vld [vmem:[%s0] sm:$0xff]
  %v49 = vld [vmem:[%s0 + $0x8] sm:$0xff]
  %vm50 = vcmask 523264
  %v51 = vsel %vm50, %v48, 0.0
  %52 = vadd.xlane.f32.xlu0 %v51
  %v53 = vpop.xlane.xlu0 %52
  %v54 = vsel %vm50, %v49, 0.0
  %55 = vadd.xlane.f32.xlu0 %v54
  %v56 = vpop.xlane.xlu0 %55
  %v57 = vrcp.pop 64.0
  %v58 = vmul.f32 %v53, %v57
  %v59 = vmul.f32 %v56, %v57
  %v60 = vsub.f32 %v48, %v58
  %v61 = vsub.f32 %v49, %v59
  %v62 = vmul.f32 %v60, %v60
  %v63 = vmul.f32 %v61, %v61
  %v64 = vsel %vm50, %v62, 0.0
  %65 = vadd.xlane.f32.xlu0 %v64
  %v66 = vpop.xlane.xlu0 %65
  %v67 = vsel %vm50, %v63, 0.0
  %68 = vadd.xlane.f32.xlu0 %v67
  %v69 = vpop.xlane.xlu0 %68
  %v70 = vmul.f32 %v66, %v57
  %v71 = vmul.f32 %v69, %v57
  %v72 = vadd.f32 %v70, 1e-05
  %v73 = vadd.f32 %v71, 1e-05
  %v74 = vrsqrt.pop %v72
  %v75 = vrsqrt.pop %v73
  %v76 = vmul.f32 %v60, %v74
  %v77 = vmul.f32 %v61, %v75
  %v78 = vld [vmem:[%s2] sm:$0x1]
  %v80 = vlaneseq
  %v81 = vshrl.u32 %v80, 7
  %v82 = vsub.s32 0, %v81
  %v83 = vrot.slane %v78, %v82
  %v85 = vmul.f32 %v76, %v83
  %v86 = vmul.f32 %v77, %v83
  %v87 = vld [vmem:[%s3] sm:$0x1]
  %v89 = vlaneseq
  %v90 = vshrl.u32 %v89, 7
  %v91 = vsub.s32 0, %v90
  %v92 = vrot.slane %v87, %v91
  %v94 = vadd.f32 %v85, %v92
  %v95 = vadd.f32 %v86, %v92
  %v96 = vpack.c.bf16 %v95, %v94
  %v97 = vld [vmem:[%s4] sm:$0xff]
  %v98 = vld [vmem:[%s4 + $0x8] sm:$0xff]
  %v99 = vld [vmem:[%s4 + $0x10] sm:$0xff]
  %v100 = vld [vmem:[%s4 + $0x18] sm:$0xff]
  %v101 = vld [vmem:[%s4 + $0x20] sm:$0xff]
  %v102 = vld [vmem:[%s4 + $0x28] sm:$0xff]
  %v103 = vld [vmem:[%s4 + $0x30] sm:$0xff]
  %v104 = vld [vmem:[%s4 + $0x38] sm:$0xff]
  %v113 = vunpack.c.l.b16 %v97
  %v114 = vunpack.c.h.b16 %v97
  %v115 = vunpack.c.l.b16 %v98
  %v116 = vunpack.c.h.b16 %v98
  %v117 = vunpack.c.l.b16 %v99
  %v118 = vunpack.c.h.b16 %v99
  %v119 = vunpack.c.l.b16 %v100
  %v120 = vunpack.c.h.b16 %v100
  %v121 = vunpack.c.l.b16 %v101
  %v122 = vunpack.c.h.b16 %v101
  %v123 = vunpack.c.l.b16 %v102
  %v124 = vunpack.c.h.b16 %v102
  %v125 = vunpack.c.l.b16 %v103
  %v126 = vunpack.c.h.b16 %v103
  %v127 = vunpack.c.l.b16 %v104
  %v128 = vunpack.c.h.b16 %v104
  %v129 = vpack.c.b16 %v115, %v113
  %v130 = vpack.c.b16 %v116, %v114
  %v131 = vpack.c.b16 %v119, %v117
  %v132 = vpack.c.b16 %v120, %v118
  %v133 = vpack.c.b16 %v123, %v121
  %v134 = vpack.c.b16 %v124, %v122
  %v135 = vpack.c.b16 %v127, %v125
  %v136 = vpack.c.b16 %v128, %v126
  %v146 = vsel %vm50, %v96, 0
  %148 = vmatprep.subr.bf16.mxu0 0
  %149 = vmatpush1.bf16.msra.mxu0 0
  %150 = vmatprep.subr.bf16.mxu0 0
  %151 = vmatpush1.bf16.msra.mxu0 0
  %152 = vmatprep.subr.bf16.mxu0 0
  %153 = vmatpush1.bf16.msra.mxu0 0
  %154 = vmatprep.subr.bf16.mxu0 0
  %155 = vmatpush1.bf16.msra.mxu0 0
  %156 = vmatprep.subr.bf16.mxu0 %v136
  %157 = vmatpush1.bf16.msra.mxu0 %v135
  %158 = vmatprep.subr.bf16.mxu0 %v134
  %159 = vmatpush1.bf16.msra.mxu0 %v133
  %160 = vmatprep.subr.bf16.mxu0 %v132
  %161 = vmatpush1.bf16.msra.mxu0 %v131
  %162 = vmatprep.subr.bf16.mxu0 %v130
  %163 = vmatpush1.bf16.msra.mxu0 %v129
  %164 = vmatprep.subr.bf16.mxu0 0
  %165 = vmatpush2.bf16.msra.mxu0 0
  %166 = vmatprep.subr.bf16.mxu0 0
  %167 = vmatpush2.bf16.msra.mxu0 0
  %168 = vmatprep.subr.bf16.mxu0 0
  %169 = vmatpush2.bf16.msra.mxu0 0
  %170 = vmatprep.subr.bf16.mxu0 0
  %171 = vmatpush2.bf16.msra.mxu0 0
  %172 = vmatprep.subr.bf16.mxu0 0
  %173 = vmatpush2.bf16.msra.mxu0 0
  %174 = vmatprep.subr.bf16.mxu0 0
  %175 = vmatpush2.bf16.msra.mxu0 0
  %176 = vmatprep.subr.bf16.mxu0 0
  %177 = vmatpush2.bf16.msra.mxu0 0
  %178 = vmatprep.subr.bf16.mxu0 0
  %179 = vmatpush2.bf16.msra.mxu0 0
  %180 = vmatprep.mubr.bf16.mxu0 0
  %181 = vmatmul.mubr.bf16.gmra.mxu0 %v146
  %v182 = vpop.f32.mrf.mxu0
  %v183 = vadd.f32 0.0, %v182
  %v184 = vpop.f32.mrf.mxu0
  %v185 = vadd.f32 0.0, %v184
  %v186 = vpop.f32.mrf.mxu0
  %v187 = vadd.f32 0.0, %v186
  %v188 = vpop.f32.mrf.mxu0
  %v189 = vadd.f32 0.0, %v188
  %190 = vdwg.mxu0
  %v191 = vpack.c.bf16 %v187, %v183
  %v192 = vpack.c.bf16 %v189, %v185
  %194 = vrot.lane.b32.xlu0 %v191, 64
  %v195 = vpop.permute.xlu0 %194
  %vm196 = vcmask 130048
  %v198 = vsel %vm196, %v191, 0
  %v201 = vsel %vm196, %v195, 0
  %203 = vmatprep.subr.bf16.mxu0 0
  %204 = vmatpush1.bf16.xpose.msra.mxu0 0
  %205 = vmatprep.subr.bf16.mxu0 0
  %206 = vmatpush1.bf16.xpose.msra.mxu0 0
  %207 = vmatprep.subr.bf16.mxu0 0
  %208 = vmatpush1.bf16.xpose.msra.mxu0 0
  %209 = vmatprep.subr.bf16.mxu0 0
  %210 = vmatpush1.bf16.xpose.msra.mxu0 0
  %211 = vmatprep.subr.bf16.mxu0 0
  %212 = vmatpush1.bf16.xpose.msra.mxu0 0
  %213 = vmatprep.subr.bf16.mxu0 0
  %214 = vmatpush1.bf16.xpose.msra.mxu0 0
  %215 = vmatprep.subr.bf16.mxu0 0
  %216 = vmatpush1.bf16.xpose.msra.mxu0 0
  %217 = vmatprep.subr.bf16.mxu0 0
  %218 = vmatpush1.bf16.xpose.msra.mxu0 %v201
  %219 = vmatprep.subr.bf16.mxu0 0
  %220 = vmatpush2.bf16.xpose.msra.mxu0 0
  %221 = vmatprep.subr.bf16.mxu0 0
  %222 = vmatpush2.bf16.xpose.msra.mxu0 0
  %223 = vmatprep.subr.bf16.mxu0 0
  %224 = vmatpush2.bf16.xpose.msra.mxu0 0
  %225 = vmatprep.subr.bf16.mxu0 0
  %226 = vmatpush2.bf16.xpose.msra.mxu0 0
  %227 = vmatprep.subr.bf16.mxu0 0
  %228 = vmatpush2.bf16.xpose.msra.mxu0 0
  %229 = vmatprep.subr.bf16.mxu0 0
  %230 = vmatpush2.bf16.xpose.msra.mxu0 0
  %231 = vmatprep.subr.bf16.mxu0 0
  %232 = vmatpush2.bf16.xpose.msra.mxu0 0
  %233 = vmatprep.subr.bf16.mxu0 0
  %234 = vmatpush2.bf16.xpose.msra.mxu0 0
  %235 = vmatprep.mubr.bf16.mxu0 0
  %236 = vmatmul.mubr.bf16.gmra.mxu0 %v198
  %v237 = vpop.f32.mrf.mxu0
  %v238 = vadd.f32 0.0, %v237
  %v239 = vpop.f32.mrf.mxu0
  %v240 = vpop.f32.mrf.mxu0
  %v241 = vpop.f32.mrf.mxu0
  %242 = vdwg.mxu0
  %v243 = vmul.f32 %v238, 0.125
  %v244 = vld [vmem:[%s1] sm:$0xff]
  %v245 = vadd.f32 %v243, %v244
  %vm246 = vcmask 64512
  %v247 = vsel %vm246, %v245, -inf
  %248 = vmax.xlane.f32.xlu0 %v247
  %v249 = vpop.xlane.xlu0 %248
  %v250 = vsub.f32 %v245, %v249
  %v251 = vmul.f32 %v250, 1.442695
  %v252 = vpow.pop %v251
  %v253 = vsel %vm246, %v252, 0.0
  %254 = vadd.xlane.f32.xlu0 %v253
  %v255 = vpop.xlane.xlu0 %254
  %v256 = vrcp.pop %v255
  %v257 = vmul.f32 %v252, %v256
  %v258 = vpack.c.bf16 %v257, %v257
  %v260 = vsel %vm246, %v258, 0
  %vm262 = vcmask 1043456
  %v264 = vsel %vm262, %v192, 0
  %266 = vmatprep.subr.bf16.mxu0 0
  %267 = vmatpush1.bf16.msra.mxu0 0
  %268 = vmatprep.subr.bf16.mxu0 0
  %269 = vmatpush1.bf16.msra.mxu0 0
  %270 = vmatprep.subr.bf16.mxu0 0
  %271 = vmatpush1.bf16.msra.mxu0 0
  %272 = vmatprep.subr.bf16.mxu0 0
  %273 = vmatpush1.bf16.msra.mxu0 0
  %274 = vmatprep.subr.bf16.mxu0 0
  %275 = vmatpush1.bf16.msra.mxu0 0
  %276 = vmatprep.subr.bf16.mxu0 0
  %277 = vmatpush1.bf16.msra.mxu0 0
  %278 = vmatprep.subr.bf16.mxu0 0
  %279 = vmatpush1.bf16.msra.mxu0 0
  %280 = vmatprep.subr.bf16.mxu0 0
  %281 = vmatpush1.bf16.msra.mxu0 %v264
  %282 = vmatprep.subr.bf16.mxu0 0
  %283 = vmatpush2.bf16.msra.mxu0 0
  %284 = vmatprep.subr.bf16.mxu0 0
  %285 = vmatpush2.bf16.msra.mxu0 0
  %286 = vmatprep.subr.bf16.mxu0 0
  %287 = vmatpush2.bf16.msra.mxu0 0
  %288 = vmatprep.subr.bf16.mxu0 0
  %289 = vmatpush2.bf16.msra.mxu0 0
  %290 = vmatprep.subr.bf16.mxu0 0
  %291 = vmatpush2.bf16.msra.mxu0 0
  %292 = vmatprep.subr.bf16.mxu0 0
  %293 = vmatpush2.bf16.msra.mxu0 0
  %294 = vmatprep.subr.bf16.mxu0 0
  %295 = vmatpush2.bf16.msra.mxu0 0
  %296 = vmatprep.subr.bf16.mxu0 0
  %297 = vmatpush2.bf16.msra.mxu0 0
  %298 = vmatprep.mubr.bf16.mxu0 0
  %299 = vmatmul.mubr.bf16.gmra.mxu0 %v260
  %v300 = vpop.f32.mrf.mxu0
  %v301 = vadd.f32 0.0, %v300
  %v302 = vpop.f32.mrf.mxu0
  %v303 = vpop.f32.mrf.mxu0
  %v304 = vpop.f32.mrf.mxu0
  %305 = vdwg.mxu0
  %306 = vrot.lane.b32.xlu0 %v191, 112
  %v307 = vpop.permute.xlu0 %306
  %308 = vrot.lane.b32.xlu0 %v191, 48
  %v309 = vpop.permute.xlu0 %308
  %v311 = vsel %vm196, %v307, 0
  %v314 = vsel %vm196, %v309, 0
  %316 = vmatprep.subr.bf16.mxu0 0
  %317 = vmatpush1.bf16.xpose.msra.mxu0 0
  %318 = vmatprep.subr.bf16.mxu0 0
  %319 = vmatpush1.bf16.xpose.msra.mxu0 0
  %320 = vmatprep.subr.bf16.mxu0 0
  %321 = vmatpush1.bf16.xpose.msra.mxu0 0
  %322 = vmatprep.subr.bf16.mxu0 0
  %323 = vmatpush1.bf16.xpose.msra.mxu0 0
  %324 = vmatprep.subr.bf16.mxu0 0
  %325 = vmatpush1.bf16.xpose.msra.mxu0 0
  %326 = vmatprep.subr.bf16.mxu0 0
  %327 = vmatpush1.bf16.xpose.msra.mxu0 0
  %328 = vmatprep.subr.bf16.mxu0 0
  %329 = vmatpush1.bf16.xpose.msra.mxu0 0
  %330 = vmatprep.subr.bf16.mxu0 0
  %331 = vmatpush1.bf16.xpose.msra.mxu0 %v314
  %332 = vmatprep.subr.bf16.mxu0 0
  %333 = vmatpush2.bf16.xpose.msra.mxu0 0
  %334 = vmatprep.subr.bf16.mxu0 0
  %335 = vmatpush2.bf16.xpose.msra.mxu0 0
  %336 = vmatprep.subr.bf16.mxu0 0
  %337 = vmatpush2.bf16.xpose.msra.mxu0 0
  %338 = vmatprep.subr.bf16.mxu0 0
  %339 = vmatpush2.bf16.xpose.msra.mxu0 0
  %340 = vmatprep.subr.bf16.mxu0 0
  %341 = vmatpush2.bf16.xpose.msra.mxu0 0
  %342 = vmatprep.subr.bf16.mxu0 0
  %343 = vmatpush2.bf16.xpose.msra.mxu0 0
  %344 = vmatprep.subr.bf16.mxu0 0
  %345 = vmatpush2.bf16.xpose.msra.mxu0 0
  %346 = vmatprep.subr.bf16.mxu0 0
  %347 = vmatpush2.bf16.xpose.msra.mxu0 0
  %348 = vmatprep.mubr.bf16.mxu0 0
  %349 = vmatmul.mubr.bf16.gmra.mxu0 %v311
  %v350 = vpop.f32.mrf.mxu0
  %v351 = vadd.f32 0.0, %v350
  %v352 = vpop.f32.mrf.mxu0
  %v353 = vpop.f32.mrf.mxu0
  %v354 = vpop.f32.mrf.mxu0
  %355 = vdwg.mxu0
  %v356 = vmul.f32 %v351, 0.125
  %s357 = scalar_lea.vmem %s1, 8
  %v358 = vld [vmem:[%s357] sm:$0xff]
  %v359 = vadd.f32 %v356, %v358
  %v360 = vsel %vm246, %v359, -inf
  %361 = vmax.xlane.f32.xlu0 %v360
  %v362 = vpop.xlane.xlu0 %361
  %v363 = vsub.f32 %v359, %v362
  %v364 = vmul.f32 %v363, 1.442695
  %v365 = vpow.pop %v364
  %v366 = vsel %vm246, %v365, 0.0
  %367 = vadd.xlane.f32.xlu0 %v366
  %v368 = vpop.xlane.xlu0 %367
  %v369 = vrcp.pop %v368
  %v370 = vmul.f32 %v365, %v369
  %v371 = vpack.c.bf16 %v370, %v370
  %373 = vrot.lane.b32.xlu0 %v192, 112
  %v374 = vpop.permute.xlu0 %373
  %v376 = vsel %vm246, %v371, 0
  %v379 = vsel %vm262, %v374, 0
  %381 = vmatprep.subr.bf16.mxu0 0
  %382 = vmatpush1.bf16.msra.mxu0 0
  %383 = vmatprep.subr.bf16.mxu0 0
  %384 = vmatpush1.bf16.msra.mxu0 0
  %385 = vmatprep.subr.bf16.mxu0 0
  %386 = vmatpush1.bf16.msra.mxu0 0
  %387 = vmatprep.subr.bf16.mxu0 0
  %388 = vmatpush1.bf16.msra.mxu0 0
  %389 = vmatprep.subr.bf16.mxu0 0
  %390 = vmatpush1.bf16.msra.mxu0 0
  %391 = vmatprep.subr.bf16.mxu0 0
  %392 = vmatpush1.bf16.msra.mxu0 0
  %393 = vmatprep.subr.bf16.mxu0 0
  %394 = vmatpush1.bf16.msra.mxu0 0
  %395 = vmatprep.subr.bf16.mxu0 0
  %396 = vmatpush1.bf16.msra.mxu0 %v379
  %397 = vmatprep.subr.bf16.mxu0 0
  %398 = vmatpush2.bf16.msra.mxu0 0
  %399 = vmatprep.subr.bf16.mxu0 0
  %400 = vmatpush2.bf16.msra.mxu0 0
  %401 = vmatprep.subr.bf16.mxu0 0
  %402 = vmatpush2.bf16.msra.mxu0 0
  %403 = vmatprep.subr.bf16.mxu0 0
  %404 = vmatpush2.bf16.msra.mxu0 0
  %405 = vmatprep.subr.bf16.mxu0 0
  %406 = vmatpush2.bf16.msra.mxu0 0
  %407 = vmatprep.subr.bf16.mxu0 0
  %408 = vmatpush2.bf16.msra.mxu0 0
  %409 = vmatprep.subr.bf16.mxu0 0
  %410 = vmatpush2.bf16.msra.mxu0 0
  %411 = vmatprep.subr.bf16.mxu0 0
  %412 = vmatpush2.bf16.msra.mxu0 0
  %413 = vmatprep.mubr.bf16.mxu0 0
  %414 = vmatmul.mubr.bf16.gmra.mxu0 %v376
  %v415 = vpop.f32.mrf.mxu0
  %v416 = vadd.f32 0.0, %v415
  %v417 = vpop.f32.mrf.mxu0
  %v418 = vpop.f32.mrf.mxu0
  %v419 = vpop.f32.mrf.mxu0
  %420 = vdwg.mxu0
  %421 = vrot.lane.b32.xlu0 %v191, 96
  %v422 = vpop.permute.xlu0 %421
  %423 = vrot.lane.b32.xlu0 %v191, 32
  %v424 = vpop.permute.xlu0 %423
  %v426 = vsel %vm196, %v422, 0
  %v429 = vsel %vm196, %v424, 0
  %431 = vmatprep.subr.bf16.mxu0 0
  %432 = vmatpush1.bf16.xpose.msra.mxu0 0
  %433 = vmatprep.subr.bf16.mxu0 0
  %434 = vmatpush1.bf16.xpose.msra.mxu0 0
  %435 = vmatprep.subr.bf16.mxu0 0
  %436 = vmatpush1.bf16.xpose.msra.mxu0 0
  %437 = vmatprep.subr.bf16.mxu0 0
  %438 = vmatpush1.bf16.xpose.msra.mxu0 0
  %439 = vmatprep.subr.bf16.mxu0 0
  %440 = vmatpush1.bf16.xpose.msra.mxu0 0
  %441 = vmatprep.subr.bf16.mxu0 0
  %442 = vmatpush1.bf16.xpose.msra.mxu0 0
  %443 = vmatprep.subr.bf16.mxu0 0
  %444 = vmatpush1.bf16.xpose.msra.mxu0 0
  %445 = vmatprep.subr.bf16.mxu0 0
  %446 = vmatpush1.bf16.xpose.msra.mxu0 %v429
  %447 = vmatprep.subr.bf16.mxu0 0
  %448 = vmatpush2.bf16.xpose.msra.mxu0 0
  %449 = vmatprep.subr.bf16.mxu0 0
  %450 = vmatpush2.bf16.xpose.msra.mxu0 0
  %451 = vmatprep.subr.bf16.mxu0 0
  %452 = vmatpush2.bf16.xpose.msra.mxu0 0
  %453 = vmatprep.subr.bf16.mxu0 0
  %454 = vmatpush2.bf16.xpose.msra.mxu0 0
  %455 = vmatprep.subr.bf16.mxu0 0
  %456 = vmatpush2.bf16.xpose.msra.mxu0 0
  %457 = vmatprep.subr.bf16.mxu0 0
  %458 = vmatpush2.bf16.xpose.msra.mxu0 0
  %459 = vmatprep.subr.bf16.mxu0 0
  %460 = vmatpush2.bf16.xpose.msra.mxu0 0
  %461 = vmatprep.subr.bf16.mxu0 0
  %462 = vmatpush2.bf16.xpose.msra.mxu0 0
  %463 = vmatprep.mubr.bf16.mxu0 0
  %464 = vmatmul.mubr.bf16.gmra.mxu0 %v426
  %v465 = vpop.f32.mrf.mxu0
  %v466 = vadd.f32 0.0, %v465
  %v467 = vpop.f32.mrf.mxu0
  %v468 = vpop.f32.mrf.mxu0
  %v469 = vpop.f32.mrf.mxu0
  %470 = vdwg.mxu0
  %v471 = vmul.f32 %v466, 0.125
  %s472 = scalar_lea.vmem %s1, 16
  %v473 = vld [vmem:[%s472] sm:$0xff]
  %v474 = vadd.f32 %v471, %v473
  %v475 = vsel %vm246, %v474, -inf
  %476 = vmax.xlane.f32.xlu0 %v475
  %v477 = vpop.xlane.xlu0 %476
  %v478 = vsub.f32 %v474, %v477
  %v479 = vmul.f32 %v478, 1.442695
  %v480 = vpow.pop %v479
  %v481 = vsel %vm246, %v480, 0.0
  %482 = vadd.xlane.f32.xlu0 %v481
  %v483 = vpop.xlane.xlu0 %482
  %v484 = vrcp.pop %v483
  %v485 = vmul.f32 %v480, %v484
  %v486 = vpack.c.bf16 %v485, %v485
  %487 = vrot.lane.b32.xlu0 %v192, 96
  %v488 = vpop.permute.xlu0 %487
  %v490 = vsel %vm246, %v486, 0
  %v493 = vsel %vm262, %v488, 0
  %495 = vmatprep.subr.bf16.mxu0 0
  %496 = vmatpush1.bf16.msra.mxu0 0
  %497 = vmatprep.subr.bf16.mxu0 0
  %498 = vmatpush1.bf16.msra.mxu0 0
  %499 = vmatprep.subr.bf16.mxu0 0
  %500 = vmatpush1.bf16.msra.mxu0 0
  %501 = vmatprep.subr.bf16.mxu0 0
  %502 = vmatpush1.bf16.msra.mxu0 0
  %503 = vmatprep.subr.bf16.mxu0 0
  %504 = vmatpush1.bf16.msra.mxu0 0
  %505 = vmatprep.subr.bf16.mxu0 0
  %506 = vmatpush1.bf16.msra.mxu0 0
  %507 = vmatprep.subr.bf16.mxu0 0
  %508 = vmatpush1.bf16.msra.mxu0 0
  %509 = vmatprep.subr.bf16.mxu0 0
  %510 = vmatpush1.bf16.msra.mxu0 %v493
  %511 = vmatprep.subr.bf16.mxu0 0
  %512 = vmatpush2.bf16.msra.mxu0 0
  %513 = vmatprep.subr.bf16.mxu0 0
  %514 = vmatpush2.bf16.msra.mxu0 0
  %515 = vmatprep.subr.bf16.mxu0 0
  %516 = vmatpush2.bf16.msra.mxu0 0
  %517 = vmatprep.subr.bf16.mxu0 0
  %518 = vmatpush2.bf16.msra.mxu0 0
  %519 = vmatprep.subr.bf16.mxu0 0
  %520 = vmatpush2.bf16.msra.mxu0 0
  %521 = vmatprep.subr.bf16.mxu0 0
  %522 = vmatpush2.bf16.msra.mxu0 0
  %523 = vmatprep.subr.bf16.mxu0 0
  %524 = vmatpush2.bf16.msra.mxu0 0
  %525 = vmatprep.subr.bf16.mxu0 0
  %526 = vmatpush2.bf16.msra.mxu0 0
  %527 = vmatprep.mubr.bf16.mxu0 0
  %528 = vmatmul.mubr.bf16.gmra.mxu0 %v490
  %v529 = vpop.f32.mrf.mxu0
  %v530 = vadd.f32 0.0, %v529
  %v531 = vpop.f32.mrf.mxu0
  %v532 = vpop.f32.mrf.mxu0
  %v533 = vpop.f32.mrf.mxu0
  %534 = vdwg.mxu0
  %535 = vrot.lane.b32.xlu0 %v191, 80
  %v536 = vpop.permute.xlu0 %535
  %537 = vrot.lane.b32.xlu0 %v191, 16
  %v538 = vpop.permute.xlu0 %537
  %v540 = vsel %vm196, %v536, 0
  %v543 = vsel %vm196, %v538, 0
  %545 = vmatprep.subr.bf16.mxu0 0
  %546 = vmatpush1.bf16.xpose.msra.mxu0 0
  %547 = vmatprep.subr.bf16.mxu0 0
  %548 = vmatpush1.bf16.xpose.msra.mxu0 0
  %549 = vmatprep.subr.bf16.mxu0 0
  %550 = vmatpush1.bf16.xpose.msra.mxu0 0
  %551 = vmatprep.subr.bf16.mxu0 0
  %552 = vmatpush1.bf16.xpose.msra.mxu0 0
  %553 = vmatprep.subr.bf16.mxu0 0
  %554 = vmatpush1.bf16.xpose.msra.mxu0 0
  %555 = vmatprep.subr.bf16.mxu0 0
  %556 = vmatpush1.bf16.xpose.msra.mxu0 0
  %557 = vmatprep.subr.bf16.mxu0 0
  %558 = vmatpush1.bf16.xpose.msra.mxu0 0
  %559 = vmatprep.subr.bf16.mxu0 0
  %560 = vmatpush1.bf16.xpose.msra.mxu0 %v543
  %561 = vmatprep.subr.bf16.mxu0 0
  %562 = vmatpush2.bf16.xpose.msra.mxu0 0
  %563 = vmatprep.subr.bf16.mxu0 0
  %564 = vmatpush2.bf16.xpose.msra.mxu0 0
  %565 = vmatprep.subr.bf16.mxu0 0
  %566 = vmatpush2.bf16.xpose.msra.mxu0 0
  %567 = vmatprep.subr.bf16.mxu0 0
  %568 = vmatpush2.bf16.xpose.msra.mxu0 0
  %569 = vmatprep.subr.bf16.mxu0 0
  %570 = vmatpush2.bf16.xpose.msra.mxu0 0
  %571 = vmatprep.subr.bf16.mxu0 0
  %572 = vmatpush2.bf16.xpose.msra.mxu0 0
  %573 = vmatprep.subr.bf16.mxu0 0
  %574 = vmatpush2.bf16.xpose.msra.mxu0 0
  %575 = vmatprep.subr.bf16.mxu0 0
  %576 = vmatpush2.bf16.xpose.msra.mxu0 0
  %577 = vmatprep.mubr.bf16.mxu0 0
  %578 = vmatmul.mubr.bf16.gmra.mxu0 %v540
  %v579 = vpop.f32.mrf.mxu0
  %v580 = vadd.f32 0.0, %v579
  %v581 = vpop.f32.mrf.mxu0
  %v582 = vpop.f32.mrf.mxu0
  %v583 = vpop.f32.mrf.mxu0
  %584 = vdwg.mxu0
  %v585 = vmul.f32 %v580, 0.125
  %s586 = scalar_lea.vmem %s1, 24
  %v587 = vld [vmem:[%s586] sm:$0xff]
  %v588 = vadd.f32 %v585, %v587
  %v589 = vsel %vm246, %v588, -inf
  %590 = vmax.xlane.f32.xlu0 %v589
  %v591 = vpop.xlane.xlu0 %590
  %v592 = vsub.f32 %v588, %v591
  %v593 = vmul.f32 %v592, 1.442695
  %v594 = vpow.pop %v593
  %v595 = vsel %vm246, %v594, 0.0
  %596 = vadd.xlane.f32.xlu0 %v595
  %v597 = vpop.xlane.xlu0 %596
  %v598 = vrcp.pop %v597
  %v599 = vmul.f32 %v594, %v598
  %v600 = vpack.c.bf16 %v599, %v599
  %601 = vrot.lane.b32.xlu0 %v192, 80
  %v602 = vpop.permute.xlu0 %601
  %v604 = vsel %vm246, %v600, 0
  %v607 = vsel %vm262, %v602, 0
  %609 = vmatprep.subr.bf16.mxu0 0
  %610 = vmatpush1.bf16.msra.mxu0 0
  %611 = vmatprep.subr.bf16.mxu0 0
  %612 = vmatpush1.bf16.msra.mxu0 0
  %613 = vmatprep.subr.bf16.mxu0 0
  %614 = vmatpush1.bf16.msra.mxu0 0
  %615 = vmatprep.subr.bf16.mxu0 0
  %616 = vmatpush1.bf16.msra.mxu0 0
  %617 = vmatprep.subr.bf16.mxu0 0
  %618 = vmatpush1.bf16.msra.mxu0 0
  %619 = vmatprep.subr.bf16.mxu0 0
  %620 = vmatpush1.bf16.msra.mxu0 0
  %621 = vmatprep.subr.bf16.mxu0 0
  %622 = vmatpush1.bf16.msra.mxu0 0
  %623 = vmatprep.subr.bf16.mxu0 0
  %624 = vmatpush1.bf16.msra.mxu0 %v607
  %625 = vmatprep.subr.bf16.mxu0 0
  %626 = vmatpush2.bf16.msra.mxu0 0
  %627 = vmatprep.subr.bf16.mxu0 0
  %628 = vmatpush2.bf16.msra.mxu0 0
  %629 = vmatprep.subr.bf16.mxu0 0
  %630 = vmatpush2.bf16.msra.mxu0 0
  %631 = vmatprep.subr.bf16.mxu0 0
  %632 = vmatpush2.bf16.msra.mxu0 0
  %633 = vmatprep.subr.bf16.mxu0 0
  %634 = vmatpush2.bf16.msra.mxu0 0
  %635 = vmatprep.subr.bf16.mxu0 0
  %636 = vmatpush2.bf16.msra.mxu0 0
  %637 = vmatprep.subr.bf16.mxu0 0
  %638 = vmatpush2.bf16.msra.mxu0 0
  %639 = vmatprep.subr.bf16.mxu0 0
  %640 = vmatpush2.bf16.msra.mxu0 0
  %641 = vmatprep.mubr.bf16.mxu0 0
  %642 = vmatmul.mubr.bf16.gmra.mxu0 %v604
  %v643 = vpop.f32.mrf.mxu0
  %v644 = vadd.f32 0.0, %v643
  %v645 = vpop.f32.mrf.mxu0
  %v646 = vpop.f32.mrf.mxu0
  %v647 = vpop.f32.mrf.mxu0
  %648 = vdwg.mxu0
  %650 = vrot.lane.b32.xlu0 %v416, 16
  %v651 = vpop.permute.xlu0 %650
  %654 = vrot.lane.b32.xlu0 %v530, 32
  %v655 = vpop.permute.xlu0 %654
  %658 = vrot.lane.b32.xlu0 %v644, 48
  %v659 = vpop.permute.xlu0 %658
  %v661 = vsel %vm196, %v301, %v651
  %vm662 = vcmask 261120
  %v663 = vsel %vm662, %v661, %v655
  %vm664 = vcmask 392192
  %v665 = vsel %vm664, %v663, %v659
  %v666 = vrot.slane %v191, 4
  %667 = vrot.lane.b32.xlu0 %v666, 64
  %v668 = vpop.permute.xlu0 %667
  %v670 = vsel %vm196, %v666, 0
  %v673 = vsel %vm196, %v668, 0
  %675 = vmatprep.subr.bf16.mxu0 0
  %676 = vmatpush1.bf16.xpose.msra.mxu0 0
  %677 = vmatprep.subr.bf16.mxu0 0
  %678 = vmatpush1.bf16.xpose.msra.mxu0 0
  %679 = vmatprep.subr.bf16.mxu0 0
  %680 = vmatpush1.bf16.xpose.msra.mxu0 0
  %681 = vmatprep.subr.bf16.mxu0 0
  %682 = vmatpush1.bf16.xpose.msra.mxu0 0
  %683 = vmatprep.subr.bf16.mxu0 0
  %684 = vmatpush1.bf16.xpose.msra.mxu0 0
  %685 = vmatprep.subr.bf16.mxu0 0
  %686 = vmatpush1.bf16.xpose.msra.mxu0 0
  %687 = vmatprep.subr.bf16.mxu0 0
  %688 = vmatpush1.bf16.xpose.msra.mxu0 0
  %689 = vmatprep.subr.bf16.mxu0 0
  %690 = vmatpush1.bf16.xpose.msra.mxu0 %v673
  %691 = vmatprep.subr.bf16.mxu0 0
  %692 = vmatpush2.bf16.xpose.msra.mxu0 0
  %693 = vmatprep.subr.bf16.mxu0 0
  %694 = vmatpush2.bf16.xpose.msra.mxu0 0
  %695 = vmatprep.subr.bf16.mxu0 0
  %696 = vmatpush2.bf16.xpose.msra.mxu0 0
  %697 = vmatprep.subr.bf16.mxu0 0
  %698 = vmatpush2.bf16.xpose.msra.mxu0 0
  %699 = vmatprep.subr.bf16.mxu0 0
  %700 = vmatpush2.bf16.xpose.msra.mxu0 0
  %701 = vmatprep.subr.bf16.mxu0 0
  %702 = vmatpush2.bf16.xpose.msra.mxu0 0
  %703 = vmatprep.subr.bf16.mxu0 0
  %704 = vmatpush2.bf16.xpose.msra.mxu0 0
  %705 = vmatprep.subr.bf16.mxu0 0
  %706 = vmatpush2.bf16.xpose.msra.mxu0 0
  %707 = vmatprep.mubr.bf16.mxu0 0
  %708 = vmatmul.mubr.bf16.gmra.mxu0 %v670
  %v709 = vpop.f32.mrf.mxu0
  %v710 = vadd.f32 0.0, %v709
  %v711 = vpop.f32.mrf.mxu0
  %v712 = vpop.f32.mrf.mxu0
  %v713 = vpop.f32.mrf.mxu0
  %714 = vdwg.mxu0
  %v715 = vmul.f32 %v710, 0.125
  %s716 = scalar_lea.vmem %s1, 32
  %v717 = vld [vmem:[%s716] sm:$0xff]
  %v718 = vadd.f32 %v715, %v717
  %v719 = vsel %vm246, %v718, -inf
  %720 = vmax.xlane.f32.xlu0 %v719
  %v721 = vpop.xlane.xlu0 %720
  %v722 = vsub.f32 %v718, %v721
  %v723 = vmul.f32 %v722, 1.442695
  %v724 = vpow.pop %v723
  %v725 = vsel %vm246, %v724, 0.0
  %726 = vadd.xlane.f32.xlu0 %v725
  %v727 = vpop.xlane.xlu0 %726
  %v728 = vrcp.pop %v727
  %v729 = vmul.f32 %v724, %v728
  %v730 = vpack.c.bf16 %v729, %v729
  %v731 = vrot.slane %v192, 4
  %v733 = vsel %vm246, %v730, 0
  %v736 = vsel %vm262, %v731, 0
  %738 = vmatprep.subr.bf16.mxu0 0
  %739 = vmatpush1.bf16.msra.mxu0 0
  %740 = vmatprep.subr.bf16.mxu0 0
  %741 = vmatpush1.bf16.msra.mxu0 0
  %742 = vmatprep.subr.bf16.mxu0 0
  %743 = vmatpush1.bf16.msra.mxu0 0
  %744 = vmatprep.subr.bf16.mxu0 0
  %745 = vmatpush1.bf16.msra.mxu0 0
  %746 = vmatprep.subr.bf16.mxu0 0
  %747 = vmatpush1.bf16.msra.mxu0 0
  %748 = vmatprep.subr.bf16.mxu0 0
  %749 = vmatpush1.bf16.msra.mxu0 0
  %750 = vmatprep.subr.bf16.mxu0 0
  %751 = vmatpush1.bf16.msra.mxu0 0
  %752 = vmatprep.subr.bf16.mxu0 0
  %753 = vmatpush1.bf16.msra.mxu0 %v736
  %754 = vmatprep.subr.bf16.mxu0 0
  %755 = vmatpush2.bf16.msra.mxu0 0
  %756 = vmatprep.subr.bf16.mxu0 0
  %757 = vmatpush2.bf16.msra.mxu0 0
  %758 = vmatprep.subr.bf16.mxu0 0
  %759 = vmatpush2.bf16.msra.mxu0 0
  %760 = vmatprep.subr.bf16.mxu0 0
  %761 = vmatpush2.bf16.msra.mxu0 0
  %762 = vmatprep.subr.bf16.mxu0 0
  %763 = vmatpush2.bf16.msra.mxu0 0
  %764 = vmatprep.subr.bf16.mxu0 0
  %765 = vmatpush2.bf16.msra.mxu0 0
  %766 = vmatprep.subr.bf16.mxu0 0
  %767 = vmatpush2.bf16.msra.mxu0 0
  %768 = vmatprep.subr.bf16.mxu0 0
  %769 = vmatpush2.bf16.msra.mxu0 0
  %770 = vmatprep.mubr.bf16.mxu0 0
  %771 = vmatmul.mubr.bf16.gmra.mxu0 %v733
  %v772 = vpop.f32.mrf.mxu0
  %v773 = vadd.f32 0.0, %v772
  %v774 = vpop.f32.mrf.mxu0
  %v775 = vpop.f32.mrf.mxu0
  %v776 = vpop.f32.mrf.mxu0
  %777 = vdwg.mxu0
  %778 = vrot.lane.b32.xlu0 %v666, 112
  %v779 = vpop.permute.xlu0 %778
  %780 = vrot.lane.b32.xlu0 %v666, 48
  %v781 = vpop.permute.xlu0 %780
  %v783 = vsel %vm196, %v779, 0
  %v786 = vsel %vm196, %v781, 0
  %788 = vmatprep.subr.bf16.mxu0 0
  %789 = vmatpush1.bf16.xpose.msra.mxu0 0
  %790 = vmatprep.subr.bf16.mxu0 0
  %791 = vmatpush1.bf16.xpose.msra.mxu0 0
  %792 = vmatprep.subr.bf16.mxu0 0
  %793 = vmatpush1.bf16.xpose.msra.mxu0 0
  %794 = vmatprep.subr.bf16.mxu0 0
  %795 = vmatpush1.bf16.xpose.msra.mxu0 0
  %796 = vmatprep.subr.bf16.mxu0 0
  %797 = vmatpush1.bf16.xpose.msra.mxu0 0
  %798 = vmatprep.subr.bf16.mxu0 0
  %799 = vmatpush1.bf16.xpose.msra.mxu0 0
  %800 = vmatprep.subr.bf16.mxu0 0
  %801 = vmatpush1.bf16.xpose.msra.mxu0 0
  %802 = vmatprep.subr.bf16.mxu0 0
  %803 = vmatpush1.bf16.xpose.msra.mxu0 %v786
  %804 = vmatprep.subr.bf16.mxu0 0
  %805 = vmatpush2.bf16.xpose.msra.mxu0 0
  %806 = vmatprep.subr.bf16.mxu0 0
  %807 = vmatpush2.bf16.xpose.msra.mxu0 0
  %808 = vmatprep.subr.bf16.mxu0 0
  %809 = vmatpush2.bf16.xpose.msra.mxu0 0
  %810 = vmatprep.subr.bf16.mxu0 0
  %811 = vmatpush2.bf16.xpose.msra.mxu0 0
  %812 = vmatprep.subr.bf16.mxu0 0
  %813 = vmatpush2.bf16.xpose.msra.mxu0 0
  %814 = vmatprep.subr.bf16.mxu0 0
  %815 = vmatpush2.bf16.xpose.msra.mxu0 0
  %816 = vmatprep.subr.bf16.mxu0 0
  %817 = vmatpush2.bf16.xpose.msra.mxu0 0
  %818 = vmatprep.subr.bf16.mxu0 0
  %819 = vmatpush2.bf16.xpose.msra.mxu0 0
  %820 = vmatprep.mubr.bf16.mxu0 0
  %821 = vmatmul.mubr.bf16.gmra.mxu0 %v783
  %v822 = vpop.f32.mrf.mxu0
  %v823 = vadd.f32 0.0, %v822
  %v824 = vpop.f32.mrf.mxu0
  %v825 = vpop.f32.mrf.mxu0
  %v826 = vpop.f32.mrf.mxu0
  %827 = vdwg.mxu0
  %v828 = vmul.f32 %v823, 0.125
  %s829 = scalar_lea.vmem %s1, 40
  %v830 = vld [vmem:[%s829] sm:$0xff]
  %v831 = vadd.f32 %v828, %v830
  %v832 = vsel %vm246, %v831, -inf
  %833 = vmax.xlane.f32.xlu0 %v832
  %v834 = vpop.xlane.xlu0 %833
  %v835 = vsub.f32 %v831, %v834
  %v836 = vmul.f32 %v835, 1.442695
  %v837 = vpow.pop %v836
  %v838 = vsel %vm246, %v837, 0.0
  %839 = vadd.xlane.f32.xlu0 %v838
  %v840 = vpop.xlane.xlu0 %839
  %v841 = vrcp.pop %v840
  %v842 = vmul.f32 %v837, %v841
  %v843 = vpack.c.bf16 %v842, %v842
  %844 = vrot.lane.b32.xlu0 %v731, 112
  %v845 = vpop.permute.xlu0 %844
  %v847 = vsel %vm246, %v843, 0
  %v850 = vsel %vm262, %v845, 0
  %852 = vmatprep.subr.bf16.mxu0 0
  %853 = vmatpush1.bf16.msra.mxu0 0
  %854 = vmatprep.subr.bf16.mxu0 0
  %855 = vmatpush1.bf16.msra.mxu0 0
  %856 = vmatprep.subr.bf16.mxu0 0
  %857 = vmatpush1.bf16.msra.mxu0 0
  %858 = vmatprep.subr.bf16.mxu0 0
  %859 = vmatpush1.bf16.msra.mxu0 0
  %860 = vmatprep.subr.bf16.mxu0 0
  %861 = vmatpush1.bf16.msra.mxu0 0
  %862 = vmatprep.subr.bf16.mxu0 0
  %863 = vmatpush1.bf16.msra.mxu0 0
  %864 = vmatprep.subr.bf16.mxu0 0
  %865 = vmatpush1.bf16.msra.mxu0 0
  %866 = vmatprep.subr.bf16.mxu0 0
  %867 = vmatpush1.bf16.msra.mxu0 %v850
  %868 = vmatprep.subr.bf16.mxu0 0
  %869 = vmatpush2.bf16.msra.mxu0 0
  %870 = vmatprep.subr.bf16.mxu0 0
  %871 = vmatpush2.bf16.msra.mxu0 0
  %872 = vmatprep.subr.bf16.mxu0 0
  %873 = vmatpush2.bf16.msra.mxu0 0
  %874 = vmatprep.subr.bf16.mxu0 0
  %875 = vmatpush2.bf16.msra.mxu0 0
  %876 = vmatprep.subr.bf16.mxu0 0
  %877 = vmatpush2.bf16.msra.mxu0 0
  %878 = vmatprep.subr.bf16.mxu0 0
  %879 = vmatpush2.bf16.msra.mxu0 0
  %880 = vmatprep.subr.bf16.mxu0 0
  %881 = vmatpush2.bf16.msra.mxu0 0
  %882 = vmatprep.subr.bf16.mxu0 0
  %883 = vmatpush2.bf16.msra.mxu0 0
  %884 = vmatprep.mubr.bf16.mxu0 0
  %885 = vmatmul.mubr.bf16.gmra.mxu0 %v847
  %v886 = vpop.f32.mrf.mxu0
  %v887 = vadd.f32 0.0, %v886
  %v888 = vpop.f32.mrf.mxu0
  %v889 = vpop.f32.mrf.mxu0
  %v890 = vpop.f32.mrf.mxu0
  %891 = vdwg.mxu0
  %892 = vrot.lane.b32.xlu0 %v666, 96
  %v893 = vpop.permute.xlu0 %892
  %894 = vrot.lane.b32.xlu0 %v666, 32
  %v895 = vpop.permute.xlu0 %894
  %v897 = vsel %vm196, %v893, 0
  %v900 = vsel %vm196, %v895, 0
  %902 = vmatprep.subr.bf16.mxu0 0
  %903 = vmatpush1.bf16.xpose.msra.mxu0 0
  %904 = vmatprep.subr.bf16.mxu0 0
  %905 = vmatpush1.bf16.xpose.msra.mxu0 0
  %906 = vmatprep.subr.bf16.mxu0 0
  %907 = vmatpush1.bf16.xpose.msra.mxu0 0
  %908 = vmatprep.subr.bf16.mxu0 0
  %909 = vmatpush1.bf16.xpose.msra.mxu0 0
  %910 = vmatprep.subr.bf16.mxu0 0
  %911 = vmatpush1.bf16.xpose.msra.mxu0 0
  %912 = vmatprep.subr.bf16.mxu0 0
  %913 = vmatpush1.bf16.xpose.msra.mxu0 0
  %914 = vmatprep.subr.bf16.mxu0 0
  %915 = vmatpush1.bf16.xpose.msra.mxu0 0
  %916 = vmatprep.subr.bf16.mxu0 0
  %917 = vmatpush1.bf16.xpose.msra.mxu0 %v900
  %918 = vmatprep.subr.bf16.mxu0 0
  %919 = vmatpush2.bf16.xpose.msra.mxu0 0
  %920 = vmatprep.subr.bf16.mxu0 0
  %921 = vmatpush2.bf16.xpose.msra.mxu0 0
  %922 = vmatprep.subr.bf16.mxu0 0
  %923 = vmatpush2.bf16.xpose.msra.mxu0 0
  %924 = vmatprep.subr.bf16.mxu0 0
  %925 = vmatpush2.bf16.xpose.msra.mxu0 0
  %926 = vmatprep.subr.bf16.mxu0 0
  %927 = vmatpush2.bf16.xpose.msra.mxu0 0
  %928 = vmatprep.subr.bf16.mxu0 0
  %929 = vmatpush2.bf16.xpose.msra.mxu0 0
  %930 = vmatprep.subr.bf16.mxu0 0
  %931 = vmatpush2.bf16.xpose.msra.mxu0 0
  %932 = vmatprep.subr.bf16.mxu0 0
  %933 = vmatpush2.bf16.xpose.msra.mxu0 0
  %934 = vmatprep.mubr.bf16.mxu0 0
  %935 = vmatmul.mubr.bf16.gmra.mxu0 %v897
  %v936 = vpop.f32.mrf.mxu0
  %v937 = vadd.f32 0.0, %v936
  %v938 = vpop.f32.mrf.mxu0
  %v939 = vpop.f32.mrf.mxu0
  %v940 = vpop.f32.mrf.mxu0
  %941 = vdwg.mxu0
  %v942 = vmul.f32 %v937, 0.125
  %s943 = scalar_lea.vmem %s1, 48
  %v944 = vld [vmem:[%s943] sm:$0xff]
  %v945 = vadd.f32 %v942, %v944
  %v946 = vsel %vm246, %v945, -inf
  %947 = vmax.xlane.f32.xlu0 %v946
  %v948 = vpop.xlane.xlu0 %947
  %v949 = vsub.f32 %v945, %v948
  %v950 = vmul.f32 %v949, 1.442695
  %v951 = vpow.pop %v950
  %v952 = vsel %vm246, %v951, 0.0
  %953 = vadd.xlane.f32.xlu0 %v952
  %v954 = vpop.xlane.xlu0 %953
  %v955 = vrcp.pop %v954
  %v956 = vmul.f32 %v951, %v955
  %v957 = vpack.c.bf16 %v956, %v956
  %958 = vrot.lane.b32.xlu0 %v731, 96
  %v959 = vpop.permute.xlu0 %958
  %v961 = vsel %vm246, %v957, 0
  %v964 = vsel %vm262, %v959, 0
  %966 = vmatprep.subr.bf16.mxu0 0
  %967 = vmatpush1.bf16.msra.mxu0 0
  %968 = vmatprep.subr.bf16.mxu0 0
  %969 = vmatpush1.bf16.msra.mxu0 0
  %970 = vmatprep.subr.bf16.mxu0 0
  %971 = vmatpush1.bf16.msra.mxu0 0
  %972 = vmatprep.subr.bf16.mxu0 0
  %973 = vmatpush1.bf16.msra.mxu0 0
  %974 = vmatprep.subr.bf16.mxu0 0
  %975 = vmatpush1.bf16.msra.mxu0 0
  %976 = vmatprep.subr.bf16.mxu0 0
  %977 = vmatpush1.bf16.msra.mxu0 0
  %978 = vmatprep.subr.bf16.mxu0 0
  %979 = vmatpush1.bf16.msra.mxu0 0
  %980 = vmatprep.subr.bf16.mxu0 0
  %981 = vmatpush1.bf16.msra.mxu0 %v964
  %982 = vmatprep.subr.bf16.mxu0 0
  %983 = vmatpush2.bf16.msra.mxu0 0
  %984 = vmatprep.subr.bf16.mxu0 0
  %985 = vmatpush2.bf16.msra.mxu0 0
  %986 = vmatprep.subr.bf16.mxu0 0
  %987 = vmatpush2.bf16.msra.mxu0 0
  %988 = vmatprep.subr.bf16.mxu0 0
  %989 = vmatpush2.bf16.msra.mxu0 0
  %990 = vmatprep.subr.bf16.mxu0 0
  %991 = vmatpush2.bf16.msra.mxu0 0
  %992 = vmatprep.subr.bf16.mxu0 0
  %993 = vmatpush2.bf16.msra.mxu0 0
  %994 = vmatprep.subr.bf16.mxu0 0
  %995 = vmatpush2.bf16.msra.mxu0 0
  %996 = vmatprep.subr.bf16.mxu0 0
  %997 = vmatpush2.bf16.msra.mxu0 0
  %998 = vmatprep.mubr.bf16.mxu0 0
  %999 = vmatmul.mubr.bf16.gmra.mxu0 %v961
  %v1000 = vpop.f32.mrf.mxu0
  %v1001 = vadd.f32 0.0, %v1000
  %v1002 = vpop.f32.mrf.mxu0
  %v1003 = vpop.f32.mrf.mxu0
  %v1004 = vpop.f32.mrf.mxu0
  %1005 = vdwg.mxu0
  %1006 = vrot.lane.b32.xlu0 %v666, 80
  %v1007 = vpop.permute.xlu0 %1006
  %1008 = vrot.lane.b32.xlu0 %v666, 16
  %v1009 = vpop.permute.xlu0 %1008
  %v1011 = vsel %vm196, %v1007, 0
  %v1014 = vsel %vm196, %v1009, 0
  %1016 = vmatprep.subr.bf16.mxu0 0
  %1017 = vmatpush1.bf16.xpose.msra.mxu0 0
  %1018 = vmatprep.subr.bf16.mxu0 0
  %1019 = vmatpush1.bf16.xpose.msra.mxu0 0
  %1020 = vmatprep.subr.bf16.mxu0 0
  %1021 = vmatpush1.bf16.xpose.msra.mxu0 0
  %1022 = vmatprep.subr.bf16.mxu0 0
  %1023 = vmatpush1.bf16.xpose.msra.mxu0 0
  %1024 = vmatprep.subr.bf16.mxu0 0
  %1025 = vmatpush1.bf16.xpose.msra.mxu0 0
  %1026 = vmatprep.subr.bf16.mxu0 0
  %1027 = vmatpush1.bf16.xpose.msra.mxu0 0
  %1028 = vmatprep.subr.bf16.mxu0 0
  %1029 = vmatpush1.bf16.xpose.msra.mxu0 0
  %1030 = vmatprep.subr.bf16.mxu0 0
  %1031 = vmatpush1.bf16.xpose.msra.mxu0 %v1014
  %1032 = vmatprep.subr.bf16.mxu0 0
  %1033 = vmatpush2.bf16.xpose.msra.mxu0 0
  %1034 = vmatprep.subr.bf16.mxu0 0
  %1035 = vmatpush2.bf16.xpose.msra.mxu0 0
  %1036 = vmatprep.subr.bf16.mxu0 0
  %1037 = vmatpush2.bf16.xpose.msra.mxu0 0
  %1038 = vmatprep.subr.bf16.mxu0 0
  %1039 = vmatpush2.bf16.xpose.msra.mxu0 0
  %1040 = vmatprep.subr.bf16.mxu0 0
  %1041 = vmatpush2.bf16.xpose.msra.mxu0 0
  %1042 = vmatprep.subr.bf16.mxu0 0
  %1043 = vmatpush2.bf16.xpose.msra.mxu0 0
  %1044 = vmatprep.subr.bf16.mxu0 0
  %1045 = vmatpush2.bf16.xpose.msra.mxu0 0
  %1046 = vmatprep.subr.bf16.mxu0 0
  %1047 = vmatpush2.bf16.xpose.msra.mxu0 0
  %1048 = vmatprep.mubr.bf16.mxu0 0
  %1049 = vmatmul.mubr.bf16.gmra.mxu0 %v1011
  %v1050 = vpop.f32.mrf.mxu0
  %v1051 = vadd.f32 0.0, %v1050
  %v1052 = vpop.f32.mrf.mxu0
  %v1053 = vpop.f32.mrf.mxu0
  %v1054 = vpop.f32.mrf.mxu0
  %1055 = vdwg.mxu0
  %v1056 = vmul.f32 %v1051, 0.125
  %s1057 = scalar_lea.vmem %s1, 56
  %v1058 = vld [vmem:[%s1057] sm:$0xff]
  %v1059 = vadd.f32 %v1056, %v1058
  %v1060 = vsel %vm246, %v1059, -inf
  %1061 = vmax.xlane.f32.xlu0 %v1060
  %v1062 = vpop.xlane.xlu0 %1061
  %v1063 = vsub.f32 %v1059, %v1062
  %v1064 = vmul.f32 %v1063, 1.442695
  %v1065 = vpow.pop %v1064
  %v1066 = vsel %vm246, %v1065, 0.0
  %1067 = vadd.xlane.f32.xlu0 %v1066
  %v1068 = vpop.xlane.xlu0 %1067
  %v1069 = vrcp.pop %v1068
  %v1070 = vmul.f32 %v1065, %v1069
  %v1071 = vpack.c.bf16 %v1070, %v1070
  %1072 = vrot.lane.b32.xlu0 %v731, 80
  %v1073 = vpop.permute.xlu0 %1072
  %v1075 = vsel %vm246, %v1071, 0
  %v1078 = vsel %vm262, %v1073, 0
  %1080 = vmatprep.subr.bf16.mxu0 0
  %1081 = vmatpush1.bf16.msra.mxu0 0
  %1082 = vmatprep.subr.bf16.mxu0 0
  %1083 = vmatpush1.bf16.msra.mxu0 0
  %1084 = vmatprep.subr.bf16.mxu0 0
  %1085 = vmatpush1.bf16.msra.mxu0 0
  %1086 = vmatprep.subr.bf16.mxu0 0
  %1087 = vmatpush1.bf16.msra.mxu0 0
  %1088 = vmatprep.subr.bf16.mxu0 0
  %1089 = vmatpush1.bf16.msra.mxu0 0
  %1090 = vmatprep.subr.bf16.mxu0 0
  %1091 = vmatpush1.bf16.msra.mxu0 0
  %1092 = vmatprep.subr.bf16.mxu0 0
  %1093 = vmatpush1.bf16.msra.mxu0 0
  %1094 = vmatprep.subr.bf16.mxu0 0
  %1095 = vmatpush1.bf16.msra.mxu0 %v1078
  %1096 = vmatprep.subr.bf16.mxu0 0
  %1097 = vmatpush2.bf16.msra.mxu0 0
  %1098 = vmatprep.subr.bf16.mxu0 0
  %1099 = vmatpush2.bf16.msra.mxu0 0
  %1100 = vmatprep.subr.bf16.mxu0 0
  %1101 = vmatpush2.bf16.msra.mxu0 0
  %1102 = vmatprep.subr.bf16.mxu0 0
  %1103 = vmatpush2.bf16.msra.mxu0 0
  %1104 = vmatprep.subr.bf16.mxu0 0
  %1105 = vmatpush2.bf16.msra.mxu0 0
  %1106 = vmatprep.subr.bf16.mxu0 0
  %1107 = vmatpush2.bf16.msra.mxu0 0
  %1108 = vmatprep.subr.bf16.mxu0 0
  %1109 = vmatpush2.bf16.msra.mxu0 0
  %1110 = vmatprep.subr.bf16.mxu0 0
  %1111 = vmatpush2.bf16.msra.mxu0 0
  %1112 = vmatprep.mubr.bf16.mxu0 0
  %1113 = vmatmul.mubr.bf16.gmra.mxu0 %v1075
  %v1114 = vpop.f32.mrf.mxu0
  %v1115 = vadd.f32 0.0, %v1114
  %v1116 = vpop.f32.mrf.mxu0
  %v1117 = vpop.f32.mrf.mxu0
  %v1118 = vpop.f32.mrf.mxu0
  %1119 = vdwg.mxu0
  %1121 = vrot.lane.b32.xlu0 %v887, 16
  %v1122 = vpop.permute.xlu0 %1121
  %1125 = vrot.lane.b32.xlu0 %v1001, 32
  %v1126 = vpop.permute.xlu0 %1125
  %1129 = vrot.lane.b32.xlu0 %v1115, 48
  %v1130 = vpop.permute.xlu0 %1129
  %v1132 = vsel %vm196, %v773, %v1122
  %v1133 = vsel %vm662, %v1132, %v1126
  %v1134 = vsel %vm664, %v1133, %v1130
  %v1135 = vpack.c.bf16 %v1134, %v665
  %v1136 = vld [vmem:[%s5] sm:$0xf]
  %v1137 = vld [vmem:[%s5 + $0x4] sm:$0xf]
  %v1138 = vld [vmem:[%s5 + $0x8] sm:$0xf]
  %v1139 = vld [vmem:[%s5 + $0xc] sm:$0xf]
  %v1140 = vld [vmem:[%s5 + $0x10] sm:$0xf]
  %v1141 = vld [vmem:[%s5 + $0x14] sm:$0xf]
  %v1142 = vld [vmem:[%s5 + $0x18] sm:$0xf]
  %v1143 = vld [vmem:[%s5 + $0x1c] sm:$0xf]
  %v1152 = vunpack.c.l.b16 %v1136
  %v1153 = vunpack.c.l.b16 %v1137
  %v1154 = vunpack.c.l.b16 %v1138
  %v1155 = vunpack.c.l.b16 %v1139
  %v1156 = vunpack.c.l.b16 %v1140
  %v1157 = vunpack.c.l.b16 %v1141
  %v1158 = vunpack.c.l.b16 %v1142
  %v1159 = vunpack.c.l.b16 %v1143
  %v1160 = vpack.c.b16 %v1153, %v1152
  %v1161 = vpack.c.b16 %v1155, %v1154
  %v1162 = vpack.c.b16 %v1157, %v1156
  %v1163 = vpack.c.b16 %v1159, %v1158
  %v1169 = vsel %vm50, %v1135, 0
  %1171 = vmatprep.subr.bf16.mxu0 0
  %1172 = vmatpush1.bf16.msra.mxu0 0
  %1173 = vmatprep.subr.bf16.mxu0 0
  %1174 = vmatpush1.bf16.msra.mxu0 0
  %1175 = vmatprep.subr.bf16.mxu0 0
  %1176 = vmatpush1.bf16.msra.mxu0 0
  %1177 = vmatprep.subr.bf16.mxu0 0
  %1178 = vmatpush1.bf16.msra.mxu0 0
  %1179 = vmatprep.subr.bf16.mxu0 0
  %1180 = vmatpush1.bf16.msra.mxu0 %v1163
  %1181 = vmatprep.subr.bf16.mxu0 0
  %1182 = vmatpush1.bf16.msra.mxu0 %v1162
  %1183 = vmatprep.subr.bf16.mxu0 0
  %1184 = vmatpush1.bf16.msra.mxu0 %v1161
  %1185 = vmatprep.subr.bf16.mxu0 0
  %1186 = vmatpush1.bf16.msra.mxu0 %v1160
  %1187 = vmatprep.subr.bf16.mxu0 0
  %1188 = vmatpush2.bf16.msra.mxu0 0
  %1189 = vmatprep.subr.bf16.mxu0 0
  %1190 = vmatpush2.bf16.msra.mxu0 0
  %1191 = vmatprep.subr.bf16.mxu0 0
  %1192 = vmatpush2.bf16.msra.mxu0 0
  %1193 = vmatprep.subr.bf16.mxu0 0
  %1194 = vmatpush2.bf16.msra.mxu0 0
  %1195 = vmatprep.subr.bf16.mxu0 0
  %1196 = vmatpush2.bf16.msra.mxu0 0
  %1197 = vmatprep.subr.bf16.mxu0 0
  %1198 = vmatpush2.bf16.msra.mxu0 0
  %1199 = vmatprep.subr.bf16.mxu0 0
  %1200 = vmatpush2.bf16.msra.mxu0 0
  %1201 = vmatprep.subr.bf16.mxu0 0
  %1202 = vmatpush2.bf16.msra.mxu0 0
  %1203 = vmatprep.mubr.bf16.mxu0 0
  %1204 = vmatmul.mubr.bf16.gmra.mxu0 %v1169
  %v1205 = vpop.f32.mrf.mxu0
  %v1206 = vadd.f32 0.0, %v1205
  %v1207 = vpop.f32.mrf.mxu0
  %v1208 = vpop.f32.mrf.mxu0
  %v1209 = vadd.f32 0.0, %v1208
  %v1210 = vpop.f32.mrf.mxu0
  %1211 = vdwg.mxu0
  %v1212 = vadd.f32 %v48, %v1206
  %v1213 = vadd.f32 %v49, %v1209
  %v1214 = vsel %vm50, %v1212, 0.0
  %1215 = vadd.xlane.f32.xlu0 %v1214
  %v1216 = vpop.xlane.xlu0 %1215
  %v1217 = vsel %vm50, %v1213, 0.0
  %1218 = vadd.xlane.f32.xlu0 %v1217
  %v1219 = vpop.xlane.xlu0 %1218
  %v1220 = vmul.f32 %v1216, %v57
  %v1221 = vmul.f32 %v1219, %v57
  %v1222 = vsub.f32 %v1212, %v1220
  %v1223 = vsub.f32 %v1213, %v1221
  %v1224 = vmul.f32 %v1222, %v1222
  %v1225 = vmul.f32 %v1223, %v1223
  %v1226 = vsel %vm50, %v1224, 0.0
  %1227 = vadd.xlane.f32.xlu0 %v1226
  %v1228 = vpop.xlane.xlu0 %1227
  %v1229 = vsel %vm50, %v1225, 0.0
  %1230 = vadd.xlane.f32.xlu0 %v1229
  %v1231 = vpop.xlane.xlu0 %1230
  %v1232 = vmul.f32 %v1228, %v57
  %v1233 = vmul.f32 %v1231, %v57
  %v1234 = vadd.f32 %v1232, 1e-05
  %v1235 = vadd.f32 %v1233, 1e-05
  %v1236 = vrsqrt.pop %v1234
  %v1237 = vrsqrt.pop %v1235
  %v1238 = vmul.f32 %v1222, %v1236
  %v1239 = vmul.f32 %v1223, %v1237
  %v1240 = vld [vmem:[%s6] sm:$0x1]
  %v1242 = vlaneseq
  %v1243 = vshrl.u32 %v1242, 7
  %v1244 = vsub.s32 0, %v1243
  %v1245 = vrot.slane %v1240, %v1244
  %v1247 = vmul.f32 %v1238, %v1245
  %v1248 = vmul.f32 %v1239, %v1245
  %v1249 = vld [vmem:[%s7] sm:$0x1]
  %v1251 = vlaneseq
  %v1252 = vshrl.u32 %v1251, 7
  %v1253 = vsub.s32 0, %v1252
  %v1254 = vrot.slane %v1249, %v1253
  %v1256 = vadd.f32 %v1247, %v1254
  %v1257 = vadd.f32 %v1248, %v1254
  %v1258 = vpack.c.bf16 %v1257, %v1256
  %v1259 = vld [vmem:[%s8] sm:$0xf]
  %v1260 = vld [vmem:[%s8 + $0x4] sm:$0xf]
  %v1261 = vld [vmem:[%s8 + $0x8] sm:$0xf]
  %v1262 = vld [vmem:[%s8 + $0xc] sm:$0xf]
  %v1263 = vld [vmem:[%s8 + $0x10] sm:$0xf]
  %v1264 = vld [vmem:[%s8 + $0x14] sm:$0xf]
  %v1265 = vld [vmem:[%s8 + $0x18] sm:$0xf]
  %v1266 = vld [vmem:[%s8 + $0x1c] sm:$0xf]
  %v1267 = vld [vmem:[%s9] sm:$0x1]
  %v1269 = vlaneseq
  %v1270 = vshrl.u32 %v1269, 7
  %v1271 = vsub.s32 0, %v1270
  %v1272 = vrot.slane %v1267, %v1271
  %v1282 = vunpack.c.l.b16 %v1259
  %v1283 = vunpack.c.l.b16 %v1260
  %v1284 = vunpack.c.l.b16 %v1261
  %v1285 = vunpack.c.l.b16 %v1262
  %v1286 = vunpack.c.l.b16 %v1263
  %v1287 = vunpack.c.l.b16 %v1264
  %v1288 = vunpack.c.l.b16 %v1265
  %v1289 = vunpack.c.l.b16 %v1266
  %v1290 = vpack.c.b16 %v1283, %v1282
  %v1291 = vpack.c.b16 %v1285, %v1284
  %v1292 = vpack.c.b16 %v1287, %v1286
  %v1293 = vpack.c.b16 %v1289, %v1288
  %v1299 = vsel %vm50, %v1258, 0
  %1301 = vmatprep.subr.bf16.mxu0 0
  %1302 = vmatpush1.bf16.msra.mxu0 0
  %1303 = vmatprep.subr.bf16.mxu0 0
  %1304 = vmatpush1.bf16.msra.mxu0 0
  %1305 = vmatprep.subr.bf16.mxu0 0
  %1306 = vmatpush1.bf16.msra.mxu0 0
  %1307 = vmatprep.subr.bf16.mxu0 0
  %1308 = vmatpush1.bf16.msra.mxu0 0
  %1309 = vmatprep.subr.bf16.mxu0 0
  %1310 = vmatpush1.bf16.msra.mxu0 %v1293
  %1311 = vmatprep.subr.bf16.mxu0 0
  %1312 = vmatpush1.bf16.msra.mxu0 %v1292
  %1313 = vmatprep.subr.bf16.mxu0 0
  %1314 = vmatpush1.bf16.msra.mxu0 %v1291
  %1315 = vmatprep.subr.bf16.mxu0 0
  %1316 = vmatpush1.bf16.msra.mxu0 %v1290
  %1317 = vmatprep.subr.bf16.mxu0 0
  %1318 = vmatpush2.bf16.msra.mxu0 0
  %1319 = vmatprep.subr.bf16.mxu0 0
  %1320 = vmatpush2.bf16.msra.mxu0 0
  %1321 = vmatprep.subr.bf16.mxu0 0
  %1322 = vmatpush2.bf16.msra.mxu0 0
  %1323 = vmatprep.subr.bf16.mxu0 0
  %1324 = vmatpush2.bf16.msra.mxu0 0
  %1325 = vmatprep.subr.bf16.mxu0 0
  %1326 = vmatpush2.bf16.msra.mxu0 0
  %1327 = vmatprep.subr.bf16.mxu0 0
  %1328 = vmatpush2.bf16.msra.mxu0 0
  %1329 = vmatprep.subr.bf16.mxu0 0
  %1330 = vmatpush2.bf16.msra.mxu0 0
  %1331 = vmatprep.subr.bf16.mxu0 0
  %1332 = vmatpush2.bf16.msra.mxu0 0
  %1333 = vmatprep.mubr.bf16.mxu0 0
  %1334 = vmatmul.mubr.bf16.gmra.mxu0 %v1299
  %v1335 = vpop.f32.mrf.mxu0
  %v1336 = vadd.f32 %v1272, %v1335
  %v1337 = vpop.f32.mrf.mxu0
  %v1338 = vpop.f32.mrf.mxu0
  %v1339 = vadd.f32 %v1272, %v1338
  %v1340 = vpop.f32.mrf.mxu0
  %1341 = vdwg.mxu0
  %v1342 = vmax.f32 %v1336, 0.0
  %v1343 = vmax.f32 %v1339, 0.0
  %v1344 = vpack.c.bf16 %v1343, %v1342
  %v1345 = vld [vmem:[%s10] sm:$0xf]
  %v1346 = vld [vmem:[%s10 + $0x4] sm:$0xf]
  %v1347 = vld [vmem:[%s10 + $0x8] sm:$0xf]
  %v1348 = vld [vmem:[%s10 + $0xc] sm:$0xf]
  %v1349 = vld [vmem:[%s10 + $0x10] sm:$0xf]
  %v1350 = vld [vmem:[%s10 + $0x14] sm:$0xf]
  %v1351 = vld [vmem:[%s10 + $0x18] sm:$0xf]
  %v1352 = vld [vmem:[%s10 + $0x1c] sm:$0xf]
  %v1353 = vld [vmem:[%s11] sm:$0x1]
  %v1355 = vlaneseq
  %v1356 = vshrl.u32 %v1355, 7
  %v1357 = vsub.s32 0, %v1356
  %v1358 = vrot.slane %v1353, %v1357
  %v1368 = vunpack.c.l.b16 %v1345
  %v1369 = vunpack.c.l.b16 %v1346
  %v1370 = vunpack.c.l.b16 %v1347
  %v1371 = vunpack.c.l.b16 %v1348
  %v1372 = vunpack.c.l.b16 %v1349
  %v1373 = vunpack.c.l.b16 %v1350
  %v1374 = vunpack.c.l.b16 %v1351
  %v1375 = vunpack.c.l.b16 %v1352
  %v1376 = vpack.c.b16 %v1369, %v1368
  %v1377 = vpack.c.b16 %v1371, %v1370
  %v1378 = vpack.c.b16 %v1373, %v1372
  %v1379 = vpack.c.b16 %v1375, %v1374
  %v1385 = vsel %vm50, %v1344, 0
  %1387 = vmatprep.subr.bf16.mxu0 0
  %1388 = vmatpush1.bf16.msra.mxu0 0
  %1389 = vmatprep.subr.bf16.mxu0 0
  %1390 = vmatpush1.bf16.msra.mxu0 0
  %1391 = vmatprep.subr.bf16.mxu0 0
  %1392 = vmatpush1.bf16.msra.mxu0 0
  %1393 = vmatprep.subr.bf16.mxu0 0
  %1394 = vmatpush1.bf16.msra.mxu0 0
  %1395 = vmatprep.subr.bf16.mxu0 0
  %1396 = vmatpush1.bf16.msra.mxu0 %v1379
  %1397 = vmatprep.subr.bf16.mxu0 0
  %1398 = vmatpush1.bf16.msra.mxu0 %v1378
  %1399 = vmatprep.subr.bf16.mxu0 0
  %1400 = vmatpush1.bf16.msra.mxu0 %v1377
  %1401 = vmatprep.subr.bf16.mxu0 0
  %1402 = vmatpush1.bf16.msra.mxu0 %v1376
  %1403 = vmatprep.subr.bf16.mxu0 0
  %1404 = vmatpush2.bf16.msra.mxu0 0
  %1405 = vmatprep.subr.bf16.mxu0 0
  %1406 = vmatpush2.bf16.msra.mxu0 0
  %1407 = vmatprep.subr.bf16.mxu0 0
  %1408 = vmatpush2.bf16.msra.mxu0 0
  %1409 = vmatprep.subr.bf16.mxu0 0
  %1410 = vmatpush2.bf16.msra.mxu0 0
  %1411 = vmatprep.subr.bf16.mxu0 0
  %1412 = vmatpush2.bf16.msra.mxu0 0
  %1413 = vmatprep.subr.bf16.mxu0 0
  %1414 = vmatpush2.bf16.msra.mxu0 0
  %1415 = vmatprep.subr.bf16.mxu0 0
  %1416 = vmatpush2.bf16.msra.mxu0 0
  %1417 = vmatprep.subr.bf16.mxu0 0
  %1418 = vmatpush2.bf16.msra.mxu0 0
  %1419 = vmatprep.mubr.bf16.mxu0 0
  %1420 = vmatmul.mubr.bf16.gmra.mxu0 %v1385
  %v1421 = vpop.f32.mrf.mxu0
  %v1422 = vadd.f32 %v1358, %v1421
  %v1423 = vpop.f32.mrf.mxu0
  %v1424 = vpop.f32.mrf.mxu0
  %v1425 = vadd.f32 %v1358, %v1424
  %v1426 = vpop.f32.mrf.mxu0
  %1427 = vdwg.mxu0
  %v1428 = vadd.f32 %v1212, %v1422
  %v1429 = vadd.f32 %v1213, %v1425
  %v1430 = vsel %vm50, %v1428, 0.0
  %1431 = vadd.xlane.f32.xlu0 %v1430
  %v1432 = vpop.xlane.xlu0 %1431
  %v1433 = vsel %vm50, %v1429, 0.0
  %1434 = vadd.xlane.f32.xlu0 %v1433
  %v1435 = vpop.xlane.xlu0 %1434
  %v1436 = vmul.f32 %v1432, %v57
  %v1437 = vmul.f32 %v1435, %v57
  %v1438 = vsub.f32 %v1428, %v1436
  %v1439 = vsub.f32 %v1429, %v1437
  %v1440 = vmul.f32 %v1438, %v1438
  %v1441 = vmul.f32 %v1439, %v1439
  %v1442 = vsel %vm50, %v1440, 0.0
  %1443 = vadd.xlane.f32.xlu0 %v1442
  %v1444 = vpop.xlane.xlu0 %1443
  %v1445 = vsel %vm50, %v1441, 0.0
  %1446 = vadd.xlane.f32.xlu0 %v1445
  %v1447 = vpop.xlane.xlu0 %1446
  %v1448 = vmul.f32 %v1444, %v57
  %v1449 = vmul.f32 %v1447, %v57
  %v1450 = vadd.f32 %v1448, 1e-05
  %v1451 = vadd.f32 %v1449, 1e-05
  %v1452 = vrsqrt.pop %v1450
  %v1453 = vrsqrt.pop %v1451
  %v1454 = vmul.f32 %v1438, %v1452
  %v1455 = vmul.f32 %v1439, %v1453
  %v1456 = vld [vmem:[%s12] sm:$0x1]
  %v1458 = vlaneseq
  %v1459 = vshrl.u32 %v1458, 7
  %v1460 = vsub.s32 0, %v1459
  %v1461 = vrot.slane %v1456, %v1460
  %v1463 = vmul.f32 %v1454, %v1461
  %v1464 = vmul.f32 %v1455, %v1461
  %v1465 = vld [vmem:[%s13] sm:$0x1]
  %v1467 = vlaneseq
  %v1468 = vshrl.u32 %v1467, 7
  %v1469 = vsub.s32 0, %v1468
  %v1470 = vrot.slane %v1465, %v1469
  %v1472 = vadd.f32 %v1463, %v1470
  %v1473 = vadd.f32 %v1464, %v1470
  %1474 = vst.msk [vmem:[%s14] sm:$0xff] %vm50, %v1472
  %1475 = vst.msk [vmem:[%s14 + $0x8] sm:$0xff] %vm50, %v1473
  // Predicated region
  $region58: #{srn_head_forward.11} parent=0 // pred_check
    _
  $region59: #{srn_head_forward.11} parent=0 // pred_check_branch
    %1477 = sbr.rel (0) target = $region61
  $region60: #{srn_head_forward.11} parent=0 // pred_region
    _
  $region61: #{srn_head_forward.11} parent=0 // pred_fallthru
    _
  // Predicated region
  $region62: #{srn_head_forward.11} parent=0 // pred_check
    _
  $region63: #{srn_head_forward.11} parent=0 // pred_check_branch
    %1479 = sbr.rel (0) target = $region65
  $region64: #{srn_head_forward.11} parent=0 // pred_region
    _
  $region65: #{srn_head_forward.11} parent=0 // pred_fallthru
    _

// kernel: srn_head_forward.12
$region0: #{srn_head_forward.12}
  #allocation0 [shape = 'u32[]', space=smem, size = 0x4, offset = 0x4, fixed_abs, tag = 'smem constant byte address 0x4 - core index']
  #allocation1 [shape = 'u32[144,128]{1,0:T(1,128)}', space=vmem, size = 0x12000, scoped, tag = 'internal scratch']
  %s0 = inlined_call_operand.vmem [shape: f32[16,64], index: 0, kind: input, shape index: {}]
  %s1 = inlined_call_operand.vmem [shape: bf16[64,128], index: 1, kind: input, shape index: {}]
  %s2 = inlined_call_operand.hbm [shape: f32[16,128], index: 2, kind: output, shape index: {}]
  %s3 = sld [smem:[#allocation0]]
  $region18: #{srn_head_forward.12} parent=0
    _
  %s5 = ssub.s32 1, %s3
  %s6 = scalar_select 0, %s5, %s3
  $region1: #{srn_head_forward.12} parent=0
    #allocation2 [shape = 'u8[8192]{0}', space=vmem, size = 0x2000, scoped, tag = 'output window, operand 0, single buffered']
    #allocation3 [shape = 's32[1]{0}', space=sflag, size = 0x4, scoped, tag = 'scoped memory for srn_head_forward.12']
    %7 = vsyncpa [#allocation3], 0
    // Predicated region
    $region2: #{srn_head_forward.12} parent=1 // pred_check
      _
    $region3: #{srn_head_forward.12} parent=1 // pred_check_branch
      %9 = sbr.rel (0) target = $region5
    $region4: #{srn_head_forward.12} parent=1 // pred_region
      _
    $region5: #{srn_head_forward.12} parent=1 // pred_fallthru
      _
    // Predicated region
    $region6: #{srn_head_forward.12} parent=1 // pred_check
      _
    $region7: #{srn_head_forward.12} parent=1 // pred_check_branch
      %11 = sbr.rel (0) target = $region9
    $region8: #{srn_head_forward.12} parent=1 // pred_region
      _
    $region9: #{srn_head_forward.12} parent=1 // pred_fallthru
      _
    %v13 = vld [vmem:[%s0] sm:$0xff]
    %v14 = vld [vmem:[%s0 + $0x8] sm:$0xff]
    %v15 = vpack.c.bf16 %v14, %v13
    %v16 = vld [vmem:[%s1] sm:$0xf]
    %v17 = vld [vmem:[%s1 + $0x4] sm:$0xf]
    %v18 = vld [vmem:[%s1 + $0x8] sm:$0xf]
    %v19 = vld [vmem:[%s1 + $0xc] sm:$0xf]
    %v20 = vld [vmem:[%s1 + $0x10] sm:$0xf]
    %v21 = vld [vmem:[%s1 + $0x14] sm:$0xf]
    %v22 = vld [vmem:[%s1 + $0x18] sm:$0xf]
    %v23 = vld [vmem:[%s1 + $0x1c] sm:$0xf]
    %v32 = vunpack.c.l.b16 %v16
    %v33 = vunpack.c.l.b16 %v17
    %v34 = vunpack.c.l.b16 %v18
    %v35 = vunpack.c.l.b16 %v19
    %v36 = vunpack.c.l.b16 %v20
    %v37 = vunpack.c.l.b16 %v21
    %v38 = vunpack.c.l.b16 %v22
    %v39 = vunpack.c.l.b16 %v23
    %v40 = vpack.c.b16 %v33, %v32
    %v41 = vpack.c.b16 %v35, %v34
    %v42 = vpack.c.b16 %v37, %v36
    %v43 = vpack.c.b16 %v39, %v38
    %vm48 = vcmask 523264
    %v50 = vsel %vm48, %v15, 0
    %52 = vmatprep.subr.bf16.mxu0 0
    %53 = vmatpush1.bf16.msra.mxu0 0
    %54 = vmatprep.subr.bf16.mxu0 0
    %55 = vmatpush1.bf16.msra.mxu0 0
    %56 = vmatprep.subr.bf16.mxu0 0
    %57 = vmatpush1.bf16.msra.mxu0 0
    %58 = vmatprep.subr.bf16.mxu0 0
    %59 = vmatpush1.bf16.msra.mxu0 0
    %60 = vmatprep.subr.bf16.mxu0 0
    %61 = vmatpush1.bf16.msra.mxu0 %v43
    %62 = vmatprep.subr.bf16.mxu0 0
    %63 = vmatpush1.bf16.msra.mxu0 %v42
    %64 = vmatprep.subr.bf16.mxu0 0
    %65 = vmatpush1.bf16.msra.mxu0 %v41
    %66 = vmatprep.subr.bf16.mxu0 0
    %67 = vmatpush1.bf16.msra.mxu0 %v40
    %68 = vmatprep.subr.bf16.mxu0 0
    %69 = vmatpush2.bf16.msra.mxu0 0
    %70 = vmatprep.subr.bf16.mxu0 0
    %71 = vmatpush2.bf16.msra.mxu0 0
    %72 = vmatprep.subr.bf16.mxu0 0
    %73 = vmatpush2.bf16.msra.mxu0 0
    %74 = vmatprep.subr.bf16.mxu0 0
    %75 = vmatpush2.bf16.msra.mxu0 0
    %76 = vmatprep.subr.bf16.mxu0 0
    %77 = vmatpush2.bf16.msra.mxu0 0
    %78 = vmatprep.subr.bf16.mxu0 0
    %79 = vmatpush2.bf16.msra.mxu0 0
    %80 = vmatprep.subr.bf16.mxu0 0
    %81 = vmatpush2.bf16.msra.mxu0 0
    %82 = vmatprep.subr.bf16.mxu0 0
    %83 = vmatpush2.bf16.msra.mxu0 0
    %84 = vmatprep.mubr.bf16.mxu0 0
    %85 = vmatmul.mubr.bf16.gmra.mxu0 %v50
    %v86 = vpop.f32.mrf.mxu0
    %v87 = vadd.f32 0.0, %v86
    %v88 = vpop.f32.mrf.mxu0
    %v89 = vpop.f32.mrf.mxu0
    %v90 = vadd.f32 0.0, %v89
    %v91 = vpop.f32.mrf.mxu0
    %92 = vdwg.mxu0
    %93 = vst [vmem:[#allocation2] sm:$0xff] %v87
    %94 = vst [vmem:[#allocation2 + $0x8] sm:$0xff] %v90
    // Predicated region
    $region10: #{srn_head_forward.12} parent=1 // pred_check
      _
    $region11: #{srn_head_forward.12} parent=1 // pred_check_branch
      %96 = sbr.rel (0) target = $region13
    $region12: #{srn_head_forward.12} parent=1 // pred_region
      %s98 = ssub.s32 256, 256
      %99 = vsyncadd [#allocation3], %s98
      %s100 = sshll.u32 [#allocation2], 4
      %s101 = int_to_ptr.vmem [resolvable:$true] %s100
      %106 = dma.vmem_to_hbm [thread:$0]  %s101, 256, %s2, [#allocation3], 128, 128, 8
    $region13: #{srn_head_forward.12} parent=1 // pred_fallthru
      _
    // Predicated region
    $region14: #{srn_head_forward.12} parent=1 // pred_check
      _
    $region15: #{srn_head_forward.12} parent=1 // pred_check_branch
      %108 = sbr.rel (0) target = $region17
    $region16: #{srn_head_forward.12} parent=1 // pred_region
      %109 = dma.done [#allocation3], 256
    $region17: #{srn_head_forward.12} parent=1 // pred_fallthru
      _
    %110 = vsyncpa [#allocation3], 1

</llo_original>
